<compile_context>
chip_gen: v5e
topology: v5e:2x2
jax: 0.10.0
libtpu: 0.0.40
codegen_flags: <defaults>
</compile_context>

<pallas_src>
import functools

import jax
import jax.numpy as jnp
from jax.experimental import pallas as pl
from jax.experimental.pallas import tpu as pltpu

INPUT_DIM = 4
LATENT_DIM = 10
LANE = 128          # TPU lane width; narrow dims are zero-padded up to this.
DEC_SHIFT = 16      # decoded values live at columns [DEC_SHIFT, DEC_SHIFT+4)
                    # of the packed output slab (encoded at columns [0, 10)).

# (in, out) for each Linear, in forward order (PyTorch module spec).
ENC_DIMS = [(INPUT_DIM, 512), (512, 256), (256, 128), (128, 64), (64, LATENT_DIM)]
DEC_DIMS = [(LATENT_DIM, 64), (64, 128), (128, 256), (256, INPUT_DIM)]
N_ENC = len(ENC_DIMS)
N_DEC = len(DEC_DIMS)
N_LAYERS = N_ENC + N_DEC


def _leaky_relu(h):
    # LeakyReLU(0.1); max form is exact for slope < 1. Stays in h's dtype.
    return jnp.maximum(h, h * jnp.asarray(0.1, h.dtype))


def _ae_kernel(x_ref, *refs, act_dtype):
    # refs = [w1, b1, ..., w9, b9, packed_out]
    param_refs = refs[: 2 * N_LAYERS]
    out_ref = refs[2 * N_LAYERS]

    def linear(h, w_ref, b_ref):
        # bf16 operands, f32 MXU accumulation, f32 bias-add, single rounding
        # to the activation dtype per layer.
        y = jnp.dot(h.astype(jnp.bfloat16), w_ref[...],
                    preferred_element_type=jnp.float32)
        return (y + b_ref[...]).astype(act_dtype)

    h = x_ref[...].astype(act_dtype)           # (tile, 128), cols >= 4 are 0

    # Encoder: Linear -> LeakyReLU (x4), final Linear without activation.
    for layer in range(N_ENC):
        h = linear(h, param_refs[2 * layer], param_refs[2 * layer + 1])
        if layer != N_ENC - 1:
            h = _leaky_relu(h)
    enc = h   # (tile, 128): encoded in cols [0,10), rest exactly 0

    # Decoder: Linear -> LeakyReLU (x3), final Linear without activation.
    for layer in range(N_DEC):
        j = 2 * (N_ENC + layer)
        h = linear(h, param_refs[j], param_refs[j + 1])
        if layer != N_DEC - 1:
            h = _leaky_relu(h)
    dec = h   # (tile, 128): decoded in cols [16,20) (shifted weights), rest 0

    # Disjoint non-zero columns -> a plain add packs both results into one
    # lane-dense slab; single bf16 writeback (4x less HBM than 2 f32 slabs).
    out_ref[...] = (enc + dec).astype(out_ref.dtype)


def init_params(key):
    """Init mimicking PyTorch nn.Linear default U(-1/sqrt(in), 1/sqrt(in)).

    Weights stored as (in, out) = PyTorch W.T so the kernel computes
    y = x @ W + b.  Biases are (1, out).
    """
    params = []
    for (din, dout) in ENC_DIMS + DEC_DIMS:
        key, kw, kb = jax.random.split(key, 3)
        bound = 1.0 / jnp.sqrt(jnp.float32(din))
        w = jax.random.uniform(kw, (din, dout), jnp.float32, -bound, bound)
        b = jax.random.uniform(kb, (1, dout), jnp.float32, -bound, bound)
        params.append((w, b))
    return params


def _prep_params(params):
    """Zero-pad the lane-narrow layers to 128 and cast weights to bf16.

    - layer 0 (encoder in 4):   pad input rows 4 -> 128 (x is padded too)
    - last encoder (out 10):    pad output cols 10 -> 128 (cols [0,10) real)
    - first decoder (in 10):    pad input rows 10 -> 128
    - last decoder (out 4):     pad to 128 with DEC_SHIFT leading zero cols,
                                so decoded lands at cols [16,20) of the slab.
    All padding is exact zeros, so results match the unpadded math.
    """
    flat = []
    for idx, (w, b) in enumerate(params):
        if idx == N_ENC - 1:                       # encoder head: out 10 -> 128
            w = jnp.pad(w, ((0, 0), (0, LANE - LATENT_DIM)))
            b = jnp.pad(b, ((0, 0), (0, LANE - LATENT_DIM)))
        if idx == N_LAYERS - 1:                    # decoder head: out 4 -> 128, shifted
            w = jnp.pad(w, ((0, 0), (DEC_SHIFT, LANE - INPUT_DIM - DEC_SHIFT)))
            b = jnp.pad(b, ((0, 0), (DEC_SHIFT, LANE - INPUT_DIM - DEC_SHIFT)))
        if idx == 0:                               # first encoder: in 4 -> 128
            w = jnp.pad(w, ((0, LANE - INPUT_DIM), (0, 0)))
        if idx == N_ENC:                           # first decoder: in 10 -> 128
            w = jnp.pad(w, ((0, LANE - LATENT_DIM), (0, 0)))
        flat.append(w.astype(jnp.bfloat16))
        flat.append(b.astype(jnp.float32))
    return flat


def _round_up(n, m):
    return ((n + m - 1) // m) * m


@functools.partial(jax.jit, static_argnames=("batch_tile", "act_dtype"))
def _ae_pallas(x_padded, flat_params, batch_tile, act_dtype):
    B_pad = x_padded.shape[0]
    grid_b = B_pad // batch_tile

    # x / output tiled over batch (lane-dense (tile, 128) blocks); weights &
    # biases use their full shape with a constant index_map -> fetched once
    # and resident in VMEM (~0.65 MiB of bf16 total).
    x_spec = pl.BlockSpec((batch_tile, LANE), lambda i: (i, 0))
    param_specs = [pl.BlockSpec(p.shape, lambda i: (0, 0)) for p in flat_params]
    out_spec = pl.BlockSpec((batch_tile, LANE), lambda i: (i, 0))

    flops = 2 * B_pad * sum(din * dout for (din, dout) in ENC_DIMS + DEC_DIMS)
    bytes_accessed = (
        x_padded.size * x_padded.dtype.itemsize
        + sum(p.size * p.dtype.itemsize for p in flat_params)
        + B_pad * LANE * 2          # single packed bf16 output slab
    )

    kernel = functools.partial(_ae_kernel, act_dtype=act_dtype)
    packed = pl.pallas_call(
        kernel,
        out_shape=jax.ShapeDtypeStruct((B_pad, LANE), jnp.bfloat16),
        grid_spec=pltpu.PrefetchScalarGridSpec(
            num_scalar_prefetch=0,
            grid=(grid_b,),
            in_specs=[x_spec] + param_specs,
            out_specs=out_spec,
        ),
        compiler_params=pltpu.CompilerParams(
            dimension_semantics=("parallel",),
            vmem_limit_bytes=48 * 1024 * 1024,
        ),
        cost_estimate=pl.CostEstimate(
            flops=flops, transcendentals=0, bytes_accessed=bytes_accessed
        ),
    )(x_padded, *flat_params)
    return packed


def _pick_act_dtype():
    # bf16 activations only where the VPU has bf16 VALU (v6e / v7x).
    kind = jax.devices()[0].device_kind.lower()
    if any(v in kind for v in ("v2", "v3", "v4", "v5")):
        return jnp.float32
    return jnp.bfloat16


def autoencoder_forward(x, params, preferred_batch_tile=1024):
    """Fused forward. Returns (encoded (B, 10) f32, decoded (B, 4) f32)."""
    B = x.shape[0]
    align = 256  # MXU-friendly tile granularity (mult. of 128 and 256)

    # Pick the batch tile: as large as requested, but keep the parallel grid
    # at >= 2 steps whenever the batch allows so v7x's two TensorCores are
    # both used (irrelevant but harmless on single-TC v5e/v6e).
    b_align = _round_up(max(B, 1), align)
    batch_tile = min(preferred_batch_tile,
                     max(align, _round_up(b_align // 2, align)))
    B_pad = _round_up(b_align, batch_tile)

    # Zero-pad batch to the grid and features 4 -> 128 (lane-dense LHS);
    # ship as bf16 (first matmul operates in bf16 anyway).
    x_p = jnp.pad(x.astype(jnp.float32),
                  ((0, B_pad - B), (0, LANE - INPUT_DIM))).astype(jnp.bfloat16)

    flat_params = _prep_params(params)
    act_dtype = _pick_act_dtype()

    packed = _ae_pallas(x_p, flat_params, batch_tile=batch_tile,
                        act_dtype=act_dtype)
    packed = packed[:B].astype(jnp.float32)
    encoded = packed[:, :LATENT_DIM]
    decoded = packed[:, DEC_SHIFT:DEC_SHIFT + INPUT_DIM]
    return encoded, decoded


def reference_forward(x, params, act_dtype=jnp.float32):
    """Pure-JAX reference matching the kernel's dtype path
    (bf16 matmuls, f32 accumulation/bias-add, act_dtype activations)."""
    def lin(h, w, b):
        y = jnp.dot(h.astype(jnp.bfloat16), w.astype(jnp.bfloat16),
                    preferred_element_type=jnp.float32)
        return (y + b).astype(act_dtype)

    h = x.astype(act_dtype)
    for i, (w, b) in enumerate(params[:N_ENC]):
        h = lin(h, w, b)
        if i != N_ENC - 1:
            h = _leaky_relu(h)
    enc = h
    for i, (w, b) in enumerate(params[N_ENC:]):
        h = lin(h, w, b)
        if i != N_DEC - 1:
            h = _leaky_relu(h)
    return enc.astype(jnp.float32), h.astype(jnp.float32)


if __name__ == "__main__":
    key = jax.random.PRNGKey(0)
    k_param, k_x = jax.random.split(key)

    params = init_params(k_param)

    # Not a multiple of the tile -> exercises batch padding; tile selection
    # yields tile=256, grid=2 (keeps both v7x TensorCores busy).
    batch = 500
    x = jax.random.normal(k_x, (batch, INPUT_DIM), jnp.float32)

    encoded, decoded = autoencoder_forward(x, params, preferred_batch_tile=1024)
    encoded = jax.block_until_ready(encoded)
    decoded = jax.block_until_ready(decoded)

    enc_ref, dec_ref = reference_forward(x, params, _pick_act_dtype())

    assert encoded.shape == (batch, LATENT_DIM)
    assert decoded.shape == (batch, INPUT_DIM)
    # Tolerance absorbs the bf16 output rounding (~4e-3 rel) + MXU ordering.
    assert jnp.allclose(encoded, enc_ref, atol=2e-2, rtol=2e-2), \
        float(jnp.max(jnp.abs(encoded - enc_ref)))
    assert jnp.allclose(decoded, dec_ref, atol=2e-2, rtol=2e-2), \
        float(jnp.max(jnp.abs(decoded - dec_ref)))

    print("KERNEL_OK")
</pallas_src>

<mosaic_0001>
module attributes {stable_mosaic.version = 11 : i64} {
  func.func @_ae_kernel(%arg0: i32, %arg1: memref<256x128xbf16, #tpu.memory_space<vmem>>, %arg2: memref<128x512xbf16, #tpu.memory_space<vmem>>, %arg3: memref<1x512xf32, #tpu.memory_space<vmem>>, %arg4: memref<512x256xbf16, #tpu.memory_space<vmem>>, %arg5: memref<1x256xf32, #tpu.memory_space<vmem>>, %arg6: memref<256x128xbf16, #tpu.memory_space<vmem>>, %arg7: memref<1x128xf32, #tpu.memory_space<vmem>>, %arg8: memref<128x64xbf16, #tpu.memory_space<vmem>>, %arg9: memref<1x64xf32, #tpu.memory_space<vmem>>, %arg10: memref<64x128xbf16, #tpu.memory_space<vmem>>, %arg11: memref<1x128xf32, #tpu.memory_space<vmem>>, %arg12: memref<128x64xbf16, #tpu.memory_space<vmem>>, %arg13: memref<1x64xf32, #tpu.memory_space<vmem>>, %arg14: memref<64x128xbf16, #tpu.memory_space<vmem>>, %arg15: memref<1x128xf32, #tpu.memory_space<vmem>>, %arg16: memref<128x256xbf16, #tpu.memory_space<vmem>>, %arg17: memref<1x256xf32, #tpu.memory_space<vmem>>, %arg18: memref<256x128xbf16, #tpu.memory_space<vmem>>, %arg19: memref<1x128xf32, #tpu.memory_space<vmem>>, %arg20: memref<256x128xbf16, #tpu.memory_space<vmem>>) attributes {dimension_semantics = [#tpu.dimension_semantics<parallel>], iteration_bounds = array<i64: 2>, scalar_prefetch = 0 : i64, scratch_operands = 0 : i64, tpu.core_type = #tpu.core_type<tc>, window_params = [{transform_indices = @transform_0, window_bounds = array<i64: 256, 128>}, {pipeline_mode = #tpu.pipeline_mode<synchronous>, transform_indices = @transform_1, window_bounds = array<i64: 128, 512>}, {pipeline_mode = #tpu.pipeline_mode<synchronous>, transform_indices = @transform_2, window_bounds = array<i64: 1, 512>}, {pipeline_mode = #tpu.pipeline_mode<synchronous>, transform_indices = @transform_3, window_bounds = array<i64: 512, 256>}, {pipeline_mode = #tpu.pipeline_mode<synchronous>, transform_indices = @transform_4, window_bounds = array<i64: 1, 256>}, {pipeline_mode = #tpu.pipeline_mode<synchronous>, transform_indices = @transform_5, window_bounds = array<i64: 256, 128>}, {pipeline_mode = #tpu.pipeline_mode<synchronous>, transform_indices = @transform_6, window_bounds = array<i64: 1, 128>}, {pipeline_mode = #tpu.pipeline_mode<synchronous>, transform_indices = @transform_7, window_bounds = array<i64: 128, 64>}, {pipeline_mode = #tpu.pipeline_mode<synchronous>, transform_indices = @transform_8, window_bounds = array<i64: 1, 64>}, {pipeline_mode = #tpu.pipeline_mode<synchronous>, transform_indices = @transform_9, window_bounds = array<i64: 64, 128>}, {pipeline_mode = #tpu.pipeline_mode<synchronous>, transform_indices = @transform_10, window_bounds = array<i64: 1, 128>}, {pipeline_mode = #tpu.pipeline_mode<synchronous>, transform_indices = @transform_11, window_bounds = array<i64: 128, 64>}, {pipeline_mode = #tpu.pipeline_mode<synchronous>, transform_indices = @transform_12, window_bounds = array<i64: 1, 64>}, {pipeline_mode = #tpu.pipeline_mode<synchronous>, transform_indices = @transform_13, window_bounds = array<i64: 64, 128>}, {pipeline_mode = #tpu.pipeline_mode<synchronous>, transform_indices = @transform_14, window_bounds = array<i64: 1, 128>}, {pipeline_mode = #tpu.pipeline_mode<synchronous>, transform_indices = @transform_15, window_bounds = array<i64: 128, 256>}, {pipeline_mode = #tpu.pipeline_mode<synchronous>, transform_indices = @transform_16, window_bounds = array<i64: 1, 256>}, {pipeline_mode = #tpu.pipeline_mode<synchronous>, transform_indices = @transform_17, window_bounds = array<i64: 256, 128>}, {pipeline_mode = #tpu.pipeline_mode<synchronous>, transform_indices = @transform_18, window_bounds = array<i64: 1, 128>}, {transform_indices = @transform_19, window_bounds = array<i64: 256, 128>}]} {
    %c0 = arith.constant 0 : index
    %c0_0 = arith.constant 0 : index
    %0 = vector.load %arg1[%c0, %c0_0] : memref<256x128xbf16, #tpu.memory_space<vmem>>, vector<256x128xbf16>
    %c0_1 = arith.constant 0 : index
    %c0_2 = arith.constant 0 : index
    %1 = vector.load %arg2[%c0_1, %c0_2] : memref<128x512xbf16, #tpu.memory_space<vmem>>, vector<128x512xbf16>
    %cst = arith.constant dense<0.000000e+00> : vector<256x512xf32>
    %2 = tpu.matmul %0, %1, %cst {dimension_numbers = #tpu.dot_dimension_numbers<[1], [0], [0], [1], [0, 0, 1, 1], [], []>} : vector<256x128xbf16>, vector<128x512xbf16>, vector<256x512xf32> -> vector<256x512xf32>
    %c0_3 = arith.constant 0 : index
    %c0_4 = arith.constant 0 : index
    %3 = vector.load %arg3[%c0_3, %c0_4] : memref<1x512xf32, #tpu.memory_space<vmem>>, vector<1x512xf32>
    %4 = vector.broadcast %3 : vector<1x512xf32> to vector<256x512xf32>
    %5 = arith.addf %2, %4 : vector<256x512xf32>
    %6 = arith.truncf %5 : vector<256x512xf32> to vector<256x512xbf16>
    %cst_5 = arith.constant 1.000980e-01 : bf16
    %7 = vector.broadcast %cst_5 : bf16 to vector<256x512xbf16>
    %8 = arith.mulf %6, %7 : vector<256x512xbf16>
    %9 = arith.maximumf %6, %8 : vector<256x512xbf16>
    %c0_6 = arith.constant 0 : index
    %c0_7 = arith.constant 0 : index
    %10 = vector.load %arg4[%c0_6, %c0_7] : memref<512x256xbf16, #tpu.memory_space<vmem>>, vector<512x256xbf16>
    %cst_8 = arith.constant dense<0.000000e+00> : vector<256x256xf32>
    %11 = tpu.matmul %9, %10, %cst_8 {dimension_numbers = #tpu.dot_dimension_numbers<[1], [0], [0], [1], [0, 0, 1, 1], [], []>} : vector<256x512xbf16>, vector<512x256xbf16>, vector<256x256xf32> -> vector<256x256xf32>
    %c0_9 = arith.constant 0 : index
    %c0_10 = arith.constant 0 : index
    %12 = vector.load %arg5[%c0_9, %c0_10] : memref<1x256xf32, #tpu.memory_space<vmem>>, vector<1x256xf32>
    %13 = vector.broadcast %12 : vector<1x256xf32> to vector<256x256xf32>
    %14 = arith.addf %11, %13 : vector<256x256xf32>
    %15 = arith.truncf %14 : vector<256x256xf32> to vector<256x256xbf16>
    %cst_11 = arith.constant 1.000980e-01 : bf16
    %16 = vector.broadcast %cst_11 : bf16 to vector<256x256xbf16>
    %17 = arith.mulf %15, %16 : vector<256x256xbf16>
    %18 = arith.maximumf %15, %17 : vector<256x256xbf16>
    %c0_12 = arith.constant 0 : index
    %c0_13 = arith.constant 0 : index
    %19 = vector.load %arg6[%c0_12, %c0_13] : memref<256x128xbf16, #tpu.memory_space<vmem>>, vector<256x128xbf16>
    %cst_14 = arith.constant dense<0.000000e+00> : vector<256x128xf32>
    %20 = tpu.matmul %18, %19, %cst_14 {dimension_numbers = #tpu.dot_dimension_numbers<[1], [0], [0], [1], [0, 0, 1, 1], [], []>} : vector<256x256xbf16>, vector<256x128xbf16>, vector<256x128xf32> -> vector<256x128xf32>
    %c0_15 = arith.constant 0 : index
    %c0_16 = arith.constant 0 : index
    %21 = vector.load %arg7[%c0_15, %c0_16] : memref<1x128xf32, #tpu.memory_space<vmem>>, vector<1x128xf32>
    %22 = vector.broadcast %21 : vector<1x128xf32> to vector<256x128xf32>
    %23 = arith.addf %20, %22 : vector<256x128xf32>
    %24 = arith.truncf %23 : vector<256x128xf32> to vector<256x128xbf16>
    %cst_17 = arith.constant 1.000980e-01 : bf16
    %25 = vector.broadcast %cst_17 : bf16 to vector<256x128xbf16>
    %26 = arith.mulf %24, %25 : vector<256x128xbf16>
    %27 = arith.maximumf %24, %26 : vector<256x128xbf16>
    %c0_18 = arith.constant 0 : index
    %c0_19 = arith.constant 0 : index
    %28 = vector.load %arg8[%c0_18, %c0_19] : memref<128x64xbf16, #tpu.memory_space<vmem>>, vector<128x64xbf16>
    %cst_20 = arith.constant dense<0.000000e+00> : vector<256x64xf32>
    %29 = tpu.matmul %27, %28, %cst_20 {dimension_numbers = #tpu.dot_dimension_numbers<[1], [0], [0], [1], [0, 0, 1, 1], [], []>} : vector<256x128xbf16>, vector<128x64xbf16>, vector<256x64xf32> -> vector<256x64xf32>
    %c0_21 = arith.constant 0 : index
    %c0_22 = arith.constant 0 : index
    %30 = vector.load %arg9[%c0_21, %c0_22] : memref<1x64xf32, #tpu.memory_space<vmem>>, vector<1x64xf32>
    %31 = vector.broadcast %30 : vector<1x64xf32> to vector<256x64xf32>
    %32 = arith.addf %29, %31 : vector<256x64xf32>
    %33 = arith.truncf %32 : vector<256x64xf32> to vector<256x64xbf16>
    %cst_23 = arith.constant 1.000980e-01 : bf16
    %34 = vector.broadcast %cst_23 : bf16 to vector<256x64xbf16>
    %35 = arith.mulf %33, %34 : vector<256x64xbf16>
    %36 = arith.maximumf %33, %35 : vector<256x64xbf16>
    %c0_24 = arith.constant 0 : index
    %c0_25 = arith.constant 0 : index
    %37 = vector.load %arg10[%c0_24, %c0_25] : memref<64x128xbf16, #tpu.memory_space<vmem>>, vector<64x128xbf16>
    %cst_26 = arith.constant dense<0.000000e+00> : vector<256x128xf32>
    %38 = tpu.matmul %36, %37, %cst_26 {dimension_numbers = #tpu.dot_dimension_numbers<[1], [0], [0], [1], [0, 0, 1, 1], [], []>} : vector<256x64xbf16>, vector<64x128xbf16>, vector<256x128xf32> -> vector<256x128xf32>
    %c0_27 = arith.constant 0 : index
    %c0_28 = arith.constant 0 : index
    %39 = vector.load %arg11[%c0_27, %c0_28] : memref<1x128xf32, #tpu.memory_space<vmem>>, vector<1x128xf32>
    %40 = vector.broadcast %39 : vector<1x128xf32> to vector<256x128xf32>
    %41 = arith.addf %38, %40 : vector<256x128xf32>
    %42 = arith.truncf %41 : vector<256x128xf32> to vector<256x128xbf16>
    %c0_29 = arith.constant 0 : index
    %c0_30 = arith.constant 0 : index
    %43 = vector.load %arg12[%c0_29, %c0_30] : memref<128x64xbf16, #tpu.memory_space<vmem>>, vector<128x64xbf16>
    %cst_31 = arith.constant dense<0.000000e+00> : vector<256x64xf32>
    %44 = tpu.matmul %42, %43, %cst_31 {dimension_numbers = #tpu.dot_dimension_numbers<[1], [0], [0], [1], [0, 0, 1, 1], [], []>} : vector<256x128xbf16>, vector<128x64xbf16>, vector<256x64xf32> -> vector<256x64xf32>
    %c0_32 = arith.constant 0 : index
    %c0_33 = arith.constant 0 : index
    %45 = vector.load %arg13[%c0_32, %c0_33] : memref<1x64xf32, #tpu.memory_space<vmem>>, vector<1x64xf32>
    %46 = vector.broadcast %45 : vector<1x64xf32> to vector<256x64xf32>
    %47 = arith.addf %44, %46 : vector<256x64xf32>
    %48 = arith.truncf %47 : vector<256x64xf32> to vector<256x64xbf16>
    %cst_34 = arith.constant 1.000980e-01 : bf16
    %49 = vector.broadcast %cst_34 : bf16 to vector<256x64xbf16>
    %50 = arith.mulf %48, %49 : vector<256x64xbf16>
    %51 = arith.maximumf %48, %50 : vector<256x64xbf16>
    %c0_35 = arith.constant 0 : index
    %c0_36 = arith.constant 0 : index
    %52 = vector.load %arg14[%c0_35, %c0_36] : memref<64x128xbf16, #tpu.memory_space<vmem>>, vector<64x128xbf16>
    %cst_37 = arith.constant dense<0.000000e+00> : vector<256x128xf32>
    %53 = tpu.matmul %51, %52, %cst_37 {dimension_numbers = #tpu.dot_dimension_numbers<[1], [0], [0], [1], [0, 0, 1, 1], [], []>} : vector<256x64xbf16>, vector<64x128xbf16>, vector<256x128xf32> -> vector<256x128xf32>
    %c0_38 = arith.constant 0 : index
    %c0_39 = arith.constant 0 : index
    %54 = vector.load %arg15[%c0_38, %c0_39] : memref<1x128xf32, #tpu.memory_space<vmem>>, vector<1x128xf32>
    %55 = vector.broadcast %54 : vector<1x128xf32> to vector<256x128xf32>
    %56 = arith.addf %53, %55 : vector<256x128xf32>
    %57 = arith.truncf %56 : vector<256x128xf32> to vector<256x128xbf16>
    %cst_40 = arith.constant 1.000980e-01 : bf16
    %58 = vector.broadcast %cst_40 : bf16 to vector<256x128xbf16>
    %59 = arith.mulf %57, %58 : vector<256x128xbf16>
    %60 = arith.maximumf %57, %59 : vector<256x128xbf16>
    %c0_41 = arith.constant 0 : index
    %c0_42 = arith.constant 0 : index
    %61 = vector.load %arg16[%c0_41, %c0_42] : memref<128x256xbf16, #tpu.memory_space<vmem>>, vector<128x256xbf16>
    %cst_43 = arith.constant dense<0.000000e+00> : vector<256x256xf32>
    %62 = tpu.matmul %60, %61, %cst_43 {dimension_numbers = #tpu.dot_dimension_numbers<[1], [0], [0], [1], [0, 0, 1, 1], [], []>} : vector<256x128xbf16>, vector<128x256xbf16>, vector<256x256xf32> -> vector<256x256xf32>
    %c0_44 = arith.constant 0 : index
    %c0_45 = arith.constant 0 : index
    %63 = vector.load %arg17[%c0_44, %c0_45] : memref<1x256xf32, #tpu.memory_space<vmem>>, vector<1x256xf32>
    %64 = vector.broadcast %63 : vector<1x256xf32> to vector<256x256xf32>
    %65 = arith.addf %62, %64 : vector<256x256xf32>
    %66 = arith.truncf %65 : vector<256x256xf32> to vector<256x256xbf16>
    %cst_46 = arith.constant 1.000980e-01 : bf16
    %67 = vector.broadcast %cst_46 : bf16 to vector<256x256xbf16>
    %68 = arith.mulf %66, %67 : vector<256x256xbf16>
    %69 = arith.maximumf %66, %68 : vector<256x256xbf16>
    %c0_47 = arith.constant 0 : index
    %c0_48 = arith.constant 0 : index
    %70 = vector.load %arg18[%c0_47, %c0_48] : memref<256x128xbf16, #tpu.memory_space<vmem>>, vector<256x128xbf16>
    %cst_49 = arith.constant dense<0.000000e+00> : vector<256x128xf32>
    %71 = tpu.matmul %69, %70, %cst_49 {dimension_numbers = #tpu.dot_dimension_numbers<[1], [0], [0], [1], [0, 0, 1, 1], [], []>} : vector<256x256xbf16>, vector<256x128xbf16>, vector<256x128xf32> -> vector<256x128xf32>
    %c0_50 = arith.constant 0 : index
    %c0_51 = arith.constant 0 : index
    %72 = vector.load %arg19[%c0_50, %c0_51] : memref<1x128xf32, #tpu.memory_space<vmem>>, vector<1x128xf32>
    %73 = vector.broadcast %72 : vector<1x128xf32> to vector<256x128xf32>
    %74 = arith.addf %71, %73 : vector<256x128xf32>
    %75 = arith.truncf %74 : vector<256x128xf32> to vector<256x128xbf16>
    %76 = arith.addf %42, %75 : vector<256x128xbf16>
    %c0_52 = arith.constant 0 : index
    %c0_53 = arith.constant 0 : index
    %77 = vector.load %arg20[%c0_52, %c0_53] : memref<256x128xbf16, #tpu.memory_space<vmem>>, vector<256x128xbf16>
    tpu.vector_store %arg20[%c0_52, %c0_53], %76 {strides = array<i32>} : memref<256x128xbf16, #tpu.memory_space<vmem>>, vector<256x128xbf16>,
    return
  }
  func.func @transform_0(%arg0: i32) -> (i32, i32) {
    %c0_i32 = arith.constant 0 : i32
    %c0_i32_0 = arith.constant 0 : i32
    return %arg0, %c0_i32 : i32, i32
  }
  func.func @transform_1(%arg0: i32) -> (i32, i32) {
    %c0_i32 = arith.constant 0 : i32
    %c0_i32_0 = arith.constant 0 : i32
    %c0_i32_1 = arith.constant 0 : i32
    return %c0_i32, %c0_i32_0 : i32, i32
  }
  func.func @transform_2(%arg0: i32) -> (i32, i32) {
    %c0_i32 = arith.constant 0 : i32
    %c0_i32_0 = arith.constant 0 : i32
    %c0_i32_1 = arith.constant 0 : i32
    return %c0_i32, %c0_i32_0 : i32, i32
  }
  func.func @transform_3(%arg0: i32) -> (i32, i32) {
    %c0_i32 = arith.constant 0 : i32
    %c0_i32_0 = arith.constant 0 : i32
    %c0_i32_1 = arith.constant 0 : i32
    return %c0_i32, %c0_i32_0 : i32, i32
  }
  func.func @transform_4(%arg0: i32) -> (i32, i32) {
    %c0_i32 = arith.constant 0 : i32
    %c0_i32_0 = arith.constant 0 : i32
    %c0_i32_1 = arith.constant 0 : i32
    return %c0_i32, %c0_i32_0 : i32, i32
  }
  func.func @transform_5(%arg0: i32) -> (i32, i32) {
    %c0_i32 = arith.constant 0 : i32
    %c0_i32_0 = arith.constant 0 : i32
    %c0_i32_1 = arith.constant 0 : i32
    return %c0_i32, %c0_i32_0 : i32, i32
  }
  func.func @transform_6(%arg0: i32) -> (i32, i32) {
    %c0_i32 = arith.constant 0 : i32
    %c0_i32_0 = arith.constant 0 : i32
    %c0_i32_1 = arith.constant 0 : i32
    return %c0_i32, %c0_i32_0 : i32, i32
  }
  func.func @transform_7(%arg0: i32) -> (i32, i32) {
    %c0_i32 = arith.constant 0 : i32
    %c0_i32_0 = arith.constant 0 : i32
    %c0_i32_1 = arith.constant 0 : i32
    return %c0_i32, %c0_i32_0 : i32, i32
  }
  func.func @transform_8(%arg0: i32) -> (i32, i32) {
    %c0_i32 = arith.constant 0 : i32
    %c0_i32_0 = arith.constant 0 : i32
    %c0_i32_1 = arith.constant 0 : i32
    return %c0_i32, %c0_i32_0 : i32, i32
  }
  func.func @transform_9(%arg0: i32) -> (i32, i32) {
    %c0_i32 = arith.constant 0 : i32
    %c0_i32_0 = arith.constant 0 : i32
    %c0_i32_1 = arith.constant 0 : i32
    return %c0_i32, %c0_i32_0 : i32, i32
  }
  func.func @transform_10(%arg0: i32) -> (i32, i32) {
    %c0_i32 = arith.constant 0 : i32
    %c0_i32_0 = arith.constant 0 : i32
    %c0_i32_1 = arith.constant 0 : i32
    return %c0_i32, %c0_i32_0 : i32, i32
  }
  func.func @transform_11(%arg0: i32) -> (i32, i32) {
    %c0_i32 = arith.constant 0 : i32
    %c0_i32_0 = arith.constant 0 : i32
    %c0_i32_1 = arith.constant 0 : i32
    return %c0_i32, %c0_i32_0 : i32, i32
  }
  func.func @transform_12(%arg0: i32) -> (i32, i32) {
    %c0_i32 = arith.constant 0 : i32
    %c0_i32_0 = arith.constant 0 : i32
    %c0_i32_1 = arith.constant 0 : i32
    return %c0_i32, %c0_i32_0 : i32, i32
  }
  func.func @transform_13(%arg0: i32) -> (i32, i32) {
    %c0_i32 = arith.constant 0 : i32
    %c0_i32_0 = arith.constant 0 : i32
    %c0_i32_1 = arith.constant 0 : i32
    return %c0_i32, %c0_i32_0 : i32, i32
  }
  func.func @transform_14(%arg0: i32) -> (i32, i32) {
    %c0_i32 = arith.constant 0 : i32
    %c0_i32_0 = arith.constant 0 : i32
    %c0_i32_1 = arith.constant 0 : i32
    return %c0_i32, %c0_i32_0 : i32, i32
  }
  func.func @transform_15(%arg0: i32) -> (i32, i32) {
    %c0_i32 = arith.constant 0 : i32
    %c0_i32_0 = arith.constant 0 : i32
    %c0_i32_1 = arith.constant 0 : i32
    return %c0_i32, %c0_i32_0 : i32, i32
  }
  func.func @transform_16(%arg0: i32) -> (i32, i32) {
    %c0_i32 = arith.constant 0 : i32
    %c0_i32_0 = arith.constant 0 : i32
    %c0_i32_1 = arith.constant 0 : i32
    return %c0_i32, %c0_i32_0 : i32, i32
  }
  func.func @transform_17(%arg0: i32) -> (i32, i32) {
    %c0_i32 = arith.constant 0 : i32
    %c0_i32_0 = arith.constant 0 : i32
    %c0_i32_1 = arith.constant 0 : i32
    return %c0_i32, %c0_i32_0 : i32, i32
  }
  func.func @transform_18(%arg0: i32) -> (i32, i32) {
    %c0_i32 = arith.constant 0 : i32
    %c0_i32_0 = arith.constant 0 : i32
    %c0_i32_1 = arith.constant 0 : i32
    return %c0_i32, %c0_i32_0 : i32, i32
  }
  func.func @transform_19(%arg0: i32) -> (i32, i32) {
    %c0_i32 = arith.constant 0 : i32
    %c0_i32_0 = arith.constant 0 : i32
    return %arg0, %c0_i32 : i32, i32
  }
}

</mosaic_0001>

<llo_original>
// kernel: _ae_pallas.1
$region0: #{_ae_pallas.1}
  #allocation0 [shape = 'u32[]', space=smem, size = 0x4, offset = 0x4, fixed_abs, tag = 'smem constant byte address 0x4 - core index']
  #allocation1 [shape = 'u32[72,128]{1,0:T(1,128)}', space=vmem, size = 0x9000, scoped, tag = 'internal scratch']
  %s0 = inlined_call_operand.hbm [shape: bf16[512,128], index: 0, kind: input, shape index: {}]
  %s1 = inlined_call_operand.hbm [shape: bf16[128,512], index: 1, kind: input, shape index: {}]
  %s2 = inlined_call_operand.vmem [shape: f32[1,512], index: 2, kind: input, shape index: {}]
  %s3 = inlined_call_operand.hbm [shape: bf16[512,256], index: 3, kind: input, shape index: {}]
  %s4 = inlined_call_operand.hbm [shape: f32[1,256], index: 4, kind: input, shape index: {}]
  %s5 = inlined_call_operand.vmem [shape: bf16[256,128], index: 5, kind: input, shape index: {}]
  %s6 = inlined_call_operand.vmem [shape: f32[1,128], index: 6, kind: input, shape index: {}]
  %s7 = inlined_call_operand.vmem [shape: bf16[128,64], index: 7, kind: input, shape index: {}]
  %s8 = inlined_call_operand.hbm [shape: f32[1,64], index: 8, kind: input, shape index: {}]
  %s9 = inlined_call_operand.vmem [shape: bf16[64,128], index: 9, kind: input, shape index: {}]
  %s10 = inlined_call_operand.vmem [shape: f32[1,128], index: 10, kind: input, shape index: {}]
  %s11 = inlined_call_operand.vmem [shape: bf16[128,64], index: 11, kind: input, shape index: {}]
  %s12 = inlined_call_operand.vmem [shape: f32[1,64], index: 12, kind: input, shape index: {}]
  %s13 = inlined_call_operand.vmem [shape: bf16[64,128], index: 13, kind: input, shape index: {}]
  %s14 = inlined_call_operand.vmem [shape: f32[1,128], index: 14, kind: input, shape index: {}]
  %s15 = inlined_call_operand.hbm [shape: bf16[128,256], index: 15, kind: input, shape index: {}]
  %s16 = inlined_call_operand.vmem [shape: f32[1,256], index: 16, kind: input, shape index: {}]
  %s17 = inlined_call_operand.hbm [shape: bf16[256,128], index: 17, kind: input, shape index: {}]
  %s18 = inlined_call_operand.vmem [shape: f32[1,128], index: 18, kind: input, shape index: {}]
  %s19 = inlined_call_operand.hbm [shape: bf16[512,128], index: 19, kind: output, shape index: {}]
  %s20 = sld [smem:[#allocation0]]
  $region137: #{_ae_pallas.1} parent=0
    _
  %s22 = ssub.s32 1, %s20
  %s23 = scalar_select 0, %s22, %s20
  $region1: #{_ae_pallas.1} parent=0
    #allocation2 [shape = 'u8[131072]{0}', space=vmem, size = 0x20000, scoped, tag = 'input window, operand 0']
    #allocation3 [shape = 's32[2]{0}', space=sflag, size = 0x8, scoped, tag = 'scoped memory for _ae_pallas.1']
    #allocation4 [shape = 's32[2]{0}', space=sflag, size = 0x8, scoped, tag = 'scoped memory for _ae_pallas.1']
    #allocation5 [shape = 'u8[131072]{0}', space=vmem, size = 0x20000, scoped, tag = 'input window, operand 1, single buffered']
    #allocation6 [shape = 's32[1]{0}', space=sflag, size = 0x4, scoped, tag = 'scoped memory for _ae_pallas.1']
    #allocation7 [shape = 'u8[262144]{0}', space=vmem, size = 0x40000, scoped, tag = 'input window, operand 3, single buffered']
    #allocation8 [shape = 'u8[1024]{0}', space=vmem, size = 0x400, scoped, tag = 'input window, operand 4, single buffered']
    #allocation9 [shape = 's32[1]{0}', space=sflag, size = 0x4, scoped, tag = 'scoped memory for _ae_pallas.1']
    #allocation10 [shape = 'u8[512]{0}', space=vmem, size = 0x400, scoped, tag = 'input window, operand 8, single buffered']
    #allocation11 [shape = 'u8[65536]{0}', space=vmem, size = 0x10000, scoped, tag = 'input window, operand 15, single buffered']
    #allocation12 [shape = 's32[1]{0}', space=sflag, size = 0x4, scoped, tag = 'scoped memory for _ae_pallas.1']
    #allocation13 [shape = 'u8[65536]{0}', space=vmem, size = 0x10000, scoped, tag = 'input window, operand 17, single buffered']
    #allocation14 [shape = 'u8[131072]{0}', space=vmem, size = 0x20000, scoped, tag = 'output window, operand 0']
    %24 = vsyncpa [#allocation3], 0
    %s25 = scalar_lea.sflag [#allocation3], 1
    %26 = vsyncpa %s25, 0
    %27 = vsyncpa [#allocation6], 0
    %28 = vsyncpa [#allocation9], 0
    %29 = vsyncpa [#allocation12], 0
    %30 = vsyncpa [#allocation4], 0
    %s31 = scalar_lea.sflag [#allocation4], 1
    %32 = vsyncpa %s31, 0
    loop: start=0, step=1, limit=4
    $region2: #{_ae_pallas.1} parent=1 // loop_pre_header
      _
    $region3: #{_ae_pallas.1} parent=1 // loop_header
      %s34 = sphi 0, %s38
      %p35 = scmp.ge.s32.totalorder %s34, 4
      %s44 = sphi 0, %s46
      %s47 = sphi 0, %s44
      %s48 = sphi 0, %s47
      %s64 = sphi 0, %s48
      %s68 = sphi 0, %s68
      %s70 = sphi 0, %s68
      %s71 = sphi 0, %s70
      %s85 = sphi 0, %s71
      %s89 = sphi 0, %s89
      %s91 = sphi 0, %s89
      %s92 = sphi 0, %s91
      %s106 = sphi 0, %s92
      %s110 = sphi 0, %s110
      %s112 = sphi 0, %s110
      %s113 = sphi 0, %s112
      %s127 = sphi 0, %s113
      %s131 = sphi 0, %s131
      %s133 = sphi 0, %s131
      %s134 = sphi 0, %s133
      %s148 = sphi 0, %s134
      %s152 = sphi 0, %s152
      %s154 = sphi 0, %s152
      %s155 = sphi 0, %s154
      %s169 = sphi 0, %s155
      %s173 = sphi 0, %s173
      %s175 = sphi 0, %s173
      %s176 = sphi 0, %s175
      %s190 = sphi 0, %s176
      %s194 = sphi 0, %s194
      %s196 = sphi 0, %s194
      %s197 = sphi 0, %s196
      %s211 = sphi 0, %s197
      %s215 = sphi 0, %s215
      %s217 = sphi 0, %s215
      %s218 = sphi 0, %s217
      %s232 = sphi 0, %s218
      %s236 = sphi 0, %s236
      %s238 = sphi 0, %s236
      %s239 = sphi 0, %s238
      %s253 = sphi 0, %s239
      %s257 = sphi 0, %s257
      %s259 = sphi 0, %s257
      %s260 = sphi 0, %s259
      %s274 = sphi 0, %s260
      %s278 = sphi 0, %s278
      %s280 = sphi 0, %s278
      %s281 = sphi 0, %s280
      %s295 = sphi 0, %s281
      %s299 = sphi 0, %s299
      %s301 = sphi 0, %s299
      %s302 = sphi 0, %s301
      %s316 = sphi 0, %s302
      %s320 = sphi 0, %s320
      %s322 = sphi 0, %s320
      %s323 = sphi 0, %s322
      %s337 = sphi 0, %s323
      %s341 = sphi 0, %s341
      %s343 = sphi 0, %s341
      %s344 = sphi 0, %s343
      %s358 = sphi 0, %s344
      %s362 = sphi 0, %s362
      %s364 = sphi 0, %s362
      %s365 = sphi 0, %s364
      %s379 = sphi 0, %s365
      %s383 = sphi 0, %s383
      %s385 = sphi 0, %s383
      %s386 = sphi 0, %s385
      %s400 = sphi 0, %s386
      %s404 = sphi 0, %s404
      %s406 = sphi 0, %s404
      %s407 = sphi 0, %s406
      %s421 = sphi 0, %s407
      %s425 = sphi 0, %s425
      %s427 = sphi 0, %s425
      %s428 = sphi 0, %s427
      %s442 = sphi 0, %s428
      %s448 = sphi 0, %s450
      %s451 = sphi 0, %s448
      %s452 = sphi 0, %s451
      %s468 = sphi 0, %s452
    $region4: #{_ae_pallas.1} parent=1 // loop_header_branch
      %37 = sbr.rel (%p35) target = $region8
    $region5: #{_ae_pallas.1} parent=1 // loop_body
      %s39 = ssub.s32 %s34, 1
      %s40 = ssub.s32 %s34, 2
      %s41 = sadd.s32 %s34, 1
      %s42 = ssub.s32 %s34, %s41
      %p43 = scmp.eq.s32.totalorder %s42, 0
      %s45 = sadd.s32 %s44, 1
      %s46 = scalar_select %p43, %s44, %s45
      %p49 = pneg %p43
      %p50 = scmp.eq.s32.totalorder %s34, 1
      %p51 = por %p49, %p50
      %p52 = scmp.ne.s32.totalorder %s44, %s47
      %p53 = scmp.eq.s32.totalorder %s34, 0
      %p54 = por %p52, %p53
      %p55 = scmp.ne.s32.totalorder %s44, %s47
      %p56 = scmp.eq.s32.totalorder %s39, 1
      %p57 = por %p55, %p56
      %p58 = scmp.ne.s32.totalorder %s47, %s48
      %p59 = scmp.eq.s32.totalorder %s39, 0
      %p60 = por %p58, %p59
      %p61 = scmp.ne.s32.totalorder %s47, %s48
      %p62 = scmp.eq.s32.totalorder %s40, 1
      %p63 = por %p61, %p62
      %p65 = scmp.ne.s32.totalorder %s48, %s64
      %p66 = scmp.eq.s32.totalorder %s40, 0
      %p67 = por %p65, %p66
      %s69 = sadd.s32 %s68, 1
      %p72 = scmp.eq.s32.totalorder %s34, 1
      %p73 = scmp.ne.s32.totalorder %s68, %s70
      %p74 = scmp.eq.s32.totalorder %s34, 0
      %p75 = por %p73, %p74
      %p76 = scmp.ne.s32.totalorder %s68, %s70
      %p77 = scmp.eq.s32.totalorder %s39, 1
      %p78 = por %p76, %p77
      %p79 = scmp.ne.s32.totalorder %s70, %s71
      %p80 = scmp.eq.s32.totalorder %s39, 0
      %p81 = por %p79, %p80
      %p82 = scmp.ne.s32.totalorder %s70, %s71
      %p83 = scmp.eq.s32.totalorder %s40, 1
      %p84 = por %p82, %p83
      %p86 = scmp.ne.s32.totalorder %s71, %s85
      %p87 = scmp.eq.s32.totalorder %s40, 0
      %p88 = por %p86, %p87
      %s90 = sadd.s32 %s89, 1
      %p93 = scmp.eq.s32.totalorder %s34, 1
      %p94 = scmp.ne.s32.totalorder %s89, %s91
      %p95 = scmp.eq.s32.totalorder %s34, 0
      %p96 = por %p94, %p95
      %p97 = scmp.ne.s32.totalorder %s89, %s91
      %p98 = scmp.eq.s32.totalorder %s39, 1
      %p99 = por %p97, %p98
      %p100 = scmp.ne.s32.totalorder %s91, %s92
      %p101 = scmp.eq.s32.totalorder %s39, 0
      %p102 = por %p100, %p101
      %p103 = scmp.ne.s32.totalorder %s91, %s92
      %p104 = scmp.eq.s32.totalorder %s40, 1
      %p105 = por %p103, %p104
      %p107 = scmp.ne.s32.totalorder %s92, %s106
      %p108 = scmp.eq.s32.totalorder %s40, 0
      %p109 = por %p107, %p108
      %s111 = sadd.s32 %s110, 1
      %p114 = scmp.eq.s32.totalorder %s34, 1
      %p115 = scmp.ne.s32.totalorder %s110, %s112
      %p116 = scmp.eq.s32.totalorder %s34, 0
      %p117 = por %p115, %p116
      %p118 = scmp.ne.s32.totalorder %s110, %s112
      %p119 = scmp.eq.s32.totalorder %s39, 1
      %p120 = por %p118, %p119
      %p121 = scmp.ne.s32.totalorder %s112, %s113
      %p122 = scmp.eq.s32.totalorder %s39, 0
      %p123 = por %p121, %p122
      %p124 = scmp.ne.s32.totalorder %s112, %s113
      %p125 = scmp.eq.s32.totalorder %s40, 1
      %p126 = por %p124, %p125
      %p128 = scmp.ne.s32.totalorder %s113, %s127
      %p129 = scmp.eq.s32.totalorder %s40, 0
      %p130 = por %p128, %p129
      %s132 = sadd.s32 %s131, 1
      %p135 = scmp.eq.s32.totalorder %s34, 1
      %p136 = scmp.ne.s32.totalorder %s131, %s133
      %p137 = scmp.eq.s32.totalorder %s34, 0
      %p138 = por %p136, %p137
      %p139 = scmp.ne.s32.totalorder %s131, %s133
      %p140 = scmp.eq.s32.totalorder %s39, 1
      %p141 = por %p139, %p140
      %p142 = scmp.ne.s32.totalorder %s133, %s134
      %p143 = scmp.eq.s32.totalorder %s39, 0
      %p144 = por %p142, %p143
      %p145 = scmp.ne.s32.totalorder %s133, %s134
      %p146 = scmp.eq.s32.totalorder %s40, 1
      %p147 = por %p145, %p146
      %p149 = scmp.ne.s32.totalorder %s134, %s148
      %p150 = scmp.eq.s32.totalorder %s40, 0
      %p151 = por %p149, %p150
      %s153 = sadd.s32 %s152, 1
      %p156 = scmp.eq.s32.totalorder %s34, 1
      %p157 = scmp.ne.s32.totalorder %s152, %s154
      %p158 = scmp.eq.s32.totalorder %s34, 0
      %p159 = por %p157, %p158
      %p160 = scmp.ne.s32.totalorder %s152, %s154
      %p161 = scmp.eq.s32.totalorder %s39, 1
      %p162 = por %p160, %p161
      %p163 = scmp.ne.s32.totalorder %s154, %s155
      %p164 = scmp.eq.s32.totalorder %s39, 0
      %p165 = por %p163, %p164
      %p166 = scmp.ne.s32.totalorder %s154, %s155
      %p167 = scmp.eq.s32.totalorder %s40, 1
      %p168 = por %p166, %p167
      %p170 = scmp.ne.s32.totalorder %s155, %s169
      %p171 = scmp.eq.s32.totalorder %s40, 0
      %p172 = por %p170, %p171
      %s174 = sadd.s32 %s173, 1
      %p177 = scmp.eq.s32.totalorder %s34, 1
      %p178 = scmp.ne.s32.totalorder %s173, %s175
      %p179 = scmp.eq.s32.totalorder %s34, 0
      %p180 = por %p178, %p179
      %p181 = scmp.ne.s32.totalorder %s173, %s175
      %p182 = scmp.eq.s32.totalorder %s39, 1
      %p183 = por %p181, %p182
      %p184 = scmp.ne.s32.totalorder %s175, %s176
      %p185 = scmp.eq.s32.totalorder %s39, 0
      %p186 = por %p184, %p185
      %p187 = scmp.ne.s32.totalorder %s175, %s176
      %p188 = scmp.eq.s32.totalorder %s40, 1
      %p189 = por %p187, %p188
      %p191 = scmp.ne.s32.totalorder %s176, %s190
      %p192 = scmp.eq.s32.totalorder %s40, 0
      %p193 = por %p191, %p192
      %s195 = sadd.s32 %s194, 1
      %p198 = scmp.eq.s32.totalorder %s34, 1
      %p199 = scmp.ne.s32.totalorder %s194, %s196
      %p200 = scmp.eq.s32.totalorder %s34, 0
      %p201 = por %p199, %p200
      %p202 = scmp.ne.s32.totalorder %s194, %s196
      %p203 = scmp.eq.s32.totalorder %s39, 1
      %p204 = por %p202, %p203
      %p205 = scmp.ne.s32.totalorder %s196, %s197
      %p206 = scmp.eq.s32.totalorder %s39, 0
      %p207 = por %p205, %p206
      %p208 = scmp.ne.s32.totalorder %s196, %s197
      %p209 = scmp.eq.s32.totalorder %s40, 1
      %p210 = por %p208, %p209
      %p212 = scmp.ne.s32.totalorder %s197, %s211
      %p213 = scmp.eq.s32.totalorder %s40, 0
      %p214 = por %p212, %p213
      %s216 = sadd.s32 %s215, 1
      %p219 = scmp.eq.s32.totalorder %s34, 1
      %p220 = scmp.ne.s32.totalorder %s215, %s217
      %p221 = scmp.eq.s32.totalorder %s34, 0
      %p222 = por %p220, %p221
      %p223 = scmp.ne.s32.totalorder %s215, %s217
      %p224 = scmp.eq.s32.totalorder %s39, 1
      %p225 = por %p223, %p224
      %p226 = scmp.ne.s32.totalorder %s217, %s218
      %p227 = scmp.eq.s32.totalorder %s39, 0
      %p228 = por %p226, %p227
      %p229 = scmp.ne.s32.totalorder %s217, %s218
      %p230 = scmp.eq.s32.totalorder %s40, 1
      %p231 = por %p229, %p230
      %p233 = scmp.ne.s32.totalorder %s218, %s232
      %p234 = scmp.eq.s32.totalorder %s40, 0
      %p235 = por %p233, %p234
      %s237 = sadd.s32 %s236, 1
      %p240 = scmp.eq.s32.totalorder %s34, 1
      %p241 = scmp.ne.s32.totalorder %s236, %s238
      %p242 = scmp.eq.s32.totalorder %s34, 0
      %p243 = por %p241, %p242
      %p244 = scmp.ne.s32.totalorder %s236, %s238
      %p245 = scmp.eq.s32.totalorder %s39, 1
      %p246 = por %p244, %p245
      %p247 = scmp.ne.s32.totalorder %s238, %s239
      %p248 = scmp.eq.s32.totalorder %s39, 0
      %p249 = por %p247, %p248
      %p250 = scmp.ne.s32.totalorder %s238, %s239
      %p251 = scmp.eq.s32.totalorder %s40, 1
      %p252 = por %p250, %p251
      %p254 = scmp.ne.s32.totalorder %s239, %s253
      %p255 = scmp.eq.s32.totalorder %s40, 0
      %p256 = por %p254, %p255
      %s258 = sadd.s32 %s257, 1
      %p261 = scmp.eq.s32.totalorder %s34, 1
      %p262 = scmp.ne.s32.totalorder %s257, %s259
      %p263 = scmp.eq.s32.totalorder %s34, 0
      %p264 = por %p262, %p263
      %p265 = scmp.ne.s32.totalorder %s257, %s259
      %p266 = scmp.eq.s32.totalorder %s39, 1
      %p267 = por %p265, %p266
      %p268 = scmp.ne.s32.totalorder %s259, %s260
      %p269 = scmp.eq.s32.totalorder %s39, 0
      %p270 = por %p268, %p269
      %p271 = scmp.ne.s32.totalorder %s259, %s260
      %p272 = scmp.eq.s32.totalorder %s40, 1
      %p273 = por %p271, %p272
      %p275 = scmp.ne.s32.totalorder %s260, %s274
      %p276 = scmp.eq.s32.totalorder %s40, 0
      %p277 = por %p275, %p276
      %s279 = sadd.s32 %s278, 1
      %p282 = scmp.eq.s32.totalorder %s34, 1
      %p283 = scmp.ne.s32.totalorder %s278, %s280
      %p284 = scmp.eq.s32.totalorder %s34, 0
      %p285 = por %p283, %p284
      %p286 = scmp.ne.s32.totalorder %s278, %s280
      %p287 = scmp.eq.s32.totalorder %s39, 1
      %p288 = por %p286, %p287
      %p289 = scmp.ne.s32.totalorder %s280, %s281
      %p290 = scmp.eq.s32.totalorder %s39, 0
      %p291 = por %p289, %p290
      %p292 = scmp.ne.s32.totalorder %s280, %s281
      %p293 = scmp.eq.s32.totalorder %s40, 1
      %p294 = por %p292, %p293
      %p296 = scmp.ne.s32.totalorder %s281, %s295
      %p297 = scmp.eq.s32.totalorder %s40, 0
      %p298 = por %p296, %p297
      %s300 = sadd.s32 %s299, 1
      %p303 = scmp.eq.s32.totalorder %s34, 1
      %p304 = scmp.ne.s32.totalorder %s299, %s301
      %p305 = scmp.eq.s32.totalorder %s34, 0
      %p306 = por %p304, %p305
      %p307 = scmp.ne.s32.totalorder %s299, %s301
      %p308 = scmp.eq.s32.totalorder %s39, 1
      %p309 = por %p307, %p308
      %p310 = scmp.ne.s32.totalorder %s301, %s302
      %p311 = scmp.eq.s32.totalorder %s39, 0
      %p312 = por %p310, %p311
      %p313 = scmp.ne.s32.totalorder %s301, %s302
      %p314 = scmp.eq.s32.totalorder %s40, 1
      %p315 = por %p313, %p314
      %p317 = scmp.ne.s32.totalorder %s302, %s316
      %p318 = scmp.eq.s32.totalorder %s40, 0
      %p319 = por %p317, %p318
      %s321 = sadd.s32 %s320, 1
      %p324 = scmp.eq.s32.totalorder %s34, 1
      %p325 = scmp.ne.s32.totalorder %s320, %s322
      %p326 = scmp.eq.s32.totalorder %s34, 0
      %p327 = por %p325, %p326
      %p328 = scmp.ne.s32.totalorder %s320, %s322
      %p329 = scmp.eq.s32.totalorder %s39, 1
      %p330 = por %p328, %p329
      %p331 = scmp.ne.s32.totalorder %s322, %s323
      %p332 = scmp.eq.s32.totalorder %s39, 0
      %p333 = por %p331, %p332
      %p334 = scmp.ne.s32.totalorder %s322, %s323
      %p335 = scmp.eq.s32.totalorder %s40, 1
      %p336 = por %p334, %p335
      %p338 = scmp.ne.s32.totalorder %s323, %s337
      %p339 = scmp.eq.s32.totalorder %s40, 0
      %p340 = por %p338, %p339
      %s342 = sadd.s32 %s341, 1
      %p345 = scmp.eq.s32.totalorder %s34, 1
      %p346 = scmp.ne.s32.totalorder %s341, %s343
      %p347 = scmp.eq.s32.totalorder %s34, 0
      %p348 = por %p346, %p347
      %p349 = scmp.ne.s32.totalorder %s341, %s343
      %p350 = scmp.eq.s32.totalorder %s39, 1
      %p351 = por %p349, %p350
      %p352 = scmp.ne.s32.totalorder %s343, %s344
      %p353 = scmp.eq.s32.totalorder %s39, 0
      %p354 = por %p352, %p353
      %p355 = scmp.ne.s32.totalorder %s343, %s344
      %p356 = scmp.eq.s32.totalorder %s40, 1
      %p357 = por %p355, %p356
      %p359 = scmp.ne.s32.totalorder %s344, %s358
      %p360 = scmp.eq.s32.totalorder %s40, 0
      %p361 = por %p359, %p360
      %s363 = sadd.s32 %s362, 1
      %p366 = scmp.eq.s32.totalorder %s34, 1
      %p367 = scmp.ne.s32.totalorder %s362, %s364
      %p368 = scmp.eq.s32.totalorder %s34, 0
      %p369 = por %p367, %p368
      %p370 = scmp.ne.s32.totalorder %s362, %s364
      %p371 = scmp.eq.s32.totalorder %s39, 1
      %p372 = por %p370, %p371
      %p373 = scmp.ne.s32.totalorder %s364, %s365
      %p374 = scmp.eq.s32.totalorder %s39, 0
      %p375 = por %p373, %p374
      %p376 = scmp.ne.s32.totalorder %s364, %s365
      %p377 = scmp.eq.s32.totalorder %s40, 1
      %p378 = por %p376, %p377
      %p380 = scmp.ne.s32.totalorder %s365, %s379
      %p381 = scmp.eq.s32.totalorder %s40, 0
      %p382 = por %p380, %p381
      %s384 = sadd.s32 %s383, 1
      %p387 = scmp.eq.s32.totalorder %s34, 1
      %p388 = scmp.ne.s32.totalorder %s383, %s385
      %p389 = scmp.eq.s32.totalorder %s34, 0
      %p390 = por %p388, %p389
      %p391 = scmp.ne.s32.totalorder %s383, %s385
      %p392 = scmp.eq.s32.totalorder %s39, 1
      %p393 = por %p391, %p392
      %p394 = scmp.ne.s32.totalorder %s385, %s386
      %p395 = scmp.eq.s32.totalorder %s39, 0
      %p396 = por %p394, %p395
      %p397 = scmp.ne.s32.totalorder %s385, %s386
      %p398 = scmp.eq.s32.totalorder %s40, 1
      %p399 = por %p397, %p398
      %p401 = scmp.ne.s32.totalorder %s386, %s400
      %p402 = scmp.eq.s32.totalorder %s40, 0
      %p403 = por %p401, %p402
      %s405 = sadd.s32 %s404, 1
      %p408 = scmp.eq.s32.totalorder %s34, 1
      %p409 = scmp.ne.s32.totalorder %s404, %s406
      %p410 = scmp.eq.s32.totalorder %s34, 0
      %p411 = por %p409, %p410
      %p412 = scmp.ne.s32.totalorder %s404, %s406
      %p413 = scmp.eq.s32.totalorder %s39, 1
      %p414 = por %p412, %p413
      %p415 = scmp.ne.s32.totalorder %s406, %s407
      %p416 = scmp.eq.s32.totalorder %s39, 0
      %p417 = por %p415, %p416
      %p418 = scmp.ne.s32.totalorder %s406, %s407
      %p419 = scmp.eq.s32.totalorder %s40, 1
      %p420 = por %p418, %p419
      %p422 = scmp.ne.s32.totalorder %s407, %s421
      %p423 = scmp.eq.s32.totalorder %s40, 0
      %p424 = por %p422, %p423
      %s426 = sadd.s32 %s425, 1
      %p429 = scmp.eq.s32.totalorder %s34, 1
      %p430 = scmp.ne.s32.totalorder %s425, %s427
      %p431 = scmp.eq.s32.totalorder %s34, 0
      %p432 = por %p430, %p431
      %p433 = scmp.ne.s32.totalorder %s425, %s427
      %p434 = scmp.eq.s32.totalorder %s39, 1
      %p435 = por %p433, %p434
      %p436 = scmp.ne.s32.totalorder %s427, %s428
      %p437 = scmp.eq.s32.totalorder %s39, 0
      %p438 = por %p436, %p437
      %p439 = scmp.ne.s32.totalorder %s427, %s428
      %p440 = scmp.eq.s32.totalorder %s40, 1
      %p441 = por %p439, %p440
      %p443 = scmp.ne.s32.totalorder %s428, %s442
      %p444 = scmp.eq.s32.totalorder %s40, 0
      %p445 = por %p443, %p444
      %s446 = ssub.s32 %s34, %s41
      %p447 = scmp.eq.s32.totalorder %s446, 0
      %s449 = sadd.s32 %s448, 1
      %s450 = scalar_select %p447, %s448, %s449
      %p453 = pneg %p447
      %p454 = scmp.eq.s32.totalorder %s34, 1
      %p455 = por %p453, %p454
      %p456 = scmp.ne.s32.totalorder %s448, %s451
      %p457 = scmp.eq.s32.totalorder %s34, 0
      %p458 = por %p456, %p457
      %p459 = scmp.ne.s32.totalorder %s448, %s451
      %p460 = scmp.eq.s32.totalorder %s39, 1
      %p461 = por %p459, %p460
      %p462 = scmp.ne.s32.totalorder %s451, %s452
      %p463 = scmp.eq.s32.totalorder %s39, 0
      %p464 = por %p462, %p463
      %p465 = scmp.ne.s32.totalorder %s451, %s452
      %p466 = scmp.eq.s32.totalorder %s40, 1
      %p467 = por %p465, %p466
      %p469 = scmp.ne.s32.totalorder %s452, %s468
      %p470 = scmp.eq.s32.totalorder %s40, 0
      %p471 = por %p469, %p470
      %p472 = scmp.le.s32.totalorder 1, %s34
      %p473 = scmp.lt.s32.totalorder %s34, 3
      %p474 = pnand %p472, %p473
      %p475 = pneg %p474
      // Predicated region
      $region9: #{_ae_pallas.1} parent=5 // pred_check
        _
      $region10: #{_ae_pallas.1} parent=5 // pred_check_branch
        %477 = sbr.rel (%p474) target = $region12
      $region11: #{_ae_pallas.1} parent=5 // pred_region
        %s478 = ssub.s32 %s34, 1
        // Predicated region
        $region13: #{_ae_pallas.1} parent=11 // pred_check
          %p479 = pneg %p81
        $region14: #{_ae_pallas.1} parent=11 // pred_check_branch
          %481 = sbr.rel (%p479) target = $region16
        $region15: #{_ae_pallas.1} parent=11 // pred_region
          %483 = vsyncadd [#allocation6], 0
          %s484 = sshll.u32 %s1, 4
          %s485 = int_to_ptr.hbm [resolvable:$true] %s484
          %s486 = sshll.u32 [#allocation5], 4
          %s487 = int_to_ptr.vmem [resolvable:$true] %s486
          %492 = dma.hbm_to_vmem [thread:$0]  %s485, 4096, %s487, [#allocation6], 256, 256, 16
        $region16: #{_ae_pallas.1} parent=11 // pred_fallthru
          _
        // Predicated region
        $region17: #{_ae_pallas.1} parent=11 // pred_check
          %p493 = pneg %p102
        $region18: #{_ae_pallas.1} parent=11 // pred_check_branch
          %495 = sbr.rel (%p493) target = $region20
        $region19: #{_ae_pallas.1} parent=11 // pred_region
          _
        $region20: #{_ae_pallas.1} parent=11 // pred_fallthru
          _
        // Predicated region
        $region21: #{_ae_pallas.1} parent=11 // pred_check
          %p496 = pneg %p123
        $region22: #{_ae_pallas.1} parent=11 // pred_check_branch
          %498 = sbr.rel (%p496) target = $region24
        $region23: #{_ae_pallas.1} parent=11 // pred_region
          %500 = vsyncadd [#allocation6], 0
          %s501 = sshll.u32 %s3, 4
          %s502 = int_to_ptr.hbm [resolvable:$true] %s501
          %s503 = sshll.u32 [#allocation7], 4
          %s504 = int_to_ptr.vmem [resolvable:$true] %s503
          %509 = dma.hbm_to_vmem [thread:$0]  %s502, 8192, %s504, [#allocation6], 128, 128, 8
        $region24: #{_ae_pallas.1} parent=11 // pred_fallthru
          _
        // Predicated region
        $region25: #{_ae_pallas.1} parent=11 // pred_check
          %p510 = pneg %p144
        $region26: #{_ae_pallas.1} parent=11 // pred_check_branch
          %512 = sbr.rel (%p510) target = $region28
        $region27: #{_ae_pallas.1} parent=11 // pred_region
          %514 = vsyncadd [#allocation9], 0
          %s516 = sshll.u32 %s4, 4
          %s517 = int_to_ptr.hbm [resolvable:$true] %s516
          %s518 = sshll.u32 [#allocation8], 4
          %s519 = int_to_ptr.vmem [resolvable:$true] %s518
          %521 = dma.hbm_to_vmem [thread:$0]  %s517, 32, %s519, [#allocation9]
        $region28: #{_ae_pallas.1} parent=11 // pred_fallthru
          _
        // Predicated region
        $region29: #{_ae_pallas.1} parent=11 // pred_check
          %p522 = pneg %p165
        $region30: #{_ae_pallas.1} parent=11 // pred_check_branch
          %524 = sbr.rel (%p522) target = $region32
        $region31: #{_ae_pallas.1} parent=11 // pred_region
          _
        $region32: #{_ae_pallas.1} parent=11 // pred_fallthru
          _
        // Predicated region
        $region33: #{_ae_pallas.1} parent=11 // pred_check
          %p525 = pneg %p186
        $region34: #{_ae_pallas.1} parent=11 // pred_check_branch
          %527 = sbr.rel (%p525) target = $region36
        $region35: #{_ae_pallas.1} parent=11 // pred_region
          _
        $region36: #{_ae_pallas.1} parent=11 // pred_fallthru
          _
        // Predicated region
        $region37: #{_ae_pallas.1} parent=11 // pred_check
          %p528 = pneg %p207
        $region38: #{_ae_pallas.1} parent=11 // pred_check_branch
          %530 = sbr.rel (%p528) target = $region40
        $region39: #{_ae_pallas.1} parent=11 // pred_region
          _
        $region40: #{_ae_pallas.1} parent=11 // pred_fallthru
          _
        // Predicated region
        $region41: #{_ae_pallas.1} parent=11 // pred_check
          %p531 = pneg %p228
        $region42: #{_ae_pallas.1} parent=11 // pred_check_branch
          %533 = sbr.rel (%p531) target = $region44
        $region43: #{_ae_pallas.1} parent=11 // pred_region
          %535 = vsyncadd [#allocation9], 0
          %s537 = sshll.u32 %s8, 4
          %s538 = int_to_ptr.hbm [resolvable:$true] %s537
          %s539 = sshll.u32 [#allocation10], 4
          %s540 = int_to_ptr.vmem [resolvable:$true] %s539
          %542 = dma.hbm_to_vmem [thread:$0]  %s538, 16, %s540, [#allocation9]
        $region44: #{_ae_pallas.1} parent=11 // pred_fallthru
          _
        // Predicated region
        $region45: #{_ae_pallas.1} parent=11 // pred_check
          %p543 = pneg %p249
        $region46: #{_ae_pallas.1} parent=11 // pred_check_branch
          %545 = sbr.rel (%p543) target = $region48
        $region47: #{_ae_pallas.1} parent=11 // pred_region
          _
        $region48: #{_ae_pallas.1} parent=11 // pred_fallthru
          _
        // Predicated region
        $region49: #{_ae_pallas.1} parent=11 // pred_check
          %p546 = pneg %p270
        $region50: #{_ae_pallas.1} parent=11 // pred_check_branch
          %548 = sbr.rel (%p546) target = $region52
        $region51: #{_ae_pallas.1} parent=11 // pred_region
          _
        $region52: #{_ae_pallas.1} parent=11 // pred_fallthru
          _
        // Predicated region
        $region53: #{_ae_pallas.1} parent=11 // pred_check
          %p549 = pneg %p291
        $region54: #{_ae_pallas.1} parent=11 // pred_check_branch
          %551 = sbr.rel (%p549) target = $region56
        $region55: #{_ae_pallas.1} parent=11 // pred_region
          _
        $region56: #{_ae_pallas.1} parent=11 // pred_fallthru
          _
        // Predicated region
        $region57: #{_ae_pallas.1} parent=11 // pred_check
          %p552 = pneg %p312
        $region58: #{_ae_pallas.1} parent=11 // pred_check_branch
          %554 = sbr.rel (%p552) target = $region60
        $region59: #{_ae_pallas.1} parent=11 // pred_region
          _
        $region60: #{_ae_pallas.1} parent=11 // pred_fallthru
          _
        // Predicated region
        $region61: #{_ae_pallas.1} parent=11 // pred_check
          %p555 = pneg %p333
        $region62: #{_ae_pallas.1} parent=11 // pred_check_branch
          %557 = sbr.rel (%p555) target = $region64
        $region63: #{_ae_pallas.1} parent=11 // pred_region
          _
        $region64: #{_ae_pallas.1} parent=11 // pred_fallthru
          _
        // Predicated region
        $region65: #{_ae_pallas.1} parent=11 // pred_check
          %p558 = pneg %p354
        $region66: #{_ae_pallas.1} parent=11 // pred_check_branch
          %560 = sbr.rel (%p558) target = $region68
        $region67: #{_ae_pallas.1} parent=11 // pred_region
          _
        $region68: #{_ae_pallas.1} parent=11 // pred_fallthru
          _
        // Predicated region
        $region69: #{_ae_pallas.1} parent=11 // pred_check
          %p561 = pneg %p375
        $region70: #{_ae_pallas.1} parent=11 // pred_check_branch
          %563 = sbr.rel (%p561) target = $region72
        $region71: #{_ae_pallas.1} parent=11 // pred_region
          %565 = vsyncadd [#allocation12], 0
          %s566 = sshll.u32 %s15, 4
          %s567 = int_to_ptr.hbm [resolvable:$true] %s566
          %s568 = sshll.u32 [#allocation11], 4
          %s569 = int_to_ptr.vmem [resolvable:$true] %s568
          %574 = dma.hbm_to_vmem [thread:$0]  %s567, 2048, %s569, [#allocation12], 128, 128, 8
        $region72: #{_ae_pallas.1} parent=11 // pred_fallthru
          _
        // Predicated region
        $region73: #{_ae_pallas.1} parent=11 // pred_check
          %p575 = pneg %p396
        $region74: #{_ae_pallas.1} parent=11 // pred_check_branch
          %577 = sbr.rel (%p575) target = $region76
        $region75: #{_ae_pallas.1} parent=11 // pred_region
          _
        $region76: #{_ae_pallas.1} parent=11 // pred_fallthru
          _
        // Predicated region
        $region77: #{_ae_pallas.1} parent=11 // pred_check
          %p578 = pneg %p417
        $region78: #{_ae_pallas.1} parent=11 // pred_check_branch
          %580 = sbr.rel (%p578) target = $region80
        $region79: #{_ae_pallas.1} parent=11 // pred_region
          %582 = vsyncadd [#allocation12], 0
          %s583 = sshll.u32 %s17, 4
          %s584 = int_to_ptr.hbm [resolvable:$true] %s583
          %s585 = sshll.u32 [#allocation13], 4
          %s586 = int_to_ptr.vmem [resolvable:$true] %s585
          %591 = dma.hbm_to_vmem [thread:$0]  %s584, 2048, %s586, [#allocation12], 64, 64, 4
        $region80: #{_ae_pallas.1} parent=11 // pred_fallthru
          _
        // Predicated region
        $region81: #{_ae_pallas.1} parent=11 // pred_check
          %p592 = pneg %p438
        $region82: #{_ae_pallas.1} parent=11 // pred_check_branch
          %594 = sbr.rel (%p592) target = $region84
        $region83: #{_ae_pallas.1} parent=11 // pred_region
          _
        $region84: #{_ae_pallas.1} parent=11 // pred_fallthru
          _
      $region12: #{_ae_pallas.1} parent=5 // pred_fallthru
        _
      %p595 = scmp.lt.s32.totalorder %s34, 2
      // Predicated region
      $region85: #{_ae_pallas.1} parent=5 // pred_check
        %p596 = pneg %p595
      $region86: #{_ae_pallas.1} parent=5 // pred_check_branch
        %598 = sbr.rel (%p596) target = $region88
      $region87: #{_ae_pallas.1} parent=5 // pred_region
        // Predicated region
        $region89: #{_ae_pallas.1} parent=87 // pred_check
          %p599 = pneg %p54
        $region90: #{_ae_pallas.1} parent=87 // pred_check_branch
          %601 = sbr.rel (%p599) target = $region92
        $region91: #{_ae_pallas.1} parent=87 // pred_region
          %s602 = sand.u32 %s44, 1
          %s603 = scalar_lea.sflag [#allocation3], %s602
          %s604 = sand.u32 %s44, 1
          %s605 = smul.addr %s604, 128
          %s606 = scalar_lea.vmem [#allocation2], %s605
          %s607 = smul.u32 32, %s34
          %609 = vsyncadd %s603, 0
          %s610 = smul.addr %s607, 4
          %s611 = scalar_lea.hbm %s0, %s610
          %s612 = sshll.u32 %s611, 4
          %s613 = int_to_ptr.hbm [resolvable:$true] %s612
          %s614 = sshll.u32 %s606, 4
          %s615 = int_to_ptr.vmem [resolvable:$true] %s614
          %620 = dma.hbm_to_vmem [thread:$0]  %s613, 2048, %s615, %s603, 64, 64, 4
        $region92: #{_ae_pallas.1} parent=87 // pred_fallthru
          _
      $region88: #{_ae_pallas.1} parent=5 // pred_fallthru
        _
      %p621 = scmp.le.s32.totalorder 1, %s34
      %p622 = scmp.lt.s32.totalorder %s34, 3
      %p623 = pnand %p621, %p622
      %p624 = pneg %p623
      // Predicated region
      $region93: #{_ae_pallas.1} parent=5 // pred_check
        _
      $region94: #{_ae_pallas.1} parent=5 // pred_check_branch
        %626 = sbr.rel (%p623) target = $region96
      $region95: #{_ae_pallas.1} parent=5 // pred_region
        %s627 = ssub.s32 %s34, 1
        %s628 = sand.u32 %s47, 1
        %s629 = scalar_lea.sflag [#allocation3], %s628
        %s630 = sand.u32 %s47, 1
        %s631 = smul.addr %s630, 128
        %s632 = scalar_lea.vmem [#allocation2], %s631
        // Predicated region
        $region97: #{_ae_pallas.1} parent=95 // pred_check
          %p633 = pneg %p60
        $region98: #{_ae_pallas.1} parent=95 // pred_check_branch
          %635 = sbr.rel (%p633) target = $region100
        $region99: #{_ae_pallas.1} parent=95 // pred_region
          %637 = dma.done %s629, 2048
        $region100: #{_ae_pallas.1} parent=95 // pred_fallthru
          _
        // Predicated region
        $region101: #{_ae_pallas.1} parent=95 // pred_check
          %p638 = pneg %p81
        $region102: #{_ae_pallas.1} parent=95 // pred_check_branch
          %640 = sbr.rel (%p638) target = $region104
        $region103: #{_ae_pallas.1} parent=95 // pred_region
          %642 = dma.done [#allocation6], 4096
        $region104: #{_ae_pallas.1} parent=95 // pred_fallthru
          _
        // Predicated region
        $region105: #{_ae_pallas.1} parent=95 // pred_check
          %p643 = pneg %p123
        $region106: #{_ae_pallas.1} parent=95 // pred_check_branch
          %645 = sbr.rel (%p643) target = $region108
        $region107: #{_ae_pallas.1} parent=95 // pred_region
          %647 = dma.done [#allocation6], 8192
        $region108: #{_ae_pallas.1} parent=95 // pred_fallthru
          _
        // Predicated region
        $region109: #{_ae_pallas.1} parent=95 // pred_check
          %p648 = pneg %p144
        $region110: #{_ae_pallas.1} parent=95 // pred_check_branch
          %650 = sbr.rel (%p648) target = $region112
        $region111: #{_ae_pallas.1} parent=95 // pred_region
          %652 = dma.done [#allocation9], 32
        $region112: #{_ae_pallas.1} parent=95 // pred_fallthru
          _
        // Predicated region
        $region113: #{_ae_pallas.1} parent=95 // pred_check
          %p653 = pneg %p228
        $region114: #{_ae_pallas.1} parent=95 // pred_check_branch
          %655 = sbr.rel (%p653) target = $region116
        $region115: #{_ae_pallas.1} parent=95 // pred_region
          %657 = dma.done [#allocation9], 16
        $region116: #{_ae_pallas.1} parent=95 // pred_fallthru
          _
        // Predicated region
        $region117: #{_ae_pallas.1} parent=95 // pred_check
          %p658 = pneg %p375
        $region118: #{_ae_pallas.1} parent=95 // pred_check_branch
          %660 = sbr.rel (%p658) target = $region120
        $region119: #{_ae_pallas.1} parent=95 // pred_region
          %662 = dma.done [#allocation12], 2048
        $region120: #{_ae_pallas.1} parent=95 // pred_fallthru
          _
        // Predicated region
        $region121: #{_ae_pallas.1} parent=95 // pred_check
          %p663 = pneg %p417
        $region122: #{_ae_pallas.1} parent=95 // pred_check_branch
          %665 = sbr.rel (%p663) target = $region124
        $region123: #{_ae_pallas.1} parent=95 // pred_region
          %667 = dma.done [#allocation12], 2048
        $region124: #{_ae_pallas.1} parent=95 // pred_fallthru
          _
        %s668 = sand.u32 %s47, 1
        %s669 = scalar_lea.sflag [#allocation3], %s668
        %s670 = sand.u32 %s47, 1
        %s671 = smul.addr %s670, 128
        %s672 = scalar_lea.vmem [#allocation2], %s671
        %p673 = pneg %p60
        %p674 = pneg %p57
        %p675 = pneg %p81
        %p676 = pneg %p78
        %p677 = pneg %p102
        %p678 = pneg %p99
        %p679 = pneg %p123
        %p680 = pneg %p120
        %p681 = pneg %p144
        %p682 = pneg %p141
        %p683 = pneg %p165
        %p684 = pneg %p162
        %p685 = pneg %p186
        %p686 = pneg %p183
        %p687 = pneg %p207
        %p688 = pneg %p204
        %p689 = pneg %p228
        %p690 = pneg %p225
        %p691 = pneg %p249
        %p692 = pneg %p246
        %p693 = pneg %p270
        %p694 = pneg %p267
        %p695 = pneg %p291
        %p696 = pneg %p288
        %p697 = pneg %p312
        %p698 = pneg %p309
        %p699 = pneg %p333
        %p700 = pneg %p330
        %p701 = pneg %p354
        %p702 = pneg %p351
        %p703 = pneg %p375
        %p704 = pneg %p372
        %p705 = pneg %p396
        %p706 = pneg %p393
        %p707 = pneg %p417
        %p708 = pneg %p414
        %p709 = pneg %p438
        %p710 = pneg %p435
        %p711 = pneg %p464
        %p712 = pneg %p461
        %s713 = sand.u32 %s451, 1
        %s714 = scalar_lea.sflag [#allocation4], %s713
        %s715 = sand.u32 %s451, 1
        %s716 = smul.addr %s715, 128
        %s717 = scalar_lea.vmem [#allocation14], %s716
        %s718 = smul.u32 32, %s39
        %s719 = smul.u32 32, %s39
        %v721 = vld [vmem:[%s632] sm:$0xf]
        %v722 = vld [vmem:[%s632 + $0x4] sm:$0xf]
        %v723 = vld [vmem:[%s632 + $0x8] sm:$0xf]
        %v724 = vld [vmem:[%s632 + $0xc] sm:$0xf]
        %v725 = vld [vmem:[%s632 + $0x10] sm:$0xf]
        %v726 = vld [vmem:[%s632 + $0x14] sm:$0xf]
        %v727 = vld [vmem:[%s632 + $0x18] sm:$0xf]
        %v728 = vld [vmem:[%s632 + $0x1c] sm:$0xf]
        %v729 = vld [vmem:[%s632 + $0x20] sm:$0xf]
        %v730 = vld [vmem:[%s632 + $0x24] sm:$0xf]
        %v731 = vld [vmem:[%s632 + $0x28] sm:$0xf]
        %v732 = vld [vmem:[%s632 + $0x2c] sm:$0xf]
        %v733 = vld [vmem:[%s632 + $0x30] sm:$0xf]
        %v734 = vld [vmem:[%s632 + $0x34] sm:$0xf]
        %v735 = vld [vmem:[%s632 + $0x38] sm:$0xf]
        %v736 = vld [vmem:[%s632 + $0x3c] sm:$0xf]
        %v737 = vld [vmem:[%s632 + $0x40] sm:$0xf]
        %v738 = vld [vmem:[%s632 + $0x44] sm:$0xf]
        %v739 = vld [vmem:[%s632 + $0x48] sm:$0xf]
        %v740 = vld [vmem:[%s632 + $0x4c] sm:$0xf]
        %v741 = vld [vmem:[%s632 + $0x50] sm:$0xf]
        %v742 = vld [vmem:[%s632 + $0x54] sm:$0xf]
        %v743 = vld [vmem:[%s632 + $0x58] sm:$0xf]
        %v744 = vld [vmem:[%s632 + $0x5c] sm:$0xf]
        %v745 = vld [vmem:[%s632 + $0x60] sm:$0xf]
        %v746 = vld [vmem:[%s632 + $0x64] sm:$0xf]
        %v747 = vld [vmem:[%s632 + $0x68] sm:$0xf]
        %v748 = vld [vmem:[%s632 + $0x6c] sm:$0xf]
        %v749 = vld [vmem:[%s632 + $0x70] sm:$0xf]
        %v750 = vld [vmem:[%s632 + $0x74] sm:$0xf]
        %v751 = vld [vmem:[%s632 + $0x78] sm:$0xf]
        %v752 = vld [vmem:[%s632 + $0x7c] sm:$0xf]
        %v753 = vld [vmem:[#allocation5] sm:$0xff]
        %v754 = vld [vmem:[#allocation5 + $0x8] sm:$0xff]
        %v755 = vld [vmem:[#allocation5 + $0x10] sm:$0xff]
        %v756 = vld [vmem:[#allocation5 + $0x18] sm:$0xff]
        %v757 = vld [vmem:[#allocation5 + $0x20] sm:$0xff]
        %v758 = vld [vmem:[#allocation5 + $0x28] sm:$0xff]
        %v759 = vld [vmem:[#allocation5 + $0x30] sm:$0xff]
        %v760 = vld [vmem:[#allocation5 + $0x38] sm:$0xff]
        %v761 = vld [vmem:[#allocation5 + $0x40] sm:$0xff]
        %v762 = vld [vmem:[#allocation5 + $0x48] sm:$0xff]
        %v763 = vld [vmem:[#allocation5 + $0x50] sm:$0xff]
        %v764 = vld [vmem:[#allocation5 + $0x58] sm:$0xff]
        %v765 = vld [vmem:[#allocation5 + $0x60] sm:$0xff]
        %v766 = vld [vmem:[#allocation5 + $0x68] sm:$0xff]
        %v767 = vld [vmem:[#allocation5 + $0x70] sm:$0xff]
        %v768 = vld [vmem:[#allocation5 + $0x78] sm:$0xff]
        %v769 = vld [vmem:[#allocation5 + $0x80] sm:$0xff]
        %v770 = vld [vmem:[#allocation5 + $0x88] sm:$0xff]
        %v771 = vld [vmem:[#allocation5 + $0x90] sm:$0xff]
        %v772 = vld [vmem:[#allocation5 + $0x98] sm:$0xff]
        %v773 = vld [vmem:[#allocation5 + $0xa0] sm:$0xff]
        %v774 = vld [vmem:[#allocation5 + $0xa8] sm:$0xff]
        %v775 = vld [vmem:[#allocation5 + $0xb0] sm:$0xff]
        %v776 = vld [vmem:[#allocation5 + $0xb8] sm:$0xff]
        %v777 = vld [vmem:[#allocation5 + $0xc0] sm:$0xff]
        %v778 = vld [vmem:[#allocation5 + $0xc8] sm:$0xff]
        %v779 = vld [vmem:[#allocation5 + $0xd0] sm:$0xff]
        %v780 = vld [vmem:[#allocation5 + $0xd8] sm:$0xff]
        %v781 = vld [vmem:[#allocation5 + $0xe0] sm:$0xff]
        %v782 = vld [vmem:[#allocation5 + $0xe8] sm:$0xff]
        %v783 = vld [vmem:[#allocation5 + $0xf0] sm:$0xff]
        %v784 = vld [vmem:[#allocation5 + $0xf8] sm:$0xff]
        %v785 = vld [vmem:[%s2] sm:$0xf]
        %v787 = vperm.slane %v785, 0
        %v788 = vperm.slane %v785, 1
        %v789 = vperm.slane %v785, 2
        %v790 = vperm.slane %v785, 3
        %v827 = vunpack.c.l.b16 %v721
        %v828 = vunpack.c.l.b16 %v722
        %v829 = vunpack.c.l.b16 %v723
        %v830 = vunpack.c.l.b16 %v724
        %v831 = vunpack.c.l.b16 %v725
        %v832 = vunpack.c.l.b16 %v726
        %v833 = vunpack.c.l.b16 %v727
        %v834 = vunpack.c.l.b16 %v728
        %v835 = vunpack.c.l.b16 %v729
        %v836 = vunpack.c.l.b16 %v730
        %v837 = vunpack.c.l.b16 %v731
        %v838 = vunpack.c.l.b16 %v732
        %v839 = vunpack.c.l.b16 %v733
        %v840 = vunpack.c.l.b16 %v734
        %v841 = vunpack.c.l.b16 %v735
        %v842 = vunpack.c.l.b16 %v736
        %v843 = vunpack.c.l.b16 %v737
        %v844 = vunpack.c.l.b16 %v738
        %v845 = vunpack.c.l.b16 %v739
        %v846 = vunpack.c.l.b16 %v740
        %v847 = vunpack.c.l.b16 %v741
        %v848 = vunpack.c.l.b16 %v742
        %v849 = vunpack.c.l.b16 %v743
        %v850 = vunpack.c.l.b16 %v744
        %v851 = vunpack.c.l.b16 %v745
        %v852 = vunpack.c.l.b16 %v746
        %v853 = vunpack.c.l.b16 %v747
        %v854 = vunpack.c.l.b16 %v748
        %v855 = vunpack.c.l.b16 %v749
        %v856 = vunpack.c.l.b16 %v750
        %v857 = vunpack.c.l.b16 %v751
        %v858 = vunpack.c.l.b16 %v752
        %v859 = vpack.c.b16 %v828, %v827
        %v860 = vpack.c.b16 %v830, %v829
        %v861 = vpack.c.b16 %v832, %v831
        %v862 = vpack.c.b16 %v834, %v833
        %v863 = vpack.c.b16 %v836, %v835
        %v864 = vpack.c.b16 %v838, %v837
        %v865 = vpack.c.b16 %v840, %v839
        %v866 = vpack.c.b16 %v842, %v841
        %v867 = vpack.c.b16 %v844, %v843
        %v868 = vpack.c.b16 %v846, %v845
        %v869 = vpack.c.b16 %v848, %v847
        %v870 = vpack.c.b16 %v850, %v849
        %v871 = vpack.c.b16 %v852, %v851
        %v872 = vpack.c.b16 %v854, %v853
        %v873 = vpack.c.b16 %v856, %v855
        %v874 = vpack.c.b16 %v858, %v857
        %v923 = vunpack.c.l.b16 %v753
        %v924 = vunpack.c.h.b16 %v753
        %v925 = vunpack.c.l.b16 %v754
        %v926 = vunpack.c.h.b16 %v754
        %v927 = vunpack.c.l.b16 %v755
        %v928 = vunpack.c.h.b16 %v755
        %v929 = vunpack.c.l.b16 %v756
        %v930 = vunpack.c.h.b16 %v756
        %v931 = vunpack.c.l.b16 %v757
        %v932 = vunpack.c.h.b16 %v757
        %v933 = vunpack.c.l.b16 %v758
        %v934 = vunpack.c.h.b16 %v758
        %v935 = vunpack.c.l.b16 %v759
        %v936 = vunpack.c.h.b16 %v759
        %v937 = vunpack.c.l.b16 %v760
        %v938 = vunpack.c.h.b16 %v760
        %v939 = vunpack.c.l.b16 %v761
        %v940 = vunpack.c.h.b16 %v761
        %v941 = vunpack.c.l.b16 %v762
        %v942 = vunpack.c.h.b16 %v762
        %v943 = vunpack.c.l.b16 %v763
        %v944 = vunpack.c.h.b16 %v763
        %v945 = vunpack.c.l.b16 %v764
        %v946 = vunpack.c.h.b16 %v764
        %v947 = vunpack.c.l.b16 %v765
        %v948 = vunpack.c.h.b16 %v765
        %v949 = vunpack.c.l.b16 %v766
        %v950 = vunpack.c.h.b16 %v766
        %v951 = vunpack.c.l.b16 %v767
        %v952 = vunpack.c.h.b16 %v767
        %v953 = vunpack.c.l.b16 %v768
        %v954 = vunpack.c.h.b16 %v768
        %v955 = vunpack.c.l.b16 %v769
        %v956 = vunpack.c.h.b16 %v769
        %v957 = vunpack.c.l.b16 %v770
        %v958 = vunpack.c.h.b16 %v770
        %v959 = vunpack.c.l.b16 %v771
        %v960 = vunpack.c.h.b16 %v771
        %v961 = vunpack.c.l.b16 %v772
        %v962 = vunpack.c.h.b16 %v772
        %v963 = vunpack.c.l.b16 %v773
        %v964 = vunpack.c.h.b16 %v773
        %v965 = vunpack.c.l.b16 %v774
        %v966 = vunpack.c.h.b16 %v774
        %v967 = vunpack.c.l.b16 %v775
        %v968 = vunpack.c.h.b16 %v775
        %v969 = vunpack.c.l.b16 %v776
        %v970 = vunpack.c.h.b16 %v776
        %v971 = vunpack.c.l.b16 %v777
        %v972 = vunpack.c.h.b16 %v777
        %v973 = vunpack.c.l.b16 %v778
        %v974 = vunpack.c.h.b16 %v778
        %v975 = vunpack.c.l.b16 %v779
        %v976 = vunpack.c.h.b16 %v779
        %v977 = vunpack.c.l.b16 %v780
        %v978 = vunpack.c.h.b16 %v780
        %v979 = vunpack.c.l.b16 %v781
        %v980 = vunpack.c.h.b16 %v781
        %v981 = vunpack.c.l.b16 %v782
        %v982 = vunpack.c.h.b16 %v782
        %v983 = vunpack.c.l.b16 %v783
        %v984 = vunpack.c.h.b16 %v783
        %v985 = vunpack.c.l.b16 %v784
        %v986 = vunpack.c.h.b16 %v784
        %v987 = vpack.c.b16 %v927, %v923
        %v988 = vpack.c.b16 %v928, %v924
        %v989 = vpack.c.b16 %v929, %v925
        %v990 = vpack.c.b16 %v930, %v926
        %v991 = vpack.c.b16 %v935, %v931
        %v992 = vpack.c.b16 %v936, %v932
        %v993 = vpack.c.b16 %v937, %v933
        %v994 = vpack.c.b16 %v938, %v934
        %v995 = vpack.c.b16 %v943, %v939
        %v996 = vpack.c.b16 %v944, %v940
        %v997 = vpack.c.b16 %v945, %v941
        %v998 = vpack.c.b16 %v946, %v942
        %v999 = vpack.c.b16 %v951, %v947
        %v1000 = vpack.c.b16 %v952, %v948
        %v1001 = vpack.c.b16 %v953, %v949
        %v1002 = vpack.c.b16 %v954, %v950
        %v1003 = vpack.c.b16 %v959, %v955
        %v1004 = vpack.c.b16 %v960, %v956
        %v1005 = vpack.c.b16 %v961, %v957
        %v1006 = vpack.c.b16 %v962, %v958
        %v1007 = vpack.c.b16 %v967, %v963
        %v1008 = vpack.c.b16 %v968, %v964
        %v1009 = vpack.c.b16 %v969, %v965
        %v1010 = vpack.c.b16 %v970, %v966
        %v1011 = vpack.c.b16 %v975, %v971
        %v1012 = vpack.c.b16 %v976, %v972
        %v1013 = vpack.c.b16 %v977, %v973
        %v1014 = vpack.c.b16 %v978, %v974
        %v1015 = vpack.c.b16 %v983, %v979
        %v1016 = vpack.c.b16 %v984, %v980
        %v1017 = vpack.c.b16 %v985, %v981
        %v1018 = vpack.c.b16 %v986, %v982
        %1051 = vmatpush.bf16.msra.mxu0 %v1015
        %1052 = vmatpush.bf16.msra.mxu0 %v1011
        %1053 = vmatpush.bf16.msra.mxu0 %v1007
        %1054 = vmatpush.bf16.msra.mxu0 %v1003
        %1055 = vmatpush.bf16.msra.mxu0 %v999
        %1056 = vmatpush.bf16.msra.mxu0 %v995
        %1057 = vmatpush.bf16.msra.mxu0 %v991
        %1058 = vmatpush.bf16.msra.mxu0 %v987
        %1059 = vmatmul.bf16.gmra.mxu0 %v859
        %v1060 = vpop.f32.mrf.mxu0
        %v1061 = vadd.f32 %v787, %v1060
        %v1062 = vpop.f32.mrf.mxu0
        %v1063 = vadd.f32 %v787, %v1062
        %1064 = vmatmul.bf16.gmra.mxu0 %v860
        %v1065 = vpop.f32.mrf.mxu0
        %v1066 = vadd.f32 %v787, %v1065
        %v1067 = vpop.f32.mrf.mxu0
        %v1068 = vadd.f32 %v787, %v1067
        %1069 = vmatmul.bf16.gmra.mxu0 %v861
        %v1070 = vpop.f32.mrf.mxu0
        %v1071 = vadd.f32 %v787, %v1070
        %v1072 = vpop.f32.mrf.mxu0
        %v1073 = vadd.f32 %v787, %v1072
        %1074 = vmatmul.bf16.gmra.mxu0 %v862
        %v1075 = vpop.f32.mrf.mxu0
        %v1076 = vadd.f32 %v787, %v1075
        %v1077 = vpop.f32.mrf.mxu0
        %v1078 = vadd.f32 %v787, %v1077
        %1079 = vmatmul.bf16.gmra.mxu0 %v863
        %v1080 = vpop.f32.mrf.mxu0
        %v1081 = vadd.f32 %v787, %v1080
        %v1082 = vpop.f32.mrf.mxu0
        %v1083 = vadd.f32 %v787, %v1082
        %1084 = vmatmul.bf16.gmra.mxu0 %v864
        %v1085 = vpop.f32.mrf.mxu0
        %v1086 = vadd.f32 %v787, %v1085
        %v1087 = vpop.f32.mrf.mxu0
        %v1088 = vadd.f32 %v787, %v1087
        %1089 = vmatmul.bf16.gmra.mxu0 %v865
        %v1090 = vpop.f32.mrf.mxu0
        %v1091 = vadd.f32 %v787, %v1090
        %v1092 = vpop.f32.mrf.mxu0
        %v1093 = vadd.f32 %v787, %v1092
        %1094 = vmatmul.bf16.gmra.mxu0 %v866
        %v1095 = vpop.f32.mrf.mxu0
        %v1096 = vadd.f32 %v787, %v1095
        %v1097 = vpop.f32.mrf.mxu0
        %v1098 = vadd.f32 %v787, %v1097
        %1099 = vmatmul.bf16.gmra.mxu0 %v867
        %v1100 = vpop.f32.mrf.mxu0
        %v1101 = vadd.f32 %v787, %v1100
        %v1102 = vpop.f32.mrf.mxu0
        %v1103 = vadd.f32 %v787, %v1102
        %1104 = vmatmul.bf16.gmra.mxu0 %v868
        %v1105 = vpop.f32.mrf.mxu0
        %v1106 = vadd.f32 %v787, %v1105
        %v1107 = vpop.f32.mrf.mxu0
        %v1108 = vadd.f32 %v787, %v1107
        %1109 = vmatmul.bf16.gmra.mxu0 %v869
        %v1110 = vpop.f32.mrf.mxu0
        %v1111 = vadd.f32 %v787, %v1110
        %v1112 = vpop.f32.mrf.mxu0
        %v1113 = vadd.f32 %v787, %v1112
        %1114 = vmatmul.bf16.gmra.mxu0 %v870
        %v1115 = vpop.f32.mrf.mxu0
        %v1116 = vadd.f32 %v787, %v1115
        %v1117 = vpop.f32.mrf.mxu0
        %v1118 = vadd.f32 %v787, %v1117
        %1119 = vmatmul.bf16.gmra.mxu0 %v871
        %v1120 = vpop.f32.mrf.mxu0
        %v1121 = vadd.f32 %v787, %v1120
        %v1122 = vpop.f32.mrf.mxu0
        %v1123 = vadd.f32 %v787, %v1122
        %1124 = vmatmul.bf16.gmra.mxu0 %v872
        %v1125 = vpop.f32.mrf.mxu0
        %v1126 = vadd.f32 %v787, %v1125
        %v1127 = vpop.f32.mrf.mxu0
        %v1128 = vadd.f32 %v787, %v1127
        %1129 = vmatmul.bf16.gmra.mxu0 %v873
        %v1130 = vpop.f32.mrf.mxu0
        %v1131 = vadd.f32 %v787, %v1130
        %v1132 = vpop.f32.mrf.mxu0
        %v1133 = vadd.f32 %v787, %v1132
        %1134 = vmatmul.bf16.gmra.mxu0 %v874
        %v1135 = vpop.f32.mrf.mxu0
        %v1136 = vadd.f32 %v787, %v1135
        %v1137 = vpop.f32.mrf.mxu0
        %v1138 = vadd.f32 %v787, %v1137
        %1139 = vdwg.mxu0
        %1140 = vmatpush.bf16.msra.mxu0 %v1016
        %1141 = vmatpush.bf16.msra.mxu0 %v1012
        %1142 = vmatpush.bf16.msra.mxu0 %v1008
        %1143 = vmatpush.bf16.msra.mxu0 %v1004
        %1144 = vmatpush.bf16.msra.mxu0 %v1000
        %1145 = vmatpush.bf16.msra.mxu0 %v996
        %1146 = vmatpush.bf16.msra.mxu0 %v992
        %1147 = vmatpush.bf16.msra.mxu0 %v988
        %1148 = vmatmul.bf16.gmra.mxu0 %v859
        %v1149 = vpop.f32.mrf.mxu0
        %v1150 = vadd.f32 %v788, %v1149
        %v1151 = vpop.f32.mrf.mxu0
        %v1152 = vadd.f32 %v788, %v1151
        %1153 = vmatmul.bf16.gmra.mxu0 %v860
        %v1154 = vpop.f32.mrf.mxu0
        %v1155 = vadd.f32 %v788, %v1154
        %v1156 = vpop.f32.mrf.mxu0
        %v1157 = vadd.f32 %v788, %v1156
        %1158 = vmatmul.bf16.gmra.mxu0 %v861
        %v1159 = vpop.f32.mrf.mxu0
        %v1160 = vadd.f32 %v788, %v1159
        %v1161 = vpop.f32.mrf.mxu0
        %v1162 = vadd.f32 %v788, %v1161
        %1163 = vmatmul.bf16.gmra.mxu0 %v862
        %v1164 = vpop.f32.mrf.mxu0
        %v1165 = vadd.f32 %v788, %v1164
        %v1166 = vpop.f32.mrf.mxu0
        %v1167 = vadd.f32 %v788, %v1166
        %1168 = vmatmul.bf16.gmra.mxu0 %v863
        %v1169 = vpop.f32.mrf.mxu0
        %v1170 = vadd.f32 %v788, %v1169
        %v1171 = vpop.f32.mrf.mxu0
        %v1172 = vadd.f32 %v788, %v1171
        %1173 = vmatmul.bf16.gmra.mxu0 %v864
        %v1174 = vpop.f32.mrf.mxu0
        %v1175 = vadd.f32 %v788, %v1174
        %v1176 = vpop.f32.mrf.mxu0
        %v1177 = vadd.f32 %v788, %v1176
        %1178 = vmatmul.bf16.gmra.mxu0 %v865
        %v1179 = vpop.f32.mrf.mxu0
        %v1180 = vadd.f32 %v788, %v1179
        %v1181 = vpop.f32.mrf.mxu0
        %v1182 = vadd.f32 %v788, %v1181
        %1183 = vmatmul.bf16.gmra.mxu0 %v866
        %v1184 = vpop.f32.mrf.mxu0
        %v1185 = vadd.f32 %v788, %v1184
        %v1186 = vpop.f32.mrf.mxu0
        %v1187 = vadd.f32 %v788, %v1186
        %1188 = vmatmul.bf16.gmra.mxu0 %v867
        %v1189 = vpop.f32.mrf.mxu0
        %v1190 = vadd.f32 %v788, %v1189
        %v1191 = vpop.f32.mrf.mxu0
        %v1192 = vadd.f32 %v788, %v1191
        %1193 = vmatmul.bf16.gmra.mxu0 %v868
        %v1194 = vpop.f32.mrf.mxu0
        %v1195 = vadd.f32 %v788, %v1194
        %v1196 = vpop.f32.mrf.mxu0
        %v1197 = vadd.f32 %v788, %v1196
        %1198 = vmatmul.bf16.gmra.mxu0 %v869
        %v1199 = vpop.f32.mrf.mxu0
        %v1200 = vadd.f32 %v788, %v1199
        %v1201 = vpop.f32.mrf.mxu0
        %v1202 = vadd.f32 %v788, %v1201
        %1203 = vmatmul.bf16.gmra.mxu0 %v870
        %v1204 = vpop.f32.mrf.mxu0
        %v1205 = vadd.f32 %v788, %v1204
        %v1206 = vpop.f32.mrf.mxu0
        %v1207 = vadd.f32 %v788, %v1206
        %1208 = vmatmul.bf16.gmra.mxu0 %v871
        %v1209 = vpop.f32.mrf.mxu0
        %v1210 = vadd.f32 %v788, %v1209
        %v1211 = vpop.f32.mrf.mxu0
        %v1212 = vadd.f32 %v788, %v1211
        %1213 = vmatmul.bf16.gmra.mxu0 %v872
        %v1214 = vpop.f32.mrf.mxu0
        %v1215 = vadd.f32 %v788, %v1214
        %v1216 = vpop.f32.mrf.mxu0
        %v1217 = vadd.f32 %v788, %v1216
        %1218 = vmatmul.bf16.gmra.mxu0 %v873
        %v1219 = vpop.f32.mrf.mxu0
        %v1220 = vadd.f32 %v788, %v1219
        %v1221 = vpop.f32.mrf.mxu0
        %v1222 = vadd.f32 %v788, %v1221
        %1223 = vmatmul.bf16.gmra.mxu0 %v874
        %v1224 = vpop.f32.mrf.mxu0
        %v1225 = vadd.f32 %v788, %v1224
        %v1226 = vpop.f32.mrf.mxu0
        %v1227 = vadd.f32 %v788, %v1226
        %1228 = vdwg.mxu0
        %1229 = vmatpush.bf16.msra.mxu0 %v1017
        %1230 = vmatpush.bf16.msra.mxu0 %v1013
        %1231 = vmatpush.bf16.msra.mxu0 %v1009
        %1232 = vmatpush.bf16.msra.mxu0 %v1005
        %1233 = vmatpush.bf16.msra.mxu0 %v1001
        %1234 = vmatpush.bf16.msra.mxu0 %v997
        %1235 = vmatpush.bf16.msra.mxu0 %v993
        %1236 = vmatpush.bf16.msra.mxu0 %v989
        %1237 = vmatmul.bf16.gmra.mxu0 %v859
        %v1238 = vpop.f32.mrf.mxu0
        %v1239 = vadd.f32 %v789, %v1238
        %v1240 = vpop.f32.mrf.mxu0
        %v1241 = vadd.f32 %v789, %v1240
        %1242 = vmatmul.bf16.gmra.mxu0 %v860
        %v1243 = vpop.f32.mrf.mxu0
        %v1244 = vadd.f32 %v789, %v1243
        %v1245 = vpop.f32.mrf.mxu0
        %v1246 = vadd.f32 %v789, %v1245
        %1247 = vmatmul.bf16.gmra.mxu0 %v861
        %v1248 = vpop.f32.mrf.mxu0
        %v1249 = vadd.f32 %v789, %v1248
        %v1250 = vpop.f32.mrf.mxu0
        %v1251 = vadd.f32 %v789, %v1250
        %1252 = vmatmul.bf16.gmra.mxu0 %v862
        %v1253 = vpop.f32.mrf.mxu0
        %v1254 = vadd.f32 %v789, %v1253
        %v1255 = vpop.f32.mrf.mxu0
        %v1256 = vadd.f32 %v789, %v1255
        %1257 = vmatmul.bf16.gmra.mxu0 %v863
        %v1258 = vpop.f32.mrf.mxu0
        %v1259 = vadd.f32 %v789, %v1258
        %v1260 = vpop.f32.mrf.mxu0
        %v1261 = vadd.f32 %v789, %v1260
        %1262 = vmatmul.bf16.gmra.mxu0 %v864
        %v1263 = vpop.f32.mrf.mxu0
        %v1264 = vadd.f32 %v789, %v1263
        %v1265 = vpop.f32.mrf.mxu0
        %v1266 = vadd.f32 %v789, %v1265
        %1267 = vmatmul.bf16.gmra.mxu0 %v865
        %v1268 = vpop.f32.mrf.mxu0
        %v1269 = vadd.f32 %v789, %v1268
        %v1270 = vpop.f32.mrf.mxu0
        %v1271 = vadd.f32 %v789, %v1270
        %1272 = vmatmul.bf16.gmra.mxu0 %v866
        %v1273 = vpop.f32.mrf.mxu0
        %v1274 = vadd.f32 %v789, %v1273
        %v1275 = vpop.f32.mrf.mxu0
        %v1276 = vadd.f32 %v789, %v1275
        %1277 = vmatmul.bf16.gmra.mxu0 %v867
        %v1278 = vpop.f32.mrf.mxu0
        %v1279 = vadd.f32 %v789, %v1278
        %v1280 = vpop.f32.mrf.mxu0
        %v1281 = vadd.f32 %v789, %v1280
        %1282 = vmatmul.bf16.gmra.mxu0 %v868
        %v1283 = vpop.f32.mrf.mxu0
        %v1284 = vadd.f32 %v789, %v1283
        %v1285 = vpop.f32.mrf.mxu0
        %v1286 = vadd.f32 %v789, %v1285
        %1287 = vmatmul.bf16.gmra.mxu0 %v869
        %v1288 = vpop.f32.mrf.mxu0
        %v1289 = vadd.f32 %v789, %v1288
        %v1290 = vpop.f32.mrf.mxu0
        %v1291 = vadd.f32 %v789, %v1290
        %1292 = vmatmul.bf16.gmra.mxu0 %v870
        %v1293 = vpop.f32.mrf.mxu0
        %v1294 = vadd.f32 %v789, %v1293
        %v1295 = vpop.f32.mrf.mxu0
        %v1296 = vadd.f32 %v789, %v1295
        %1297 = vmatmul.bf16.gmra.mxu0 %v871
        %v1298 = vpop.f32.mrf.mxu0
        %v1299 = vadd.f32 %v789, %v1298
        %v1300 = vpop.f32.mrf.mxu0
        %v1301 = vadd.f32 %v789, %v1300
        %1302 = vmatmul.bf16.gmra.mxu0 %v872
        %v1303 = vpop.f32.mrf.mxu0
        %v1304 = vadd.f32 %v789, %v1303
        %v1305 = vpop.f32.mrf.mxu0
        %v1306 = vadd.f32 %v789, %v1305
        %1307 = vmatmul.bf16.gmra.mxu0 %v873
        %v1308 = vpop.f32.mrf.mxu0
        %v1309 = vadd.f32 %v789, %v1308
        %v1310 = vpop.f32.mrf.mxu0
        %v1311 = vadd.f32 %v789, %v1310
        %1312 = vmatmul.bf16.gmra.mxu0 %v874
        %v1313 = vpop.f32.mrf.mxu0
        %v1314 = vadd.f32 %v789, %v1313
        %v1315 = vpop.f32.mrf.mxu0
        %v1316 = vadd.f32 %v789, %v1315
        %1317 = vdwg.mxu0
        %1318 = vmatpush.bf16.msra.mxu0 %v1018
        %1319 = vmatpush.bf16.msra.mxu0 %v1014
        %1320 = vmatpush.bf16.msra.mxu0 %v1010
        %1321 = vmatpush.bf16.msra.mxu0 %v1006
        %1322 = vmatpush.bf16.msra.mxu0 %v1002
        %1323 = vmatpush.bf16.msra.mxu0 %v998
        %1324 = vmatpush.bf16.msra.mxu0 %v994
        %1325 = vmatpush.bf16.msra.mxu0 %v990
        %1326 = vmatmul.bf16.gmra.mxu0 %v859
        %v1327 = vpop.f32.mrf.mxu0
        %v1328 = vadd.f32 %v790, %v1327
        %v1329 = vpop.f32.mrf.mxu0
        %v1330 = vadd.f32 %v790, %v1329
        %1331 = vmatmul.bf16.gmra.mxu0 %v860
        %v1332 = vpop.f32.mrf.mxu0
        %v1333 = vadd.f32 %v790, %v1332
        %v1334 = vpop.f32.mrf.mxu0
        %v1335 = vadd.f32 %v790, %v1334
        %1336 = vmatmul.bf16.gmra.mxu0 %v861
        %v1337 = vpop.f32.mrf.mxu0
        %v1338 = vadd.f32 %v790, %v1337
        %v1339 = vpop.f32.mrf.mxu0
        %v1340 = vadd.f32 %v790, %v1339
        %1341 = vmatmul.bf16.gmra.mxu0 %v862
        %v1342 = vpop.f32.mrf.mxu0
        %v1343 = vadd.f32 %v790, %v1342
        %v1344 = vpop.f32.mrf.mxu0
        %v1345 = vadd.f32 %v790, %v1344
        %1346 = vmatmul.bf16.gmra.mxu0 %v863
        %v1347 = vpop.f32.mrf.mxu0
        %v1348 = vadd.f32 %v790, %v1347
        %v1349 = vpop.f32.mrf.mxu0
        %v1350 = vadd.f32 %v790, %v1349
        %1351 = vmatmul.bf16.gmra.mxu0 %v864
        %v1352 = vpop.f32.mrf.mxu0
        %v1353 = vadd.f32 %v790, %v1352
        %v1354 = vpop.f32.mrf.mxu0
        %v1355 = vadd.f32 %v790, %v1354
        %1356 = vmatmul.bf16.gmra.mxu0 %v865
        %v1357 = vpop.f32.mrf.mxu0
        %v1358 = vadd.f32 %v790, %v1357
        %v1359 = vpop.f32.mrf.mxu0
        %v1360 = vadd.f32 %v790, %v1359
        %1361 = vmatmul.bf16.gmra.mxu0 %v866
        %v1362 = vpop.f32.mrf.mxu0
        %v1363 = vadd.f32 %v790, %v1362
        %v1364 = vpop.f32.mrf.mxu0
        %v1365 = vadd.f32 %v790, %v1364
        %1366 = vmatmul.bf16.gmra.mxu0 %v867
        %v1367 = vpop.f32.mrf.mxu0
        %v1368 = vadd.f32 %v790, %v1367
        %v1369 = vpop.f32.mrf.mxu0
        %v1370 = vadd.f32 %v790, %v1369
        %1371 = vmatmul.bf16.gmra.mxu0 %v868
        %v1372 = vpop.f32.mrf.mxu0
        %v1373 = vadd.f32 %v790, %v1372
        %v1374 = vpop.f32.mrf.mxu0
        %v1375 = vadd.f32 %v790, %v1374
        %1376 = vmatmul.bf16.gmra.mxu0 %v869
        %v1377 = vpop.f32.mrf.mxu0
        %v1378 = vadd.f32 %v790, %v1377
        %v1379 = vpop.f32.mrf.mxu0
        %v1380 = vadd.f32 %v790, %v1379
        %1381 = vmatmul.bf16.gmra.mxu0 %v870
        %v1382 = vpop.f32.mrf.mxu0
        %v1383 = vadd.f32 %v790, %v1382
        %v1384 = vpop.f32.mrf.mxu0
        %v1385 = vadd.f32 %v790, %v1384
        %1386 = vmatmul.bf16.gmra.mxu0 %v871
        %v1387 = vpop.f32.mrf.mxu0
        %v1388 = vadd.f32 %v790, %v1387
        %v1389 = vpop.f32.mrf.mxu0
        %v1390 = vadd.f32 %v790, %v1389
        %1391 = vmatmul.bf16.gmra.mxu0 %v872
        %v1392 = vpop.f32.mrf.mxu0
        %v1393 = vadd.f32 %v790, %v1392
        %v1394 = vpop.f32.mrf.mxu0
        %v1395 = vadd.f32 %v790, %v1394
        %1396 = vmatmul.bf16.gmra.mxu0 %v873
        %v1397 = vpop.f32.mrf.mxu0
        %v1398 = vadd.f32 %v790, %v1397
        %v1399 = vpop.f32.mrf.mxu0
        %v1400 = vadd.f32 %v790, %v1399
        %1401 = vmatmul.bf16.gmra.mxu0 %v874
        %v1402 = vpop.f32.mrf.mxu0
        %v1403 = vadd.f32 %v790, %v1402
        %v1404 = vpop.f32.mrf.mxu0
        %v1405 = vadd.f32 %v790, %v1404
        %1406 = vdwg.mxu0
        %v1407 = vpack.c.bf16 %v1150, %v1061
        %v1408 = vpack.c.bf16 %v1328, %v1239
        %v1409 = vpack.c.bf16 %v1152, %v1063
        %v1410 = vpack.c.bf16 %v1330, %v1241
        %v1411 = vpack.c.bf16 %v1155, %v1066
        %v1412 = vpack.c.bf16 %v1333, %v1244
        %v1413 = vpack.c.bf16 %v1157, %v1068
        %v1414 = vpack.c.bf16 %v1335, %v1246
        %v1415 = vpack.c.bf16 %v1160, %v1071
        %v1416 = vpack.c.bf16 %v1338, %v1249
        %v1417 = vpack.c.bf16 %v1162, %v1073
        %v1418 = vpack.c.bf16 %v1340, %v1251
        %v1419 = vpack.c.bf16 %v1165, %v1076
        %v1420 = vpack.c.bf16 %v1343, %v1254
        %v1421 = vpack.c.bf16 %v1167, %v1078
        %v1422 = vpack.c.bf16 %v1345, %v1256
        %v1423 = vpack.c.bf16 %v1170, %v1081
        %v1424 = vpack.c.bf16 %v1348, %v1259
        %v1425 = vpack.c.bf16 %v1172, %v1083
        %v1426 = vpack.c.bf16 %v1350, %v1261
        %v1427 = vpack.c.bf16 %v1175, %v1086
        %v1428 = vpack.c.bf16 %v1353, %v1264
        %v1429 = vpack.c.bf16 %v1177, %v1088
        %v1430 = vpack.c.bf16 %v1355, %v1266
        %v1431 = vpack.c.bf16 %v1180, %v1091
        %v1432 = vpack.c.bf16 %v1358, %v1269
        %v1433 = vpack.c.bf16 %v1182, %v1093
        %v1434 = vpack.c.bf16 %v1360, %v1271
        %v1435 = vpack.c.bf16 %v1185, %v1096
        %v1436 = vpack.c.bf16 %v1363, %v1274
        %v1437 = vpack.c.bf16 %v1187, %v1098
        %v1438 = vpack.c.bf16 %v1365, %v1276
        %v1439 = vpack.c.bf16 %v1190, %v1101
        %v1440 = vpack.c.bf16 %v1368, %v1279
        %v1441 = vpack.c.bf16 %v1192, %v1103
        %v1442 = vpack.c.bf16 %v1370, %v1281
        %v1443 = vpack.c.bf16 %v1195, %v1106
        %v1444 = vpack.c.bf16 %v1373, %v1284
        %v1445 = vpack.c.bf16 %v1197, %v1108
        %v1446 = vpack.c.bf16 %v1375, %v1286
        %v1447 = vpack.c.bf16 %v1200, %v1111
        %v1448 = vpack.c.bf16 %v1378, %v1289
        %v1449 = vpack.c.bf16 %v1202, %v1113
        %v1450 = vpack.c.bf16 %v1380, %v1291
        %v1451 = vpack.c.bf16 %v1205, %v1116
        %v1452 = vpack.c.bf16 %v1383, %v1294
        %v1453 = vpack.c.bf16 %v1207, %v1118
        %v1454 = vpack.c.bf16 %v1385, %v1296
        %v1455 = vpack.c.bf16 %v1210, %v1121
        %v1456 = vpack.c.bf16 %v1388, %v1299
        %v1457 = vpack.c.bf16 %v1212, %v1123
        %v1458 = vpack.c.bf16 %v1390, %v1301
        %v1459 = vpack.c.bf16 %v1215, %v1126
        %v1460 = vpack.c.bf16 %v1393, %v1304
        %v1461 = vpack.c.bf16 %v1217, %v1128
        %v1462 = vpack.c.bf16 %v1395, %v1306
        %v1463 = vpack.c.bf16 %v1220, %v1131
        %v1464 = vpack.c.bf16 %v1398, %v1309
        %v1465 = vpack.c.bf16 %v1222, %v1133
        %v1466 = vpack.c.bf16 %v1400, %v1311
        %v1467 = vpack.c.bf16 %v1225, %v1136
        %v1468 = vpack.c.bf16 %v1403, %v1314
        %v1469 = vpack.c.bf16 %v1227, %v1138
        %v1470 = vpack.c.bf16 %v1405, %v1316
        %v1471 = vunpack.c.l.bf16 %v1407
        %v1472 = vunpack.c.h.bf16 %v1407
        %v1473 = vunpack.c.l.bf16 %v1408
        %v1474 = vunpack.c.h.bf16 %v1408
        %v1475 = vunpack.c.l.bf16 %v1409
        %v1476 = vunpack.c.h.bf16 %v1409
        %v1477 = vunpack.c.l.bf16 %v1410
        %v1478 = vunpack.c.h.bf16 %v1410
        %v1479 = vunpack.c.l.bf16 %v1411
        %v1480 = vunpack.c.h.bf16 %v1411
        %v1481 = vunpack.c.l.bf16 %v1412
        %v1482 = vunpack.c.h.bf16 %v1412
        %v1483 = vunpack.c.l.bf16 %v1413
        %v1484 = vunpack.c.h.bf16 %v1413
        %v1485 = vunpack.c.l.bf16 %v1414
        %v1486 = vunpack.c.h.bf16 %v1414
        %v1487 = vunpack.c.l.bf16 %v1415
        %v1488 = vunpack.c.h.bf16 %v1415
        %v1489 = vunpack.c.l.bf16 %v1416
        %v1490 = vunpack.c.h.bf16 %v1416
        %v1491 = vunpack.c.l.bf16 %v1417
        %v1492 = vunpack.c.h.bf16 %v1417
        %v1493 = vunpack.c.l.bf16 %v1418
        %v1494 = vunpack.c.h.bf16 %v1418
        %v1495 = vunpack.c.l.bf16 %v1419
        %v1496 = vunpack.c.h.bf16 %v1419
        %v1497 = vunpack.c.l.bf16 %v1420
        %v1498 = vunpack.c.h.bf16 %v1420
        %v1499 = vunpack.c.l.bf16 %v1421
        %v1500 = vunpack.c.h.bf16 %v1421
        %v1501 = vunpack.c.l.bf16 %v1422
        %v1502 = vunpack.c.h.bf16 %v1422
        %v1503 = vunpack.c.l.bf16 %v1423
        %v1504 = vunpack.c.h.bf16 %v1423
        %v1505 = vunpack.c.l.bf16 %v1424
        %v1506 = vunpack.c.h.bf16 %v1424
        %v1507 = vunpack.c.l.bf16 %v1425
        %v1508 = vunpack.c.h.bf16 %v1425
        %v1509 = vunpack.c.l.bf16 %v1426
        %v1510 = vunpack.c.h.bf16 %v1426
        %v1511 = vunpack.c.l.bf16 %v1427
        %v1512 = vunpack.c.h.bf16 %v1427
        %v1513 = vunpack.c.l.bf16 %v1428
        %v1514 = vunpack.c.h.bf16 %v1428
        %v1515 = vunpack.c.l.bf16 %v1429
        %v1516 = vunpack.c.h.bf16 %v1429
        %v1517 = vunpack.c.l.bf16 %v1430
        %v1518 = vunpack.c.h.bf16 %v1430
        %v1519 = vunpack.c.l.bf16 %v1431
        %v1520 = vunpack.c.h.bf16 %v1431
        %v1521 = vunpack.c.l.bf16 %v1432
        %v1522 = vunpack.c.h.bf16 %v1432
        %v1523 = vunpack.c.l.bf16 %v1433
        %v1524 = vunpack.c.h.bf16 %v1433
        %v1525 = vunpack.c.l.bf16 %v1434
        %v1526 = vunpack.c.h.bf16 %v1434
        %v1527 = vunpack.c.l.bf16 %v1435
        %v1528 = vunpack.c.h.bf16 %v1435
        %v1529 = vunpack.c.l.bf16 %v1436
        %v1530 = vunpack.c.h.bf16 %v1436
        %v1531 = vunpack.c.l.bf16 %v1437
        %v1532 = vunpack.c.h.bf16 %v1437
        %v1533 = vunpack.c.l.bf16 %v1438
        %v1534 = vunpack.c.h.bf16 %v1438
        %v1535 = vunpack.c.l.bf16 %v1439
        %v1536 = vunpack.c.h.bf16 %v1439
        %v1537 = vunpack.c.l.bf16 %v1440
        %v1538 = vunpack.c.h.bf16 %v1440
        %v1539 = vunpack.c.l.bf16 %v1441
        %v1540 = vunpack.c.h.bf16 %v1441
        %v1541 = vunpack.c.l.bf16 %v1442
        %v1542 = vunpack.c.h.bf16 %v1442
        %v1543 = vunpack.c.l.bf16 %v1443
        %v1544 = vunpack.c.h.bf16 %v1443
        %v1545 = vunpack.c.l.bf16 %v1444
        %v1546 = vunpack.c.h.bf16 %v1444
        %v1547 = vunpack.c.l.bf16 %v1445
        %v1548 = vunpack.c.h.bf16 %v1445
        %v1549 = vunpack.c.l.bf16 %v1446
        %v1550 = vunpack.c.h.bf16 %v1446
        %v1551 = vunpack.c.l.bf16 %v1447
        %v1552 = vunpack.c.h.bf16 %v1447
        %v1553 = vunpack.c.l.bf16 %v1448
        %v1554 = vunpack.c.h.bf16 %v1448
        %v1555 = vunpack.c.l.bf16 %v1449
        %v1556 = vunpack.c.h.bf16 %v1449
        %v1557 = vunpack.c.l.bf16 %v1450
        %v1558 = vunpack.c.h.bf16 %v1450
        %v1559 = vunpack.c.l.bf16 %v1451
        %v1560 = vunpack.c.h.bf16 %v1451
        %v1561 = vunpack.c.l.bf16 %v1452
        %v1562 = vunpack.c.h.bf16 %v1452
        %v1563 = vunpack.c.l.bf16 %v1453
        %v1564 = vunpack.c.h.bf16 %v1453
        %v1565 = vunpack.c.l.bf16 %v1454
        %v1566 = vunpack.c.h.bf16 %v1454
        %v1567 = vunpack.c.l.bf16 %v1455
        %v1568 = vunpack.c.h.bf16 %v1455
        %v1569 = vunpack.c.l.bf16 %v1456
        %v1570 = vunpack.c.h.bf16 %v1456
        %v1571 = vunpack.c.l.bf16 %v1457
        %v1572 = vunpack.c.h.bf16 %v1457
        %v1573 = vunpack.c.l.bf16 %v1458
        %v1574 = vunpack.c.h.bf16 %v1458
        %v1575 = vunpack.c.l.bf16 %v1459
        %v1576 = vunpack.c.h.bf16 %v1459
        %v1577 = vunpack.c.l.bf16 %v1460
        %v1578 = vunpack.c.h.bf16 %v1460
        %v1579 = vunpack.c.l.bf16 %v1461
        %v1580 = vunpack.c.h.bf16 %v1461
        %v1581 = vunpack.c.l.bf16 %v1462
        %v1582 = vunpack.c.h.bf16 %v1462
        %v1583 = vunpack.c.l.bf16 %v1463
        %v1584 = vunpack.c.h.bf16 %v1463
        %v1585 = vunpack.c.l.bf16 %v1464
        %v1586 = vunpack.c.h.bf16 %v1464
        %v1587 = vunpack.c.l.bf16 %v1465
        %v1588 = vunpack.c.h.bf16 %v1465
        %v1589 = vunpack.c.l.bf16 %v1466
        %v1590 = vunpack.c.h.bf16 %v1466
        %v1591 = vunpack.c.l.bf16 %v1467
        %v1592 = vunpack.c.h.bf16 %v1467
        %v1593 = vunpack.c.l.bf16 %v1468
        %v1594 = vunpack.c.h.bf16 %v1468
        %v1595 = vunpack.c.l.bf16 %v1469
        %v1596 = vunpack.c.h.bf16 %v1469
        %v1597 = vunpack.c.l.bf16 %v1470
        %v1598 = vunpack.c.h.bf16 %v1470
        %v1599 = vmul.f32 %v1471, 0.100097656
        %v1600 = vmul.f32 %v1472, 0.100097656
        %v1601 = vmul.f32 %v1473, 0.100097656
        %v1602 = vmul.f32 %v1474, 0.100097656
        %v1603 = vmul.f32 %v1475, 0.100097656
        %v1604 = vmul.f32 %v1476, 0.100097656
        %v1605 = vmul.f32 %v1477, 0.100097656
        %v1606 = vmul.f32 %v1478, 0.100097656
        %v1607 = vmul.f32 %v1479, 0.100097656
        %v1608 = vmul.f32 %v1480, 0.100097656
        %v1609 = vmul.f32 %v1481, 0.100097656
        %v1610 = vmul.f32 %v1482, 0.100097656
        %v1611 = vmul.f32 %v1483, 0.100097656
        %v1612 = vmul.f32 %v1484, 0.100097656
        %v1613 = vmul.f32 %v1485, 0.100097656
        %v1614 = vmul.f32 %v1486, 0.100097656
        %v1615 = vmul.f32 %v1487, 0.100097656
        %v1616 = vmul.f32 %v1488, 0.100097656
        %v1617 = vmul.f32 %v1489, 0.100097656
        %v1618 = vmul.f32 %v1490, 0.100097656
        %v1619 = vmul.f32 %v1491, 0.100097656
        %v1620 = vmul.f32 %v1492, 0.100097656
        %v1621 = vmul.f32 %v1493, 0.100097656
        %v1622 = vmul.f32 %v1494, 0.100097656
        %v1623 = vmul.f32 %v1495, 0.100097656
        %v1624 = vmul.f32 %v1496, 0.100097656
        %v1625 = vmul.f32 %v1497, 0.100097656
        %v1626 = vmul.f32 %v1498, 0.100097656
        %v1627 = vmul.f32 %v1499, 0.100097656
        %v1628 = vmul.f32 %v1500, 0.100097656
        %v1629 = vmul.f32 %v1501, 0.100097656
        %v1630 = vmul.f32 %v1502, 0.100097656
        %v1631 = vmul.f32 %v1503, 0.100097656
        %v1632 = vmul.f32 %v1504, 0.100097656
        %v1633 = vmul.f32 %v1505, 0.100097656
        %v1634 = vmul.f32 %v1506, 0.100097656
        %v1635 = vmul.f32 %v1507, 0.100097656
        %v1636 = vmul.f32 %v1508, 0.100097656
        %v1637 = vmul.f32 %v1509, 0.100097656
        %v1638 = vmul.f32 %v1510, 0.100097656
        %v1639 = vmul.f32 %v1511, 0.100097656
        %v1640 = vmul.f32 %v1512, 0.100097656
        %v1641 = vmul.f32 %v1513, 0.100097656
        %v1642 = vmul.f32 %v1514, 0.100097656
        %v1643 = vmul.f32 %v1515, 0.100097656
        %v1644 = vmul.f32 %v1516, 0.100097656
        %v1645 = vmul.f32 %v1517, 0.100097656
        %v1646 = vmul.f32 %v1518, 0.100097656
        %v1647 = vmul.f32 %v1519, 0.100097656
        %v1648 = vmul.f32 %v1520, 0.100097656
        %v1649 = vmul.f32 %v1521, 0.100097656
        %v1650 = vmul.f32 %v1522, 0.100097656
        %v1651 = vmul.f32 %v1523, 0.100097656
        %v1652 = vmul.f32 %v1524, 0.100097656
        %v1653 = vmul.f32 %v1525, 0.100097656
        %v1654 = vmul.f32 %v1526, 0.100097656
        %v1655 = vmul.f32 %v1527, 0.100097656
        %v1656 = vmul.f32 %v1528, 0.100097656
        %v1657 = vmul.f32 %v1529, 0.100097656
        %v1658 = vmul.f32 %v1530, 0.100097656
        %v1659 = vmul.f32 %v1531, 0.100097656
        %v1660 = vmul.f32 %v1532, 0.100097656
        %v1661 = vmul.f32 %v1533, 0.100097656
        %v1662 = vmul.f32 %v1534, 0.100097656
        %v1663 = vmul.f32 %v1535, 0.100097656
        %v1664 = vmul.f32 %v1536, 0.100097656
        %v1665 = vmul.f32 %v1537, 0.100097656
        %v1666 = vmul.f32 %v1538, 0.100097656
        %v1667 = vmul.f32 %v1539, 0.100097656
        %v1668 = vmul.f32 %v1540, 0.100097656
        %v1669 = vmul.f32 %v1541, 0.100097656
        %v1670 = vmul.f32 %v1542, 0.100097656
        %v1671 = vmul.f32 %v1543, 0.100097656
        %v1672 = vmul.f32 %v1544, 0.100097656
        %v1673 = vmul.f32 %v1545, 0.100097656
        %v1674 = vmul.f32 %v1546, 0.100097656
        %v1675 = vmul.f32 %v1547, 0.100097656
        %v1676 = vmul.f32 %v1548, 0.100097656
        %v1677 = vmul.f32 %v1549, 0.100097656
        %v1678 = vmul.f32 %v1550, 0.100097656
        %v1679 = vmul.f32 %v1551, 0.100097656
        %v1680 = vmul.f32 %v1552, 0.100097656
        %v1681 = vmul.f32 %v1553, 0.100097656
        %v1682 = vmul.f32 %v1554, 0.100097656
        %v1683 = vmul.f32 %v1555, 0.100097656
        %v1684 = vmul.f32 %v1556, 0.100097656
        %v1685 = vmul.f32 %v1557, 0.100097656
        %v1686 = vmul.f32 %v1558, 0.100097656
        %v1687 = vmul.f32 %v1559, 0.100097656
        %v1688 = vmul.f32 %v1560, 0.100097656
        %v1689 = vmul.f32 %v1561, 0.100097656
        %v1690 = vmul.f32 %v1562, 0.100097656
        %v1691 = vmul.f32 %v1563, 0.100097656
        %v1692 = vmul.f32 %v1564, 0.100097656
        %v1693 = vmul.f32 %v1565, 0.100097656
        %v1694 = vmul.f32 %v1566, 0.100097656
        %v1695 = vmul.f32 %v1567, 0.100097656
        %v1696 = vmul.f32 %v1568, 0.100097656
        %v1697 = vmul.f32 %v1569, 0.100097656
        %v1698 = vmul.f32 %v1570, 0.100097656
        %v1699 = vmul.f32 %v1571, 0.100097656
        %v1700 = vmul.f32 %v1572, 0.100097656
        %v1701 = vmul.f32 %v1573, 0.100097656
        %v1702 = vmul.f32 %v1574, 0.100097656
        %v1703 = vmul.f32 %v1575, 0.100097656
        %v1704 = vmul.f32 %v1576, 0.100097656
        %v1705 = vmul.f32 %v1577, 0.100097656
        %v1706 = vmul.f32 %v1578, 0.100097656
        %v1707 = vmul.f32 %v1579, 0.100097656
        %v1708 = vmul.f32 %v1580, 0.100097656
        %v1709 = vmul.f32 %v1581, 0.100097656
        %v1710 = vmul.f32 %v1582, 0.100097656
        %v1711 = vmul.f32 %v1583, 0.100097656
        %v1712 = vmul.f32 %v1584, 0.100097656
        %v1713 = vmul.f32 %v1585, 0.100097656
        %v1714 = vmul.f32 %v1586, 0.100097656
        %v1715 = vmul.f32 %v1587, 0.100097656
        %v1716 = vmul.f32 %v1588, 0.100097656
        %v1717 = vmul.f32 %v1589, 0.100097656
        %v1718 = vmul.f32 %v1590, 0.100097656
        %v1719 = vmul.f32 %v1591, 0.100097656
        %v1720 = vmul.f32 %v1592, 0.100097656
        %v1721 = vmul.f32 %v1593, 0.100097656
        %v1722 = vmul.f32 %v1594, 0.100097656
        %v1723 = vmul.f32 %v1595, 0.100097656
        %v1724 = vmul.f32 %v1596, 0.100097656
        %v1725 = vmul.f32 %v1597, 0.100097656
        %v1726 = vmul.f32 %v1598, 0.100097656
        %v1727 = vpack.c.bf16 %v1600, %v1599
        %v1728 = vpack.c.bf16 %v1602, %v1601
        %v1729 = vpack.c.bf16 %v1604, %v1603
        %v1730 = vpack.c.bf16 %v1606, %v1605
        %v1731 = vpack.c.bf16 %v1608, %v1607
        %v1732 = vpack.c.bf16 %v1610, %v1609
        %v1733 = vpack.c.bf16 %v1612, %v1611
        %v1734 = vpack.c.bf16 %v1614, %v1613
        %v1735 = vpack.c.bf16 %v1616, %v1615
        %v1736 = vpack.c.bf16 %v1618, %v1617
        %v1737 = vpack.c.bf16 %v1620, %v1619
        %v1738 = vpack.c.bf16 %v1622, %v1621
        %v1739 = vpack.c.bf16 %v1624, %v1623
        %v1740 = vpack.c.bf16 %v1626, %v1625
        %v1741 = vpack.c.bf16 %v1628, %v1627
        %v1742 = vpack.c.bf16 %v1630, %v1629
        %v1743 = vpack.c.bf16 %v1632, %v1631
        %v1744 = vpack.c.bf16 %v1634, %v1633
        %v1745 = vpack.c.bf16 %v1636, %v1635
        %v1746 = vpack.c.bf16 %v1638, %v1637
        %v1747 = vpack.c.bf16 %v1640, %v1639
        %v1748 = vpack.c.bf16 %v1642, %v1641
        %v1749 = vpack.c.bf16 %v1644, %v1643
        %v1750 = vpack.c.bf16 %v1646, %v1645
        %v1751 = vpack.c.bf16 %v1648, %v1647
        %v1752 = vpack.c.bf16 %v1650, %v1649
        %v1753 = vpack.c.bf16 %v1652, %v1651
        %v1754 = vpack.c.bf16 %v1654, %v1653
        %v1755 = vpack.c.bf16 %v1656, %v1655
        %v1756 = vpack.c.bf16 %v1658, %v1657
        %v1757 = vpack.c.bf16 %v1660, %v1659
        %v1758 = vpack.c.bf16 %v1662, %v1661
        %v1759 = vpack.c.bf16 %v1664, %v1663
        %v1760 = vpack.c.bf16 %v1666, %v1665
        %v1761 = vpack.c.bf16 %v1668, %v1667
        %v1762 = vpack.c.bf16 %v1670, %v1669
        %v1763 = vpack.c.bf16 %v1672, %v1671
        %v1764 = vpack.c.bf16 %v1674, %v1673
        %v1765 = vpack.c.bf16 %v1676, %v1675
        %v1766 = vpack.c.bf16 %v1678, %v1677
        %v1767 = vpack.c.bf16 %v1680, %v1679
        %v1768 = vpack.c.bf16 %v1682, %v1681
        %v1769 = vpack.c.bf16 %v1684, %v1683
        %v1770 = vpack.c.bf16 %v1686, %v1685
        %v1771 = vpack.c.bf16 %v1688, %v1687
        %v1772 = vpack.c.bf16 %v1690, %v1689
        %v1773 = vpack.c.bf16 %v1692, %v1691
        %v1774 = vpack.c.bf16 %v1694, %v1693
        %v1775 = vpack.c.bf16 %v1696, %v1695
        %v1776 = vpack.c.bf16 %v1698, %v1697
        %v1777 = vpack.c.bf16 %v1700, %v1699
        %v1778 = vpack.c.bf16 %v1702, %v1701
        %v1779 = vpack.c.bf16 %v1704, %v1703
        %v1780 = vpack.c.bf16 %v1706, %v1705
        %v1781 = vpack.c.bf16 %v1708, %v1707
        %v1782 = vpack.c.bf16 %v1710, %v1709
        %v1783 = vpack.c.bf16 %v1712, %v1711
        %v1784 = vpack.c.bf16 %v1714, %v1713
        %v1785 = vpack.c.bf16 %v1716, %v1715
        %v1786 = vpack.c.bf16 %v1718, %v1717
        %v1787 = vpack.c.bf16 %v1720, %v1719
        %v1788 = vpack.c.bf16 %v1722, %v1721
        %v1789 = vpack.c.bf16 %v1724, %v1723
        %v1790 = vpack.c.bf16 %v1726, %v1725
        %v1791 = vunpack.c.l.bf16 %v1727
        %v1792 = vunpack.c.h.bf16 %v1727
        %v1793 = vunpack.c.l.bf16 %v1728
        %v1794 = vunpack.c.h.bf16 %v1728
        %v1795 = vunpack.c.l.bf16 %v1729
        %v1796 = vunpack.c.h.bf16 %v1729
        %v1797 = vunpack.c.l.bf16 %v1730
        %v1798 = vunpack.c.h.bf16 %v1730
        %v1799 = vunpack.c.l.bf16 %v1731
        %v1800 = vunpack.c.h.bf16 %v1731
        %v1801 = vunpack.c.l.bf16 %v1732
        %v1802 = vunpack.c.h.bf16 %v1732
        %v1803 = vunpack.c.l.bf16 %v1733
        %v1804 = vunpack.c.h.bf16 %v1733
        %v1805 = vunpack.c.l.bf16 %v1734
        %v1806 = vunpack.c.h.bf16 %v1734
        %v1807 = vunpack.c.l.bf16 %v1735
        %v1808 = vunpack.c.h.bf16 %v1735
        %v1809 = vunpack.c.l.bf16 %v1736
        %v1810 = vunpack.c.h.bf16 %v1736
        %v1811 = vunpack.c.l.bf16 %v1737
        %v1812 = vunpack.c.h.bf16 %v1737
        %v1813 = vunpack.c.l.bf16 %v1738
        %v1814 = vunpack.c.h.bf16 %v1738
        %v1815 = vunpack.c.l.bf16 %v1739
        %v1816 = vunpack.c.h.bf16 %v1739
        %v1817 = vunpack.c.l.bf16 %v1740
        %v1818 = vunpack.c.h.bf16 %v1740
        %v1819 = vunpack.c.l.bf16 %v1741
        %v1820 = vunpack.c.h.bf16 %v1741
        %v1821 = vunpack.c.l.bf16 %v1742
        %v1822 = vunpack.c.h.bf16 %v1742
        %v1823 = vunpack.c.l.bf16 %v1743
        %v1824 = vunpack.c.h.bf16 %v1743
        %v1825 = vunpack.c.l.bf16 %v1744
        %v1826 = vunpack.c.h.bf16 %v1744
        %v1827 = vunpack.c.l.bf16 %v1745
        %v1828 = vunpack.c.h.bf16 %v1745
        %v1829 = vunpack.c.l.bf16 %v1746
        %v1830 = vunpack.c.h.bf16 %v1746
        %v1831 = vunpack.c.l.bf16 %v1747
        %v1832 = vunpack.c.h.bf16 %v1747
        %v1833 = vunpack.c.l.bf16 %v1748
        %v1834 = vunpack.c.h.bf16 %v1748
        %v1835 = vunpack.c.l.bf16 %v1749
        %v1836 = vunpack.c.h.bf16 %v1749
        %v1837 = vunpack.c.l.bf16 %v1750
        %v1838 = vunpack.c.h.bf16 %v1750
        %v1839 = vunpack.c.l.bf16 %v1751
        %v1840 = vunpack.c.h.bf16 %v1751
        %v1841 = vunpack.c.l.bf16 %v1752
        %v1842 = vunpack.c.h.bf16 %v1752
        %v1843 = vunpack.c.l.bf16 %v1753
        %v1844 = vunpack.c.h.bf16 %v1753
        %v1845 = vunpack.c.l.bf16 %v1754
        %v1846 = vunpack.c.h.bf16 %v1754
        %v1847 = vunpack.c.l.bf16 %v1755
        %v1848 = vunpack.c.h.bf16 %v1755
        %v1849 = vunpack.c.l.bf16 %v1756
        %v1850 = vunpack.c.h.bf16 %v1756
        %v1851 = vunpack.c.l.bf16 %v1757
        %v1852 = vunpack.c.h.bf16 %v1757
        %v1853 = vunpack.c.l.bf16 %v1758
        %v1854 = vunpack.c.h.bf16 %v1758
        %v1855 = vunpack.c.l.bf16 %v1759
        %v1856 = vunpack.c.h.bf16 %v1759
        %v1857 = vunpack.c.l.bf16 %v1760
        %v1858 = vunpack.c.h.bf16 %v1760
        %v1859 = vunpack.c.l.bf16 %v1761
        %v1860 = vunpack.c.h.bf16 %v1761
        %v1861 = vunpack.c.l.bf16 %v1762
        %v1862 = vunpack.c.h.bf16 %v1762
        %v1863 = vunpack.c.l.bf16 %v1763
        %v1864 = vunpack.c.h.bf16 %v1763
        %v1865 = vunpack.c.l.bf16 %v1764
        %v1866 = vunpack.c.h.bf16 %v1764
        %v1867 = vunpack.c.l.bf16 %v1765
        %v1868 = vunpack.c.h.bf16 %v1765
        %v1869 = vunpack.c.l.bf16 %v1766
        %v1870 = vunpack.c.h.bf16 %v1766
        %v1871 = vunpack.c.l.bf16 %v1767
        %v1872 = vunpack.c.h.bf16 %v1767
        %v1873 = vunpack.c.l.bf16 %v1768
        %v1874 = vunpack.c.h.bf16 %v1768
        %v1875 = vunpack.c.l.bf16 %v1769
        %v1876 = vunpack.c.h.bf16 %v1769
        %v1877 = vunpack.c.l.bf16 %v1770
        %v1878 = vunpack.c.h.bf16 %v1770
        %v1879 = vunpack.c.l.bf16 %v1771
        %v1880 = vunpack.c.h.bf16 %v1771
        %v1881 = vunpack.c.l.bf16 %v1772
        %v1882 = vunpack.c.h.bf16 %v1772
        %v1883 = vunpack.c.l.bf16 %v1773
        %v1884 = vunpack.c.h.bf16 %v1773
        %v1885 = vunpack.c.l.bf16 %v1774
        %v1886 = vunpack.c.h.bf16 %v1774
        %v1887 = vunpack.c.l.bf16 %v1775
        %v1888 = vunpack.c.h.bf16 %v1775
        %v1889 = vunpack.c.l.bf16 %v1776
        %v1890 = vunpack.c.h.bf16 %v1776
        %v1891 = vunpack.c.l.bf16 %v1777
        %v1892 = vunpack.c.h.bf16 %v1777
        %v1893 = vunpack.c.l.bf16 %v1778
        %v1894 = vunpack.c.h.bf16 %v1778
        %v1895 = vunpack.c.l.bf16 %v1779
        %v1896 = vunpack.c.h.bf16 %v1779
        %v1897 = vunpack.c.l.bf16 %v1780
        %v1898 = vunpack.c.h.bf16 %v1780
        %v1899 = vunpack.c.l.bf16 %v1781
        %v1900 = vunpack.c.h.bf16 %v1781
        %v1901 = vunpack.c.l.bf16 %v1782
        %v1902 = vunpack.c.h.bf16 %v1782
        %v1903 = vunpack.c.l.bf16 %v1783
        %v1904 = vunpack.c.h.bf16 %v1783
        %v1905 = vunpack.c.l.bf16 %v1784
        %v1906 = vunpack.c.h.bf16 %v1784
        %v1907 = vunpack.c.l.bf16 %v1785
        %v1908 = vunpack.c.h.bf16 %v1785
        %v1909 = vunpack.c.l.bf16 %v1786
        %v1910 = vunpack.c.h.bf16 %v1786
        %v1911 = vunpack.c.l.bf16 %v1787
        %v1912 = vunpack.c.h.bf16 %v1787
        %v1913 = vunpack.c.l.bf16 %v1788
        %v1914 = vunpack.c.h.bf16 %v1788
        %v1915 = vunpack.c.l.bf16 %v1789
        %v1916 = vunpack.c.h.bf16 %v1789
        %v1917 = vunpack.c.l.bf16 %v1790
        %v1918 = vunpack.c.h.bf16 %v1790
        %v1919 = vmax.f32 %v1471, %v1791
        %v1920 = vmax.f32 %v1472, %v1792
        %v1921 = vmax.f32 %v1473, %v1793
        %v1922 = vmax.f32 %v1474, %v1794
        %v1923 = vmax.f32 %v1475, %v1795
        %v1924 = vmax.f32 %v1476, %v1796
        %v1925 = vmax.f32 %v1477, %v1797
        %v1926 = vmax.f32 %v1478, %v1798
        %v1927 = vmax.f32 %v1479, %v1799
        %v1928 = vmax.f32 %v1480, %v1800
        %v1929 = vmax.f32 %v1481, %v1801
        %v1930 = vmax.f32 %v1482, %v1802
        %v1931 = vmax.f32 %v1483, %v1803
        %v1932 = vmax.f32 %v1484, %v1804
        %v1933 = vmax.f32 %v1485, %v1805
        %v1934 = vmax.f32 %v1486, %v1806
        %v1935 = vmax.f32 %v1487, %v1807
        %v1936 = vmax.f32 %v1488, %v1808
        %v1937 = vmax.f32 %v1489, %v1809
        %v1938 = vmax.f32 %v1490, %v1810
        %v1939 = vmax.f32 %v1491, %v1811
        %v1940 = vmax.f32 %v1492, %v1812
        %v1941 = vmax.f32 %v1493, %v1813
        %v1942 = vmax.f32 %v1494, %v1814
        %v1943 = vmax.f32 %v1495, %v1815
        %v1944 = vmax.f32 %v1496, %v1816
        %v1945 = vmax.f32 %v1497, %v1817
        %v1946 = vmax.f32 %v1498, %v1818
        %v1947 = vmax.f32 %v1499, %v1819
        %v1948 = vmax.f32 %v1500, %v1820
        %v1949 = vmax.f32 %v1501, %v1821
        %v1950 = vmax.f32 %v1502, %v1822
        %v1951 = vmax.f32 %v1503, %v1823
        %v1952 = vmax.f32 %v1504, %v1824
        %v1953 = vmax.f32 %v1505, %v1825
        %v1954 = vmax.f32 %v1506, %v1826
        %v1955 = vmax.f32 %v1507, %v1827
        %v1956 = vmax.f32 %v1508, %v1828
        %v1957 = vmax.f32 %v1509, %v1829
        %v1958 = vmax.f32 %v1510, %v1830
        %v1959 = vmax.f32 %v1511, %v1831
        %v1960 = vmax.f32 %v1512, %v1832
        %v1961 = vmax.f32 %v1513, %v1833
        %v1962 = vmax.f32 %v1514, %v1834
        %v1963 = vmax.f32 %v1515, %v1835
        %v1964 = vmax.f32 %v1516, %v1836
        %v1965 = vmax.f32 %v1517, %v1837
        %v1966 = vmax.f32 %v1518, %v1838
        %v1967 = vmax.f32 %v1519, %v1839
        %v1968 = vmax.f32 %v1520, %v1840
        %v1969 = vmax.f32 %v1521, %v1841
        %v1970 = vmax.f32 %v1522, %v1842
        %v1971 = vmax.f32 %v1523, %v1843
        %v1972 = vmax.f32 %v1524, %v1844
        %v1973 = vmax.f32 %v1525, %v1845
        %v1974 = vmax.f32 %v1526, %v1846
        %v1975 = vmax.f32 %v1527, %v1847
        %v1976 = vmax.f32 %v1528, %v1848
        %v1977 = vmax.f32 %v1529, %v1849
        %v1978 = vmax.f32 %v1530, %v1850
        %v1979 = vmax.f32 %v1531, %v1851
        %v1980 = vmax.f32 %v1532, %v1852
        %v1981 = vmax.f32 %v1533, %v1853
        %v1982 = vmax.f32 %v1534, %v1854
        %v1983 = vmax.f32 %v1535, %v1855
        %v1984 = vmax.f32 %v1536, %v1856
        %v1985 = vmax.f32 %v1537, %v1857
        %v1986 = vmax.f32 %v1538, %v1858
        %v1987 = vmax.f32 %v1539, %v1859
        %v1988 = vmax.f32 %v1540, %v1860
        %v1989 = vmax.f32 %v1541, %v1861
        %v1990 = vmax.f32 %v1542, %v1862
        %v1991 = vmax.f32 %v1543, %v1863
        %v1992 = vmax.f32 %v1544, %v1864
        %v1993 = vmax.f32 %v1545, %v1865
        %v1994 = vmax.f32 %v1546, %v1866
        %v1995 = vmax.f32 %v1547, %v1867
        %v1996 = vmax.f32 %v1548, %v1868
        %v1997 = vmax.f32 %v1549, %v1869
        %v1998 = vmax.f32 %v1550, %v1870
        %v1999 = vmax.f32 %v1551, %v1871
        %v2000 = vmax.f32 %v1552, %v1872
        %v2001 = vmax.f32 %v1553, %v1873
        %v2002 = vmax.f32 %v1554, %v1874
        %v2003 = vmax.f32 %v1555, %v1875
        %v2004 = vmax.f32 %v1556, %v1876
        %v2005 = vmax.f32 %v1557, %v1877
        %v2006 = vmax.f32 %v1558, %v1878
        %v2007 = vmax.f32 %v1559, %v1879
        %v2008 = vmax.f32 %v1560, %v1880
        %v2009 = vmax.f32 %v1561, %v1881
        %v2010 = vmax.f32 %v1562, %v1882
        %v2011 = vmax.f32 %v1563, %v1883
        %v2012 = vmax.f32 %v1564, %v1884
        %v2013 = vmax.f32 %v1565, %v1885
        %v2014 = vmax.f32 %v1566, %v1886
        %v2015 = vmax.f32 %v1567, %v1887
        %v2016 = vmax.f32 %v1568, %v1888
        %v2017 = vmax.f32 %v1569, %v1889
        %v2018 = vmax.f32 %v1570, %v1890
        %v2019 = vmax.f32 %v1571, %v1891
        %v2020 = vmax.f32 %v1572, %v1892
        %v2021 = vmax.f32 %v1573, %v1893
        %v2022 = vmax.f32 %v1574, %v1894
        %v2023 = vmax.f32 %v1575, %v1895
        %v2024 = vmax.f32 %v1576, %v1896
        %v2025 = vmax.f32 %v1577, %v1897
        %v2026 = vmax.f32 %v1578, %v1898
        %v2027 = vmax.f32 %v1579, %v1899
        %v2028 = vmax.f32 %v1580, %v1900
        %v2029 = vmax.f32 %v1581, %v1901
        %v2030 = vmax.f32 %v1582, %v1902
        %v2031 = vmax.f32 %v1583, %v1903
        %v2032 = vmax.f32 %v1584, %v1904
        %v2033 = vmax.f32 %v1585, %v1905
        %v2034 = vmax.f32 %v1586, %v1906
        %v2035 = vmax.f32 %v1587, %v1907
        %v2036 = vmax.f32 %v1588, %v1908
        %v2037 = vmax.f32 %v1589, %v1909
        %v2038 = vmax.f32 %v1590, %v1910
        %v2039 = vmax.f32 %v1591, %v1911
        %v2040 = vmax.f32 %v1592, %v1912
        %v2041 = vmax.f32 %v1593, %v1913
        %v2042 = vmax.f32 %v1594, %v1914
        %v2043 = vmax.f32 %v1595, %v1915
        %v2044 = vmax.f32 %v1596, %v1916
        %v2045 = vmax.f32 %v1597, %v1917
        %v2046 = vmax.f32 %v1598, %v1918
        %v2047 = vpack.c.bf16 %v1923, %v1919
        %v2048 = vpack.c.bf16 %v1924, %v1920
        %v2049 = vpack.c.bf16 %v1925, %v1921
        %v2050 = vpack.c.bf16 %v1926, %v1922
        %v2051 = vpack.c.bf16 %v1931, %v1927
        %v2052 = vpack.c.bf16 %v1932, %v1928
        %v2053 = vpack.c.bf16 %v1933, %v1929
        %v2054 = vpack.c.bf16 %v1934, %v1930
        %v2055 = vpack.c.bf16 %v1939, %v1935
        %v2056 = vpack.c.bf16 %v1940, %v1936
        %v2057 = vpack.c.bf16 %v1941, %v1937
        %v2058 = vpack.c.bf16 %v1942, %v1938
        %v2059 = vpack.c.bf16 %v1947, %v1943
        %v2060 = vpack.c.bf16 %v1948, %v1944
        %v2061 = vpack.c.bf16 %v1949, %v1945
        %v2062 = vpack.c.bf16 %v1950, %v1946
        %v2063 = vpack.c.bf16 %v1955, %v1951
        %v2064 = vpack.c.bf16 %v1956, %v1952
        %v2065 = vpack.c.bf16 %v1957, %v1953
        %v2066 = vpack.c.bf16 %v1958, %v1954
        %v2067 = vpack.c.bf16 %v1963, %v1959
        %v2068 = vpack.c.bf16 %v1964, %v1960
        %v2069 = vpack.c.bf16 %v1965, %v1961
        %v2070 = vpack.c.bf16 %v1966, %v1962
        %v2071 = vpack.c.bf16 %v1971, %v1967
        %v2072 = vpack.c.bf16 %v1972, %v1968
        %v2073 = vpack.c.bf16 %v1973, %v1969
        %v2074 = vpack.c.bf16 %v1974, %v1970
        %v2075 = vpack.c.bf16 %v1979, %v1975
        %v2076 = vpack.c.bf16 %v1980, %v1976
        %v2077 = vpack.c.bf16 %v1981, %v1977
        %v2078 = vpack.c.bf16 %v1982, %v1978
        %v2079 = vpack.c.bf16 %v1987, %v1983
        %v2080 = vpack.c.bf16 %v1988, %v1984
        %v2081 = vpack.c.bf16 %v1989, %v1985
        %v2082 = vpack.c.bf16 %v1990, %v1986
        %v2083 = vpack.c.bf16 %v1995, %v1991
        %v2084 = vpack.c.bf16 %v1996, %v1992
        %v2085 = vpack.c.bf16 %v1997, %v1993
        %v2086 = vpack.c.bf16 %v1998, %v1994
        %v2087 = vpack.c.bf16 %v2003, %v1999
        %v2088 = vpack.c.bf16 %v2004, %v2000
        %v2089 = vpack.c.bf16 %v2005, %v2001
        %v2090 = vpack.c.bf16 %v2006, %v2002
        %v2091 = vpack.c.bf16 %v2011, %v2007
        %v2092 = vpack.c.bf16 %v2012, %v2008
        %v2093 = vpack.c.bf16 %v2013, %v2009
        %v2094 = vpack.c.bf16 %v2014, %v2010
        %v2095 = vpack.c.bf16 %v2019, %v2015
        %v2096 = vpack.c.bf16 %v2020, %v2016
        %v2097 = vpack.c.bf16 %v2021, %v2017
        %v2098 = vpack.c.bf16 %v2022, %v2018
        %v2099 = vpack.c.bf16 %v2027, %v2023
        %v2100 = vpack.c.bf16 %v2028, %v2024
        %v2101 = vpack.c.bf16 %v2029, %v2025
        %v2102 = vpack.c.bf16 %v2030, %v2026
        %v2103 = vpack.c.bf16 %v2035, %v2031
        %v2104 = vpack.c.bf16 %v2036, %v2032
        %v2105 = vpack.c.bf16 %v2037, %v2033
        %v2106 = vpack.c.bf16 %v2038, %v2034
        %v2107 = vpack.c.bf16 %v2043, %v2039
        %v2108 = vpack.c.bf16 %v2044, %v2040
        %v2109 = vpack.c.bf16 %v2045, %v2041
        %v2110 = vpack.c.bf16 %v2046, %v2042
        %v2111 = vld [vmem:[#allocation7] sm:$0xff]
        %v2112 = vld [vmem:[#allocation7 + $0x8] sm:$0xff]
        %v2113 = vld [vmem:[#allocation7 + $0x10] sm:$0xff]
        %v2114 = vld [vmem:[#allocation7 + $0x18] sm:$0xff]
        %v2115 = vld [vmem:[#allocation7 + $0x20] sm:$0xff]
        %v2116 = vld [vmem:[#allocation7 + $0x28] sm:$0xff]
        %v2117 = vld [vmem:[#allocation7 + $0x30] sm:$0xff]
        %v2118 = vld [vmem:[#allocation7 + $0x38] sm:$0xff]
        %v2119 = vld [vmem:[#allocation7 + $0x40] sm:$0xff]
        %v2120 = vld [vmem:[#allocation7 + $0x48] sm:$0xff]
        %v2121 = vld [vmem:[#allocation7 + $0x50] sm:$0xff]
        %v2122 = vld [vmem:[#allocation7 + $0x58] sm:$0xff]
        %v2123 = vld [vmem:[#allocation7 + $0x60] sm:$0xff]
        %v2124 = vld [vmem:[#allocation7 + $0x68] sm:$0xff]
        %v2125 = vld [vmem:[#allocation7 + $0x70] sm:$0xff]
        %v2126 = vld [vmem:[#allocation7 + $0x78] sm:$0xff]
        %v2127 = vld [vmem:[#allocation7 + $0x80] sm:$0xff]
        %v2128 = vld [vmem:[#allocation7 + $0x88] sm:$0xff]
        %v2129 = vld [vmem:[#allocation7 + $0x90] sm:$0xff]
        %v2130 = vld [vmem:[#allocation7 + $0x98] sm:$0xff]
        %v2131 = vld [vmem:[#allocation7 + $0xa0] sm:$0xff]
        %v2132 = vld [vmem:[#allocation7 + $0xa8] sm:$0xff]
        %v2133 = vld [vmem:[#allocation7 + $0xb0] sm:$0xff]
        %v2134 = vld [vmem:[#allocation7 + $0xb8] sm:$0xff]
        %v2135 = vld [vmem:[#allocation7 + $0xc0] sm:$0xff]
        %v2136 = vld [vmem:[#allocation7 + $0xc8] sm:$0xff]
        %v2137 = vld [vmem:[#allocation7 + $0xd0] sm:$0xff]
        %v2138 = vld [vmem:[#allocation7 + $0xd8] sm:$0xff]
        %v2139 = vld [vmem:[#allocation7 + $0xe0] sm:$0xff]
        %v2140 = vld [vmem:[#allocation7 + $0xe8] sm:$0xff]
        %v2141 = vld [vmem:[#allocation7 + $0xf0] sm:$0xff]
        %v2142 = vld [vmem:[#allocation7 + $0xf8] sm:$0xff]
        %v2143 = vld [vmem:[#allocation7 + $0x100] sm:$0xff]
        %v2144 = vld [vmem:[#allocation7 + $0x108] sm:$0xff]
        %v2145 = vld [vmem:[#allocation7 + $0x110] sm:$0xff]
        %v2146 = vld [vmem:[#allocation7 + $0x118] sm:$0xff]
        %v2147 = vld [vmem:[#allocation7 + $0x120] sm:$0xff]
        %v2148 = vld [vmem:[#allocation7 + $0x128] sm:$0xff]
        %v2149 = vld [vmem:[#allocation7 + $0x130] sm:$0xff]
        %v2150 = vld [vmem:[#allocation7 + $0x138] sm:$0xff]
        %v2151 = vld [vmem:[#allocation7 + $0x140] sm:$0xff]
        %v2152 = vld [vmem:[#allocation7 + $0x148] sm:$0xff]
        %v2153 = vld [vmem:[#allocation7 + $0x150] sm:$0xff]
        %v2154 = vld [vmem:[#allocation7 + $0x158] sm:$0xff]
        %v2155 = vld [vmem:[#allocation7 + $0x160] sm:$0xff]
        %v2156 = vld [vmem:[#allocation7 + $0x168] sm:$0xff]
        %v2157 = vld [vmem:[#allocation7 + $0x170] sm:$0xff]
        %v2158 = vld [vmem:[#allocation7 + $0x178] sm:$0xff]
        %v2159 = vld [vmem:[#allocation7 + $0x180] sm:$0xff]
        %v2160 = vld [vmem:[#allocation7 + $0x188] sm:$0xff]
        %v2161 = vld [vmem:[#allocation7 + $0x190] sm:$0xff]
        %v2162 = vld [vmem:[#allocation7 + $0x198] sm:$0xff]
        %v2163 = vld [vmem:[#allocation7 + $0x1a0] sm:$0xff]
        %v2164 = vld [vmem:[#allocation7 + $0x1a8] sm:$0xff]
        %v2165 = vld [vmem:[#allocation7 + $0x1b0] sm:$0xff]
        %v2166 = vld [vmem:[#allocation7 + $0x1b8] sm:$0xff]
        %v2167 = vld [vmem:[#allocation7 + $0x1c0] sm:$0xff]
        %v2168 = vld [vmem:[#allocation7 + $0x1c8] sm:$0xff]
        %v2169 = vld [vmem:[#allocation7 + $0x1d0] sm:$0xff]
        %v2170 = vld [vmem:[#allocation7 + $0x1d8] sm:$0xff]
        %v2171 = vld [vmem:[#allocation7 + $0x1e0] sm:$0xff]
        %v2172 = vld [vmem:[#allocation7 + $0x1e8] sm:$0xff]
        %v2173 = vld [vmem:[#allocation7 + $0x1f0] sm:$0xff]
        %v2174 = vld [vmem:[#allocation7 + $0x1f8] sm:$0xff]
        %v2175 = vld [vmem:[#allocation8] sm:$0x3]
        %v2177 = vperm.slane %v2175, 0
        %v2178 = vperm.slane %v2175, 1
        %v2245 = vunpack.c.l.b16 %v2111
        %v2246 = vunpack.c.h.b16 %v2111
        %v2247 = vunpack.c.l.b16 %v2112
        %v2248 = vunpack.c.h.b16 %v2112
        %v2249 = vunpack.c.l.b16 %v2113
        %v2250 = vunpack.c.h.b16 %v2113
        %v2251 = vunpack.c.l.b16 %v2114
        %v2252 = vunpack.c.h.b16 %v2114
        %v2253 = vunpack.c.l.b16 %v2115
        %v2254 = vunpack.c.h.b16 %v2115
        %v2255 = vunpack.c.l.b16 %v2116
        %v2256 = vunpack.c.h.b16 %v2116
        %v2257 = vunpack.c.l.b16 %v2117
        %v2258 = vunpack.c.h.b16 %v2117
        %v2259 = vunpack.c.l.b16 %v2118
        %v2260 = vunpack.c.h.b16 %v2118
        %v2261 = vunpack.c.l.b16 %v2119
        %v2262 = vunpack.c.h.b16 %v2119
        %v2263 = vunpack.c.l.b16 %v2120
        %v2264 = vunpack.c.h.b16 %v2120
        %v2265 = vunpack.c.l.b16 %v2121
        %v2266 = vunpack.c.h.b16 %v2121
        %v2267 = vunpack.c.l.b16 %v2122
        %v2268 = vunpack.c.h.b16 %v2122
        %v2269 = vunpack.c.l.b16 %v2123
        %v2270 = vunpack.c.h.b16 %v2123
        %v2271 = vunpack.c.l.b16 %v2124
        %v2272 = vunpack.c.h.b16 %v2124
        %v2273 = vunpack.c.l.b16 %v2125
        %v2274 = vunpack.c.h.b16 %v2125
        %v2275 = vunpack.c.l.b16 %v2126
        %v2276 = vunpack.c.h.b16 %v2126
        %v2277 = vunpack.c.l.b16 %v2127
        %v2278 = vunpack.c.h.b16 %v2127
        %v2279 = vunpack.c.l.b16 %v2128
        %v2280 = vunpack.c.h.b16 %v2128
        %v2281 = vunpack.c.l.b16 %v2129
        %v2282 = vunpack.c.h.b16 %v2129
        %v2283 = vunpack.c.l.b16 %v2130
        %v2284 = vunpack.c.h.b16 %v2130
        %v2285 = vunpack.c.l.b16 %v2131
        %v2286 = vunpack.c.h.b16 %v2131
        %v2287 = vunpack.c.l.b16 %v2132
        %v2288 = vunpack.c.h.b16 %v2132
        %v2289 = vunpack.c.l.b16 %v2133
        %v2290 = vunpack.c.h.b16 %v2133
        %v2291 = vunpack.c.l.b16 %v2134
        %v2292 = vunpack.c.h.b16 %v2134
        %v2293 = vunpack.c.l.b16 %v2135
        %v2294 = vunpack.c.h.b16 %v2135
        %v2295 = vunpack.c.l.b16 %v2136
        %v2296 = vunpack.c.h.b16 %v2136
        %v2297 = vunpack.c.l.b16 %v2137
        %v2298 = vunpack.c.h.b16 %v2137
        %v2299 = vunpack.c.l.b16 %v2138
        %v2300 = vunpack.c.h.b16 %v2138
        %v2301 = vunpack.c.l.b16 %v2139
        %v2302 = vunpack.c.h.b16 %v2139
        %v2303 = vunpack.c.l.b16 %v2140
        %v2304 = vunpack.c.h.b16 %v2140
        %v2305 = vunpack.c.l.b16 %v2141
        %v2306 = vunpack.c.h.b16 %v2141
        %v2307 = vunpack.c.l.b16 %v2142
        %v2308 = vunpack.c.h.b16 %v2142
        %v2309 = vunpack.c.l.b16 %v2143
        %v2310 = vunpack.c.h.b16 %v2143
        %v2311 = vunpack.c.l.b16 %v2144
        %v2312 = vunpack.c.h.b16 %v2144
        %v2313 = vunpack.c.l.b16 %v2145
        %v2314 = vunpack.c.h.b16 %v2145
        %v2315 = vunpack.c.l.b16 %v2146
        %v2316 = vunpack.c.h.b16 %v2146
        %v2317 = vunpack.c.l.b16 %v2147
        %v2318 = vunpack.c.h.b16 %v2147
        %v2319 = vunpack.c.l.b16 %v2148
        %v2320 = vunpack.c.h.b16 %v2148
        %v2321 = vunpack.c.l.b16 %v2149
        %v2322 = vunpack.c.h.b16 %v2149
        %v2323 = vunpack.c.l.b16 %v2150
        %v2324 = vunpack.c.h.b16 %v2150
        %v2325 = vunpack.c.l.b16 %v2151
        %v2326 = vunpack.c.h.b16 %v2151
        %v2327 = vunpack.c.l.b16 %v2152
        %v2328 = vunpack.c.h.b16 %v2152
        %v2329 = vunpack.c.l.b16 %v2153
        %v2330 = vunpack.c.h.b16 %v2153
        %v2331 = vunpack.c.l.b16 %v2154
        %v2332 = vunpack.c.h.b16 %v2154
        %v2333 = vunpack.c.l.b16 %v2155
        %v2334 = vunpack.c.h.b16 %v2155
        %v2335 = vunpack.c.l.b16 %v2156
        %v2336 = vunpack.c.h.b16 %v2156
        %v2337 = vunpack.c.l.b16 %v2157
        %v2338 = vunpack.c.h.b16 %v2157
        %v2339 = vunpack.c.l.b16 %v2158
        %v2340 = vunpack.c.h.b16 %v2158
        %v2341 = vunpack.c.l.b16 %v2159
        %v2342 = vunpack.c.h.b16 %v2159
        %v2343 = vunpack.c.l.b16 %v2160
        %v2344 = vunpack.c.h.b16 %v2160
        %v2345 = vunpack.c.l.b16 %v2161
        %v2346 = vunpack.c.h.b16 %v2161
        %v2347 = vunpack.c.l.b16 %v2162
        %v2348 = vunpack.c.h.b16 %v2162
        %v2349 = vunpack.c.l.b16 %v2163
        %v2350 = vunpack.c.h.b16 %v2163
        %v2351 = vunpack.c.l.b16 %v2164
        %v2352 = vunpack.c.h.b16 %v2164
        %v2353 = vunpack.c.l.b16 %v2165
        %v2354 = vunpack.c.h.b16 %v2165
        %v2355 = vunpack.c.l.b16 %v2166
        %v2356 = vunpack.c.h.b16 %v2166
        %v2357 = vunpack.c.l.b16 %v2167
        %v2358 = vunpack.c.h.b16 %v2167
        %v2359 = vunpack.c.l.b16 %v2168
        %v2360 = vunpack.c.h.b16 %v2168
        %v2361 = vunpack.c.l.b16 %v2169
        %v2362 = vunpack.c.h.b16 %v2169
        %v2363 = vunpack.c.l.b16 %v2170
        %v2364 = vunpack.c.h.b16 %v2170
        %v2365 = vunpack.c.l.b16 %v2171
        %v2366 = vunpack.c.h.b16 %v2171
        %v2367 = vunpack.c.l.b16 %v2172
        %v2368 = vunpack.c.h.b16 %v2172
        %v2369 = vunpack.c.l.b16 %v2173
        %v2370 = vunpack.c.h.b16 %v2173
        %v2371 = vunpack.c.l.b16 %v2174
        %v2372 = vunpack.c.h.b16 %v2174
        %v2373 = vpack.c.b16 %v2247, %v2245
        %v2374 = vpack.c.b16 %v2248, %v2246
        %v2375 = vpack.c.b16 %v2251, %v2249
        %v2376 = vpack.c.b16 %v2252, %v2250
        %v2377 = vpack.c.b16 %v2255, %v2253
        %v2378 = vpack.c.b16 %v2256, %v2254
        %v2379 = vpack.c.b16 %v2259, %v2257
        %v2380 = vpack.c.b16 %v2260, %v2258
        %v2381 = vpack.c.b16 %v2263, %v2261
        %v2382 = vpack.c.b16 %v2264, %v2262
        %v2383 = vpack.c.b16 %v2267, %v2265
        %v2384 = vpack.c.b16 %v2268, %v2266
        %v2385 = vpack.c.b16 %v2271, %v2269
        %v2386 = vpack.c.b16 %v2272, %v2270
        %v2387 = vpack.c.b16 %v2275, %v2273
        %v2388 = vpack.c.b16 %v2276, %v2274
        %v2389 = vpack.c.b16 %v2279, %v2277
        %v2390 = vpack.c.b16 %v2280, %v2278
        %v2391 = vpack.c.b16 %v2283, %v2281
        %v2392 = vpack.c.b16 %v2284, %v2282
        %v2393 = vpack.c.b16 %v2287, %v2285
        %v2394 = vpack.c.b16 %v2288, %v2286
        %v2395 = vpack.c.b16 %v2291, %v2289
        %v2396 = vpack.c.b16 %v2292, %v2290
        %v2397 = vpack.c.b16 %v2295, %v2293
        %v2398 = vpack.c.b16 %v2296, %v2294
        %v2399 = vpack.c.b16 %v2299, %v2297
        %v2400 = vpack.c.b16 %v2300, %v2298
        %v2401 = vpack.c.b16 %v2303, %v2301
        %v2402 = vpack.c.b16 %v2304, %v2302
        %v2403 = vpack.c.b16 %v2307, %v2305
        %v2404 = vpack.c.b16 %v2308, %v2306
        %v2405 = vpack.c.b16 %v2311, %v2309
        %v2406 = vpack.c.b16 %v2312, %v2310
        %v2407 = vpack.c.b16 %v2315, %v2313
        %v2408 = vpack.c.b16 %v2316, %v2314
        %v2409 = vpack.c.b16 %v2319, %v2317
        %v2410 = vpack.c.b16 %v2320, %v2318
        %v2411 = vpack.c.b16 %v2323, %v2321
        %v2412 = vpack.c.b16 %v2324, %v2322
        %v2413 = vpack.c.b16 %v2327, %v2325
        %v2414 = vpack.c.b16 %v2328, %v2326
        %v2415 = vpack.c.b16 %v2331, %v2329
        %v2416 = vpack.c.b16 %v2332, %v2330
        %v2417 = vpack.c.b16 %v2335, %v2333
        %v2418 = vpack.c.b16 %v2336, %v2334
        %v2419 = vpack.c.b16 %v2339, %v2337
        %v2420 = vpack.c.b16 %v2340, %v2338
        %v2421 = vpack.c.b16 %v2343, %v2341
        %v2422 = vpack.c.b16 %v2344, %v2342
        %v2423 = vpack.c.b16 %v2347, %v2345
        %v2424 = vpack.c.b16 %v2348, %v2346
        %v2425 = vpack.c.b16 %v2351, %v2349
        %v2426 = vpack.c.b16 %v2352, %v2350
        %v2427 = vpack.c.b16 %v2355, %v2353
        %v2428 = vpack.c.b16 %v2356, %v2354
        %v2429 = vpack.c.b16 %v2359, %v2357
        %v2430 = vpack.c.b16 %v2360, %v2358
        %v2431 = vpack.c.b16 %v2363, %v2361
        %v2432 = vpack.c.b16 %v2364, %v2362
        %v2433 = vpack.c.b16 %v2367, %v2365
        %v2434 = vpack.c.b16 %v2368, %v2366
        %v2435 = vpack.c.b16 %v2371, %v2369
        %v2436 = vpack.c.b16 %v2372, %v2370
        %2501 = vmatpush.bf16.msra.mxu0 %v2387
        %2502 = vmatpush.bf16.msra.mxu0 %v2385
        %2503 = vmatpush.bf16.msra.mxu0 %v2383
        %2504 = vmatpush.bf16.msra.mxu0 %v2381
        %2505 = vmatpush.bf16.msra.mxu0 %v2379
        %2506 = vmatpush.bf16.msra.mxu0 %v2377
        %2507 = vmatpush.bf16.msra.mxu0 %v2375
        %2508 = vmatpush.bf16.msra.mxu0 %v2373
        %2509 = vmatmul.bf16.gmra.mxu0 %v2047
        %v2510 = vpop.f32.mrf.mxu0
        %v2511 = vadd.f32 %v2177, %v2510
        %v2512 = vpop.f32.mrf.mxu0
        %v2513 = vadd.f32 %v2177, %v2512
        %2514 = vmatmul.bf16.gmra.mxu0 %v2051
        %v2515 = vpop.f32.mrf.mxu0
        %v2516 = vadd.f32 %v2177, %v2515
        %v2517 = vpop.f32.mrf.mxu0
        %v2518 = vadd.f32 %v2177, %v2517
        %2519 = vmatmul.bf16.gmra.mxu0 %v2055
        %v2520 = vpop.f32.mrf.mxu0
        %v2521 = vadd.f32 %v2177, %v2520
        %v2522 = vpop.f32.mrf.mxu0
        %v2523 = vadd.f32 %v2177, %v2522
        %2524 = vmatmul.bf16.gmra.mxu0 %v2059
        %v2525 = vpop.f32.mrf.mxu0
        %v2526 = vadd.f32 %v2177, %v2525
        %v2527 = vpop.f32.mrf.mxu0
        %v2528 = vadd.f32 %v2177, %v2527
        %2529 = vmatmul.bf16.gmra.mxu0 %v2063
        %v2530 = vpop.f32.mrf.mxu0
        %v2531 = vadd.f32 %v2177, %v2530
        %v2532 = vpop.f32.mrf.mxu0
        %v2533 = vadd.f32 %v2177, %v2532
        %2534 = vmatmul.bf16.gmra.mxu0 %v2067
        %v2535 = vpop.f32.mrf.mxu0
        %v2536 = vadd.f32 %v2177, %v2535
        %v2537 = vpop.f32.mrf.mxu0
        %v2538 = vadd.f32 %v2177, %v2537
        %2539 = vmatmul.bf16.gmra.mxu0 %v2071
        %v2540 = vpop.f32.mrf.mxu0
        %v2541 = vadd.f32 %v2177, %v2540
        %v2542 = vpop.f32.mrf.mxu0
        %v2543 = vadd.f32 %v2177, %v2542
        %2544 = vmatmul.bf16.gmra.mxu0 %v2075
        %v2545 = vpop.f32.mrf.mxu0
        %v2546 = vadd.f32 %v2177, %v2545
        %v2547 = vpop.f32.mrf.mxu0
        %v2548 = vadd.f32 %v2177, %v2547
        %2549 = vmatmul.bf16.gmra.mxu0 %v2079
        %v2550 = vpop.f32.mrf.mxu0
        %v2551 = vadd.f32 %v2177, %v2550
        %v2552 = vpop.f32.mrf.mxu0
        %v2553 = vadd.f32 %v2177, %v2552
        %2554 = vmatmul.bf16.gmra.mxu0 %v2083
        %v2555 = vpop.f32.mrf.mxu0
        %v2556 = vadd.f32 %v2177, %v2555
        %v2557 = vpop.f32.mrf.mxu0
        %v2558 = vadd.f32 %v2177, %v2557
        %2559 = vmatmul.bf16.gmra.mxu0 %v2087
        %v2560 = vpop.f32.mrf.mxu0
        %v2561 = vadd.f32 %v2177, %v2560
        %v2562 = vpop.f32.mrf.mxu0
        %v2563 = vadd.f32 %v2177, %v2562
        %2564 = vmatmul.bf16.gmra.mxu0 %v2091
        %v2565 = vpop.f32.mrf.mxu0
        %v2566 = vadd.f32 %v2177, %v2565
        %v2567 = vpop.f32.mrf.mxu0
        %v2568 = vadd.f32 %v2177, %v2567
        %2569 = vmatmul.bf16.gmra.mxu0 %v2095
        %v2570 = vpop.f32.mrf.mxu0
        %v2571 = vadd.f32 %v2177, %v2570
        %v2572 = vpop.f32.mrf.mxu0
        %v2573 = vadd.f32 %v2177, %v2572
        %2574 = vmatmul.bf16.gmra.mxu0 %v2099
        %v2575 = vpop.f32.mrf.mxu0
        %v2576 = vadd.f32 %v2177, %v2575
        %v2577 = vpop.f32.mrf.mxu0
        %v2578 = vadd.f32 %v2177, %v2577
        %2579 = vmatmul.bf16.gmra.mxu0 %v2103
        %v2580 = vpop.f32.mrf.mxu0
        %v2581 = vadd.f32 %v2177, %v2580
        %v2582 = vpop.f32.mrf.mxu0
        %v2583 = vadd.f32 %v2177, %v2582
        %2584 = vmatmul.bf16.gmra.mxu0 %v2107
        %v2585 = vpop.f32.mrf.mxu0
        %v2586 = vadd.f32 %v2177, %v2585
        %v2587 = vpop.f32.mrf.mxu0
        %v2588 = vadd.f32 %v2177, %v2587
        %2589 = vdwg.mxu0
        %2590 = vmatpush.bf16.msra.mxu0 %v2403
        %2591 = vmatpush.bf16.msra.mxu0 %v2401
        %2592 = vmatpush.bf16.msra.mxu0 %v2399
        %2593 = vmatpush.bf16.msra.mxu0 %v2397
        %2594 = vmatpush.bf16.msra.mxu0 %v2395
        %2595 = vmatpush.bf16.msra.mxu0 %v2393
        %2596 = vmatpush.bf16.msra.mxu0 %v2391
        %2597 = vmatpush.bf16.msra.mxu0 %v2389
        %2598 = vmatmul.bf16.gmra.mxu0 %v2048
        %v2599 = vpop.f32.mrf.mxu0
        %v2600 = vadd.f32 %v2511, %v2599
        %v2601 = vpop.f32.mrf.mxu0
        %v2602 = vadd.f32 %v2513, %v2601
        %2603 = vmatmul.bf16.gmra.mxu0 %v2052
        %v2604 = vpop.f32.mrf.mxu0
        %v2605 = vadd.f32 %v2516, %v2604
        %v2606 = vpop.f32.mrf.mxu0
        %v2607 = vadd.f32 %v2518, %v2606
        %2608 = vmatmul.bf16.gmra.mxu0 %v2056
        %v2609 = vpop.f32.mrf.mxu0
        %v2610 = vadd.f32 %v2521, %v2609
        %v2611 = vpop.f32.mrf.mxu0
        %v2612 = vadd.f32 %v2523, %v2611
        %2613 = vmatmul.bf16.gmra.mxu0 %v2060
        %v2614 = vpop.f32.mrf.mxu0
        %v2615 = vadd.f32 %v2526, %v2614
        %v2616 = vpop.f32.mrf.mxu0
        %v2617 = vadd.f32 %v2528, %v2616
        %2618 = vmatmul.bf16.gmra.mxu0 %v2064
        %v2619 = vpop.f32.mrf.mxu0
        %v2620 = vadd.f32 %v2531, %v2619
        %v2621 = vpop.f32.mrf.mxu0
        %v2622 = vadd.f32 %v2533, %v2621
        %2623 = vmatmul.bf16.gmra.mxu0 %v2068
        %v2624 = vpop.f32.mrf.mxu0
        %v2625 = vadd.f32 %v2536, %v2624
        %v2626 = vpop.f32.mrf.mxu0
        %v2627 = vadd.f32 %v2538, %v2626
        %2628 = vmatmul.bf16.gmra.mxu0 %v2072
        %v2629 = vpop.f32.mrf.mxu0
        %v2630 = vadd.f32 %v2541, %v2629
        %v2631 = vpop.f32.mrf.mxu0
        %v2632 = vadd.f32 %v2543, %v2631
        %2633 = vmatmul.bf16.gmra.mxu0 %v2076
        %v2634 = vpop.f32.mrf.mxu0
        %v2635 = vadd.f32 %v2546, %v2634
        %v2636 = vpop.f32.mrf.mxu0
        %v2637 = vadd.f32 %v2548, %v2636
        %2638 = vmatmul.bf16.gmra.mxu0 %v2080
        %v2639 = vpop.f32.mrf.mxu0
        %v2640 = vadd.f32 %v2551, %v2639
        %v2641 = vpop.f32.mrf.mxu0
        %v2642 = vadd.f32 %v2553, %v2641
        %2643 = vmatmul.bf16.gmra.mxu0 %v2084
        %v2644 = vpop.f32.mrf.mxu0
        %v2645 = vadd.f32 %v2556, %v2644
        %v2646 = vpop.f32.mrf.mxu0
        %v2647 = vadd.f32 %v2558, %v2646
        %2648 = vmatmul.bf16.gmra.mxu0 %v2088
        %v2649 = vpop.f32.mrf.mxu0
        %v2650 = vadd.f32 %v2561, %v2649
        %v2651 = vpop.f32.mrf.mxu0
        %v2652 = vadd.f32 %v2563, %v2651
        %2653 = vmatmul.bf16.gmra.mxu0 %v2092
        %v2654 = vpop.f32.mrf.mxu0
        %v2655 = vadd.f32 %v2566, %v2654
        %v2656 = vpop.f32.mrf.mxu0
        %v2657 = vadd.f32 %v2568, %v2656
        %2658 = vmatmul.bf16.gmra.mxu0 %v2096
        %v2659 = vpop.f32.mrf.mxu0
        %v2660 = vadd.f32 %v2571, %v2659
        %v2661 = vpop.f32.mrf.mxu0
        %v2662 = vadd.f32 %v2573, %v2661
        %2663 = vmatmul.bf16.gmra.mxu0 %v2100
        %v2664 = vpop.f32.mrf.mxu0
        %v2665 = vadd.f32 %v2576, %v2664
        %v2666 = vpop.f32.mrf.mxu0
        %v2667 = vadd.f32 %v2578, %v2666
        %2668 = vmatmul.bf16.gmra.mxu0 %v2104
        %v2669 = vpop.f32.mrf.mxu0
        %v2670 = vadd.f32 %v2581, %v2669
        %v2671 = vpop.f32.mrf.mxu0
        %v2672 = vadd.f32 %v2583, %v2671
        %2673 = vmatmul.bf16.gmra.mxu0 %v2108
        %v2674 = vpop.f32.mrf.mxu0
        %v2675 = vadd.f32 %v2586, %v2674
        %v2676 = vpop.f32.mrf.mxu0
        %v2677 = vadd.f32 %v2588, %v2676
        %2678 = vdwg.mxu0
        %2679 = vmatpush.bf16.msra.mxu0 %v2419
        %2680 = vmatpush.bf16.msra.mxu0 %v2417
        %2681 = vmatpush.bf16.msra.mxu0 %v2415
        %2682 = vmatpush.bf16.msra.mxu0 %v2413
        %2683 = vmatpush.bf16.msra.mxu0 %v2411
        %2684 = vmatpush.bf16.msra.mxu0 %v2409
        %2685 = vmatpush.bf16.msra.mxu0 %v2407
        %2686 = vmatpush.bf16.msra.mxu0 %v2405
        %2687 = vmatmul.bf16.gmra.mxu0 %v2049
        %v2688 = vpop.f32.mrf.mxu0
        %v2689 = vadd.f32 %v2600, %v2688
        %v2690 = vpop.f32.mrf.mxu0
        %v2691 = vadd.f32 %v2602, %v2690
        %2692 = vmatmul.bf16.gmra.mxu0 %v2053
        %v2693 = vpop.f32.mrf.mxu0
        %v2694 = vadd.f32 %v2605, %v2693
        %v2695 = vpop.f32.mrf.mxu0
        %v2696 = vadd.f32 %v2607, %v2695
        %2697 = vmatmul.bf16.gmra.mxu0 %v2057
        %v2698 = vpop.f32.mrf.mxu0
        %v2699 = vadd.f32 %v2610, %v2698
        %v2700 = vpop.f32.mrf.mxu0
        %v2701 = vadd.f32 %v2612, %v2700
        %2702 = vmatmul.bf16.gmra.mxu0 %v2061
        %v2703 = vpop.f32.mrf.mxu0
        %v2704 = vadd.f32 %v2615, %v2703
        %v2705 = vpop.f32.mrf.mxu0
        %v2706 = vadd.f32 %v2617, %v2705
        %2707 = vmatmul.bf16.gmra.mxu0 %v2065
        %v2708 = vpop.f32.mrf.mxu0
        %v2709 = vadd.f32 %v2620, %v2708
        %v2710 = vpop.f32.mrf.mxu0
        %v2711 = vadd.f32 %v2622, %v2710
        %2712 = vmatmul.bf16.gmra.mxu0 %v2069
        %v2713 = vpop.f32.mrf.mxu0
        %v2714 = vadd.f32 %v2625, %v2713
        %v2715 = vpop.f32.mrf.mxu0
        %v2716 = vadd.f32 %v2627, %v2715
        %2717 = vmatmul.bf16.gmra.mxu0 %v2073
        %v2718 = vpop.f32.mrf.mxu0
        %v2719 = vadd.f32 %v2630, %v2718
        %v2720 = vpop.f32.mrf.mxu0
        %v2721 = vadd.f32 %v2632, %v2720
        %2722 = vmatmul.bf16.gmra.mxu0 %v2077
        %v2723 = vpop.f32.mrf.mxu0
        %v2724 = vadd.f32 %v2635, %v2723
        %v2725 = vpop.f32.mrf.mxu0
        %v2726 = vadd.f32 %v2637, %v2725
        %2727 = vmatmul.bf16.gmra.mxu0 %v2081
        %v2728 = vpop.f32.mrf.mxu0
        %v2729 = vadd.f32 %v2640, %v2728
        %v2730 = vpop.f32.mrf.mxu0
        %v2731 = vadd.f32 %v2642, %v2730
        %2732 = vmatmul.bf16.gmra.mxu0 %v2085
        %v2733 = vpop.f32.mrf.mxu0
        %v2734 = vadd.f32 %v2645, %v2733
        %v2735 = vpop.f32.mrf.mxu0
        %v2736 = vadd.f32 %v2647, %v2735
        %2737 = vmatmul.bf16.gmra.mxu0 %v2089
        %v2738 = vpop.f32.mrf.mxu0
        %v2739 = vadd.f32 %v2650, %v2738
        %v2740 = vpop.f32.mrf.mxu0
        %v2741 = vadd.f32 %v2652, %v2740
        %2742 = vmatmul.bf16.gmra.mxu0 %v2093
        %v2743 = vpop.f32.mrf.mxu0
        %v2744 = vadd.f32 %v2655, %v2743
        %v2745 = vpop.f32.mrf.mxu0
        %v2746 = vadd.f32 %v2657, %v2745
        %2747 = vmatmul.bf16.gmra.mxu0 %v2097
        %v2748 = vpop.f32.mrf.mxu0
        %v2749 = vadd.f32 %v2660, %v2748
        %v2750 = vpop.f32.mrf.mxu0
        %v2751 = vadd.f32 %v2662, %v2750
        %2752 = vmatmul.bf16.gmra.mxu0 %v2101
        %v2753 = vpop.f32.mrf.mxu0
        %v2754 = vadd.f32 %v2665, %v2753
        %v2755 = vpop.f32.mrf.mxu0
        %v2756 = vadd.f32 %v2667, %v2755
        %2757 = vmatmul.bf16.gmra.mxu0 %v2105
        %v2758 = vpop.f32.mrf.mxu0
        %v2759 = vadd.f32 %v2670, %v2758
        %v2760 = vpop.f32.mrf.mxu0
        %v2761 = vadd.f32 %v2672, %v2760
        %2762 = vmatmul.bf16.gmra.mxu0 %v2109
        %v2763 = vpop.f32.mrf.mxu0
        %v2764 = vadd.f32 %v2675, %v2763
        %v2765 = vpop.f32.mrf.mxu0
        %v2766 = vadd.f32 %v2677, %v2765
        %2767 = vdwg.mxu0
        %2768 = vmatpush.bf16.msra.mxu0 %v2435
        %2769 = vmatpush.bf16.msra.mxu0 %v2433
        %2770 = vmatpush.bf16.msra.mxu0 %v2431
        %2771 = vmatpush.bf16.msra.mxu0 %v2429
        %2772 = vmatpush.bf16.msra.mxu0 %v2427
        %2773 = vmatpush.bf16.msra.mxu0 %v2425
        %2774 = vmatpush.bf16.msra.mxu0 %v2423
        %2775 = vmatpush.bf16.msra.mxu0 %v2421
        %2776 = vmatmul.bf16.gmra.mxu0 %v2050
        %v2777 = vpop.f32.mrf.mxu0
        %v2778 = vadd.f32 %v2689, %v2777
        %v2779 = vpop.f32.mrf.mxu0
        %v2780 = vadd.f32 %v2691, %v2779
        %2781 = vmatmul.bf16.gmra.mxu0 %v2054
        %v2782 = vpop.f32.mrf.mxu0
        %v2783 = vadd.f32 %v2694, %v2782
        %v2784 = vpop.f32.mrf.mxu0
        %v2785 = vadd.f32 %v2696, %v2784
        %2786 = vmatmul.bf16.gmra.mxu0 %v2058
        %v2787 = vpop.f32.mrf.mxu0
        %v2788 = vadd.f32 %v2699, %v2787
        %v2789 = vpop.f32.mrf.mxu0
        %v2790 = vadd.f32 %v2701, %v2789
        %2791 = vmatmul.bf16.gmra.mxu0 %v2062
        %v2792 = vpop.f32.mrf.mxu0
        %v2793 = vadd.f32 %v2704, %v2792
        %v2794 = vpop.f32.mrf.mxu0
        %v2795 = vadd.f32 %v2706, %v2794
        %2796 = vmatmul.bf16.gmra.mxu0 %v2066
        %v2797 = vpop.f32.mrf.mxu0
        %v2798 = vadd.f32 %v2709, %v2797
        %v2799 = vpop.f32.mrf.mxu0
        %v2800 = vadd.f32 %v2711, %v2799
        %2801 = vmatmul.bf16.gmra.mxu0 %v2070
        %v2802 = vpop.f32.mrf.mxu0
        %v2803 = vadd.f32 %v2714, %v2802
        %v2804 = vpop.f32.mrf.mxu0
        %v2805 = vadd.f32 %v2716, %v2804
        %2806 = vmatmul.bf16.gmra.mxu0 %v2074
        %v2807 = vpop.f32.mrf.mxu0
        %v2808 = vadd.f32 %v2719, %v2807
        %v2809 = vpop.f32.mrf.mxu0
        %v2810 = vadd.f32 %v2721, %v2809
        %2811 = vmatmul.bf16.gmra.mxu0 %v2078
        %v2812 = vpop.f32.mrf.mxu0
        %v2813 = vadd.f32 %v2724, %v2812
        %v2814 = vpop.f32.mrf.mxu0
        %v2815 = vadd.f32 %v2726, %v2814
        %2816 = vmatmul.bf16.gmra.mxu0 %v2082
        %v2817 = vpop.f32.mrf.mxu0
        %v2818 = vadd.f32 %v2729, %v2817
        %v2819 = vpop.f32.mrf.mxu0
        %v2820 = vadd.f32 %v2731, %v2819
        %2821 = vmatmul.bf16.gmra.mxu0 %v2086
        %v2822 = vpop.f32.mrf.mxu0
        %v2823 = vadd.f32 %v2734, %v2822
        %v2824 = vpop.f32.mrf.mxu0
        %v2825 = vadd.f32 %v2736, %v2824
        %2826 = vmatmul.bf16.gmra.mxu0 %v2090
        %v2827 = vpop.f32.mrf.mxu0
        %v2828 = vadd.f32 %v2739, %v2827
        %v2829 = vpop.f32.mrf.mxu0
        %v2830 = vadd.f32 %v2741, %v2829
        %2831 = vmatmul.bf16.gmra.mxu0 %v2094
        %v2832 = vpop.f32.mrf.mxu0
        %v2833 = vadd.f32 %v2744, %v2832
        %v2834 = vpop.f32.mrf.mxu0
        %v2835 = vadd.f32 %v2746, %v2834
        %2836 = vmatmul.bf16.gmra.mxu0 %v2098
        %v2837 = vpop.f32.mrf.mxu0
        %v2838 = vadd.f32 %v2749, %v2837
        %v2839 = vpop.f32.mrf.mxu0
        %v2840 = vadd.f32 %v2751, %v2839
        %2841 = vmatmul.bf16.gmra.mxu0 %v2102
        %v2842 = vpop.f32.mrf.mxu0
        %v2843 = vadd.f32 %v2754, %v2842
        %v2844 = vpop.f32.mrf.mxu0
        %v2845 = vadd.f32 %v2756, %v2844
        %2846 = vmatmul.bf16.gmra.mxu0 %v2106
        %v2847 = vpop.f32.mrf.mxu0
        %v2848 = vadd.f32 %v2759, %v2847
        %v2849 = vpop.f32.mrf.mxu0
        %v2850 = vadd.f32 %v2761, %v2849
        %2851 = vmatmul.bf16.gmra.mxu0 %v2110
        %v2852 = vpop.f32.mrf.mxu0
        %v2853 = vadd.f32 %v2764, %v2852
        %v2854 = vpop.f32.mrf.mxu0
        %v2855 = vadd.f32 %v2766, %v2854
        %2856 = vdwg.mxu0
        %2857 = vmatpush.bf16.msra.mxu0 %v2388
        %2858 = vmatpush.bf16.msra.mxu0 %v2386
        %2859 = vmatpush.bf16.msra.mxu0 %v2384
        %2860 = vmatpush.bf16.msra.mxu0 %v2382
        %2861 = vmatpush.bf16.msra.mxu0 %v2380
        %2862 = vmatpush.bf16.msra.mxu0 %v2378
        %2863 = vmatpush.bf16.msra.mxu0 %v2376
        %2864 = vmatpush.bf16.msra.mxu0 %v2374
        %2865 = vmatmul.bf16.gmra.mxu0 %v2047
        %v2866 = vpop.f32.mrf.mxu0
        %v2867 = vadd.f32 %v2178, %v2866
        %v2868 = vpop.f32.mrf.mxu0
        %v2869 = vadd.f32 %v2178, %v2868
        %2870 = vmatmul.bf16.gmra.mxu0 %v2051
        %v2871 = vpop.f32.mrf.mxu0
        %v2872 = vadd.f32 %v2178, %v2871
        %v2873 = vpop.f32.mrf.mxu0
        %v2874 = vadd.f32 %v2178, %v2873
        %2875 = vmatmul.bf16.gmra.mxu0 %v2055
        %v2876 = vpop.f32.mrf.mxu0
        %v2877 = vadd.f32 %v2178, %v2876
        %v2878 = vpop.f32.mrf.mxu0
        %v2879 = vadd.f32 %v2178, %v2878
        %2880 = vmatmul.bf16.gmra.mxu0 %v2059
        %v2881 = vpop.f32.mrf.mxu0
        %v2882 = vadd.f32 %v2178, %v2881
        %v2883 = vpop.f32.mrf.mxu0
        %v2884 = vadd.f32 %v2178, %v2883
        %2885 = vmatmul.bf16.gmra.mxu0 %v2063
        %v2886 = vpop.f32.mrf.mxu0
        %v2887 = vadd.f32 %v2178, %v2886
        %v2888 = vpop.f32.mrf.mxu0
        %v2889 = vadd.f32 %v2178, %v2888
        %2890 = vmatmul.bf16.gmra.mxu0 %v2067
        %v2891 = vpop.f32.mrf.mxu0
        %v2892 = vadd.f32 %v2178, %v2891
        %v2893 = vpop.f32.mrf.mxu0
        %v2894 = vadd.f32 %v2178, %v2893
        %2895 = vmatmul.bf16.gmra.mxu0 %v2071
        %v2896 = vpop.f32.mrf.mxu0
        %v2897 = vadd.f32 %v2178, %v2896
        %v2898 = vpop.f32.mrf.mxu0
        %v2899 = vadd.f32 %v2178, %v2898
        %2900 = vmatmul.bf16.gmra.mxu0 %v2075
        %v2901 = vpop.f32.mrf.mxu0
        %v2902 = vadd.f32 %v2178, %v2901
        %v2903 = vpop.f32.mrf.mxu0
        %v2904 = vadd.f32 %v2178, %v2903
        %2905 = vmatmul.bf16.gmra.mxu0 %v2079
        %v2906 = vpop.f32.mrf.mxu0
        %v2907 = vadd.f32 %v2178, %v2906
        %v2908 = vpop.f32.mrf.mxu0
        %v2909 = vadd.f32 %v2178, %v2908
        %2910 = vmatmul.bf16.gmra.mxu0 %v2083
        %v2911 = vpop.f32.mrf.mxu0
        %v2912 = vadd.f32 %v2178, %v2911
        %v2913 = vpop.f32.mrf.mxu0
        %v2914 = vadd.f32 %v2178, %v2913
        %2915 = vmatmul.bf16.gmra.mxu0 %v2087
        %v2916 = vpop.f32.mrf.mxu0
        %v2917 = vadd.f32 %v2178, %v2916
        %v2918 = vpop.f32.mrf.mxu0
        %v2919 = vadd.f32 %v2178, %v2918
        %2920 = vmatmul.bf16.gmra.mxu0 %v2091
        %v2921 = vpop.f32.mrf.mxu0
        %v2922 = vadd.f32 %v2178, %v2921
        %v2923 = vpop.f32.mrf.mxu0
        %v2924 = vadd.f32 %v2178, %v2923
        %2925 = vmatmul.bf16.gmra.mxu0 %v2095
        %v2926 = vpop.f32.mrf.mxu0
        %v2927 = vadd.f32 %v2178, %v2926
        %v2928 = vpop.f32.mrf.mxu0
        %v2929 = vadd.f32 %v2178, %v2928
        %2930 = vmatmul.bf16.gmra.mxu0 %v2099
        %v2931 = vpop.f32.mrf.mxu0
        %v2932 = vadd.f32 %v2178, %v2931
        %v2933 = vpop.f32.mrf.mxu0
        %v2934 = vadd.f32 %v2178, %v2933
        %2935 = vmatmul.bf16.gmra.mxu0 %v2103
        %v2936 = vpop.f32.mrf.mxu0
        %v2937 = vadd.f32 %v2178, %v2936
        %v2938 = vpop.f32.mrf.mxu0
        %v2939 = vadd.f32 %v2178, %v2938
        %2940 = vmatmul.bf16.gmra.mxu0 %v2107
        %v2941 = vpop.f32.mrf.mxu0
        %v2942 = vadd.f32 %v2178, %v2941
        %v2943 = vpop.f32.mrf.mxu0
        %v2944 = vadd.f32 %v2178, %v2943
        %2945 = vdwg.mxu0
        %2946 = vmatpush.bf16.msra.mxu0 %v2404
        %2947 = vmatpush.bf16.msra.mxu0 %v2402
        %2948 = vmatpush.bf16.msra.mxu0 %v2400
        %2949 = vmatpush.bf16.msra.mxu0 %v2398
        %2950 = vmatpush.bf16.msra.mxu0 %v2396
        %2951 = vmatpush.bf16.msra.mxu0 %v2394
        %2952 = vmatpush.bf16.msra.mxu0 %v2392
        %2953 = vmatpush.bf16.msra.mxu0 %v2390
        %2954 = vmatmul.bf16.gmra.mxu0 %v2048
        %v2955 = vpop.f32.mrf.mxu0
        %v2956 = vadd.f32 %v2867, %v2955
        %v2957 = vpop.f32.mrf.mxu0
        %v2958 = vadd.f32 %v2869, %v2957
        %2959 = vmatmul.bf16.gmra.mxu0 %v2052
        %v2960 = vpop.f32.mrf.mxu0
        %v2961 = vadd.f32 %v2872, %v2960
        %v2962 = vpop.f32.mrf.mxu0
        %v2963 = vadd.f32 %v2874, %v2962
        %2964 = vmatmul.bf16.gmra.mxu0 %v2056
        %v2965 = vpop.f32.mrf.mxu0
        %v2966 = vadd.f32 %v2877, %v2965
        %v2967 = vpop.f32.mrf.mxu0
        %v2968 = vadd.f32 %v2879, %v2967
        %2969 = vmatmul.bf16.gmra.mxu0 %v2060
        %v2970 = vpop.f32.mrf.mxu0
        %v2971 = vadd.f32 %v2882, %v2970
        %v2972 = vpop.f32.mrf.mxu0
        %v2973 = vadd.f32 %v2884, %v2972
        %2974 = vmatmul.bf16.gmra.mxu0 %v2064
        %v2975 = vpop.f32.mrf.mxu0
        %v2976 = vadd.f32 %v2887, %v2975
        %v2977 = vpop.f32.mrf.mxu0
        %v2978 = vadd.f32 %v2889, %v2977
        %2979 = vmatmul.bf16.gmra.mxu0 %v2068
        %v2980 = vpop.f32.mrf.mxu0
        %v2981 = vadd.f32 %v2892, %v2980
        %v2982 = vpop.f32.mrf.mxu0
        %v2983 = vadd.f32 %v2894, %v2982
        %2984 = vmatmul.bf16.gmra.mxu0 %v2072
        %v2985 = vpop.f32.mrf.mxu0
        %v2986 = vadd.f32 %v2897, %v2985
        %v2987 = vpop.f32.mrf.mxu0
        %v2988 = vadd.f32 %v2899, %v2987
        %2989 = vmatmul.bf16.gmra.mxu0 %v2076
        %v2990 = vpop.f32.mrf.mxu0
        %v2991 = vadd.f32 %v2902, %v2990
        %v2992 = vpop.f32.mrf.mxu0
        %v2993 = vadd.f32 %v2904, %v2992
        %2994 = vmatmul.bf16.gmra.mxu0 %v2080
        %v2995 = vpop.f32.mrf.mxu0
        %v2996 = vadd.f32 %v2907, %v2995
        %v2997 = vpop.f32.mrf.mxu0
        %v2998 = vadd.f32 %v2909, %v2997
        %2999 = vmatmul.bf16.gmra.mxu0 %v2084
        %v3000 = vpop.f32.mrf.mxu0
        %v3001 = vadd.f32 %v2912, %v3000
        %v3002 = vpop.f32.mrf.mxu0
        %v3003 = vadd.f32 %v2914, %v3002
        %3004 = vmatmul.bf16.gmra.mxu0 %v2088
        %v3005 = vpop.f32.mrf.mxu0
        %v3006 = vadd.f32 %v2917, %v3005
        %v3007 = vpop.f32.mrf.mxu0
        %v3008 = vadd.f32 %v2919, %v3007
        %3009 = vmatmul.bf16.gmra.mxu0 %v2092
        %v3010 = vpop.f32.mrf.mxu0
        %v3011 = vadd.f32 %v2922, %v3010
        %v3012 = vpop.f32.mrf.mxu0
        %v3013 = vadd.f32 %v2924, %v3012
        %3014 = vmatmul.bf16.gmra.mxu0 %v2096
        %v3015 = vpop.f32.mrf.mxu0
        %v3016 = vadd.f32 %v2927, %v3015
        %v3017 = vpop.f32.mrf.mxu0
        %v3018 = vadd.f32 %v2929, %v3017
        %3019 = vmatmul.bf16.gmra.mxu0 %v2100
        %v3020 = vpop.f32.mrf.mxu0
        %v3021 = vadd.f32 %v2932, %v3020
        %v3022 = vpop.f32.mrf.mxu0
        %v3023 = vadd.f32 %v2934, %v3022
        %3024 = vmatmul.bf16.gmra.mxu0 %v2104
        %v3025 = vpop.f32.mrf.mxu0
        %v3026 = vadd.f32 %v2937, %v3025
        %v3027 = vpop.f32.mrf.mxu0
        %v3028 = vadd.f32 %v2939, %v3027
        %3029 = vmatmul.bf16.gmra.mxu0 %v2108
        %v3030 = vpop.f32.mrf.mxu0
        %v3031 = vadd.f32 %v2942, %v3030
        %v3032 = vpop.f32.mrf.mxu0
        %v3033 = vadd.f32 %v2944, %v3032
        %3034 = vdwg.mxu0
        %3035 = vmatpush.bf16.msra.mxu0 %v2420
        %3036 = vmatpush.bf16.msra.mxu0 %v2418
        %3037 = vmatpush.bf16.msra.mxu0 %v2416
        %3038 = vmatpush.bf16.msra.mxu0 %v2414
        %3039 = vmatpush.bf16.msra.mxu0 %v2412
        %3040 = vmatpush.bf16.msra.mxu0 %v2410
        %3041 = vmatpush.bf16.msra.mxu0 %v2408
        %3042 = vmatpush.bf16.msra.mxu0 %v2406
        %3043 = vmatmul.bf16.gmra.mxu0 %v2049
        %v3044 = vpop.f32.mrf.mxu0
        %v3045 = vadd.f32 %v2956, %v3044
        %v3046 = vpop.f32.mrf.mxu0
        %v3047 = vadd.f32 %v2958, %v3046
        %3048 = vmatmul.bf16.gmra.mxu0 %v2053
        %v3049 = vpop.f32.mrf.mxu0
        %v3050 = vadd.f32 %v2961, %v3049
        %v3051 = vpop.f32.mrf.mxu0
        %v3052 = vadd.f32 %v2963, %v3051
        %3053 = vmatmul.bf16.gmra.mxu0 %v2057
        %v3054 = vpop.f32.mrf.mxu0
        %v3055 = vadd.f32 %v2966, %v3054
        %v3056 = vpop.f32.mrf.mxu0
        %v3057 = vadd.f32 %v2968, %v3056
        %3058 = vmatmul.bf16.gmra.mxu0 %v2061
        %v3059 = vpop.f32.mrf.mxu0
        %v3060 = vadd.f32 %v2971, %v3059
        %v3061 = vpop.f32.mrf.mxu0
        %v3062 = vadd.f32 %v2973, %v3061
        %3063 = vmatmul.bf16.gmra.mxu0 %v2065
        %v3064 = vpop.f32.mrf.mxu0
        %v3065 = vadd.f32 %v2976, %v3064
        %v3066 = vpop.f32.mrf.mxu0
        %v3067 = vadd.f32 %v2978, %v3066
        %3068 = vmatmul.bf16.gmra.mxu0 %v2069
        %v3069 = vpop.f32.mrf.mxu0
        %v3070 = vadd.f32 %v2981, %v3069
        %v3071 = vpop.f32.mrf.mxu0
        %v3072 = vadd.f32 %v2983, %v3071
        %3073 = vmatmul.bf16.gmra.mxu0 %v2073
        %v3074 = vpop.f32.mrf.mxu0
        %v3075 = vadd.f32 %v2986, %v3074
        %v3076 = vpop.f32.mrf.mxu0
        %v3077 = vadd.f32 %v2988, %v3076
        %3078 = vmatmul.bf16.gmra.mxu0 %v2077
        %v3079 = vpop.f32.mrf.mxu0
        %v3080 = vadd.f32 %v2991, %v3079
        %v3081 = vpop.f32.mrf.mxu0
        %v3082 = vadd.f32 %v2993, %v3081
        %3083 = vmatmul.bf16.gmra.mxu0 %v2081
        %v3084 = vpop.f32.mrf.mxu0
        %v3085 = vadd.f32 %v2996, %v3084
        %v3086 = vpop.f32.mrf.mxu0
        %v3087 = vadd.f32 %v2998, %v3086
        %3088 = vmatmul.bf16.gmra.mxu0 %v2085
        %v3089 = vpop.f32.mrf.mxu0
        %v3090 = vadd.f32 %v3001, %v3089
        %v3091 = vpop.f32.mrf.mxu0
        %v3092 = vadd.f32 %v3003, %v3091
        %3093 = vmatmul.bf16.gmra.mxu0 %v2089
        %v3094 = vpop.f32.mrf.mxu0
        %v3095 = vadd.f32 %v3006, %v3094
        %v3096 = vpop.f32.mrf.mxu0
        %v3097 = vadd.f32 %v3008, %v3096
        %3098 = vmatmul.bf16.gmra.mxu0 %v2093
        %v3099 = vpop.f32.mrf.mxu0
        %v3100 = vadd.f32 %v3011, %v3099
        %v3101 = vpop.f32.mrf.mxu0
        %v3102 = vadd.f32 %v3013, %v3101
        %3103 = vmatmul.bf16.gmra.mxu0 %v2097
        %v3104 = vpop.f32.mrf.mxu0
        %v3105 = vadd.f32 %v3016, %v3104
        %v3106 = vpop.f32.mrf.mxu0
        %v3107 = vadd.f32 %v3018, %v3106
        %3108 = vmatmul.bf16.gmra.mxu0 %v2101
        %v3109 = vpop.f32.mrf.mxu0
        %v3110 = vadd.f32 %v3021, %v3109
        %v3111 = vpop.f32.mrf.mxu0
        %v3112 = vadd.f32 %v3023, %v3111
        %3113 = vmatmul.bf16.gmra.mxu0 %v2105
        %v3114 = vpop.f32.mrf.mxu0
        %v3115 = vadd.f32 %v3026, %v3114
        %v3116 = vpop.f32.mrf.mxu0
        %v3117 = vadd.f32 %v3028, %v3116
        %3118 = vmatmul.bf16.gmra.mxu0 %v2109
        %v3119 = vpop.f32.mrf.mxu0
        %v3120 = vadd.f32 %v3031, %v3119
        %v3121 = vpop.f32.mrf.mxu0
        %v3122 = vadd.f32 %v3033, %v3121
        %3123 = vdwg.mxu0
        %3124 = vmatpush.bf16.msra.mxu0 %v2436
        %3125 = vmatpush.bf16.msra.mxu0 %v2434
        %3126 = vmatpush.bf16.msra.mxu0 %v2432
        %3127 = vmatpush.bf16.msra.mxu0 %v2430
        %3128 = vmatpush.bf16.msra.mxu0 %v2428
        %3129 = vmatpush.bf16.msra.mxu0 %v2426
        %3130 = vmatpush.bf16.msra.mxu0 %v2424
        %3131 = vmatpush.bf16.msra.mxu0 %v2422
        %3132 = vmatmul.bf16.gmra.mxu0 %v2050
        %v3133 = vpop.f32.mrf.mxu0
        %v3134 = vadd.f32 %v3045, %v3133
        %v3135 = vpop.f32.mrf.mxu0
        %v3136 = vadd.f32 %v3047, %v3135
        %3137 = vmatmul.bf16.gmra.mxu0 %v2054
        %v3138 = vpop.f32.mrf.mxu0
        %v3139 = vadd.f32 %v3050, %v3138
        %v3140 = vpop.f32.mrf.mxu0
        %v3141 = vadd.f32 %v3052, %v3140
        %3142 = vmatmul.bf16.gmra.mxu0 %v2058
        %v3143 = vpop.f32.mrf.mxu0
        %v3144 = vadd.f32 %v3055, %v3143
        %v3145 = vpop.f32.mrf.mxu0
        %v3146 = vadd.f32 %v3057, %v3145
        %3147 = vmatmul.bf16.gmra.mxu0 %v2062
        %v3148 = vpop.f32.mrf.mxu0
        %v3149 = vadd.f32 %v3060, %v3148
        %v3150 = vpop.f32.mrf.mxu0
        %v3151 = vadd.f32 %v3062, %v3150
        %3152 = vmatmul.bf16.gmra.mxu0 %v2066
        %v3153 = vpop.f32.mrf.mxu0
        %v3154 = vadd.f32 %v3065, %v3153
        %v3155 = vpop.f32.mrf.mxu0
        %v3156 = vadd.f32 %v3067, %v3155
        %3157 = vmatmul.bf16.gmra.mxu0 %v2070
        %v3158 = vpop.f32.mrf.mxu0
        %v3159 = vadd.f32 %v3070, %v3158
        %v3160 = vpop.f32.mrf.mxu0
        %v3161 = vadd.f32 %v3072, %v3160
        %3162 = vmatmul.bf16.gmra.mxu0 %v2074
        %v3163 = vpop.f32.mrf.mxu0
        %v3164 = vadd.f32 %v3075, %v3163
        %v3165 = vpop.f32.mrf.mxu0
        %v3166 = vadd.f32 %v3077, %v3165
        %3167 = vmatmul.bf16.gmra.mxu0 %v2078
        %v3168 = vpop.f32.mrf.mxu0
        %v3169 = vadd.f32 %v3080, %v3168
        %v3170 = vpop.f32.mrf.mxu0
        %v3171 = vadd.f32 %v3082, %v3170
        %3172 = vmatmul.bf16.gmra.mxu0 %v2082
        %v3173 = vpop.f32.mrf.mxu0
        %v3174 = vadd.f32 %v3085, %v3173
        %v3175 = vpop.f32.mrf.mxu0
        %v3176 = vadd.f32 %v3087, %v3175
        %3177 = vmatmul.bf16.gmra.mxu0 %v2086
        %v3178 = vpop.f32.mrf.mxu0
        %v3179 = vadd.f32 %v3090, %v3178
        %v3180 = vpop.f32.mrf.mxu0
        %v3181 = vadd.f32 %v3092, %v3180
        %3182 = vmatmul.bf16.gmra.mxu0 %v2090
        %v3183 = vpop.f32.mrf.mxu0
        %v3184 = vadd.f32 %v3095, %v3183
        %v3185 = vpop.f32.mrf.mxu0
        %v3186 = vadd.f32 %v3097, %v3185
        %3187 = vmatmul.bf16.gmra.mxu0 %v2094
        %v3188 = vpop.f32.mrf.mxu0
        %v3189 = vadd.f32 %v3100, %v3188
        %v3190 = vpop.f32.mrf.mxu0
        %v3191 = vadd.f32 %v3102, %v3190
        %3192 = vmatmul.bf16.gmra.mxu0 %v2098
        %v3193 = vpop.f32.mrf.mxu0
        %v3194 = vadd.f32 %v3105, %v3193
        %v3195 = vpop.f32.mrf.mxu0
        %v3196 = vadd.f32 %v3107, %v3195
        %3197 = vmatmul.bf16.gmra.mxu0 %v2102
        %v3198 = vpop.f32.mrf.mxu0
        %v3199 = vadd.f32 %v3110, %v3198
        %v3200 = vpop.f32.mrf.mxu0
        %v3201 = vadd.f32 %v3112, %v3200
        %3202 = vmatmul.bf16.gmra.mxu0 %v2106
        %v3203 = vpop.f32.mrf.mxu0
        %v3204 = vadd.f32 %v3115, %v3203
        %v3205 = vpop.f32.mrf.mxu0
        %v3206 = vadd.f32 %v3117, %v3205
        %3207 = vmatmul.bf16.gmra.mxu0 %v2110
        %v3208 = vpop.f32.mrf.mxu0
        %v3209 = vadd.f32 %v3120, %v3208
        %v3210 = vpop.f32.mrf.mxu0
        %v3211 = vadd.f32 %v3122, %v3210
        %3212 = vdwg.mxu0
        %v3213 = vpack.c.bf16 %v3134, %v2778
        %v3214 = vpack.c.bf16 %v3136, %v2780
        %v3215 = vpack.c.bf16 %v3139, %v2783
        %v3216 = vpack.c.bf16 %v3141, %v2785
        %v3217 = vpack.c.bf16 %v3144, %v2788
        %v3218 = vpack.c.bf16 %v3146, %v2790
        %v3219 = vpack.c.bf16 %v3149, %v2793
        %v3220 = vpack.c.bf16 %v3151, %v2795
        %v3221 = vpack.c.bf16 %v3154, %v2798
        %v3222 = vpack.c.bf16 %v3156, %v2800
        %v3223 = vpack.c.bf16 %v3159, %v2803
        %v3224 = vpack.c.bf16 %v3161, %v2805
        %v3225 = vpack.c.bf16 %v3164, %v2808
        %v3226 = vpack.c.bf16 %v3166, %v2810
        %v3227 = vpack.c.bf16 %v3169, %v2813
        %v3228 = vpack.c.bf16 %v3171, %v2815
        %v3229 = vpack.c.bf16 %v3174, %v2818
        %v3230 = vpack.c.bf16 %v3176, %v2820
        %v3231 = vpack.c.bf16 %v3179, %v2823
        %v3232 = vpack.c.bf16 %v3181, %v2825
        %v3233 = vpack.c.bf16 %v3184, %v2828
        %v3234 = vpack.c.bf16 %v3186, %v2830
        %v3235 = vpack.c.bf16 %v3189, %v2833
        %v3236 = vpack.c.bf16 %v3191, %v2835
        %v3237 = vpack.c.bf16 %v3194, %v2838
        %v3238 = vpack.c.bf16 %v3196, %v2840
        %v3239 = vpack.c.bf16 %v3199, %v2843
        %v3240 = vpack.c.bf16 %v3201, %v2845
        %v3241 = vpack.c.bf16 %v3204, %v2848
        %v3242 = vpack.c.bf16 %v3206, %v2850
        %v3243 = vpack.c.bf16 %v3209, %v2853
        %v3244 = vpack.c.bf16 %v3211, %v2855
        %v3245 = vunpack.c.l.bf16 %v3213
        %v3246 = vunpack.c.h.bf16 %v3213
        %v3247 = vunpack.c.l.bf16 %v3214
        %v3248 = vunpack.c.h.bf16 %v3214
        %v3249 = vunpack.c.l.bf16 %v3215
        %v3250 = vunpack.c.h.bf16 %v3215
        %v3251 = vunpack.c.l.bf16 %v3216
        %v3252 = vunpack.c.h.bf16 %v3216
        %v3253 = vunpack.c.l.bf16 %v3217
        %v3254 = vunpack.c.h.bf16 %v3217
        %v3255 = vunpack.c.l.bf16 %v3218
        %v3256 = vunpack.c.h.bf16 %v3218
        %v3257 = vunpack.c.l.bf16 %v3219
        %v3258 = vunpack.c.h.bf16 %v3219
        %v3259 = vunpack.c.l.bf16 %v3220
        %v3260 = vunpack.c.h.bf16 %v3220
        %v3261 = vunpack.c.l.bf16 %v3221
        %v3262 = vunpack.c.h.bf16 %v3221
        %v3263 = vunpack.c.l.bf16 %v3222
        %v3264 = vunpack.c.h.bf16 %v3222
        %v3265 = vunpack.c.l.bf16 %v3223
        %v3266 = vunpack.c.h.bf16 %v3223
        %v3267 = vunpack.c.l.bf16 %v3224
        %v3268 = vunpack.c.h.bf16 %v3224
        %v3269 = vunpack.c.l.bf16 %v3225
        %v3270 = vunpack.c.h.bf16 %v3225
        %v3271 = vunpack.c.l.bf16 %v3226
        %v3272 = vunpack.c.h.bf16 %v3226
        %v3273 = vunpack.c.l.bf16 %v3227
        %v3274 = vunpack.c.h.bf16 %v3227
        %v3275 = vunpack.c.l.bf16 %v3228
        %v3276 = vunpack.c.h.bf16 %v3228
        %v3277 = vunpack.c.l.bf16 %v3229
        %v3278 = vunpack.c.h.bf16 %v3229
        %v3279 = vunpack.c.l.bf16 %v3230
        %v3280 = vunpack.c.h.bf16 %v3230
        %v3281 = vunpack.c.l.bf16 %v3231
        %v3282 = vunpack.c.h.bf16 %v3231
        %v3283 = vunpack.c.l.bf16 %v3232
        %v3284 = vunpack.c.h.bf16 %v3232
        %v3285 = vunpack.c.l.bf16 %v3233
        %v3286 = vunpack.c.h.bf16 %v3233
        %v3287 = vunpack.c.l.bf16 %v3234
        %v3288 = vunpack.c.h.bf16 %v3234
        %v3289 = vunpack.c.l.bf16 %v3235
        %v3290 = vunpack.c.h.bf16 %v3235
        %v3291 = vunpack.c.l.bf16 %v3236
        %v3292 = vunpack.c.h.bf16 %v3236
        %v3293 = vunpack.c.l.bf16 %v3237
        %v3294 = vunpack.c.h.bf16 %v3237
        %v3295 = vunpack.c.l.bf16 %v3238
        %v3296 = vunpack.c.h.bf16 %v3238
        %v3297 = vunpack.c.l.bf16 %v3239
        %v3298 = vunpack.c.h.bf16 %v3239
        %v3299 = vunpack.c.l.bf16 %v3240
        %v3300 = vunpack.c.h.bf16 %v3240
        %v3301 = vunpack.c.l.bf16 %v3241
        %v3302 = vunpack.c.h.bf16 %v3241
        %v3303 = vunpack.c.l.bf16 %v3242
        %v3304 = vunpack.c.h.bf16 %v3242
        %v3305 = vunpack.c.l.bf16 %v3243
        %v3306 = vunpack.c.h.bf16 %v3243
        %v3307 = vunpack.c.l.bf16 %v3244
        %v3308 = vunpack.c.h.bf16 %v3244
        %v3309 = vmul.f32 %v3245, 0.100097656
        %v3310 = vmul.f32 %v3246, 0.100097656
        %v3311 = vmul.f32 %v3247, 0.100097656
        %v3312 = vmul.f32 %v3248, 0.100097656
        %v3313 = vmul.f32 %v3249, 0.100097656
        %v3314 = vmul.f32 %v3250, 0.100097656
        %v3315 = vmul.f32 %v3251, 0.100097656
        %v3316 = vmul.f32 %v3252, 0.100097656
        %v3317 = vmul.f32 %v3253, 0.100097656
        %v3318 = vmul.f32 %v3254, 0.100097656
        %v3319 = vmul.f32 %v3255, 0.100097656
        %v3320 = vmul.f32 %v3256, 0.100097656
        %v3321 = vmul.f32 %v3257, 0.100097656
        %v3322 = vmul.f32 %v3258, 0.100097656
        %v3323 = vmul.f32 %v3259, 0.100097656
        %v3324 = vmul.f32 %v3260, 0.100097656
        %v3325 = vmul.f32 %v3261, 0.100097656
        %v3326 = vmul.f32 %v3262, 0.100097656
        %v3327 = vmul.f32 %v3263, 0.100097656
        %v3328 = vmul.f32 %v3264, 0.100097656
        %v3329 = vmul.f32 %v3265, 0.100097656
        %v3330 = vmul.f32 %v3266, 0.100097656
        %v3331 = vmul.f32 %v3267, 0.100097656
        %v3332 = vmul.f32 %v3268, 0.100097656
        %v3333 = vmul.f32 %v3269, 0.100097656
        %v3334 = vmul.f32 %v3270, 0.100097656
        %v3335 = vmul.f32 %v3271, 0.100097656
        %v3336 = vmul.f32 %v3272, 0.100097656
        %v3337 = vmul.f32 %v3273, 0.100097656
        %v3338 = vmul.f32 %v3274, 0.100097656
        %v3339 = vmul.f32 %v3275, 0.100097656
        %v3340 = vmul.f32 %v3276, 0.100097656
        %v3341 = vmul.f32 %v3277, 0.100097656
        %v3342 = vmul.f32 %v3278, 0.100097656
        %v3343 = vmul.f32 %v3279, 0.100097656
        %v3344 = vmul.f32 %v3280, 0.100097656
        %v3345 = vmul.f32 %v3281, 0.100097656
        %v3346 = vmul.f32 %v3282, 0.100097656
        %v3347 = vmul.f32 %v3283, 0.100097656
        %v3348 = vmul.f32 %v3284, 0.100097656
        %v3349 = vmul.f32 %v3285, 0.100097656
        %v3350 = vmul.f32 %v3286, 0.100097656
        %v3351 = vmul.f32 %v3287, 0.100097656
        %v3352 = vmul.f32 %v3288, 0.100097656
        %v3353 = vmul.f32 %v3289, 0.100097656
        %v3354 = vmul.f32 %v3290, 0.100097656
        %v3355 = vmul.f32 %v3291, 0.100097656
        %v3356 = vmul.f32 %v3292, 0.100097656
        %v3357 = vmul.f32 %v3293, 0.100097656
        %v3358 = vmul.f32 %v3294, 0.100097656
        %v3359 = vmul.f32 %v3295, 0.100097656
        %v3360 = vmul.f32 %v3296, 0.100097656
        %v3361 = vmul.f32 %v3297, 0.100097656
        %v3362 = vmul.f32 %v3298, 0.100097656
        %v3363 = vmul.f32 %v3299, 0.100097656
        %v3364 = vmul.f32 %v3300, 0.100097656
        %v3365 = vmul.f32 %v3301, 0.100097656
        %v3366 = vmul.f32 %v3302, 0.100097656
        %v3367 = vmul.f32 %v3303, 0.100097656
        %v3368 = vmul.f32 %v3304, 0.100097656
        %v3369 = vmul.f32 %v3305, 0.100097656
        %v3370 = vmul.f32 %v3306, 0.100097656
        %v3371 = vmul.f32 %v3307, 0.100097656
        %v3372 = vmul.f32 %v3308, 0.100097656
        %v3373 = vpack.c.bf16 %v3310, %v3309
        %v3374 = vpack.c.bf16 %v3312, %v3311
        %v3375 = vpack.c.bf16 %v3314, %v3313
        %v3376 = vpack.c.bf16 %v3316, %v3315
        %v3377 = vpack.c.bf16 %v3318, %v3317
        %v3378 = vpack.c.bf16 %v3320, %v3319
        %v3379 = vpack.c.bf16 %v3322, %v3321
        %v3380 = vpack.c.bf16 %v3324, %v3323
        %v3381 = vpack.c.bf16 %v3326, %v3325
        %v3382 = vpack.c.bf16 %v3328, %v3327
        %v3383 = vpack.c.bf16 %v3330, %v3329
        %v3384 = vpack.c.bf16 %v3332, %v3331
        %v3385 = vpack.c.bf16 %v3334, %v3333
        %v3386 = vpack.c.bf16 %v3336, %v3335
        %v3387 = vpack.c.bf16 %v3338, %v3337
        %v3388 = vpack.c.bf16 %v3340, %v3339
        %v3389 = vpack.c.bf16 %v3342, %v3341
        %v3390 = vpack.c.bf16 %v3344, %v3343
        %v3391 = vpack.c.bf16 %v3346, %v3345
        %v3392 = vpack.c.bf16 %v3348, %v3347
        %v3393 = vpack.c.bf16 %v3350, %v3349
        %v3394 = vpack.c.bf16 %v3352, %v3351
        %v3395 = vpack.c.bf16 %v3354, %v3353
        %v3396 = vpack.c.bf16 %v3356, %v3355
        %v3397 = vpack.c.bf16 %v3358, %v3357
        %v3398 = vpack.c.bf16 %v3360, %v3359
        %v3399 = vpack.c.bf16 %v3362, %v3361
        %v3400 = vpack.c.bf16 %v3364, %v3363
        %v3401 = vpack.c.bf16 %v3366, %v3365
        %v3402 = vpack.c.bf16 %v3368, %v3367
        %v3403 = vpack.c.bf16 %v3370, %v3369
        %v3404 = vpack.c.bf16 %v3372, %v3371
        %v3405 = vunpack.c.l.bf16 %v3373
        %v3406 = vunpack.c.h.bf16 %v3373
        %v3407 = vunpack.c.l.bf16 %v3374
        %v3408 = vunpack.c.h.bf16 %v3374
        %v3409 = vunpack.c.l.bf16 %v3375
        %v3410 = vunpack.c.h.bf16 %v3375
        %v3411 = vunpack.c.l.bf16 %v3376
        %v3412 = vunpack.c.h.bf16 %v3376
        %v3413 = vunpack.c.l.bf16 %v3377
        %v3414 = vunpack.c.h.bf16 %v3377
        %v3415 = vunpack.c.l.bf16 %v3378
        %v3416 = vunpack.c.h.bf16 %v3378
        %v3417 = vunpack.c.l.bf16 %v3379
        %v3418 = vunpack.c.h.bf16 %v3379
        %v3419 = vunpack.c.l.bf16 %v3380
        %v3420 = vunpack.c.h.bf16 %v3380
        %v3421 = vunpack.c.l.bf16 %v3381
        %v3422 = vunpack.c.h.bf16 %v3381
        %v3423 = vunpack.c.l.bf16 %v3382
        %v3424 = vunpack.c.h.bf16 %v3382
        %v3425 = vunpack.c.l.bf16 %v3383
        %v3426 = vunpack.c.h.bf16 %v3383
        %v3427 = vunpack.c.l.bf16 %v3384
        %v3428 = vunpack.c.h.bf16 %v3384
        %v3429 = vunpack.c.l.bf16 %v3385
        %v3430 = vunpack.c.h.bf16 %v3385
        %v3431 = vunpack.c.l.bf16 %v3386
        %v3432 = vunpack.c.h.bf16 %v3386
        %v3433 = vunpack.c.l.bf16 %v3387
        %v3434 = vunpack.c.h.bf16 %v3387
        %v3435 = vunpack.c.l.bf16 %v3388
        %v3436 = vunpack.c.h.bf16 %v3388
        %v3437 = vunpack.c.l.bf16 %v3389
        %v3438 = vunpack.c.h.bf16 %v3389
        %v3439 = vunpack.c.l.bf16 %v3390
        %v3440 = vunpack.c.h.bf16 %v3390
        %v3441 = vunpack.c.l.bf16 %v3391
        %v3442 = vunpack.c.h.bf16 %v3391
        %v3443 = vunpack.c.l.bf16 %v3392
        %v3444 = vunpack.c.h.bf16 %v3392
        %v3445 = vunpack.c.l.bf16 %v3393
        %v3446 = vunpack.c.h.bf16 %v3393
        %v3447 = vunpack.c.l.bf16 %v3394
        %v3448 = vunpack.c.h.bf16 %v3394
        %v3449 = vunpack.c.l.bf16 %v3395
        %v3450 = vunpack.c.h.bf16 %v3395
        %v3451 = vunpack.c.l.bf16 %v3396
        %v3452 = vunpack.c.h.bf16 %v3396
        %v3453 = vunpack.c.l.bf16 %v3397
        %v3454 = vunpack.c.h.bf16 %v3397
        %v3455 = vunpack.c.l.bf16 %v3398
        %v3456 = vunpack.c.h.bf16 %v3398
        %v3457 = vunpack.c.l.bf16 %v3399
        %v3458 = vunpack.c.h.bf16 %v3399
        %v3459 = vunpack.c.l.bf16 %v3400
        %v3460 = vunpack.c.h.bf16 %v3400
        %v3461 = vunpack.c.l.bf16 %v3401
        %v3462 = vunpack.c.h.bf16 %v3401
        %v3463 = vunpack.c.l.bf16 %v3402
        %v3464 = vunpack.c.h.bf16 %v3402
        %v3465 = vunpack.c.l.bf16 %v3403
        %v3466 = vunpack.c.h.bf16 %v3403
        %v3467 = vunpack.c.l.bf16 %v3404
        %v3468 = vunpack.c.h.bf16 %v3404
        %v3469 = vmax.f32 %v3245, %v3405
        %v3470 = vmax.f32 %v3246, %v3406
        %v3471 = vmax.f32 %v3247, %v3407
        %v3472 = vmax.f32 %v3248, %v3408
        %v3473 = vmax.f32 %v3249, %v3409
        %v3474 = vmax.f32 %v3250, %v3410
        %v3475 = vmax.f32 %v3251, %v3411
        %v3476 = vmax.f32 %v3252, %v3412
        %v3477 = vmax.f32 %v3253, %v3413
        %v3478 = vmax.f32 %v3254, %v3414
        %v3479 = vmax.f32 %v3255, %v3415
        %v3480 = vmax.f32 %v3256, %v3416
        %v3481 = vmax.f32 %v3257, %v3417
        %v3482 = vmax.f32 %v3258, %v3418
        %v3483 = vmax.f32 %v3259, %v3419
        %v3484 = vmax.f32 %v3260, %v3420
        %v3485 = vmax.f32 %v3261, %v3421
        %v3486 = vmax.f32 %v3262, %v3422
        %v3487 = vmax.f32 %v3263, %v3423
        %v3488 = vmax.f32 %v3264, %v3424
        %v3489 = vmax.f32 %v3265, %v3425
        %v3490 = vmax.f32 %v3266, %v3426
        %v3491 = vmax.f32 %v3267, %v3427
        %v3492 = vmax.f32 %v3268, %v3428
        %v3493 = vmax.f32 %v3269, %v3429
        %v3494 = vmax.f32 %v3270, %v3430
        %v3495 = vmax.f32 %v3271, %v3431
        %v3496 = vmax.f32 %v3272, %v3432
        %v3497 = vmax.f32 %v3273, %v3433
        %v3498 = vmax.f32 %v3274, %v3434
        %v3499 = vmax.f32 %v3275, %v3435
        %v3500 = vmax.f32 %v3276, %v3436
        %v3501 = vmax.f32 %v3277, %v3437
        %v3502 = vmax.f32 %v3278, %v3438
        %v3503 = vmax.f32 %v3279, %v3439
        %v3504 = vmax.f32 %v3280, %v3440
        %v3505 = vmax.f32 %v3281, %v3441
        %v3506 = vmax.f32 %v3282, %v3442
        %v3507 = vmax.f32 %v3283, %v3443
        %v3508 = vmax.f32 %v3284, %v3444
        %v3509 = vmax.f32 %v3285, %v3445
        %v3510 = vmax.f32 %v3286, %v3446
        %v3511 = vmax.f32 %v3287, %v3447
        %v3512 = vmax.f32 %v3288, %v3448
        %v3513 = vmax.f32 %v3289, %v3449
        %v3514 = vmax.f32 %v3290, %v3450
        %v3515 = vmax.f32 %v3291, %v3451
        %v3516 = vmax.f32 %v3292, %v3452
        %v3517 = vmax.f32 %v3293, %v3453
        %v3518 = vmax.f32 %v3294, %v3454
        %v3519 = vmax.f32 %v3295, %v3455
        %v3520 = vmax.f32 %v3296, %v3456
        %v3521 = vmax.f32 %v3297, %v3457
        %v3522 = vmax.f32 %v3298, %v3458
        %v3523 = vmax.f32 %v3299, %v3459
        %v3524 = vmax.f32 %v3300, %v3460
        %v3525 = vmax.f32 %v3301, %v3461
        %v3526 = vmax.f32 %v3302, %v3462
        %v3527 = vmax.f32 %v3303, %v3463
        %v3528 = vmax.f32 %v3304, %v3464
        %v3529 = vmax.f32 %v3305, %v3465
        %v3530 = vmax.f32 %v3306, %v3466
        %v3531 = vmax.f32 %v3307, %v3467
        %v3532 = vmax.f32 %v3308, %v3468
        %v3533 = vpack.c.bf16 %v3471, %v3469
        %v3534 = vpack.c.bf16 %v3472, %v3470
        %v3535 = vpack.c.bf16 %v3475, %v3473
        %v3536 = vpack.c.bf16 %v3476, %v3474
        %v3537 = vpack.c.bf16 %v3479, %v3477
        %v3538 = vpack.c.bf16 %v3480, %v3478
        %v3539 = vpack.c.bf16 %v3483, %v3481
        %v3540 = vpack.c.bf16 %v3484, %v3482
        %v3541 = vpack.c.bf16 %v3487, %v3485
        %v3542 = vpack.c.bf16 %v3488, %v3486
        %v3543 = vpack.c.bf16 %v3491, %v3489
        %v3544 = vpack.c.bf16 %v3492, %v3490
        %v3545 = vpack.c.bf16 %v3495, %v3493
        %v3546 = vpack.c.bf16 %v3496, %v3494
        %v3547 = vpack.c.bf16 %v3499, %v3497
        %v3548 = vpack.c.bf16 %v3500, %v3498
        %v3549 = vpack.c.bf16 %v3503, %v3501
        %v3550 = vpack.c.bf16 %v3504, %v3502
        %v3551 = vpack.c.bf16 %v3507, %v3505
        %v3552 = vpack.c.bf16 %v3508, %v3506
        %v3553 = vpack.c.bf16 %v3511, %v3509
        %v3554 = vpack.c.bf16 %v3512, %v3510
        %v3555 = vpack.c.bf16 %v3515, %v3513
        %v3556 = vpack.c.bf16 %v3516, %v3514
        %v3557 = vpack.c.bf16 %v3519, %v3517
        %v3558 = vpack.c.bf16 %v3520, %v3518
        %v3559 = vpack.c.bf16 %v3523, %v3521
        %v3560 = vpack.c.bf16 %v3524, %v3522
        %v3561 = vpack.c.bf16 %v3527, %v3525
        %v3562 = vpack.c.bf16 %v3528, %v3526
        %v3563 = vpack.c.bf16 %v3531, %v3529
        %v3564 = vpack.c.bf16 %v3532, %v3530
        %v3565 = vld [vmem:[%s5] sm:$0xf]
        %v3566 = vld [vmem:[%s5 + $0x4] sm:$0xf]
        %v3567 = vld [vmem:[%s5 + $0x8] sm:$0xf]
        %v3568 = vld [vmem:[%s5 + $0xc] sm:$0xf]
        %v3569 = vld [vmem:[%s5 + $0x10] sm:$0xf]
        %v3570 = vld [vmem:[%s5 + $0x14] sm:$0xf]
        %v3571 = vld [vmem:[%s5 + $0x18] sm:$0xf]
        %v3572 = vld [vmem:[%s5 + $0x1c] sm:$0xf]
        %v3573 = vld [vmem:[%s5 + $0x20] sm:$0xf]
        %v3574 = vld [vmem:[%s5 + $0x24] sm:$0xf]
        %v3575 = vld [vmem:[%s5 + $0x28] sm:$0xf]
        %v3576 = vld [vmem:[%s5 + $0x2c] sm:$0xf]
        %v3577 = vld [vmem:[%s5 + $0x30] sm:$0xf]
        %v3578 = vld [vmem:[%s5 + $0x34] sm:$0xf]
        %v3579 = vld [vmem:[%s5 + $0x38] sm:$0xf]
        %v3580 = vld [vmem:[%s5 + $0x3c] sm:$0xf]
        %v3581 = vld [vmem:[%s5 + $0x40] sm:$0xf]
        %v3582 = vld [vmem:[%s5 + $0x44] sm:$0xf]
        %v3583 = vld [vmem:[%s5 + $0x48] sm:$0xf]
        %v3584 = vld [vmem:[%s5 + $0x4c] sm:$0xf]
        %v3585 = vld [vmem:[%s5 + $0x50] sm:$0xf]
        %v3586 = vld [vmem:[%s5 + $0x54] sm:$0xf]
        %v3587 = vld [vmem:[%s5 + $0x58] sm:$0xf]
        %v3588 = vld [vmem:[%s5 + $0x5c] sm:$0xf]
        %v3589 = vld [vmem:[%s5 + $0x60] sm:$0xf]
        %v3590 = vld [vmem:[%s5 + $0x64] sm:$0xf]
        %v3591 = vld [vmem:[%s5 + $0x68] sm:$0xf]
        %v3592 = vld [vmem:[%s5 + $0x6c] sm:$0xf]
        %v3593 = vld [vmem:[%s5 + $0x70] sm:$0xf]
        %v3594 = vld [vmem:[%s5 + $0x74] sm:$0xf]
        %v3595 = vld [vmem:[%s5 + $0x78] sm:$0xf]
        %v3596 = vld [vmem:[%s5 + $0x7c] sm:$0xf]
        %v3597 = vld [vmem:[%s6] sm:$0x1]
        %v3599 = vperm.slane %v3597, 0
        %v3633 = vunpack.c.l.b16 %v3565
        %v3634 = vunpack.c.l.b16 %v3566
        %v3635 = vunpack.c.l.b16 %v3567
        %v3636 = vunpack.c.l.b16 %v3568
        %v3637 = vunpack.c.l.b16 %v3569
        %v3638 = vunpack.c.l.b16 %v3570
        %v3639 = vunpack.c.l.b16 %v3571
        %v3640 = vunpack.c.l.b16 %v3572
        %v3641 = vunpack.c.l.b16 %v3573
        %v3642 = vunpack.c.l.b16 %v3574
        %v3643 = vunpack.c.l.b16 %v3575
        %v3644 = vunpack.c.l.b16 %v3576
        %v3645 = vunpack.c.l.b16 %v3577
        %v3646 = vunpack.c.l.b16 %v3578
        %v3647 = vunpack.c.l.b16 %v3579
        %v3648 = vunpack.c.l.b16 %v3580
        %v3649 = vunpack.c.l.b16 %v3581
        %v3650 = vunpack.c.l.b16 %v3582
        %v3651 = vunpack.c.l.b16 %v3583
        %v3652 = vunpack.c.l.b16 %v3584
        %v3653 = vunpack.c.l.b16 %v3585
        %v3654 = vunpack.c.l.b16 %v3586
        %v3655 = vunpack.c.l.b16 %v3587
        %v3656 = vunpack.c.l.b16 %v3588
        %v3657 = vunpack.c.l.b16 %v3589
        %v3658 = vunpack.c.l.b16 %v3590
        %v3659 = vunpack.c.l.b16 %v3591
        %v3660 = vunpack.c.l.b16 %v3592
        %v3661 = vunpack.c.l.b16 %v3593
        %v3662 = vunpack.c.l.b16 %v3594
        %v3663 = vunpack.c.l.b16 %v3595
        %v3664 = vunpack.c.l.b16 %v3596
        %v3665 = vpack.c.b16 %v3634, %v3633
        %v3666 = vpack.c.b16 %v3636, %v3635
        %v3667 = vpack.c.b16 %v3638, %v3637
        %v3668 = vpack.c.b16 %v3640, %v3639
        %v3669 = vpack.c.b16 %v3642, %v3641
        %v3670 = vpack.c.b16 %v3644, %v3643
        %v3671 = vpack.c.b16 %v3646, %v3645
        %v3672 = vpack.c.b16 %v3648, %v3647
        %v3673 = vpack.c.b16 %v3650, %v3649
        %v3674 = vpack.c.b16 %v3652, %v3651
        %v3675 = vpack.c.b16 %v3654, %v3653
        %v3676 = vpack.c.b16 %v3656, %v3655
        %v3677 = vpack.c.b16 %v3658, %v3657
        %v3678 = vpack.c.b16 %v3660, %v3659
        %v3679 = vpack.c.b16 %v3662, %v3661
        %v3680 = vpack.c.b16 %v3664, %v3663
        %3697 = vmatpush.bf16.msra.mxu0 %v3672
        %3698 = vmatpush.bf16.msra.mxu0 %v3671
        %3699 = vmatpush.bf16.msra.mxu0 %v3670
        %3700 = vmatpush.bf16.msra.mxu0 %v3669
        %3701 = vmatpush.bf16.msra.mxu0 %v3668
        %3702 = vmatpush.bf16.msra.mxu0 %v3667
        %3703 = vmatpush.bf16.msra.mxu0 %v3666
        %3704 = vmatpush.bf16.msra.mxu0 %v3665
        %3705 = vmatmul.bf16.gmra.mxu0 %v3533
        %v3706 = vpop.f32.mrf.mxu0
        %v3707 = vadd.f32 %v3599, %v3706
        %v3708 = vpop.f32.mrf.mxu0
        %v3709 = vadd.f32 %v3599, %v3708
        %3710 = vmatmul.bf16.gmra.mxu0 %v3535
        %v3711 = vpop.f32.mrf.mxu0
        %v3712 = vadd.f32 %v3599, %v3711
        %v3713 = vpop.f32.mrf.mxu0
        %v3714 = vadd.f32 %v3599, %v3713
        %3715 = vmatmul.bf16.gmra.mxu0 %v3537
        %v3716 = vpop.f32.mrf.mxu0
        %v3717 = vadd.f32 %v3599, %v3716
        %v3718 = vpop.f32.mrf.mxu0
        %v3719 = vadd.f32 %v3599, %v3718
        %3720 = vmatmul.bf16.gmra.mxu0 %v3539
        %v3721 = vpop.f32.mrf.mxu0
        %v3722 = vadd.f32 %v3599, %v3721
        %v3723 = vpop.f32.mrf.mxu0
        %v3724 = vadd.f32 %v3599, %v3723
        %3725 = vmatmul.bf16.gmra.mxu0 %v3541
        %v3726 = vpop.f32.mrf.mxu0
        %v3727 = vadd.f32 %v3599, %v3726
        %v3728 = vpop.f32.mrf.mxu0
        %v3729 = vadd.f32 %v3599, %v3728
        %3730 = vmatmul.bf16.gmra.mxu0 %v3543
        %v3731 = vpop.f32.mrf.mxu0
        %v3732 = vadd.f32 %v3599, %v3731
        %v3733 = vpop.f32.mrf.mxu0
        %v3734 = vadd.f32 %v3599, %v3733
        %3735 = vmatmul.bf16.gmra.mxu0 %v3545
        %v3736 = vpop.f32.mrf.mxu0
        %v3737 = vadd.f32 %v3599, %v3736
        %v3738 = vpop.f32.mrf.mxu0
        %v3739 = vadd.f32 %v3599, %v3738
        %3740 = vmatmul.bf16.gmra.mxu0 %v3547
        %v3741 = vpop.f32.mrf.mxu0
        %v3742 = vadd.f32 %v3599, %v3741
        %v3743 = vpop.f32.mrf.mxu0
        %v3744 = vadd.f32 %v3599, %v3743
        %3745 = vmatmul.bf16.gmra.mxu0 %v3549
        %v3746 = vpop.f32.mrf.mxu0
        %v3747 = vadd.f32 %v3599, %v3746
        %v3748 = vpop.f32.mrf.mxu0
        %v3749 = vadd.f32 %v3599, %v3748
        %3750 = vmatmul.bf16.gmra.mxu0 %v3551
        %v3751 = vpop.f32.mrf.mxu0
        %v3752 = vadd.f32 %v3599, %v3751
        %v3753 = vpop.f32.mrf.mxu0
        %v3754 = vadd.f32 %v3599, %v3753
        %3755 = vmatmul.bf16.gmra.mxu0 %v3553
        %v3756 = vpop.f32.mrf.mxu0
        %v3757 = vadd.f32 %v3599, %v3756
        %v3758 = vpop.f32.mrf.mxu0
        %v3759 = vadd.f32 %v3599, %v3758
        %3760 = vmatmul.bf16.gmra.mxu0 %v3555
        %v3761 = vpop.f32.mrf.mxu0
        %v3762 = vadd.f32 %v3599, %v3761
        %v3763 = vpop.f32.mrf.mxu0
        %v3764 = vadd.f32 %v3599, %v3763
        %3765 = vmatmul.bf16.gmra.mxu0 %v3557
        %v3766 = vpop.f32.mrf.mxu0
        %v3767 = vadd.f32 %v3599, %v3766
        %v3768 = vpop.f32.mrf.mxu0
        %v3769 = vadd.f32 %v3599, %v3768
        %3770 = vmatmul.bf16.gmra.mxu0 %v3559
        %v3771 = vpop.f32.mrf.mxu0
        %v3772 = vadd.f32 %v3599, %v3771
        %v3773 = vpop.f32.mrf.mxu0
        %v3774 = vadd.f32 %v3599, %v3773
        %3775 = vmatmul.bf16.gmra.mxu0 %v3561
        %v3776 = vpop.f32.mrf.mxu0
        %v3777 = vadd.f32 %v3599, %v3776
        %v3778 = vpop.f32.mrf.mxu0
        %v3779 = vadd.f32 %v3599, %v3778
        %3780 = vmatmul.bf16.gmra.mxu0 %v3563
        %v3781 = vpop.f32.mrf.mxu0
        %v3782 = vadd.f32 %v3599, %v3781
        %v3783 = vpop.f32.mrf.mxu0
        %v3784 = vadd.f32 %v3599, %v3783
        %3785 = vdwg.mxu0
        %3786 = vmatpush.bf16.msra.mxu0 %v3680
        %3787 = vmatpush.bf16.msra.mxu0 %v3679
        %3788 = vmatpush.bf16.msra.mxu0 %v3678
        %3789 = vmatpush.bf16.msra.mxu0 %v3677
        %3790 = vmatpush.bf16.msra.mxu0 %v3676
        %3791 = vmatpush.bf16.msra.mxu0 %v3675
        %3792 = vmatpush.bf16.msra.mxu0 %v3674
        %3793 = vmatpush.bf16.msra.mxu0 %v3673
        %3794 = vmatmul.bf16.gmra.mxu0 %v3534
        %v3795 = vpop.f32.mrf.mxu0
        %v3796 = vadd.f32 %v3707, %v3795
        %v3797 = vpop.f32.mrf.mxu0
        %v3798 = vadd.f32 %v3709, %v3797
        %3799 = vmatmul.bf16.gmra.mxu0 %v3536
        %v3800 = vpop.f32.mrf.mxu0
        %v3801 = vadd.f32 %v3712, %v3800
        %v3802 = vpop.f32.mrf.mxu0
        %v3803 = vadd.f32 %v3714, %v3802
        %3804 = vmatmul.bf16.gmra.mxu0 %v3538
        %v3805 = vpop.f32.mrf.mxu0
        %v3806 = vadd.f32 %v3717, %v3805
        %v3807 = vpop.f32.mrf.mxu0
        %v3808 = vadd.f32 %v3719, %v3807
        %3809 = vmatmul.bf16.gmra.mxu0 %v3540
        %v3810 = vpop.f32.mrf.mxu0
        %v3811 = vadd.f32 %v3722, %v3810
        %v3812 = vpop.f32.mrf.mxu0
        %v3813 = vadd.f32 %v3724, %v3812
        %3814 = vmatmul.bf16.gmra.mxu0 %v3542
        %v3815 = vpop.f32.mrf.mxu0
        %v3816 = vadd.f32 %v3727, %v3815
        %v3817 = vpop.f32.mrf.mxu0
        %v3818 = vadd.f32 %v3729, %v3817
        %3819 = vmatmul.bf16.gmra.mxu0 %v3544
        %v3820 = vpop.f32.mrf.mxu0
        %v3821 = vadd.f32 %v3732, %v3820
        %v3822 = vpop.f32.mrf.mxu0
        %v3823 = vadd.f32 %v3734, %v3822
        %3824 = vmatmul.bf16.gmra.mxu0 %v3546
        %v3825 = vpop.f32.mrf.mxu0
        %v3826 = vadd.f32 %v3737, %v3825
        %v3827 = vpop.f32.mrf.mxu0
        %v3828 = vadd.f32 %v3739, %v3827
        %3829 = vmatmul.bf16.gmra.mxu0 %v3548
        %v3830 = vpop.f32.mrf.mxu0
        %v3831 = vadd.f32 %v3742, %v3830
        %v3832 = vpop.f32.mrf.mxu0
        %v3833 = vadd.f32 %v3744, %v3832
        %3834 = vmatmul.bf16.gmra.mxu0 %v3550
        %v3835 = vpop.f32.mrf.mxu0
        %v3836 = vadd.f32 %v3747, %v3835
        %v3837 = vpop.f32.mrf.mxu0
        %v3838 = vadd.f32 %v3749, %v3837
        %3839 = vmatmul.bf16.gmra.mxu0 %v3552
        %v3840 = vpop.f32.mrf.mxu0
        %v3841 = vadd.f32 %v3752, %v3840
        %v3842 = vpop.f32.mrf.mxu0
        %v3843 = vadd.f32 %v3754, %v3842
        %3844 = vmatmul.bf16.gmra.mxu0 %v3554
        %v3845 = vpop.f32.mrf.mxu0
        %v3846 = vadd.f32 %v3757, %v3845
        %v3847 = vpop.f32.mrf.mxu0
        %v3848 = vadd.f32 %v3759, %v3847
        %3849 = vmatmul.bf16.gmra.mxu0 %v3556
        %v3850 = vpop.f32.mrf.mxu0
        %v3851 = vadd.f32 %v3762, %v3850
        %v3852 = vpop.f32.mrf.mxu0
        %v3853 = vadd.f32 %v3764, %v3852
        %3854 = vmatmul.bf16.gmra.mxu0 %v3558
        %v3855 = vpop.f32.mrf.mxu0
        %v3856 = vadd.f32 %v3767, %v3855
        %v3857 = vpop.f32.mrf.mxu0
        %v3858 = vadd.f32 %v3769, %v3857
        %3859 = vmatmul.bf16.gmra.mxu0 %v3560
        %v3860 = vpop.f32.mrf.mxu0
        %v3861 = vadd.f32 %v3772, %v3860
        %v3862 = vpop.f32.mrf.mxu0
        %v3863 = vadd.f32 %v3774, %v3862
        %3864 = vmatmul.bf16.gmra.mxu0 %v3562
        %v3865 = vpop.f32.mrf.mxu0
        %v3866 = vadd.f32 %v3777, %v3865
        %v3867 = vpop.f32.mrf.mxu0
        %v3868 = vadd.f32 %v3779, %v3867
        %3869 = vmatmul.bf16.gmra.mxu0 %v3564
        %v3870 = vpop.f32.mrf.mxu0
        %v3871 = vadd.f32 %v3782, %v3870
        %v3872 = vpop.f32.mrf.mxu0
        %v3873 = vadd.f32 %v3784, %v3872
        %3874 = vdwg.mxu0
        %v3875 = vpack.c.bf16 %v3796, %v3796
        %v3876 = vpack.c.bf16 %v3798, %v3798
        %v3877 = vpack.c.bf16 %v3801, %v3801
        %v3878 = vpack.c.bf16 %v3803, %v3803
        %v3879 = vpack.c.bf16 %v3806, %v3806
        %v3880 = vpack.c.bf16 %v3808, %v3808
        %v3881 = vpack.c.bf16 %v3811, %v3811
        %v3882 = vpack.c.bf16 %v3813, %v3813
        %v3883 = vpack.c.bf16 %v3816, %v3816
        %v3884 = vpack.c.bf16 %v3818, %v3818
        %v3885 = vpack.c.bf16 %v3821, %v3821
        %v3886 = vpack.c.bf16 %v3823, %v3823
        %v3887 = vpack.c.bf16 %v3826, %v3826
        %v3888 = vpack.c.bf16 %v3828, %v3828
        %v3889 = vpack.c.bf16 %v3831, %v3831
        %v3890 = vpack.c.bf16 %v3833, %v3833
        %v3891 = vpack.c.bf16 %v3836, %v3836
        %v3892 = vpack.c.bf16 %v3838, %v3838
        %v3893 = vpack.c.bf16 %v3841, %v3841
        %v3894 = vpack.c.bf16 %v3843, %v3843
        %v3895 = vpack.c.bf16 %v3846, %v3846
        %v3896 = vpack.c.bf16 %v3848, %v3848
        %v3897 = vpack.c.bf16 %v3851, %v3851
        %v3898 = vpack.c.bf16 %v3853, %v3853
        %v3899 = vpack.c.bf16 %v3856, %v3856
        %v3900 = vpack.c.bf16 %v3858, %v3858
        %v3901 = vpack.c.bf16 %v3861, %v3861
        %v3902 = vpack.c.bf16 %v3863, %v3863
        %v3903 = vpack.c.bf16 %v3866, %v3866
        %v3904 = vpack.c.bf16 %v3868, %v3868
        %v3905 = vpack.c.bf16 %v3871, %v3871
        %v3906 = vpack.c.bf16 %v3873, %v3873
        %v3907 = vunpack.c.l.bf16 %v3875
        %v3908 = vunpack.c.l.bf16 %v3876
        %v3909 = vunpack.c.l.bf16 %v3877
        %v3910 = vunpack.c.l.bf16 %v3878
        %v3911 = vunpack.c.l.bf16 %v3879
        %v3912 = vunpack.c.l.bf16 %v3880
        %v3913 = vunpack.c.l.bf16 %v3881
        %v3914 = vunpack.c.l.bf16 %v3882
        %v3915 = vunpack.c.l.bf16 %v3883
        %v3916 = vunpack.c.l.bf16 %v3884
        %v3917 = vunpack.c.l.bf16 %v3885
        %v3918 = vunpack.c.l.bf16 %v3886
        %v3919 = vunpack.c.l.bf16 %v3887
        %v3920 = vunpack.c.l.bf16 %v3888
        %v3921 = vunpack.c.l.bf16 %v3889
        %v3922 = vunpack.c.l.bf16 %v3890
        %v3923 = vunpack.c.l.bf16 %v3891
        %v3924 = vunpack.c.l.bf16 %v3892
        %v3925 = vunpack.c.l.bf16 %v3893
        %v3926 = vunpack.c.l.bf16 %v3894
        %v3927 = vunpack.c.l.bf16 %v3895
        %v3928 = vunpack.c.l.bf16 %v3896
        %v3929 = vunpack.c.l.bf16 %v3897
        %v3930 = vunpack.c.l.bf16 %v3898
        %v3931 = vunpack.c.l.bf16 %v3899
        %v3932 = vunpack.c.l.bf16 %v3900
        %v3933 = vunpack.c.l.bf16 %v3901
        %v3934 = vunpack.c.l.bf16 %v3902
        %v3935 = vunpack.c.l.bf16 %v3903
        %v3936 = vunpack.c.l.bf16 %v3904
        %v3937 = vunpack.c.l.bf16 %v3905
        %v3938 = vunpack.c.l.bf16 %v3906
        %v3939 = vmul.f32 %v3907, 0.100097656
        %v3940 = vmul.f32 %v3908, 0.100097656
        %v3941 = vmul.f32 %v3909, 0.100097656
        %v3942 = vmul.f32 %v3910, 0.100097656
        %v3943 = vmul.f32 %v3911, 0.100097656
        %v3944 = vmul.f32 %v3912, 0.100097656
        %v3945 = vmul.f32 %v3913, 0.100097656
        %v3946 = vmul.f32 %v3914, 0.100097656
        %v3947 = vmul.f32 %v3915, 0.100097656
        %v3948 = vmul.f32 %v3916, 0.100097656
        %v3949 = vmul.f32 %v3917, 0.100097656
        %v3950 = vmul.f32 %v3918, 0.100097656
        %v3951 = vmul.f32 %v3919, 0.100097656
        %v3952 = vmul.f32 %v3920, 0.100097656
        %v3953 = vmul.f32 %v3921, 0.100097656
        %v3954 = vmul.f32 %v3922, 0.100097656
        %v3955 = vmul.f32 %v3923, 0.100097656
        %v3956 = vmul.f32 %v3924, 0.100097656
        %v3957 = vmul.f32 %v3925, 0.100097656
        %v3958 = vmul.f32 %v3926, 0.100097656
        %v3959 = vmul.f32 %v3927, 0.100097656
        %v3960 = vmul.f32 %v3928, 0.100097656
        %v3961 = vmul.f32 %v3929, 0.100097656
        %v3962 = vmul.f32 %v3930, 0.100097656
        %v3963 = vmul.f32 %v3931, 0.100097656
        %v3964 = vmul.f32 %v3932, 0.100097656
        %v3965 = vmul.f32 %v3933, 0.100097656
        %v3966 = vmul.f32 %v3934, 0.100097656
        %v3967 = vmul.f32 %v3935, 0.100097656
        %v3968 = vmul.f32 %v3936, 0.100097656
        %v3969 = vmul.f32 %v3937, 0.100097656
        %v3970 = vmul.f32 %v3938, 0.100097656
        %v3971 = vpack.c.bf16 %v3939, %v3939
        %v3972 = vpack.c.bf16 %v3940, %v3940
        %v3973 = vpack.c.bf16 %v3941, %v3941
        %v3974 = vpack.c.bf16 %v3942, %v3942
        %v3975 = vpack.c.bf16 %v3943, %v3943
        %v3976 = vpack.c.bf16 %v3944, %v3944
        %v3977 = vpack.c.bf16 %v3945, %v3945
        %v3978 = vpack.c.bf16 %v3946, %v3946
        %v3979 = vpack.c.bf16 %v3947, %v3947
        %v3980 = vpack.c.bf16 %v3948, %v3948
        %v3981 = vpack.c.bf16 %v3949, %v3949
        %v3982 = vpack.c.bf16 %v3950, %v3950
        %v3983 = vpack.c.bf16 %v3951, %v3951
        %v3984 = vpack.c.bf16 %v3952, %v3952
        %v3985 = vpack.c.bf16 %v3953, %v3953
        %v3986 = vpack.c.bf16 %v3954, %v3954
        %v3987 = vpack.c.bf16 %v3955, %v3955
        %v3988 = vpack.c.bf16 %v3956, %v3956
        %v3989 = vpack.c.bf16 %v3957, %v3957
        %v3990 = vpack.c.bf16 %v3958, %v3958
        %v3991 = vpack.c.bf16 %v3959, %v3959
        %v3992 = vpack.c.bf16 %v3960, %v3960
        %v3993 = vpack.c.bf16 %v3961, %v3961
        %v3994 = vpack.c.bf16 %v3962, %v3962
        %v3995 = vpack.c.bf16 %v3963, %v3963
        %v3996 = vpack.c.bf16 %v3964, %v3964
        %v3997 = vpack.c.bf16 %v3965, %v3965
        %v3998 = vpack.c.bf16 %v3966, %v3966
        %v3999 = vpack.c.bf16 %v3967, %v3967
        %v4000 = vpack.c.bf16 %v3968, %v3968
        %v4001 = vpack.c.bf16 %v3969, %v3969
        %v4002 = vpack.c.bf16 %v3970, %v3970
        %v4003 = vunpack.c.l.bf16 %v3971
        %v4004 = vunpack.c.l.bf16 %v3972
        %v4005 = vunpack.c.l.bf16 %v3973
        %v4006 = vunpack.c.l.bf16 %v3974
        %v4007 = vunpack.c.l.bf16 %v3975
        %v4008 = vunpack.c.l.bf16 %v3976
        %v4009 = vunpack.c.l.bf16 %v3977
        %v4010 = vunpack.c.l.bf16 %v3978
        %v4011 = vunpack.c.l.bf16 %v3979
        %v4012 = vunpack.c.l.bf16 %v3980
        %v4013 = vunpack.c.l.bf16 %v3981
        %v4014 = vunpack.c.l.bf16 %v3982
        %v4015 = vunpack.c.l.bf16 %v3983
        %v4016 = vunpack.c.l.bf16 %v3984
        %v4017 = vunpack.c.l.bf16 %v3985
        %v4018 = vunpack.c.l.bf16 %v3986
        %v4019 = vunpack.c.l.bf16 %v3987
        %v4020 = vunpack.c.l.bf16 %v3988
        %v4021 = vunpack.c.l.bf16 %v3989
        %v4022 = vunpack.c.l.bf16 %v3990
        %v4023 = vunpack.c.l.bf16 %v3991
        %v4024 = vunpack.c.l.bf16 %v3992
        %v4025 = vunpack.c.l.bf16 %v3993
        %v4026 = vunpack.c.l.bf16 %v3994
        %v4027 = vunpack.c.l.bf16 %v3995
        %v4028 = vunpack.c.l.bf16 %v3996
        %v4029 = vunpack.c.l.bf16 %v3997
        %v4030 = vunpack.c.l.bf16 %v3998
        %v4031 = vunpack.c.l.bf16 %v3999
        %v4032 = vunpack.c.l.bf16 %v4000
        %v4033 = vunpack.c.l.bf16 %v4001
        %v4034 = vunpack.c.l.bf16 %v4002
        %v4035 = vmax.f32 %v3907, %v4003
        %v4036 = vmax.f32 %v3908, %v4004
        %v4037 = vmax.f32 %v3909, %v4005
        %v4038 = vmax.f32 %v3910, %v4006
        %v4039 = vmax.f32 %v3911, %v4007
        %v4040 = vmax.f32 %v3912, %v4008
        %v4041 = vmax.f32 %v3913, %v4009
        %v4042 = vmax.f32 %v3914, %v4010
        %v4043 = vmax.f32 %v3915, %v4011
        %v4044 = vmax.f32 %v3916, %v4012
        %v4045 = vmax.f32 %v3917, %v4013
        %v4046 = vmax.f32 %v3918, %v4014
        %v4047 = vmax.f32 %v3919, %v4015
        %v4048 = vmax.f32 %v3920, %v4016
        %v4049 = vmax.f32 %v3921, %v4017
        %v4050 = vmax.f32 %v3922, %v4018
        %v4051 = vmax.f32 %v3923, %v4019
        %v4052 = vmax.f32 %v3924, %v4020
        %v4053 = vmax.f32 %v3925, %v4021
        %v4054 = vmax.f32 %v3926, %v4022
        %v4055 = vmax.f32 %v3927, %v4023
        %v4056 = vmax.f32 %v3928, %v4024
        %v4057 = vmax.f32 %v3929, %v4025
        %v4058 = vmax.f32 %v3930, %v4026
        %v4059 = vmax.f32 %v3931, %v4027
        %v4060 = vmax.f32 %v3932, %v4028
        %v4061 = vmax.f32 %v3933, %v4029
        %v4062 = vmax.f32 %v3934, %v4030
        %v4063 = vmax.f32 %v3935, %v4031
        %v4064 = vmax.f32 %v3936, %v4032
        %v4065 = vmax.f32 %v3937, %v4033
        %v4066 = vmax.f32 %v3938, %v4034
        %v4067 = vpack.c.bf16 %v4036, %v4035
        %v4068 = vpack.c.bf16 %v4038, %v4037
        %v4069 = vpack.c.bf16 %v4040, %v4039
        %v4070 = vpack.c.bf16 %v4042, %v4041
        %v4071 = vpack.c.bf16 %v4044, %v4043
        %v4072 = vpack.c.bf16 %v4046, %v4045
        %v4073 = vpack.c.bf16 %v4048, %v4047
        %v4074 = vpack.c.bf16 %v4050, %v4049
        %v4075 = vpack.c.bf16 %v4052, %v4051
        %v4076 = vpack.c.bf16 %v4054, %v4053
        %v4077 = vpack.c.bf16 %v4056, %v4055
        %v4078 = vpack.c.bf16 %v4058, %v4057
        %v4079 = vpack.c.bf16 %v4060, %v4059
        %v4080 = vpack.c.bf16 %v4062, %v4061
        %v4081 = vpack.c.bf16 %v4064, %v4063
        %v4082 = vpack.c.bf16 %v4066, %v4065
        %v4083 = vld [vmem:[%s7] sm:$0xf]
        %v4084 = vld [vmem:[%s7 + $0x4] sm:$0xf]
        %v4085 = vld [vmem:[%s7 + $0x8] sm:$0xf]
        %v4086 = vld [vmem:[%s7 + $0xc] sm:$0xf]
        %v4087 = vld [vmem:[%s7 + $0x10] sm:$0xf]
        %v4088 = vld [vmem:[%s7 + $0x14] sm:$0xf]
        %v4089 = vld [vmem:[%s7 + $0x18] sm:$0xf]
        %v4090 = vld [vmem:[%s7 + $0x1c] sm:$0xf]
        %v4091 = vld [vmem:[%s7 + $0x20] sm:$0xf]
        %v4092 = vld [vmem:[%s7 + $0x24] sm:$0xf]
        %v4093 = vld [vmem:[%s7 + $0x28] sm:$0xf]
        %v4094 = vld [vmem:[%s7 + $0x2c] sm:$0xf]
        %v4095 = vld [vmem:[%s7 + $0x30] sm:$0xf]
        %v4096 = vld [vmem:[%s7 + $0x34] sm:$0xf]
        %v4097 = vld [vmem:[%s7 + $0x38] sm:$0xf]
        %v4098 = vld [vmem:[%s7 + $0x3c] sm:$0xf]
        %v4099 = vld [vmem:[#allocation10] sm:$0x1]
        %v4101 = vperm.slane %v4099, 0
        %v4119 = vunpack.c.l.b16 %v4083
        %v4120 = vunpack.c.l.b16 %v4084
        %v4121 = vunpack.c.l.b16 %v4085
        %v4122 = vunpack.c.l.b16 %v4086
        %v4123 = vunpack.c.l.b16 %v4087
        %v4124 = vunpack.c.l.b16 %v4088
        %v4125 = vunpack.c.l.b16 %v4089
        %v4126 = vunpack.c.l.b16 %v4090
        %v4127 = vunpack.c.l.b16 %v4091
        %v4128 = vunpack.c.l.b16 %v4092
        %v4129 = vunpack.c.l.b16 %v4093
        %v4130 = vunpack.c.l.b16 %v4094
        %v4131 = vunpack.c.l.b16 %v4095
        %v4132 = vunpack.c.l.b16 %v4096
        %v4133 = vunpack.c.l.b16 %v4097
        %v4134 = vunpack.c.l.b16 %v4098
        %v4135 = vpack.c.b16 %v4120, %v4119
        %v4136 = vpack.c.b16 %v4122, %v4121
        %v4137 = vpack.c.b16 %v4124, %v4123
        %v4138 = vpack.c.b16 %v4126, %v4125
        %v4139 = vpack.c.b16 %v4128, %v4127
        %v4140 = vpack.c.b16 %v4130, %v4129
        %v4141 = vpack.c.b16 %v4132, %v4131
        %v4142 = vpack.c.b16 %v4134, %v4133
        %4151 = vmatpush.bf16.msra.mxu0 %v4142
        %4152 = vmatpush.bf16.msra.mxu0 %v4141
        %4153 = vmatpush.bf16.msra.mxu0 %v4140
        %4154 = vmatpush.bf16.msra.mxu0 %v4139
        %4155 = vmatpush.bf16.msra.mxu0 %v4138
        %4156 = vmatpush.bf16.msra.mxu0 %v4137
        %4157 = vmatpush.bf16.msra.mxu0 %v4136
        %4158 = vmatpush.bf16.msra.mxu0 %v4135
        %4159 = vmatmul.bf16.gmra.mxu0 %v4067
        %v4160 = vpop.f32.mrf.mxu0
        %v4161 = vadd.f32 %v4101, %v4160
        %v4162 = vpop.f32.mrf.mxu0
        %v4163 = vadd.f32 %v4101, %v4162
        %4164 = vmatmul.bf16.gmra.mxu0 %v4068
        %v4165 = vpop.f32.mrf.mxu0
        %v4166 = vadd.f32 %v4101, %v4165
        %v4167 = vpop.f32.mrf.mxu0
        %v4168 = vadd.f32 %v4101, %v4167
        %4169 = vmatmul.bf16.gmra.mxu0 %v4069
        %v4170 = vpop.f32.mrf.mxu0
        %v4171 = vadd.f32 %v4101, %v4170
        %v4172 = vpop.f32.mrf.mxu0
        %v4173 = vadd.f32 %v4101, %v4172
        %4174 = vmatmul.bf16.gmra.mxu0 %v4070
        %v4175 = vpop.f32.mrf.mxu0
        %v4176 = vadd.f32 %v4101, %v4175
        %v4177 = vpop.f32.mrf.mxu0
        %v4178 = vadd.f32 %v4101, %v4177
        %4179 = vmatmul.bf16.gmra.mxu0 %v4071
        %v4180 = vpop.f32.mrf.mxu0
        %v4181 = vadd.f32 %v4101, %v4180
        %v4182 = vpop.f32.mrf.mxu0
        %v4183 = vadd.f32 %v4101, %v4182
        %4184 = vmatmul.bf16.gmra.mxu0 %v4072
        %v4185 = vpop.f32.mrf.mxu0
        %v4186 = vadd.f32 %v4101, %v4185
        %v4187 = vpop.f32.mrf.mxu0
        %v4188 = vadd.f32 %v4101, %v4187
        %4189 = vmatmul.bf16.gmra.mxu0 %v4073
        %v4190 = vpop.f32.mrf.mxu0
        %v4191 = vadd.f32 %v4101, %v4190
        %v4192 = vpop.f32.mrf.mxu0
        %v4193 = vadd.f32 %v4101, %v4192
        %4194 = vmatmul.bf16.gmra.mxu0 %v4074
        %v4195 = vpop.f32.mrf.mxu0
        %v4196 = vadd.f32 %v4101, %v4195
        %v4197 = vpop.f32.mrf.mxu0
        %v4198 = vadd.f32 %v4101, %v4197
        %4199 = vmatmul.bf16.gmra.mxu0 %v4075
        %v4200 = vpop.f32.mrf.mxu0
        %v4201 = vadd.f32 %v4101, %v4200
        %v4202 = vpop.f32.mrf.mxu0
        %v4203 = vadd.f32 %v4101, %v4202
        %4204 = vmatmul.bf16.gmra.mxu0 %v4076
        %v4205 = vpop.f32.mrf.mxu0
        %v4206 = vadd.f32 %v4101, %v4205
        %v4207 = vpop.f32.mrf.mxu0
        %v4208 = vadd.f32 %v4101, %v4207
        %4209 = vmatmul.bf16.gmra.mxu0 %v4077
        %v4210 = vpop.f32.mrf.mxu0
        %v4211 = vadd.f32 %v4101, %v4210
        %v4212 = vpop.f32.mrf.mxu0
        %v4213 = vadd.f32 %v4101, %v4212
        %4214 = vmatmul.bf16.gmra.mxu0 %v4078
        %v4215 = vpop.f32.mrf.mxu0
        %v4216 = vadd.f32 %v4101, %v4215
        %v4217 = vpop.f32.mrf.mxu0
        %v4218 = vadd.f32 %v4101, %v4217
        %4219 = vmatmul.bf16.gmra.mxu0 %v4079
        %v4220 = vpop.f32.mrf.mxu0
        %v4221 = vadd.f32 %v4101, %v4220
        %v4222 = vpop.f32.mrf.mxu0
        %v4223 = vadd.f32 %v4101, %v4222
        %4224 = vmatmul.bf16.gmra.mxu0 %v4080
        %v4225 = vpop.f32.mrf.mxu0
        %v4226 = vadd.f32 %v4101, %v4225
        %v4227 = vpop.f32.mrf.mxu0
        %v4228 = vadd.f32 %v4101, %v4227
        %4229 = vmatmul.bf16.gmra.mxu0 %v4081
        %v4230 = vpop.f32.mrf.mxu0
        %v4231 = vadd.f32 %v4101, %v4230
        %v4232 = vpop.f32.mrf.mxu0
        %v4233 = vadd.f32 %v4101, %v4232
        %4234 = vmatmul.bf16.gmra.mxu0 %v4082
        %v4235 = vpop.f32.mrf.mxu0
        %v4236 = vadd.f32 %v4101, %v4235
        %v4237 = vpop.f32.mrf.mxu0
        %v4238 = vadd.f32 %v4101, %v4237
        %4239 = vdwg.mxu0
        %v4240 = vpack.c.bf16 %v4161, %v4161
        %v4241 = vpack.c.bf16 %v4163, %v4163
        %v4242 = vpack.c.bf16 %v4166, %v4166
        %v4243 = vpack.c.bf16 %v4168, %v4168
        %v4244 = vpack.c.bf16 %v4171, %v4171
        %v4245 = vpack.c.bf16 %v4173, %v4173
        %v4246 = vpack.c.bf16 %v4176, %v4176
        %v4247 = vpack.c.bf16 %v4178, %v4178
        %v4248 = vpack.c.bf16 %v4181, %v4181
        %v4249 = vpack.c.bf16 %v4183, %v4183
        %v4250 = vpack.c.bf16 %v4186, %v4186
        %v4251 = vpack.c.bf16 %v4188, %v4188
        %v4252 = vpack.c.bf16 %v4191, %v4191
        %v4253 = vpack.c.bf16 %v4193, %v4193
        %v4254 = vpack.c.bf16 %v4196, %v4196
        %v4255 = vpack.c.bf16 %v4198, %v4198
        %v4256 = vpack.c.bf16 %v4201, %v4201
        %v4257 = vpack.c.bf16 %v4203, %v4203
        %v4258 = vpack.c.bf16 %v4206, %v4206
        %v4259 = vpack.c.bf16 %v4208, %v4208
        %v4260 = vpack.c.bf16 %v4211, %v4211
        %v4261 = vpack.c.bf16 %v4213, %v4213
        %v4262 = vpack.c.bf16 %v4216, %v4216
        %v4263 = vpack.c.bf16 %v4218, %v4218
        %v4264 = vpack.c.bf16 %v4221, %v4221
        %v4265 = vpack.c.bf16 %v4223, %v4223
        %v4266 = vpack.c.bf16 %v4226, %v4226
        %v4267 = vpack.c.bf16 %v4228, %v4228
        %v4268 = vpack.c.bf16 %v4231, %v4231
        %v4269 = vpack.c.bf16 %v4233, %v4233
        %v4270 = vpack.c.bf16 %v4236, %v4236
        %v4271 = vpack.c.bf16 %v4238, %v4238
        %v4272 = vunpack.c.l.bf16 %v4240
        %v4273 = vunpack.c.l.bf16 %v4241
        %v4274 = vunpack.c.l.bf16 %v4242
        %v4275 = vunpack.c.l.bf16 %v4243
        %v4276 = vunpack.c.l.bf16 %v4244
        %v4277 = vunpack.c.l.bf16 %v4245
        %v4278 = vunpack.c.l.bf16 %v4246
        %v4279 = vunpack.c.l.bf16 %v4247
        %v4280 = vunpack.c.l.bf16 %v4248
        %v4281 = vunpack.c.l.bf16 %v4249
        %v4282 = vunpack.c.l.bf16 %v4250
        %v4283 = vunpack.c.l.bf16 %v4251
        %v4284 = vunpack.c.l.bf16 %v4252
        %v4285 = vunpack.c.l.bf16 %v4253
        %v4286 = vunpack.c.l.bf16 %v4254
        %v4287 = vunpack.c.l.bf16 %v4255
        %v4288 = vunpack.c.l.bf16 %v4256
        %v4289 = vunpack.c.l.bf16 %v4257
        %v4290 = vunpack.c.l.bf16 %v4258
        %v4291 = vunpack.c.l.bf16 %v4259
        %v4292 = vunpack.c.l.bf16 %v4260
        %v4293 = vunpack.c.l.bf16 %v4261
        %v4294 = vunpack.c.l.bf16 %v4262
        %v4295 = vunpack.c.l.bf16 %v4263
        %v4296 = vunpack.c.l.bf16 %v4264
        %v4297 = vunpack.c.l.bf16 %v4265
        %v4298 = vunpack.c.l.bf16 %v4266
        %v4299 = vunpack.c.l.bf16 %v4267
        %v4300 = vunpack.c.l.bf16 %v4268
        %v4301 = vunpack.c.l.bf16 %v4269
        %v4302 = vunpack.c.l.bf16 %v4270
        %v4303 = vunpack.c.l.bf16 %v4271
        %v4304 = vmul.f32 %v4272, 0.100097656
        %v4305 = vmul.f32 %v4273, 0.100097656
        %v4306 = vmul.f32 %v4274, 0.100097656
        %v4307 = vmul.f32 %v4275, 0.100097656
        %v4308 = vmul.f32 %v4276, 0.100097656
        %v4309 = vmul.f32 %v4277, 0.100097656
        %v4310 = vmul.f32 %v4278, 0.100097656
        %v4311 = vmul.f32 %v4279, 0.100097656
        %v4312 = vmul.f32 %v4280, 0.100097656
        %v4313 = vmul.f32 %v4281, 0.100097656
        %v4314 = vmul.f32 %v4282, 0.100097656
        %v4315 = vmul.f32 %v4283, 0.100097656
        %v4316 = vmul.f32 %v4284, 0.100097656
        %v4317 = vmul.f32 %v4285, 0.100097656
        %v4318 = vmul.f32 %v4286, 0.100097656
        %v4319 = vmul.f32 %v4287, 0.100097656
        %v4320 = vmul.f32 %v4288, 0.100097656
        %v4321 = vmul.f32 %v4289, 0.100097656
        %v4322 = vmul.f32 %v4290, 0.100097656
        %v4323 = vmul.f32 %v4291, 0.100097656
        %v4324 = vmul.f32 %v4292, 0.100097656
        %v4325 = vmul.f32 %v4293, 0.100097656
        %v4326 = vmul.f32 %v4294, 0.100097656
        %v4327 = vmul.f32 %v4295, 0.100097656
        %v4328 = vmul.f32 %v4296, 0.100097656
        %v4329 = vmul.f32 %v4297, 0.100097656
        %v4330 = vmul.f32 %v4298, 0.100097656
        %v4331 = vmul.f32 %v4299, 0.100097656
        %v4332 = vmul.f32 %v4300, 0.100097656
        %v4333 = vmul.f32 %v4301, 0.100097656
        %v4334 = vmul.f32 %v4302, 0.100097656
        %v4335 = vmul.f32 %v4303, 0.100097656
        %v4336 = vpack.c.bf16 %v4304, %v4304
        %v4337 = vpack.c.bf16 %v4305, %v4305
        %v4338 = vpack.c.bf16 %v4306, %v4306
        %v4339 = vpack.c.bf16 %v4307, %v4307
        %v4340 = vpack.c.bf16 %v4308, %v4308
        %v4341 = vpack.c.bf16 %v4309, %v4309
        %v4342 = vpack.c.bf16 %v4310, %v4310
        %v4343 = vpack.c.bf16 %v4311, %v4311
        %v4344 = vpack.c.bf16 %v4312, %v4312
        %v4345 = vpack.c.bf16 %v4313, %v4313
        %v4346 = vpack.c.bf16 %v4314, %v4314
        %v4347 = vpack.c.bf16 %v4315, %v4315
        %v4348 = vpack.c.bf16 %v4316, %v4316
        %v4349 = vpack.c.bf16 %v4317, %v4317
        %v4350 = vpack.c.bf16 %v4318, %v4318
        %v4351 = vpack.c.bf16 %v4319, %v4319
        %v4352 = vpack.c.bf16 %v4320, %v4320
        %v4353 = vpack.c.bf16 %v4321, %v4321
        %v4354 = vpack.c.bf16 %v4322, %v4322
        %v4355 = vpack.c.bf16 %v4323, %v4323
        %v4356 = vpack.c.bf16 %v4324, %v4324
        %v4357 = vpack.c.bf16 %v4325, %v4325
        %v4358 = vpack.c.bf16 %v4326, %v4326
        %v4359 = vpack.c.bf16 %v4327, %v4327
        %v4360 = vpack.c.bf16 %v4328, %v4328
        %v4361 = vpack.c.bf16 %v4329, %v4329
        %v4362 = vpack.c.bf16 %v4330, %v4330
        %v4363 = vpack.c.bf16 %v4331, %v4331
        %v4364 = vpack.c.bf16 %v4332, %v4332
        %v4365 = vpack.c.bf16 %v4333, %v4333
        %v4366 = vpack.c.bf16 %v4334, %v4334
        %v4367 = vpack.c.bf16 %v4335, %v4335
        %v4368 = vunpack.c.l.bf16 %v4336
        %v4369 = vunpack.c.l.bf16 %v4337
        %v4370 = vunpack.c.l.bf16 %v4338
        %v4371 = vunpack.c.l.bf16 %v4339
        %v4372 = vunpack.c.l.bf16 %v4340
        %v4373 = vunpack.c.l.bf16 %v4341
        %v4374 = vunpack.c.l.bf16 %v4342
        %v4375 = vunpack.c.l.bf16 %v4343
        %v4376 = vunpack.c.l.bf16 %v4344
        %v4377 = vunpack.c.l.bf16 %v4345
        %v4378 = vunpack.c.l.bf16 %v4346
        %v4379 = vunpack.c.l.bf16 %v4347
        %v4380 = vunpack.c.l.bf16 %v4348
        %v4381 = vunpack.c.l.bf16 %v4349
        %v4382 = vunpack.c.l.bf16 %v4350
        %v4383 = vunpack.c.l.bf16 %v4351
        %v4384 = vunpack.c.l.bf16 %v4352
        %v4385 = vunpack.c.l.bf16 %v4353
        %v4386 = vunpack.c.l.bf16 %v4354
        %v4387 = vunpack.c.l.bf16 %v4355
        %v4388 = vunpack.c.l.bf16 %v4356
        %v4389 = vunpack.c.l.bf16 %v4357
        %v4390 = vunpack.c.l.bf16 %v4358
        %v4391 = vunpack.c.l.bf16 %v4359
        %v4392 = vunpack.c.l.bf16 %v4360
        %v4393 = vunpack.c.l.bf16 %v4361
        %v4394 = vunpack.c.l.bf16 %v4362
        %v4395 = vunpack.c.l.bf16 %v4363
        %v4396 = vunpack.c.l.bf16 %v4364
        %v4397 = vunpack.c.l.bf16 %v4365
        %v4398 = vunpack.c.l.bf16 %v4366
        %v4399 = vunpack.c.l.bf16 %v4367
        %v4400 = vmax.f32 %v4272, %v4368
        %v4401 = vmax.f32 %v4273, %v4369
        %v4402 = vmax.f32 %v4274, %v4370
        %v4403 = vmax.f32 %v4275, %v4371
        %v4404 = vmax.f32 %v4276, %v4372
        %v4405 = vmax.f32 %v4277, %v4373
        %v4406 = vmax.f32 %v4278, %v4374
        %v4407 = vmax.f32 %v4279, %v4375
        %v4408 = vmax.f32 %v4280, %v4376
        %v4409 = vmax.f32 %v4281, %v4377
        %v4410 = vmax.f32 %v4282, %v4378
        %v4411 = vmax.f32 %v4283, %v4379
        %v4412 = vmax.f32 %v4284, %v4380
        %v4413 = vmax.f32 %v4285, %v4381
        %v4414 = vmax.f32 %v4286, %v4382
        %v4415 = vmax.f32 %v4287, %v4383
        %v4416 = vmax.f32 %v4288, %v4384
        %v4417 = vmax.f32 %v4289, %v4385
        %v4418 = vmax.f32 %v4290, %v4386
        %v4419 = vmax.f32 %v4291, %v4387
        %v4420 = vmax.f32 %v4292, %v4388
        %v4421 = vmax.f32 %v4293, %v4389
        %v4422 = vmax.f32 %v4294, %v4390
        %v4423 = vmax.f32 %v4295, %v4391
        %v4424 = vmax.f32 %v4296, %v4392
        %v4425 = vmax.f32 %v4297, %v4393
        %v4426 = vmax.f32 %v4298, %v4394
        %v4427 = vmax.f32 %v4299, %v4395
        %v4428 = vmax.f32 %v4300, %v4396
        %v4429 = vmax.f32 %v4301, %v4397
        %v4430 = vmax.f32 %v4302, %v4398
        %v4431 = vmax.f32 %v4303, %v4399
        %v4432 = vpack.c.bf16 %v4401, %v4400
        %v4433 = vpack.c.bf16 %v4403, %v4402
        %v4434 = vpack.c.bf16 %v4405, %v4404
        %v4435 = vpack.c.bf16 %v4407, %v4406
        %v4436 = vpack.c.bf16 %v4409, %v4408
        %v4437 = vpack.c.bf16 %v4411, %v4410
        %v4438 = vpack.c.bf16 %v4413, %v4412
        %v4439 = vpack.c.bf16 %v4415, %v4414
        %v4440 = vpack.c.bf16 %v4417, %v4416
        %v4441 = vpack.c.bf16 %v4419, %v4418
        %v4442 = vpack.c.bf16 %v4421, %v4420
        %v4443 = vpack.c.bf16 %v4423, %v4422
        %v4444 = vpack.c.bf16 %v4425, %v4424
        %v4445 = vpack.c.bf16 %v4427, %v4426
        %v4446 = vpack.c.bf16 %v4429, %v4428
        %v4447 = vpack.c.bf16 %v4431, %v4430
        %v4448 = vld [vmem:[%s9] sm:$0xf]
        %v4449 = vld [vmem:[%s9 + $0x4] sm:$0xf]
        %v4450 = vld [vmem:[%s9 + $0x8] sm:$0xf]
        %v4451 = vld [vmem:[%s9 + $0xc] sm:$0xf]
        %v4452 = vld [vmem:[%s9 + $0x10] sm:$0xf]
        %v4453 = vld [vmem:[%s9 + $0x14] sm:$0xf]
        %v4454 = vld [vmem:[%s9 + $0x18] sm:$0xf]
        %v4455 = vld [vmem:[%s9 + $0x1c] sm:$0xf]
        %v4456 = vld [vmem:[%s10] sm:$0x1]
        %v4458 = vperm.slane %v4456, 0
        %v4468 = vunpack.c.l.b16 %v4448
        %v4469 = vunpack.c.l.b16 %v4449
        %v4470 = vunpack.c.l.b16 %v4450
        %v4471 = vunpack.c.l.b16 %v4451
        %v4472 = vunpack.c.l.b16 %v4452
        %v4473 = vunpack.c.l.b16 %v4453
        %v4474 = vunpack.c.l.b16 %v4454
        %v4475 = vunpack.c.l.b16 %v4455
        %v4476 = vpack.c.b16 %v4469, %v4468
        %v4477 = vpack.c.b16 %v4471, %v4470
        %v4478 = vpack.c.b16 %v4473, %v4472
        %v4479 = vpack.c.b16 %v4475, %v4474
        %vm4484 = vcmask 523264
        %v4486 = vsel %vm4484, %v4432, 0
        %v4489 = vsel %vm4484, %v4433, 0
        %v4492 = vsel %vm4484, %v4434, 0
        %v4495 = vsel %vm4484, %v4435, 0
        %v4498 = vsel %vm4484, %v4436, 0
        %v4501 = vsel %vm4484, %v4437, 0
        %v4504 = vsel %vm4484, %v4438, 0
        %v4507 = vsel %vm4484, %v4439, 0
        %v4510 = vsel %vm4484, %v4440, 0
        %v4513 = vsel %vm4484, %v4441, 0
        %v4516 = vsel %vm4484, %v4442, 0
        %v4519 = vsel %vm4484, %v4443, 0
        %v4522 = vsel %vm4484, %v4444, 0
        %v4525 = vsel %vm4484, %v4445, 0
        %v4528 = vsel %vm4484, %v4446, 0
        %v4531 = vsel %vm4484, %v4447, 0
        %4533 = vmatpush.bf16.msra.mxu0 0
        %4534 = vmatpush.bf16.msra.mxu0 0
        %4535 = vmatpush.bf16.msra.mxu0 0
        %4536 = vmatpush.bf16.msra.mxu0 0
        %4537 = vmatpush.bf16.msra.mxu0 %v4479
        %4538 = vmatpush.bf16.msra.mxu0 %v4478
        %4539 = vmatpush.bf16.msra.mxu0 %v4477
        %4540 = vmatpush.bf16.msra.mxu0 %v4476
        %4541 = vmatmul.bf16.gmra.mxu0 %v4486
        %v4542 = vpop.f32.mrf.mxu0
        %v4543 = vadd.f32 %v4458, %v4542
        %v4544 = vpop.f32.mrf.mxu0
        %v4545 = vadd.f32 %v4458, %v4544
        %4546 = vmatmul.bf16.gmra.mxu0 %v4489
        %v4547 = vpop.f32.mrf.mxu0
        %v4548 = vadd.f32 %v4458, %v4547
        %v4549 = vpop.f32.mrf.mxu0
        %v4550 = vadd.f32 %v4458, %v4549
        %4551 = vmatmul.bf16.gmra.mxu0 %v4492
        %v4552 = vpop.f32.mrf.mxu0
        %v4553 = vadd.f32 %v4458, %v4552
        %v4554 = vpop.f32.mrf.mxu0
        %v4555 = vadd.f32 %v4458, %v4554
        %4556 = vmatmul.bf16.gmra.mxu0 %v4495
        %v4557 = vpop.f32.mrf.mxu0
        %v4558 = vadd.f32 %v4458, %v4557
        %v4559 = vpop.f32.mrf.mxu0
        %v4560 = vadd.f32 %v4458, %v4559
        %4561 = vmatmul.bf16.gmra.mxu0 %v4498
        %v4562 = vpop.f32.mrf.mxu0
        %v4563 = vadd.f32 %v4458, %v4562
        %v4564 = vpop.f32.mrf.mxu0
        %v4565 = vadd.f32 %v4458, %v4564
        %4566 = vmatmul.bf16.gmra.mxu0 %v4501
        %v4567 = vpop.f32.mrf.mxu0
        %v4568 = vadd.f32 %v4458, %v4567
        %v4569 = vpop.f32.mrf.mxu0
        %v4570 = vadd.f32 %v4458, %v4569
        %4571 = vmatmul.bf16.gmra.mxu0 %v4504
        %v4572 = vpop.f32.mrf.mxu0
        %v4573 = vadd.f32 %v4458, %v4572
        %v4574 = vpop.f32.mrf.mxu0
        %v4575 = vadd.f32 %v4458, %v4574
        %4576 = vmatmul.bf16.gmra.mxu0 %v4507
        %v4577 = vpop.f32.mrf.mxu0
        %v4578 = vadd.f32 %v4458, %v4577
        %v4579 = vpop.f32.mrf.mxu0
        %v4580 = vadd.f32 %v4458, %v4579
        %4581 = vmatmul.bf16.gmra.mxu0 %v4510
        %v4582 = vpop.f32.mrf.mxu0
        %v4583 = vadd.f32 %v4458, %v4582
        %v4584 = vpop.f32.mrf.mxu0
        %v4585 = vadd.f32 %v4458, %v4584
        %4586 = vmatmul.bf16.gmra.mxu0 %v4513
        %v4587 = vpop.f32.mrf.mxu0
        %v4588 = vadd.f32 %v4458, %v4587
        %v4589 = vpop.f32.mrf.mxu0
        %v4590 = vadd.f32 %v4458, %v4589
        %4591 = vmatmul.bf16.gmra.mxu0 %v4516
        %v4592 = vpop.f32.mrf.mxu0
        %v4593 = vadd.f32 %v4458, %v4592
        %v4594 = vpop.f32.mrf.mxu0
        %v4595 = vadd.f32 %v4458, %v4594
        %4596 = vmatmul.bf16.gmra.mxu0 %v4519
        %v4597 = vpop.f32.mrf.mxu0
        %v4598 = vadd.f32 %v4458, %v4597
        %v4599 = vpop.f32.mrf.mxu0
        %v4600 = vadd.f32 %v4458, %v4599
        %4601 = vmatmul.bf16.gmra.mxu0 %v4522
        %v4602 = vpop.f32.mrf.mxu0
        %v4603 = vadd.f32 %v4458, %v4602
        %v4604 = vpop.f32.mrf.mxu0
        %v4605 = vadd.f32 %v4458, %v4604
        %4606 = vmatmul.bf16.gmra.mxu0 %v4525
        %v4607 = vpop.f32.mrf.mxu0
        %v4608 = vadd.f32 %v4458, %v4607
        %v4609 = vpop.f32.mrf.mxu0
        %v4610 = vadd.f32 %v4458, %v4609
        %4611 = vmatmul.bf16.gmra.mxu0 %v4528
        %v4612 = vpop.f32.mrf.mxu0
        %v4613 = vadd.f32 %v4458, %v4612
        %v4614 = vpop.f32.mrf.mxu0
        %v4615 = vadd.f32 %v4458, %v4614
        %4616 = vmatmul.bf16.gmra.mxu0 %v4531
        %v4617 = vpop.f32.mrf.mxu0
        %v4618 = vadd.f32 %v4458, %v4617
        %v4619 = vpop.f32.mrf.mxu0
        %v4620 = vadd.f32 %v4458, %v4619
        %4621 = vdwg.mxu0
        %v4622 = vpack.c.bf16 %v4543, %v4543
        %v4623 = vpack.c.bf16 %v4545, %v4545
        %v4624 = vpack.c.bf16 %v4548, %v4548
        %v4625 = vpack.c.bf16 %v4550, %v4550
        %v4626 = vpack.c.bf16 %v4553, %v4553
        %v4627 = vpack.c.bf16 %v4555, %v4555
        %v4628 = vpack.c.bf16 %v4558, %v4558
        %v4629 = vpack.c.bf16 %v4560, %v4560
        %v4630 = vpack.c.bf16 %v4563, %v4563
        %v4631 = vpack.c.bf16 %v4565, %v4565
        %v4632 = vpack.c.bf16 %v4568, %v4568
        %v4633 = vpack.c.bf16 %v4570, %v4570
        %v4634 = vpack.c.bf16 %v4573, %v4573
        %v4635 = vpack.c.bf16 %v4575, %v4575
        %v4636 = vpack.c.bf16 %v4578, %v4578
        %v4637 = vpack.c.bf16 %v4580, %v4580
        %v4638 = vpack.c.bf16 %v4583, %v4583
        %v4639 = vpack.c.bf16 %v4585, %v4585
        %v4640 = vpack.c.bf16 %v4588, %v4588
        %v4641 = vpack.c.bf16 %v4590, %v4590
        %v4642 = vpack.c.bf16 %v4593, %v4593
        %v4643 = vpack.c.bf16 %v4595, %v4595
        %v4644 = vpack.c.bf16 %v4598, %v4598
        %v4645 = vpack.c.bf16 %v4600, %v4600
        %v4646 = vpack.c.bf16 %v4603, %v4603
        %v4647 = vpack.c.bf16 %v4605, %v4605
        %v4648 = vpack.c.bf16 %v4608, %v4608
        %v4649 = vpack.c.bf16 %v4610, %v4610
        %v4650 = vpack.c.bf16 %v4613, %v4613
        %v4651 = vpack.c.bf16 %v4615, %v4615
        %v4652 = vpack.c.bf16 %v4618, %v4618
        %v4653 = vpack.c.bf16 %v4620, %v4620
        %v4654 = vld [vmem:[%s11] sm:$0xf]
        %v4655 = vld [vmem:[%s11 + $0x4] sm:$0xf]
        %v4656 = vld [vmem:[%s11 + $0x8] sm:$0xf]
        %v4657 = vld [vmem:[%s11 + $0xc] sm:$0xf]
        %v4658 = vld [vmem:[%s11 + $0x10] sm:$0xf]
        %v4659 = vld [vmem:[%s11 + $0x14] sm:$0xf]
        %v4660 = vld [vmem:[%s11 + $0x18] sm:$0xf]
        %v4661 = vld [vmem:[%s11 + $0x1c] sm:$0xf]
        %v4662 = vld [vmem:[%s11 + $0x20] sm:$0xf]
        %v4663 = vld [vmem:[%s11 + $0x24] sm:$0xf]
        %v4664 = vld [vmem:[%s11 + $0x28] sm:$0xf]
        %v4665 = vld [vmem:[%s11 + $0x2c] sm:$0xf]
        %v4666 = vld [vmem:[%s11 + $0x30] sm:$0xf]
        %v4667 = vld [vmem:[%s11 + $0x34] sm:$0xf]
        %v4668 = vld [vmem:[%s11 + $0x38] sm:$0xf]
        %v4669 = vld [vmem:[%s11 + $0x3c] sm:$0xf]
        %v4670 = vld [vmem:[%s12] sm:$0x1]
        %v4672 = vperm.slane %v4670, 0
        %v4706 = vunpack.c.l.b16 %v4622
        %v4707 = vunpack.c.l.b16 %v4623
        %v4708 = vunpack.c.l.b16 %v4624
        %v4709 = vunpack.c.l.b16 %v4625
        %v4710 = vunpack.c.l.b16 %v4626
        %v4711 = vunpack.c.l.b16 %v4627
        %v4712 = vunpack.c.l.b16 %v4628
        %v4713 = vunpack.c.l.b16 %v4629
        %v4714 = vunpack.c.l.b16 %v4630
        %v4715 = vunpack.c.l.b16 %v4631
        %v4716 = vunpack.c.l.b16 %v4632
        %v4717 = vunpack.c.l.b16 %v4633
        %v4718 = vunpack.c.l.b16 %v4634
        %v4719 = vunpack.c.l.b16 %v4635
        %v4720 = vunpack.c.l.b16 %v4636
        %v4721 = vunpack.c.l.b16 %v4637
        %v4722 = vunpack.c.l.b16 %v4638
        %v4723 = vunpack.c.l.b16 %v4639
        %v4724 = vunpack.c.l.b16 %v4640
        %v4725 = vunpack.c.l.b16 %v4641
        %v4726 = vunpack.c.l.b16 %v4642
        %v4727 = vunpack.c.l.b16 %v4643
        %v4728 = vunpack.c.l.b16 %v4644
        %v4729 = vunpack.c.l.b16 %v4645
        %v4730 = vunpack.c.l.b16 %v4646
        %v4731 = vunpack.c.l.b16 %v4647
        %v4732 = vunpack.c.l.b16 %v4648
        %v4733 = vunpack.c.l.b16 %v4649
        %v4734 = vunpack.c.l.b16 %v4650
        %v4735 = vunpack.c.l.b16 %v4651
        %v4736 = vunpack.c.l.b16 %v4652
        %v4737 = vunpack.c.l.b16 %v4653
        %v4738 = vpack.c.b16 %v4707, %v4706
        %v4739 = vpack.c.b16 %v4709, %v4708
        %v4740 = vpack.c.b16 %v4711, %v4710
        %v4741 = vpack.c.b16 %v4713, %v4712
        %v4742 = vpack.c.b16 %v4715, %v4714
        %v4743 = vpack.c.b16 %v4717, %v4716
        %v4744 = vpack.c.b16 %v4719, %v4718
        %v4745 = vpack.c.b16 %v4721, %v4720
        %v4746 = vpack.c.b16 %v4723, %v4722
        %v4747 = vpack.c.b16 %v4725, %v4724
        %v4748 = vpack.c.b16 %v4727, %v4726
        %v4749 = vpack.c.b16 %v4729, %v4728
        %v4750 = vpack.c.b16 %v4731, %v4730
        %v4751 = vpack.c.b16 %v4733, %v4732
        %v4752 = vpack.c.b16 %v4735, %v4734
        %v4753 = vpack.c.b16 %v4737, %v4736
        %v4786 = vunpack.c.l.b16 %v4654
        %v4787 = vunpack.c.l.b16 %v4655
        %v4788 = vunpack.c.l.b16 %v4656
        %v4789 = vunpack.c.l.b16 %v4657
        %v4790 = vunpack.c.l.b16 %v4658
        %v4791 = vunpack.c.l.b16 %v4659
        %v4792 = vunpack.c.l.b16 %v4660
        %v4793 = vunpack.c.l.b16 %v4661
        %v4794 = vunpack.c.l.b16 %v4662
        %v4795 = vunpack.c.l.b16 %v4663
        %v4796 = vunpack.c.l.b16 %v4664
        %v4797 = vunpack.c.l.b16 %v4665
        %v4798 = vunpack.c.l.b16 %v4666
        %v4799 = vunpack.c.l.b16 %v4667
        %v4800 = vunpack.c.l.b16 %v4668
        %v4801 = vunpack.c.l.b16 %v4669
        %v4802 = vpack.c.b16 %v4787, %v4786
        %v4803 = vpack.c.b16 %v4789, %v4788
        %v4804 = vpack.c.b16 %v4791, %v4790
        %v4805 = vpack.c.b16 %v4793, %v4792
        %v4806 = vpack.c.b16 %v4795, %v4794
        %v4807 = vpack.c.b16 %v4797, %v4796
        %v4808 = vpack.c.b16 %v4799, %v4798
        %v4809 = vpack.c.b16 %v4801, %v4800
        %4818 = vmatpush.bf16.msra.mxu0 %v4809
        %4819 = vmatpush.bf16.msra.mxu0 %v4808
        %4820 = vmatpush.bf16.msra.mxu0 %v4807
        %4821 = vmatpush.bf16.msra.mxu0 %v4806
        %4822 = vmatpush.bf16.msra.mxu0 %v4805
        %4823 = vmatpush.bf16.msra.mxu0 %v4804
        %4824 = vmatpush.bf16.msra.mxu0 %v4803
        %4825 = vmatpush.bf16.msra.mxu0 %v4802
        %4826 = vmatmul.bf16.gmra.mxu0 %v4738
        %v4827 = vpop.f32.mrf.mxu0
        %v4828 = vadd.f32 %v4672, %v4827
        %v4829 = vpop.f32.mrf.mxu0
        %v4830 = vadd.f32 %v4672, %v4829
        %4831 = vmatmul.bf16.gmra.mxu0 %v4739
        %v4832 = vpop.f32.mrf.mxu0
        %v4833 = vadd.f32 %v4672, %v4832
        %v4834 = vpop.f32.mrf.mxu0
        %v4835 = vadd.f32 %v4672, %v4834
        %4836 = vmatmul.bf16.gmra.mxu0 %v4740
        %v4837 = vpop.f32.mrf.mxu0
        %v4838 = vadd.f32 %v4672, %v4837
        %v4839 = vpop.f32.mrf.mxu0
        %v4840 = vadd.f32 %v4672, %v4839
        %4841 = vmatmul.bf16.gmra.mxu0 %v4741
        %v4842 = vpop.f32.mrf.mxu0
        %v4843 = vadd.f32 %v4672, %v4842
        %v4844 = vpop.f32.mrf.mxu0
        %v4845 = vadd.f32 %v4672, %v4844
        %4846 = vmatmul.bf16.gmra.mxu0 %v4742
        %v4847 = vpop.f32.mrf.mxu0
        %v4848 = vadd.f32 %v4672, %v4847
        %v4849 = vpop.f32.mrf.mxu0
        %v4850 = vadd.f32 %v4672, %v4849
        %4851 = vmatmul.bf16.gmra.mxu0 %v4743
        %v4852 = vpop.f32.mrf.mxu0
        %v4853 = vadd.f32 %v4672, %v4852
        %v4854 = vpop.f32.mrf.mxu0
        %v4855 = vadd.f32 %v4672, %v4854
        %4856 = vmatmul.bf16.gmra.mxu0 %v4744
        %v4857 = vpop.f32.mrf.mxu0
        %v4858 = vadd.f32 %v4672, %v4857
        %v4859 = vpop.f32.mrf.mxu0
        %v4860 = vadd.f32 %v4672, %v4859
        %4861 = vmatmul.bf16.gmra.mxu0 %v4745
        %v4862 = vpop.f32.mrf.mxu0
        %v4863 = vadd.f32 %v4672, %v4862
        %v4864 = vpop.f32.mrf.mxu0
        %v4865 = vadd.f32 %v4672, %v4864
        %4866 = vmatmul.bf16.gmra.mxu0 %v4746
        %v4867 = vpop.f32.mrf.mxu0
        %v4868 = vadd.f32 %v4672, %v4867
        %v4869 = vpop.f32.mrf.mxu0
        %v4870 = vadd.f32 %v4672, %v4869
        %4871 = vmatmul.bf16.gmra.mxu0 %v4747
        %v4872 = vpop.f32.mrf.mxu0
        %v4873 = vadd.f32 %v4672, %v4872
        %v4874 = vpop.f32.mrf.mxu0
        %v4875 = vadd.f32 %v4672, %v4874
        %4876 = vmatmul.bf16.gmra.mxu0 %v4748
        %v4877 = vpop.f32.mrf.mxu0
        %v4878 = vadd.f32 %v4672, %v4877
        %v4879 = vpop.f32.mrf.mxu0
        %v4880 = vadd.f32 %v4672, %v4879
        %4881 = vmatmul.bf16.gmra.mxu0 %v4749
        %v4882 = vpop.f32.mrf.mxu0
        %v4883 = vadd.f32 %v4672, %v4882
        %v4884 = vpop.f32.mrf.mxu0
        %v4885 = vadd.f32 %v4672, %v4884
        %4886 = vmatmul.bf16.gmra.mxu0 %v4750
        %v4887 = vpop.f32.mrf.mxu0
        %v4888 = vadd.f32 %v4672, %v4887
        %v4889 = vpop.f32.mrf.mxu0
        %v4890 = vadd.f32 %v4672, %v4889
        %4891 = vmatmul.bf16.gmra.mxu0 %v4751
        %v4892 = vpop.f32.mrf.mxu0
        %v4893 = vadd.f32 %v4672, %v4892
        %v4894 = vpop.f32.mrf.mxu0
        %v4895 = vadd.f32 %v4672, %v4894
        %4896 = vmatmul.bf16.gmra.mxu0 %v4752
        %v4897 = vpop.f32.mrf.mxu0
        %v4898 = vadd.f32 %v4672, %v4897
        %v4899 = vpop.f32.mrf.mxu0
        %v4900 = vadd.f32 %v4672, %v4899
        %4901 = vmatmul.bf16.gmra.mxu0 %v4753
        %v4902 = vpop.f32.mrf.mxu0
        %v4903 = vadd.f32 %v4672, %v4902
        %v4904 = vpop.f32.mrf.mxu0
        %v4905 = vadd.f32 %v4672, %v4904
        %4906 = vdwg.mxu0
        %v4907 = vpack.c.bf16 %v4828, %v4828
        %v4908 = vpack.c.bf16 %v4830, %v4830
        %v4909 = vpack.c.bf16 %v4833, %v4833
        %v4910 = vpack.c.bf16 %v4835, %v4835
        %v4911 = vpack.c.bf16 %v4838, %v4838
        %v4912 = vpack.c.bf16 %v4840, %v4840
        %v4913 = vpack.c.bf16 %v4843, %v4843
        %v4914 = vpack.c.bf16 %v4845, %v4845
        %v4915 = vpack.c.bf16 %v4848, %v4848
        %v4916 = vpack.c.bf16 %v4850, %v4850
        %v4917 = vpack.c.bf16 %v4853, %v4853
        %v4918 = vpack.c.bf16 %v4855, %v4855
        %v4919 = vpack.c.bf16 %v4858, %v4858
        %v4920 = vpack.c.bf16 %v4860, %v4860
        %v4921 = vpack.c.bf16 %v4863, %v4863
        %v4922 = vpack.c.bf16 %v4865, %v4865
        %v4923 = vpack.c.bf16 %v4868, %v4868
        %v4924 = vpack.c.bf16 %v4870, %v4870
        %v4925 = vpack.c.bf16 %v4873, %v4873
        %v4926 = vpack.c.bf16 %v4875, %v4875
        %v4927 = vpack.c.bf16 %v4878, %v4878
        %v4928 = vpack.c.bf16 %v4880, %v4880
        %v4929 = vpack.c.bf16 %v4883, %v4883
        %v4930 = vpack.c.bf16 %v4885, %v4885
        %v4931 = vpack.c.bf16 %v4888, %v4888
        %v4932 = vpack.c.bf16 %v4890, %v4890
        %v4933 = vpack.c.bf16 %v4893, %v4893
        %v4934 = vpack.c.bf16 %v4895, %v4895
        %v4935 = vpack.c.bf16 %v4898, %v4898
        %v4936 = vpack.c.bf16 %v4900, %v4900
        %v4937 = vpack.c.bf16 %v4903, %v4903
        %v4938 = vpack.c.bf16 %v4905, %v4905
        %v4939 = vunpack.c.l.bf16 %v4907
        %v4940 = vunpack.c.l.bf16 %v4908
        %v4941 = vunpack.c.l.bf16 %v4909
        %v4942 = vunpack.c.l.bf16 %v4910
        %v4943 = vunpack.c.l.bf16 %v4911
        %v4944 = vunpack.c.l.bf16 %v4912
        %v4945 = vunpack.c.l.bf16 %v4913
        %v4946 = vunpack.c.l.bf16 %v4914
        %v4947 = vunpack.c.l.bf16 %v4915
        %v4948 = vunpack.c.l.bf16 %v4916
        %v4949 = vunpack.c.l.bf16 %v4917
        %v4950 = vunpack.c.l.bf16 %v4918
        %v4951 = vunpack.c.l.bf16 %v4919
        %v4952 = vunpack.c.l.bf16 %v4920
        %v4953 = vunpack.c.l.bf16 %v4921
        %v4954 = vunpack.c.l.bf16 %v4922
        %v4955 = vunpack.c.l.bf16 %v4923
        %v4956 = vunpack.c.l.bf16 %v4924
        %v4957 = vunpack.c.l.bf16 %v4925
        %v4958 = vunpack.c.l.bf16 %v4926
        %v4959 = vunpack.c.l.bf16 %v4927
        %v4960 = vunpack.c.l.bf16 %v4928
        %v4961 = vunpack.c.l.bf16 %v4929
        %v4962 = vunpack.c.l.bf16 %v4930
        %v4963 = vunpack.c.l.bf16 %v4931
        %v4964 = vunpack.c.l.bf16 %v4932
        %v4965 = vunpack.c.l.bf16 %v4933
        %v4966 = vunpack.c.l.bf16 %v4934
        %v4967 = vunpack.c.l.bf16 %v4935
        %v4968 = vunpack.c.l.bf16 %v4936
        %v4969 = vunpack.c.l.bf16 %v4937
        %v4970 = vunpack.c.l.bf16 %v4938
        %v4971 = vmul.f32 %v4939, 0.100097656
        %v4972 = vmul.f32 %v4940, 0.100097656
        %v4973 = vmul.f32 %v4941, 0.100097656
        %v4974 = vmul.f32 %v4942, 0.100097656
        %v4975 = vmul.f32 %v4943, 0.100097656
        %v4976 = vmul.f32 %v4944, 0.100097656
        %v4977 = vmul.f32 %v4945, 0.100097656
        %v4978 = vmul.f32 %v4946, 0.100097656
        %v4979 = vmul.f32 %v4947, 0.100097656
        %v4980 = vmul.f32 %v4948, 0.100097656
        %v4981 = vmul.f32 %v4949, 0.100097656
        %v4982 = vmul.f32 %v4950, 0.100097656
        %v4983 = vmul.f32 %v4951, 0.100097656
        %v4984 = vmul.f32 %v4952, 0.100097656
        %v4985 = vmul.f32 %v4953, 0.100097656
        %v4986 = vmul.f32 %v4954, 0.100097656
        %v4987 = vmul.f32 %v4955, 0.100097656
        %v4988 = vmul.f32 %v4956, 0.100097656
        %v4989 = vmul.f32 %v4957, 0.100097656
        %v4990 = vmul.f32 %v4958, 0.100097656
        %v4991 = vmul.f32 %v4959, 0.100097656
        %v4992 = vmul.f32 %v4960, 0.100097656
        %v4993 = vmul.f32 %v4961, 0.100097656
        %v4994 = vmul.f32 %v4962, 0.100097656
        %v4995 = vmul.f32 %v4963, 0.100097656
        %v4996 = vmul.f32 %v4964, 0.100097656
        %v4997 = vmul.f32 %v4965, 0.100097656
        %v4998 = vmul.f32 %v4966, 0.100097656
        %v4999 = vmul.f32 %v4967, 0.100097656
        %v5000 = vmul.f32 %v4968, 0.100097656
        %v5001 = vmul.f32 %v4969, 0.100097656
        %v5002 = vmul.f32 %v4970, 0.100097656
        %v5003 = vpack.c.bf16 %v4971, %v4971
        %v5004 = vpack.c.bf16 %v4972, %v4972
        %v5005 = vpack.c.bf16 %v4973, %v4973
        %v5006 = vpack.c.bf16 %v4974, %v4974
        %v5007 = vpack.c.bf16 %v4975, %v4975
        %v5008 = vpack.c.bf16 %v4976, %v4976
        %v5009 = vpack.c.bf16 %v4977, %v4977
        %v5010 = vpack.c.bf16 %v4978, %v4978
        %v5011 = vpack.c.bf16 %v4979, %v4979
        %v5012 = vpack.c.bf16 %v4980, %v4980
        %v5013 = vpack.c.bf16 %v4981, %v4981
        %v5014 = vpack.c.bf16 %v4982, %v4982
        %v5015 = vpack.c.bf16 %v4983, %v4983
        %v5016 = vpack.c.bf16 %v4984, %v4984
        %v5017 = vpack.c.bf16 %v4985, %v4985
        %v5018 = vpack.c.bf16 %v4986, %v4986
        %v5019 = vpack.c.bf16 %v4987, %v4987
        %v5020 = vpack.c.bf16 %v4988, %v4988
        %v5021 = vpack.c.bf16 %v4989, %v4989
        %v5022 = vpack.c.bf16 %v4990, %v4990
        %v5023 = vpack.c.bf16 %v4991, %v4991
        %v5024 = vpack.c.bf16 %v4992, %v4992
        %v5025 = vpack.c.bf16 %v4993, %v4993
        %v5026 = vpack.c.bf16 %v4994, %v4994
        %v5027 = vpack.c.bf16 %v4995, %v4995
        %v5028 = vpack.c.bf16 %v4996, %v4996
        %v5029 = vpack.c.bf16 %v4997, %v4997
        %v5030 = vpack.c.bf16 %v4998, %v4998
        %v5031 = vpack.c.bf16 %v4999, %v4999
        %v5032 = vpack.c.bf16 %v5000, %v5000
        %v5033 = vpack.c.bf16 %v5001, %v5001
        %v5034 = vpack.c.bf16 %v5002, %v5002
        %v5035 = vunpack.c.l.bf16 %v5003
        %v5036 = vunpack.c.l.bf16 %v5004
        %v5037 = vunpack.c.l.bf16 %v5005
        %v5038 = vunpack.c.l.bf16 %v5006
        %v5039 = vunpack.c.l.bf16 %v5007
        %v5040 = vunpack.c.l.bf16 %v5008
        %v5041 = vunpack.c.l.bf16 %v5009
        %v5042 = vunpack.c.l.bf16 %v5010
        %v5043 = vunpack.c.l.bf16 %v5011
        %v5044 = vunpack.c.l.bf16 %v5012
        %v5045 = vunpack.c.l.bf16 %v5013
        %v5046 = vunpack.c.l.bf16 %v5014
        %v5047 = vunpack.c.l.bf16 %v5015
        %v5048 = vunpack.c.l.bf16 %v5016
        %v5049 = vunpack.c.l.bf16 %v5017
        %v5050 = vunpack.c.l.bf16 %v5018
        %v5051 = vunpack.c.l.bf16 %v5019
        %v5052 = vunpack.c.l.bf16 %v5020
        %v5053 = vunpack.c.l.bf16 %v5021
        %v5054 = vunpack.c.l.bf16 %v5022
        %v5055 = vunpack.c.l.bf16 %v5023
        %v5056 = vunpack.c.l.bf16 %v5024
        %v5057 = vunpack.c.l.bf16 %v5025
        %v5058 = vunpack.c.l.bf16 %v5026
        %v5059 = vunpack.c.l.bf16 %v5027
        %v5060 = vunpack.c.l.bf16 %v5028
        %v5061 = vunpack.c.l.bf16 %v5029
        %v5062 = vunpack.c.l.bf16 %v5030
        %v5063 = vunpack.c.l.bf16 %v5031
        %v5064 = vunpack.c.l.bf16 %v5032
        %v5065 = vunpack.c.l.bf16 %v5033
        %v5066 = vunpack.c.l.bf16 %v5034
        %v5067 = vmax.f32 %v4939, %v5035
        %v5068 = vmax.f32 %v4940, %v5036
        %v5069 = vmax.f32 %v4941, %v5037
        %v5070 = vmax.f32 %v4942, %v5038
        %v5071 = vmax.f32 %v4943, %v5039
        %v5072 = vmax.f32 %v4944, %v5040
        %v5073 = vmax.f32 %v4945, %v5041
        %v5074 = vmax.f32 %v4946, %v5042
        %v5075 = vmax.f32 %v4947, %v5043
        %v5076 = vmax.f32 %v4948, %v5044
        %v5077 = vmax.f32 %v4949, %v5045
        %v5078 = vmax.f32 %v4950, %v5046
        %v5079 = vmax.f32 %v4951, %v5047
        %v5080 = vmax.f32 %v4952, %v5048
        %v5081 = vmax.f32 %v4953, %v5049
        %v5082 = vmax.f32 %v4954, %v5050
        %v5083 = vmax.f32 %v4955, %v5051
        %v5084 = vmax.f32 %v4956, %v5052
        %v5085 = vmax.f32 %v4957, %v5053
        %v5086 = vmax.f32 %v4958, %v5054
        %v5087 = vmax.f32 %v4959, %v5055
        %v5088 = vmax.f32 %v4960, %v5056
        %v5089 = vmax.f32 %v4961, %v5057
        %v5090 = vmax.f32 %v4962, %v5058
        %v5091 = vmax.f32 %v4963, %v5059
        %v5092 = vmax.f32 %v4964, %v5060
        %v5093 = vmax.f32 %v4965, %v5061
        %v5094 = vmax.f32 %v4966, %v5062
        %v5095 = vmax.f32 %v4967, %v5063
        %v5096 = vmax.f32 %v4968, %v5064
        %v5097 = vmax.f32 %v4969, %v5065
        %v5098 = vmax.f32 %v4970, %v5066
        %v5099 = vpack.c.bf16 %v5068, %v5067
        %v5100 = vpack.c.bf16 %v5070, %v5069
        %v5101 = vpack.c.bf16 %v5072, %v5071
        %v5102 = vpack.c.bf16 %v5074, %v5073
        %v5103 = vpack.c.bf16 %v5076, %v5075
        %v5104 = vpack.c.bf16 %v5078, %v5077
        %v5105 = vpack.c.bf16 %v5080, %v5079
        %v5106 = vpack.c.bf16 %v5082, %v5081
        %v5107 = vpack.c.bf16 %v5084, %v5083
        %v5108 = vpack.c.bf16 %v5086, %v5085
        %v5109 = vpack.c.bf16 %v5088, %v5087
        %v5110 = vpack.c.bf16 %v5090, %v5089
        %v5111 = vpack.c.bf16 %v5092, %v5091
        %v5112 = vpack.c.bf16 %v5094, %v5093
        %v5113 = vpack.c.bf16 %v5096, %v5095
        %v5114 = vpack.c.bf16 %v5098, %v5097
        %v5115 = vld [vmem:[%s13] sm:$0xf]
        %v5116 = vld [vmem:[%s13 + $0x4] sm:$0xf]
        %v5117 = vld [vmem:[%s13 + $0x8] sm:$0xf]
        %v5118 = vld [vmem:[%s13 + $0xc] sm:$0xf]
        %v5119 = vld [vmem:[%s13 + $0x10] sm:$0xf]
        %v5120 = vld [vmem:[%s13 + $0x14] sm:$0xf]
        %v5121 = vld [vmem:[%s13 + $0x18] sm:$0xf]
        %v5122 = vld [vmem:[%s13 + $0x1c] sm:$0xf]
        %v5123 = vld [vmem:[%s14] sm:$0x1]
        %v5125 = vperm.slane %v5123, 0
        %v5135 = vunpack.c.l.b16 %v5115
        %v5136 = vunpack.c.l.b16 %v5116
        %v5137 = vunpack.c.l.b16 %v5117
        %v5138 = vunpack.c.l.b16 %v5118
        %v5139 = vunpack.c.l.b16 %v5119
        %v5140 = vunpack.c.l.b16 %v5120
        %v5141 = vunpack.c.l.b16 %v5121
        %v5142 = vunpack.c.l.b16 %v5122
        %v5143 = vpack.c.b16 %v5136, %v5135
        %v5144 = vpack.c.b16 %v5138, %v5137
        %v5145 = vpack.c.b16 %v5140, %v5139
        %v5146 = vpack.c.b16 %v5142, %v5141
        %v5152 = vsel %vm4484, %v5099, 0
        %v5155 = vsel %vm4484, %v5100, 0
        %v5158 = vsel %vm4484, %v5101, 0
        %v5161 = vsel %vm4484, %v5102, 0
        %v5164 = vsel %vm4484, %v5103, 0
        %v5167 = vsel %vm4484, %v5104, 0
        %v5170 = vsel %vm4484, %v5105, 0
        %v5173 = vsel %vm4484, %v5106, 0
        %v5176 = vsel %vm4484, %v5107, 0
        %v5179 = vsel %vm4484, %v5108, 0
        %v5182 = vsel %vm4484, %v5109, 0
        %v5185 = vsel %vm4484, %v5110, 0
        %v5188 = vsel %vm4484, %v5111, 0
        %v5191 = vsel %vm4484, %v5112, 0
        %v5194 = vsel %vm4484, %v5113, 0
        %v5197 = vsel %vm4484, %v5114, 0
        %5199 = vmatpush.bf16.msra.mxu0 0
        %5200 = vmatpush.bf16.msra.mxu0 0
        %5201 = vmatpush.bf16.msra.mxu0 0
        %5202 = vmatpush.bf16.msra.mxu0 0
        %5203 = vmatpush.bf16.msra.mxu0 %v5146
        %5204 = vmatpush.bf16.msra.mxu0 %v5145
        %5205 = vmatpush.bf16.msra.mxu0 %v5144
        %5206 = vmatpush.bf16.msra.mxu0 %v5143
        %5207 = vmatmul.bf16.gmra.mxu0 %v5152
        %v5208 = vpop.f32.mrf.mxu0
        %v5209 = vadd.f32 %v5125, %v5208
        %v5210 = vpop.f32.mrf.mxu0
        %v5211 = vadd.f32 %v5125, %v5210
        %5212 = vmatmul.bf16.gmra.mxu0 %v5155
        %v5213 = vpop.f32.mrf.mxu0
        %v5214 = vadd.f32 %v5125, %v5213
        %v5215 = vpop.f32.mrf.mxu0
        %v5216 = vadd.f32 %v5125, %v5215
        %5217 = vmatmul.bf16.gmra.mxu0 %v5158
        %v5218 = vpop.f32.mrf.mxu0
        %v5219 = vadd.f32 %v5125, %v5218
        %v5220 = vpop.f32.mrf.mxu0
        %v5221 = vadd.f32 %v5125, %v5220
        %5222 = vmatmul.bf16.gmra.mxu0 %v5161
        %v5223 = vpop.f32.mrf.mxu0
        %v5224 = vadd.f32 %v5125, %v5223
        %v5225 = vpop.f32.mrf.mxu0
        %v5226 = vadd.f32 %v5125, %v5225
        %5227 = vmatmul.bf16.gmra.mxu0 %v5164
        %v5228 = vpop.f32.mrf.mxu0
        %v5229 = vadd.f32 %v5125, %v5228
        %v5230 = vpop.f32.mrf.mxu0
        %v5231 = vadd.f32 %v5125, %v5230
        %5232 = vmatmul.bf16.gmra.mxu0 %v5167
        %v5233 = vpop.f32.mrf.mxu0
        %v5234 = vadd.f32 %v5125, %v5233
        %v5235 = vpop.f32.mrf.mxu0
        %v5236 = vadd.f32 %v5125, %v5235
        %5237 = vmatmul.bf16.gmra.mxu0 %v5170
        %v5238 = vpop.f32.mrf.mxu0
        %v5239 = vadd.f32 %v5125, %v5238
        %v5240 = vpop.f32.mrf.mxu0
        %v5241 = vadd.f32 %v5125, %v5240
        %5242 = vmatmul.bf16.gmra.mxu0 %v5173
        %v5243 = vpop.f32.mrf.mxu0
        %v5244 = vadd.f32 %v5125, %v5243
        %v5245 = vpop.f32.mrf.mxu0
        %v5246 = vadd.f32 %v5125, %v5245
        %5247 = vmatmul.bf16.gmra.mxu0 %v5176
        %v5248 = vpop.f32.mrf.mxu0
        %v5249 = vadd.f32 %v5125, %v5248
        %v5250 = vpop.f32.mrf.mxu0
        %v5251 = vadd.f32 %v5125, %v5250
        %5252 = vmatmul.bf16.gmra.mxu0 %v5179
        %v5253 = vpop.f32.mrf.mxu0
        %v5254 = vadd.f32 %v5125, %v5253
        %v5255 = vpop.f32.mrf.mxu0
        %v5256 = vadd.f32 %v5125, %v5255
        %5257 = vmatmul.bf16.gmra.mxu0 %v5182
        %v5258 = vpop.f32.mrf.mxu0
        %v5259 = vadd.f32 %v5125, %v5258
        %v5260 = vpop.f32.mrf.mxu0
        %v5261 = vadd.f32 %v5125, %v5260
        %5262 = vmatmul.bf16.gmra.mxu0 %v5185
        %v5263 = vpop.f32.mrf.mxu0
        %v5264 = vadd.f32 %v5125, %v5263
        %v5265 = vpop.f32.mrf.mxu0
        %v5266 = vadd.f32 %v5125, %v5265
        %5267 = vmatmul.bf16.gmra.mxu0 %v5188
        %v5268 = vpop.f32.mrf.mxu0
        %v5269 = vadd.f32 %v5125, %v5268
        %v5270 = vpop.f32.mrf.mxu0
        %v5271 = vadd.f32 %v5125, %v5270
        %5272 = vmatmul.bf16.gmra.mxu0 %v5191
        %v5273 = vpop.f32.mrf.mxu0
        %v5274 = vadd.f32 %v5125, %v5273
        %v5275 = vpop.f32.mrf.mxu0
        %v5276 = vadd.f32 %v5125, %v5275
        %5277 = vmatmul.bf16.gmra.mxu0 %v5194
        %v5278 = vpop.f32.mrf.mxu0
        %v5279 = vadd.f32 %v5125, %v5278
        %v5280 = vpop.f32.mrf.mxu0
        %v5281 = vadd.f32 %v5125, %v5280
        %5282 = vmatmul.bf16.gmra.mxu0 %v5197
        %v5283 = vpop.f32.mrf.mxu0
        %v5284 = vadd.f32 %v5125, %v5283
        %v5285 = vpop.f32.mrf.mxu0
        %v5286 = vadd.f32 %v5125, %v5285
        %5287 = vdwg.mxu0
        %v5288 = vpack.c.bf16 %v5209, %v5209
        %v5289 = vpack.c.bf16 %v5211, %v5211
        %v5290 = vpack.c.bf16 %v5214, %v5214
        %v5291 = vpack.c.bf16 %v5216, %v5216
        %v5292 = vpack.c.bf16 %v5219, %v5219
        %v5293 = vpack.c.bf16 %v5221, %v5221
        %v5294 = vpack.c.bf16 %v5224, %v5224
        %v5295 = vpack.c.bf16 %v5226, %v5226
        %v5296 = vpack.c.bf16 %v5229, %v5229
        %v5297 = vpack.c.bf16 %v5231, %v5231
        %v5298 = vpack.c.bf16 %v5234, %v5234
        %v5299 = vpack.c.bf16 %v5236, %v5236
        %v5300 = vpack.c.bf16 %v5239, %v5239
        %v5301 = vpack.c.bf16 %v5241, %v5241
        %v5302 = vpack.c.bf16 %v5244, %v5244
        %v5303 = vpack.c.bf16 %v5246, %v5246
        %v5304 = vpack.c.bf16 %v5249, %v5249
        %v5305 = vpack.c.bf16 %v5251, %v5251
        %v5306 = vpack.c.bf16 %v5254, %v5254
        %v5307 = vpack.c.bf16 %v5256, %v5256
        %v5308 = vpack.c.bf16 %v5259, %v5259
        %v5309 = vpack.c.bf16 %v5261, %v5261
        %v5310 = vpack.c.bf16 %v5264, %v5264
        %v5311 = vpack.c.bf16 %v5266, %v5266
        %v5312 = vpack.c.bf16 %v5269, %v5269
        %v5313 = vpack.c.bf16 %v5271, %v5271
        %v5314 = vpack.c.bf16 %v5274, %v5274
        %v5315 = vpack.c.bf16 %v5276, %v5276
        %v5316 = vpack.c.bf16 %v5279, %v5279
        %v5317 = vpack.c.bf16 %v5281, %v5281
        %v5318 = vpack.c.bf16 %v5284, %v5284
        %v5319 = vpack.c.bf16 %v5286, %v5286
        %v5320 = vunpack.c.l.bf16 %v5288
        %v5321 = vunpack.c.l.bf16 %v5289
        %v5322 = vunpack.c.l.bf16 %v5290
        %v5323 = vunpack.c.l.bf16 %v5291
        %v5324 = vunpack.c.l.bf16 %v5292
        %v5325 = vunpack.c.l.bf16 %v5293
        %v5326 = vunpack.c.l.bf16 %v5294
        %v5327 = vunpack.c.l.bf16 %v5295
        %v5328 = vunpack.c.l.bf16 %v5296
        %v5329 = vunpack.c.l.bf16 %v5297
        %v5330 = vunpack.c.l.bf16 %v5298
        %v5331 = vunpack.c.l.bf16 %v5299
        %v5332 = vunpack.c.l.bf16 %v5300
        %v5333 = vunpack.c.l.bf16 %v5301
        %v5334 = vunpack.c.l.bf16 %v5302
        %v5335 = vunpack.c.l.bf16 %v5303
        %v5336 = vunpack.c.l.bf16 %v5304
        %v5337 = vunpack.c.l.bf16 %v5305
        %v5338 = vunpack.c.l.bf16 %v5306
        %v5339 = vunpack.c.l.bf16 %v5307
        %v5340 = vunpack.c.l.bf16 %v5308
        %v5341 = vunpack.c.l.bf16 %v5309
        %v5342 = vunpack.c.l.bf16 %v5310
        %v5343 = vunpack.c.l.bf16 %v5311
        %v5344 = vunpack.c.l.bf16 %v5312
        %v5345 = vunpack.c.l.bf16 %v5313
        %v5346 = vunpack.c.l.bf16 %v5314
        %v5347 = vunpack.c.l.bf16 %v5315
        %v5348 = vunpack.c.l.bf16 %v5316
        %v5349 = vunpack.c.l.bf16 %v5317
        %v5350 = vunpack.c.l.bf16 %v5318
        %v5351 = vunpack.c.l.bf16 %v5319
        %v5352 = vmul.f32 %v5320, 0.100097656
        %v5353 = vmul.f32 %v5321, 0.100097656
        %v5354 = vmul.f32 %v5322, 0.100097656
        %v5355 = vmul.f32 %v5323, 0.100097656
        %v5356 = vmul.f32 %v5324, 0.100097656
        %v5357 = vmul.f32 %v5325, 0.100097656
        %v5358 = vmul.f32 %v5326, 0.100097656
        %v5359 = vmul.f32 %v5327, 0.100097656
        %v5360 = vmul.f32 %v5328, 0.100097656
        %v5361 = vmul.f32 %v5329, 0.100097656
        %v5362 = vmul.f32 %v5330, 0.100097656
        %v5363 = vmul.f32 %v5331, 0.100097656
        %v5364 = vmul.f32 %v5332, 0.100097656
        %v5365 = vmul.f32 %v5333, 0.100097656
        %v5366 = vmul.f32 %v5334, 0.100097656
        %v5367 = vmul.f32 %v5335, 0.100097656
        %v5368 = vmul.f32 %v5336, 0.100097656
        %v5369 = vmul.f32 %v5337, 0.100097656
        %v5370 = vmul.f32 %v5338, 0.100097656
        %v5371 = vmul.f32 %v5339, 0.100097656
        %v5372 = vmul.f32 %v5340, 0.100097656
        %v5373 = vmul.f32 %v5341, 0.100097656
        %v5374 = vmul.f32 %v5342, 0.100097656
        %v5375 = vmul.f32 %v5343, 0.100097656
        %v5376 = vmul.f32 %v5344, 0.100097656
        %v5377 = vmul.f32 %v5345, 0.100097656
        %v5378 = vmul.f32 %v5346, 0.100097656
        %v5379 = vmul.f32 %v5347, 0.100097656
        %v5380 = vmul.f32 %v5348, 0.100097656
        %v5381 = vmul.f32 %v5349, 0.100097656
        %v5382 = vmul.f32 %v5350, 0.100097656
        %v5383 = vmul.f32 %v5351, 0.100097656
        %v5384 = vpack.c.bf16 %v5352, %v5352
        %v5385 = vpack.c.bf16 %v5353, %v5353
        %v5386 = vpack.c.bf16 %v5354, %v5354
        %v5387 = vpack.c.bf16 %v5355, %v5355
        %v5388 = vpack.c.bf16 %v5356, %v5356
        %v5389 = vpack.c.bf16 %v5357, %v5357
        %v5390 = vpack.c.bf16 %v5358, %v5358
        %v5391 = vpack.c.bf16 %v5359, %v5359
        %v5392 = vpack.c.bf16 %v5360, %v5360
        %v5393 = vpack.c.bf16 %v5361, %v5361
        %v5394 = vpack.c.bf16 %v5362, %v5362
        %v5395 = vpack.c.bf16 %v5363, %v5363
        %v5396 = vpack.c.bf16 %v5364, %v5364
        %v5397 = vpack.c.bf16 %v5365, %v5365
        %v5398 = vpack.c.bf16 %v5366, %v5366
        %v5399 = vpack.c.bf16 %v5367, %v5367
        %v5400 = vpack.c.bf16 %v5368, %v5368
        %v5401 = vpack.c.bf16 %v5369, %v5369
        %v5402 = vpack.c.bf16 %v5370, %v5370
        %v5403 = vpack.c.bf16 %v5371, %v5371
        %v5404 = vpack.c.bf16 %v5372, %v5372
        %v5405 = vpack.c.bf16 %v5373, %v5373
        %v5406 = vpack.c.bf16 %v5374, %v5374
        %v5407 = vpack.c.bf16 %v5375, %v5375
        %v5408 = vpack.c.bf16 %v5376, %v5376
        %v5409 = vpack.c.bf16 %v5377, %v5377
        %v5410 = vpack.c.bf16 %v5378, %v5378
        %v5411 = vpack.c.bf16 %v5379, %v5379
        %v5412 = vpack.c.bf16 %v5380, %v5380
        %v5413 = vpack.c.bf16 %v5381, %v5381
        %v5414 = vpack.c.bf16 %v5382, %v5382
        %v5415 = vpack.c.bf16 %v5383, %v5383
        %v5416 = vunpack.c.l.bf16 %v5384
        %v5417 = vunpack.c.l.bf16 %v5385
        %v5418 = vunpack.c.l.bf16 %v5386
        %v5419 = vunpack.c.l.bf16 %v5387
        %v5420 = vunpack.c.l.bf16 %v5388
        %v5421 = vunpack.c.l.bf16 %v5389
        %v5422 = vunpack.c.l.bf16 %v5390
        %v5423 = vunpack.c.l.bf16 %v5391
        %v5424 = vunpack.c.l.bf16 %v5392
        %v5425 = vunpack.c.l.bf16 %v5393
        %v5426 = vunpack.c.l.bf16 %v5394
        %v5427 = vunpack.c.l.bf16 %v5395
        %v5428 = vunpack.c.l.bf16 %v5396
        %v5429 = vunpack.c.l.bf16 %v5397
        %v5430 = vunpack.c.l.bf16 %v5398
        %v5431 = vunpack.c.l.bf16 %v5399
        %v5432 = vunpack.c.l.bf16 %v5400
        %v5433 = vunpack.c.l.bf16 %v5401
        %v5434 = vunpack.c.l.bf16 %v5402
        %v5435 = vunpack.c.l.bf16 %v5403
        %v5436 = vunpack.c.l.bf16 %v5404
        %v5437 = vunpack.c.l.bf16 %v5405
        %v5438 = vunpack.c.l.bf16 %v5406
        %v5439 = vunpack.c.l.bf16 %v5407
        %v5440 = vunpack.c.l.bf16 %v5408
        %v5441 = vunpack.c.l.bf16 %v5409
        %v5442 = vunpack.c.l.bf16 %v5410
        %v5443 = vunpack.c.l.bf16 %v5411
        %v5444 = vunpack.c.l.bf16 %v5412
        %v5445 = vunpack.c.l.bf16 %v5413
        %v5446 = vunpack.c.l.bf16 %v5414
        %v5447 = vunpack.c.l.bf16 %v5415
        %v5448 = vmax.f32 %v5320, %v5416
        %v5449 = vmax.f32 %v5321, %v5417
        %v5450 = vmax.f32 %v5322, %v5418
        %v5451 = vmax.f32 %v5323, %v5419
        %v5452 = vmax.f32 %v5324, %v5420
        %v5453 = vmax.f32 %v5325, %v5421
        %v5454 = vmax.f32 %v5326, %v5422
        %v5455 = vmax.f32 %v5327, %v5423
        %v5456 = vmax.f32 %v5328, %v5424
        %v5457 = vmax.f32 %v5329, %v5425
        %v5458 = vmax.f32 %v5330, %v5426
        %v5459 = vmax.f32 %v5331, %v5427
        %v5460 = vmax.f32 %v5332, %v5428
        %v5461 = vmax.f32 %v5333, %v5429
        %v5462 = vmax.f32 %v5334, %v5430
        %v5463 = vmax.f32 %v5335, %v5431
        %v5464 = vmax.f32 %v5336, %v5432
        %v5465 = vmax.f32 %v5337, %v5433
        %v5466 = vmax.f32 %v5338, %v5434
        %v5467 = vmax.f32 %v5339, %v5435
        %v5468 = vmax.f32 %v5340, %v5436
        %v5469 = vmax.f32 %v5341, %v5437
        %v5470 = vmax.f32 %v5342, %v5438
        %v5471 = vmax.f32 %v5343, %v5439
        %v5472 = vmax.f32 %v5344, %v5440
        %v5473 = vmax.f32 %v5345, %v5441
        %v5474 = vmax.f32 %v5346, %v5442
        %v5475 = vmax.f32 %v5347, %v5443
        %v5476 = vmax.f32 %v5348, %v5444
        %v5477 = vmax.f32 %v5349, %v5445
        %v5478 = vmax.f32 %v5350, %v5446
        %v5479 = vmax.f32 %v5351, %v5447
        %v5480 = vpack.c.bf16 %v5449, %v5448
        %v5481 = vpack.c.bf16 %v5451, %v5450
        %v5482 = vpack.c.bf16 %v5453, %v5452
        %v5483 = vpack.c.bf16 %v5455, %v5454
        %v5484 = vpack.c.bf16 %v5457, %v5456
        %v5485 = vpack.c.bf16 %v5459, %v5458
        %v5486 = vpack.c.bf16 %v5461, %v5460
        %v5487 = vpack.c.bf16 %v5463, %v5462
        %v5488 = vpack.c.bf16 %v5465, %v5464
        %v5489 = vpack.c.bf16 %v5467, %v5466
        %v5490 = vpack.c.bf16 %v5469, %v5468
        %v5491 = vpack.c.bf16 %v5471, %v5470
        %v5492 = vpack.c.bf16 %v5473, %v5472
        %v5493 = vpack.c.bf16 %v5475, %v5474
        %v5494 = vpack.c.bf16 %v5477, %v5476
        %v5495 = vpack.c.bf16 %v5479, %v5478
        %v5496 = vld [vmem:[#allocation11] sm:$0xff]
        %v5497 = vld [vmem:[#allocation11 + $0x8] sm:$0xff]
        %v5498 = vld [vmem:[#allocation11 + $0x10] sm:$0xff]
        %v5499 = vld [vmem:[#allocation11 + $0x18] sm:$0xff]
        %v5500 = vld [vmem:[#allocation11 + $0x20] sm:$0xff]
        %v5501 = vld [vmem:[#allocation11 + $0x28] sm:$0xff]
        %v5502 = vld [vmem:[#allocation11 + $0x30] sm:$0xff]
        %v5503 = vld [vmem:[#allocation11 + $0x38] sm:$0xff]
        %v5504 = vld [vmem:[#allocation11 + $0x40] sm:$0xff]
        %v5505 = vld [vmem:[#allocation11 + $0x48] sm:$0xff]
        %v5506 = vld [vmem:[#allocation11 + $0x50] sm:$0xff]
        %v5507 = vld [vmem:[#allocation11 + $0x58] sm:$0xff]
        %v5508 = vld [vmem:[#allocation11 + $0x60] sm:$0xff]
        %v5509 = vld [vmem:[#allocation11 + $0x68] sm:$0xff]
        %v5510 = vld [vmem:[#allocation11 + $0x70] sm:$0xff]
        %v5511 = vld [vmem:[#allocation11 + $0x78] sm:$0xff]
        %v5512 = vld [vmem:[%s16] sm:$0x3]
        %v5514 = vperm.slane %v5512, 0
        %v5515 = vperm.slane %v5512, 1
        %v5534 = vunpack.c.l.b16 %v5496
        %v5535 = vunpack.c.h.b16 %v5496
        %v5536 = vunpack.c.l.b16 %v5497
        %v5537 = vunpack.c.h.b16 %v5497
        %v5538 = vunpack.c.l.b16 %v5498
        %v5539 = vunpack.c.h.b16 %v5498
        %v5540 = vunpack.c.l.b16 %v5499
        %v5541 = vunpack.c.h.b16 %v5499
        %v5542 = vunpack.c.l.b16 %v5500
        %v5543 = vunpack.c.h.b16 %v5500
        %v5544 = vunpack.c.l.b16 %v5501
        %v5545 = vunpack.c.h.b16 %v5501
        %v5546 = vunpack.c.l.b16 %v5502
        %v5547 = vunpack.c.h.b16 %v5502
        %v5548 = vunpack.c.l.b16 %v5503
        %v5549 = vunpack.c.h.b16 %v5503
        %v5550 = vunpack.c.l.b16 %v5504
        %v5551 = vunpack.c.h.b16 %v5504
        %v5552 = vunpack.c.l.b16 %v5505
        %v5553 = vunpack.c.h.b16 %v5505
        %v5554 = vunpack.c.l.b16 %v5506
        %v5555 = vunpack.c.h.b16 %v5506
        %v5556 = vunpack.c.l.b16 %v5507
        %v5557 = vunpack.c.h.b16 %v5507
        %v5558 = vunpack.c.l.b16 %v5508
        %v5559 = vunpack.c.h.b16 %v5508
        %v5560 = vunpack.c.l.b16 %v5509
        %v5561 = vunpack.c.h.b16 %v5509
        %v5562 = vunpack.c.l.b16 %v5510
        %v5563 = vunpack.c.h.b16 %v5510
        %v5564 = vunpack.c.l.b16 %v5511
        %v5565 = vunpack.c.h.b16 %v5511
        %v5566 = vpack.c.b16 %v5536, %v5534
        %v5567 = vpack.c.b16 %v5537, %v5535
        %v5568 = vpack.c.b16 %v5540, %v5538
        %v5569 = vpack.c.b16 %v5541, %v5539
        %v5570 = vpack.c.b16 %v5544, %v5542
        %v5571 = vpack.c.b16 %v5545, %v5543
        %v5572 = vpack.c.b16 %v5548, %v5546
        %v5573 = vpack.c.b16 %v5549, %v5547
        %v5574 = vpack.c.b16 %v5552, %v5550
        %v5575 = vpack.c.b16 %v5553, %v5551
        %v5576 = vpack.c.b16 %v5556, %v5554
        %v5577 = vpack.c.b16 %v5557, %v5555
        %v5578 = vpack.c.b16 %v5560, %v5558
        %v5579 = vpack.c.b16 %v5561, %v5559
        %v5580 = vpack.c.b16 %v5564, %v5562
        %v5581 = vpack.c.b16 %v5565, %v5563
        %5598 = vmatpush.bf16.msra.mxu0 %v5580
        %5599 = vmatpush.bf16.msra.mxu0 %v5578
        %5600 = vmatpush.bf16.msra.mxu0 %v5576
        %5601 = vmatpush.bf16.msra.mxu0 %v5574
        %5602 = vmatpush.bf16.msra.mxu0 %v5572
        %5603 = vmatpush.bf16.msra.mxu0 %v5570
        %5604 = vmatpush.bf16.msra.mxu0 %v5568
        %5605 = vmatpush.bf16.msra.mxu0 %v5566
        %5606 = vmatmul.bf16.gmra.mxu0 %v5480
        %v5607 = vpop.f32.mrf.mxu0
        %v5608 = vadd.f32 %v5514, %v5607
        %v5609 = vpop.f32.mrf.mxu0
        %v5610 = vadd.f32 %v5514, %v5609
        %5611 = vmatmul.bf16.gmra.mxu0 %v5481
        %v5612 = vpop.f32.mrf.mxu0
        %v5613 = vadd.f32 %v5514, %v5612
        %v5614 = vpop.f32.mrf.mxu0
        %v5615 = vadd.f32 %v5514, %v5614
        %5616 = vmatmul.bf16.gmra.mxu0 %v5482
        %v5617 = vpop.f32.mrf.mxu0
        %v5618 = vadd.f32 %v5514, %v5617
        %v5619 = vpop.f32.mrf.mxu0
        %v5620 = vadd.f32 %v5514, %v5619
        %5621 = vmatmul.bf16.gmra.mxu0 %v5483
        %v5622 = vpop.f32.mrf.mxu0
        %v5623 = vadd.f32 %v5514, %v5622
        %v5624 = vpop.f32.mrf.mxu0
        %v5625 = vadd.f32 %v5514, %v5624
        %5626 = vmatmul.bf16.gmra.mxu0 %v5484
        %v5627 = vpop.f32.mrf.mxu0
        %v5628 = vadd.f32 %v5514, %v5627
        %v5629 = vpop.f32.mrf.mxu0
        %v5630 = vadd.f32 %v5514, %v5629
        %5631 = vmatmul.bf16.gmra.mxu0 %v5485
        %v5632 = vpop.f32.mrf.mxu0
        %v5633 = vadd.f32 %v5514, %v5632
        %v5634 = vpop.f32.mrf.mxu0
        %v5635 = vadd.f32 %v5514, %v5634
        %5636 = vmatmul.bf16.gmra.mxu0 %v5486
        %v5637 = vpop.f32.mrf.mxu0
        %v5638 = vadd.f32 %v5514, %v5637
        %v5639 = vpop.f32.mrf.mxu0
        %v5640 = vadd.f32 %v5514, %v5639
        %5641 = vmatmul.bf16.gmra.mxu0 %v5487
        %v5642 = vpop.f32.mrf.mxu0
        %v5643 = vadd.f32 %v5514, %v5642
        %v5644 = vpop.f32.mrf.mxu0
        %v5645 = vadd.f32 %v5514, %v5644
        %5646 = vmatmul.bf16.gmra.mxu0 %v5488
        %v5647 = vpop.f32.mrf.mxu0
        %v5648 = vadd.f32 %v5514, %v5647
        %v5649 = vpop.f32.mrf.mxu0
        %v5650 = vadd.f32 %v5514, %v5649
        %5651 = vmatmul.bf16.gmra.mxu0 %v5489
        %v5652 = vpop.f32.mrf.mxu0
        %v5653 = vadd.f32 %v5514, %v5652
        %v5654 = vpop.f32.mrf.mxu0
        %v5655 = vadd.f32 %v5514, %v5654
        %5656 = vmatmul.bf16.gmra.mxu0 %v5490
        %v5657 = vpop.f32.mrf.mxu0
        %v5658 = vadd.f32 %v5514, %v5657
        %v5659 = vpop.f32.mrf.mxu0
        %v5660 = vadd.f32 %v5514, %v5659
        %5661 = vmatmul.bf16.gmra.mxu0 %v5491
        %v5662 = vpop.f32.mrf.mxu0
        %v5663 = vadd.f32 %v5514, %v5662
        %v5664 = vpop.f32.mrf.mxu0
        %v5665 = vadd.f32 %v5514, %v5664
        %5666 = vmatmul.bf16.gmra.mxu0 %v5492
        %v5667 = vpop.f32.mrf.mxu0
        %v5668 = vadd.f32 %v5514, %v5667
        %v5669 = vpop.f32.mrf.mxu0
        %v5670 = vadd.f32 %v5514, %v5669
        %5671 = vmatmul.bf16.gmra.mxu0 %v5493
        %v5672 = vpop.f32.mrf.mxu0
        %v5673 = vadd.f32 %v5514, %v5672
        %v5674 = vpop.f32.mrf.mxu0
        %v5675 = vadd.f32 %v5514, %v5674
        %5676 = vmatmul.bf16.gmra.mxu0 %v5494
        %v5677 = vpop.f32.mrf.mxu0
        %v5678 = vadd.f32 %v5514, %v5677
        %v5679 = vpop.f32.mrf.mxu0
        %v5680 = vadd.f32 %v5514, %v5679
        %5681 = vmatmul.bf16.gmra.mxu0 %v5495
        %v5682 = vpop.f32.mrf.mxu0
        %v5683 = vadd.f32 %v5514, %v5682
        %v5684 = vpop.f32.mrf.mxu0
        %v5685 = vadd.f32 %v5514, %v5684
        %5686 = vdwg.mxu0
        %5687 = vmatpush.bf16.msra.mxu0 %v5581
        %5688 = vmatpush.bf16.msra.mxu0 %v5579
        %5689 = vmatpush.bf16.msra.mxu0 %v5577
        %5690 = vmatpush.bf16.msra.mxu0 %v5575
        %5691 = vmatpush.bf16.msra.mxu0 %v5573
        %5692 = vmatpush.bf16.msra.mxu0 %v5571
        %5693 = vmatpush.bf16.msra.mxu0 %v5569
        %5694 = vmatpush.bf16.msra.mxu0 %v5567
        %5695 = vmatmul.bf16.gmra.mxu0 %v5480
        %v5696 = vpop.f32.mrf.mxu0
        %v5697 = vadd.f32 %v5515, %v5696
        %v5698 = vpop.f32.mrf.mxu0
        %v5699 = vadd.f32 %v5515, %v5698
        %5700 = vmatmul.bf16.gmra.mxu0 %v5481
        %v5701 = vpop.f32.mrf.mxu0
        %v5702 = vadd.f32 %v5515, %v5701
        %v5703 = vpop.f32.mrf.mxu0
        %v5704 = vadd.f32 %v5515, %v5703
        %5705 = vmatmul.bf16.gmra.mxu0 %v5482
        %v5706 = vpop.f32.mrf.mxu0
        %v5707 = vadd.f32 %v5515, %v5706
        %v5708 = vpop.f32.mrf.mxu0
        %v5709 = vadd.f32 %v5515, %v5708
        %5710 = vmatmul.bf16.gmra.mxu0 %v5483
        %v5711 = vpop.f32.mrf.mxu0
        %v5712 = vadd.f32 %v5515, %v5711
        %v5713 = vpop.f32.mrf.mxu0
        %v5714 = vadd.f32 %v5515, %v5713
        %5715 = vmatmul.bf16.gmra.mxu0 %v5484
        %v5716 = vpop.f32.mrf.mxu0
        %v5717 = vadd.f32 %v5515, %v5716
        %v5718 = vpop.f32.mrf.mxu0
        %v5719 = vadd.f32 %v5515, %v5718
        %5720 = vmatmul.bf16.gmra.mxu0 %v5485
        %v5721 = vpop.f32.mrf.mxu0
        %v5722 = vadd.f32 %v5515, %v5721
        %v5723 = vpop.f32.mrf.mxu0
        %v5724 = vadd.f32 %v5515, %v5723
        %5725 = vmatmul.bf16.gmra.mxu0 %v5486
        %v5726 = vpop.f32.mrf.mxu0
        %v5727 = vadd.f32 %v5515, %v5726
        %v5728 = vpop.f32.mrf.mxu0
        %v5729 = vadd.f32 %v5515, %v5728
        %5730 = vmatmul.bf16.gmra.mxu0 %v5487
        %v5731 = vpop.f32.mrf.mxu0
        %v5732 = vadd.f32 %v5515, %v5731
        %v5733 = vpop.f32.mrf.mxu0
        %v5734 = vadd.f32 %v5515, %v5733
        %5735 = vmatmul.bf16.gmra.mxu0 %v5488
        %v5736 = vpop.f32.mrf.mxu0
        %v5737 = vadd.f32 %v5515, %v5736
        %v5738 = vpop.f32.mrf.mxu0
        %v5739 = vadd.f32 %v5515, %v5738
        %5740 = vmatmul.bf16.gmra.mxu0 %v5489
        %v5741 = vpop.f32.mrf.mxu0
        %v5742 = vadd.f32 %v5515, %v5741
        %v5743 = vpop.f32.mrf.mxu0
        %v5744 = vadd.f32 %v5515, %v5743
        %5745 = vmatmul.bf16.gmra.mxu0 %v5490
        %v5746 = vpop.f32.mrf.mxu0
        %v5747 = vadd.f32 %v5515, %v5746
        %v5748 = vpop.f32.mrf.mxu0
        %v5749 = vadd.f32 %v5515, %v5748
        %5750 = vmatmul.bf16.gmra.mxu0 %v5491
        %v5751 = vpop.f32.mrf.mxu0
        %v5752 = vadd.f32 %v5515, %v5751
        %v5753 = vpop.f32.mrf.mxu0
        %v5754 = vadd.f32 %v5515, %v5753
        %5755 = vmatmul.bf16.gmra.mxu0 %v5492
        %v5756 = vpop.f32.mrf.mxu0
        %v5757 = vadd.f32 %v5515, %v5756
        %v5758 = vpop.f32.mrf.mxu0
        %v5759 = vadd.f32 %v5515, %v5758
        %5760 = vmatmul.bf16.gmra.mxu0 %v5493
        %v5761 = vpop.f32.mrf.mxu0
        %v5762 = vadd.f32 %v5515, %v5761
        %v5763 = vpop.f32.mrf.mxu0
        %v5764 = vadd.f32 %v5515, %v5763
        %5765 = vmatmul.bf16.gmra.mxu0 %v5494
        %v5766 = vpop.f32.mrf.mxu0
        %v5767 = vadd.f32 %v5515, %v5766
        %v5768 = vpop.f32.mrf.mxu0
        %v5769 = vadd.f32 %v5515, %v5768
        %5770 = vmatmul.bf16.gmra.mxu0 %v5495
        %v5771 = vpop.f32.mrf.mxu0
        %v5772 = vadd.f32 %v5515, %v5771
        %v5773 = vpop.f32.mrf.mxu0
        %v5774 = vadd.f32 %v5515, %v5773
        %5775 = vdwg.mxu0
        %v5776 = vpack.c.bf16 %v5697, %v5608
        %v5777 = vpack.c.bf16 %v5699, %v5610
        %v5778 = vpack.c.bf16 %v5702, %v5613
        %v5779 = vpack.c.bf16 %v5704, %v5615
        %v5780 = vpack.c.bf16 %v5707, %v5618
        %v5781 = vpack.c.bf16 %v5709, %v5620
        %v5782 = vpack.c.bf16 %v5712, %v5623
        %v5783 = vpack.c.bf16 %v5714, %v5625
        %v5784 = vpack.c.bf16 %v5717, %v5628
        %v5785 = vpack.c.bf16 %v5719, %v5630
        %v5786 = vpack.c.bf16 %v5722, %v5633
        %v5787 = vpack.c.bf16 %v5724, %v5635
        %v5788 = vpack.c.bf16 %v5727, %v5638
        %v5789 = vpack.c.bf16 %v5729, %v5640
        %v5790 = vpack.c.bf16 %v5732, %v5643
        %v5791 = vpack.c.bf16 %v5734, %v5645
        %v5792 = vpack.c.bf16 %v5737, %v5648
        %v5793 = vpack.c.bf16 %v5739, %v5650
        %v5794 = vpack.c.bf16 %v5742, %v5653
        %v5795 = vpack.c.bf16 %v5744, %v5655
        %v5796 = vpack.c.bf16 %v5747, %v5658
        %v5797 = vpack.c.bf16 %v5749, %v5660
        %v5798 = vpack.c.bf16 %v5752, %v5663
        %v5799 = vpack.c.bf16 %v5754, %v5665
        %v5800 = vpack.c.bf16 %v5757, %v5668
        %v5801 = vpack.c.bf16 %v5759, %v5670
        %v5802 = vpack.c.bf16 %v5762, %v5673
        %v5803 = vpack.c.bf16 %v5764, %v5675
        %v5804 = vpack.c.bf16 %v5767, %v5678
        %v5805 = vpack.c.bf16 %v5769, %v5680
        %v5806 = vpack.c.bf16 %v5772, %v5683
        %v5807 = vpack.c.bf16 %v5774, %v5685
        %v5808 = vunpack.c.l.bf16 %v5776
        %v5809 = vunpack.c.h.bf16 %v5776
        %v5810 = vunpack.c.l.bf16 %v5777
        %v5811 = vunpack.c.h.bf16 %v5777
        %v5812 = vunpack.c.l.bf16 %v5778
        %v5813 = vunpack.c.h.bf16 %v5778
        %v5814 = vunpack.c.l.bf16 %v5779
        %v5815 = vunpack.c.h.bf16 %v5779
        %v5816 = vunpack.c.l.bf16 %v5780
        %v5817 = vunpack.c.h.bf16 %v5780
        %v5818 = vunpack.c.l.bf16 %v5781
        %v5819 = vunpack.c.h.bf16 %v5781
        %v5820 = vunpack.c.l.bf16 %v5782
        %v5821 = vunpack.c.h.bf16 %v5782
        %v5822 = vunpack.c.l.bf16 %v5783
        %v5823 = vunpack.c.h.bf16 %v5783
        %v5824 = vunpack.c.l.bf16 %v5784
        %v5825 = vunpack.c.h.bf16 %v5784
        %v5826 = vunpack.c.l.bf16 %v5785
        %v5827 = vunpack.c.h.bf16 %v5785
        %v5828 = vunpack.c.l.bf16 %v5786
        %v5829 = vunpack.c.h.bf16 %v5786
        %v5830 = vunpack.c.l.bf16 %v5787
        %v5831 = vunpack.c.h.bf16 %v5787
        %v5832 = vunpack.c.l.bf16 %v5788
        %v5833 = vunpack.c.h.bf16 %v5788
        %v5834 = vunpack.c.l.bf16 %v5789
        %v5835 = vunpack.c.h.bf16 %v5789
        %v5836 = vunpack.c.l.bf16 %v5790
        %v5837 = vunpack.c.h.bf16 %v5790
        %v5838 = vunpack.c.l.bf16 %v5791
        %v5839 = vunpack.c.h.bf16 %v5791
        %v5840 = vunpack.c.l.bf16 %v5792
        %v5841 = vunpack.c.h.bf16 %v5792
        %v5842 = vunpack.c.l.bf16 %v5793
        %v5843 = vunpack.c.h.bf16 %v5793
        %v5844 = vunpack.c.l.bf16 %v5794
        %v5845 = vunpack.c.h.bf16 %v5794
        %v5846 = vunpack.c.l.bf16 %v5795
        %v5847 = vunpack.c.h.bf16 %v5795
        %v5848 = vunpack.c.l.bf16 %v5796
        %v5849 = vunpack.c.h.bf16 %v5796
        %v5850 = vunpack.c.l.bf16 %v5797
        %v5851 = vunpack.c.h.bf16 %v5797
        %v5852 = vunpack.c.l.bf16 %v5798
        %v5853 = vunpack.c.h.bf16 %v5798
        %v5854 = vunpack.c.l.bf16 %v5799
        %v5855 = vunpack.c.h.bf16 %v5799
        %v5856 = vunpack.c.l.bf16 %v5800
        %v5857 = vunpack.c.h.bf16 %v5800
        %v5858 = vunpack.c.l.bf16 %v5801
        %v5859 = vunpack.c.h.bf16 %v5801
        %v5860 = vunpack.c.l.bf16 %v5802
        %v5861 = vunpack.c.h.bf16 %v5802
        %v5862 = vunpack.c.l.bf16 %v5803
        %v5863 = vunpack.c.h.bf16 %v5803
        %v5864 = vunpack.c.l.bf16 %v5804
        %v5865 = vunpack.c.h.bf16 %v5804
        %v5866 = vunpack.c.l.bf16 %v5805
        %v5867 = vunpack.c.h.bf16 %v5805
        %v5868 = vunpack.c.l.bf16 %v5806
        %v5869 = vunpack.c.h.bf16 %v5806
        %v5870 = vunpack.c.l.bf16 %v5807
        %v5871 = vunpack.c.h.bf16 %v5807
        %v5872 = vmul.f32 %v5808, 0.100097656
        %v5873 = vmul.f32 %v5809, 0.100097656
        %v5874 = vmul.f32 %v5810, 0.100097656
        %v5875 = vmul.f32 %v5811, 0.100097656
        %v5876 = vmul.f32 %v5812, 0.100097656
        %v5877 = vmul.f32 %v5813, 0.100097656
        %v5878 = vmul.f32 %v5814, 0.100097656
        %v5879 = vmul.f32 %v5815, 0.100097656
        %v5880 = vmul.f32 %v5816, 0.100097656
        %v5881 = vmul.f32 %v5817, 0.100097656
        %v5882 = vmul.f32 %v5818, 0.100097656
        %v5883 = vmul.f32 %v5819, 0.100097656
        %v5884 = vmul.f32 %v5820, 0.100097656
        %v5885 = vmul.f32 %v5821, 0.100097656
        %v5886 = vmul.f32 %v5822, 0.100097656
        %v5887 = vmul.f32 %v5823, 0.100097656
        %v5888 = vmul.f32 %v5824, 0.100097656
        %v5889 = vmul.f32 %v5825, 0.100097656
        %v5890 = vmul.f32 %v5826, 0.100097656
        %v5891 = vmul.f32 %v5827, 0.100097656
        %v5892 = vmul.f32 %v5828, 0.100097656
        %v5893 = vmul.f32 %v5829, 0.100097656
        %v5894 = vmul.f32 %v5830, 0.100097656
        %v5895 = vmul.f32 %v5831, 0.100097656
        %v5896 = vmul.f32 %v5832, 0.100097656
        %v5897 = vmul.f32 %v5833, 0.100097656
        %v5898 = vmul.f32 %v5834, 0.100097656
        %v5899 = vmul.f32 %v5835, 0.100097656
        %v5900 = vmul.f32 %v5836, 0.100097656
        %v5901 = vmul.f32 %v5837, 0.100097656
        %v5902 = vmul.f32 %v5838, 0.100097656
        %v5903 = vmul.f32 %v5839, 0.100097656
        %v5904 = vmul.f32 %v5840, 0.100097656
        %v5905 = vmul.f32 %v5841, 0.100097656
        %v5906 = vmul.f32 %v5842, 0.100097656
        %v5907 = vmul.f32 %v5843, 0.100097656
        %v5908 = vmul.f32 %v5844, 0.100097656
        %v5909 = vmul.f32 %v5845, 0.100097656
        %v5910 = vmul.f32 %v5846, 0.100097656
        %v5911 = vmul.f32 %v5847, 0.100097656
        %v5912 = vmul.f32 %v5848, 0.100097656
        %v5913 = vmul.f32 %v5849, 0.100097656
        %v5914 = vmul.f32 %v5850, 0.100097656
        %v5915 = vmul.f32 %v5851, 0.100097656
        %v5916 = vmul.f32 %v5852, 0.100097656
        %v5917 = vmul.f32 %v5853, 0.100097656
        %v5918 = vmul.f32 %v5854, 0.100097656
        %v5919 = vmul.f32 %v5855, 0.100097656
        %v5920 = vmul.f32 %v5856, 0.100097656
        %v5921 = vmul.f32 %v5857, 0.100097656
        %v5922 = vmul.f32 %v5858, 0.100097656
        %v5923 = vmul.f32 %v5859, 0.100097656
        %v5924 = vmul.f32 %v5860, 0.100097656
        %v5925 = vmul.f32 %v5861, 0.100097656
        %v5926 = vmul.f32 %v5862, 0.100097656
        %v5927 = vmul.f32 %v5863, 0.100097656
        %v5928 = vmul.f32 %v5864, 0.100097656
        %v5929 = vmul.f32 %v5865, 0.100097656
        %v5930 = vmul.f32 %v5866, 0.100097656
        %v5931 = vmul.f32 %v5867, 0.100097656
        %v5932 = vmul.f32 %v5868, 0.100097656
        %v5933 = vmul.f32 %v5869, 0.100097656
        %v5934 = vmul.f32 %v5870, 0.100097656
        %v5935 = vmul.f32 %v5871, 0.100097656
        %v5936 = vpack.c.bf16 %v5873, %v5872
        %v5937 = vpack.c.bf16 %v5875, %v5874
        %v5938 = vpack.c.bf16 %v5877, %v5876
        %v5939 = vpack.c.bf16 %v5879, %v5878
        %v5940 = vpack.c.bf16 %v5881, %v5880
        %v5941 = vpack.c.bf16 %v5883, %v5882
        %v5942 = vpack.c.bf16 %v5885, %v5884
        %v5943 = vpack.c.bf16 %v5887, %v5886
        %v5944 = vpack.c.bf16 %v5889, %v5888
        %v5945 = vpack.c.bf16 %v5891, %v5890
        %v5946 = vpack.c.bf16 %v5893, %v5892
        %v5947 = vpack.c.bf16 %v5895, %v5894
        %v5948 = vpack.c.bf16 %v5897, %v5896
        %v5949 = vpack.c.bf16 %v5899, %v5898
        %v5950 = vpack.c.bf16 %v5901, %v5900
        %v5951 = vpack.c.bf16 %v5903, %v5902
        %v5952 = vpack.c.bf16 %v5905, %v5904
        %v5953 = vpack.c.bf16 %v5907, %v5906
        %v5954 = vpack.c.bf16 %v5909, %v5908
        %v5955 = vpack.c.bf16 %v5911, %v5910
        %v5956 = vpack.c.bf16 %v5913, %v5912
        %v5957 = vpack.c.bf16 %v5915, %v5914
        %v5958 = vpack.c.bf16 %v5917, %v5916
        %v5959 = vpack.c.bf16 %v5919, %v5918
        %v5960 = vpack.c.bf16 %v5921, %v5920
        %v5961 = vpack.c.bf16 %v5923, %v5922
        %v5962 = vpack.c.bf16 %v5925, %v5924
        %v5963 = vpack.c.bf16 %v5927, %v5926
        %v5964 = vpack.c.bf16 %v5929, %v5928
        %v5965 = vpack.c.bf16 %v5931, %v5930
        %v5966 = vpack.c.bf16 %v5933, %v5932
        %v5967 = vpack.c.bf16 %v5935, %v5934
        %v5968 = vunpack.c.l.bf16 %v5936
        %v5969 = vunpack.c.h.bf16 %v5936
        %v5970 = vunpack.c.l.bf16 %v5937
        %v5971 = vunpack.c.h.bf16 %v5937
        %v5972 = vunpack.c.l.bf16 %v5938
        %v5973 = vunpack.c.h.bf16 %v5938
        %v5974 = vunpack.c.l.bf16 %v5939
        %v5975 = vunpack.c.h.bf16 %v5939
        %v5976 = vunpack.c.l.bf16 %v5940
        %v5977 = vunpack.c.h.bf16 %v5940
        %v5978 = vunpack.c.l.bf16 %v5941
        %v5979 = vunpack.c.h.bf16 %v5941
        %v5980 = vunpack.c.l.bf16 %v5942
        %v5981 = vunpack.c.h.bf16 %v5942
        %v5982 = vunpack.c.l.bf16 %v5943
        %v5983 = vunpack.c.h.bf16 %v5943
        %v5984 = vunpack.c.l.bf16 %v5944
        %v5985 = vunpack.c.h.bf16 %v5944
        %v5986 = vunpack.c.l.bf16 %v5945
        %v5987 = vunpack.c.h.bf16 %v5945
        %v5988 = vunpack.c.l.bf16 %v5946
        %v5989 = vunpack.c.h.bf16 %v5946
        %v5990 = vunpack.c.l.bf16 %v5947
        %v5991 = vunpack.c.h.bf16 %v5947
        %v5992 = vunpack.c.l.bf16 %v5948
        %v5993 = vunpack.c.h.bf16 %v5948
        %v5994 = vunpack.c.l.bf16 %v5949
        %v5995 = vunpack.c.h.bf16 %v5949
        %v5996 = vunpack.c.l.bf16 %v5950
        %v5997 = vunpack.c.h.bf16 %v5950
        %v5998 = vunpack.c.l.bf16 %v5951
        %v5999 = vunpack.c.h.bf16 %v5951
        %v6000 = vunpack.c.l.bf16 %v5952
        %v6001 = vunpack.c.h.bf16 %v5952
        %v6002 = vunpack.c.l.bf16 %v5953
        %v6003 = vunpack.c.h.bf16 %v5953
        %v6004 = vunpack.c.l.bf16 %v5954
        %v6005 = vunpack.c.h.bf16 %v5954
        %v6006 = vunpack.c.l.bf16 %v5955
        %v6007 = vunpack.c.h.bf16 %v5955
        %v6008 = vunpack.c.l.bf16 %v5956
        %v6009 = vunpack.c.h.bf16 %v5956
        %v6010 = vunpack.c.l.bf16 %v5957
        %v6011 = vunpack.c.h.bf16 %v5957
        %v6012 = vunpack.c.l.bf16 %v5958
        %v6013 = vunpack.c.h.bf16 %v5958
        %v6014 = vunpack.c.l.bf16 %v5959
        %v6015 = vunpack.c.h.bf16 %v5959
        %v6016 = vunpack.c.l.bf16 %v5960
        %v6017 = vunpack.c.h.bf16 %v5960
        %v6018 = vunpack.c.l.bf16 %v5961
        %v6019 = vunpack.c.h.bf16 %v5961
        %v6020 = vunpack.c.l.bf16 %v5962
        %v6021 = vunpack.c.h.bf16 %v5962
        %v6022 = vunpack.c.l.bf16 %v5963
        %v6023 = vunpack.c.h.bf16 %v5963
        %v6024 = vunpack.c.l.bf16 %v5964
        %v6025 = vunpack.c.h.bf16 %v5964
        %v6026 = vunpack.c.l.bf16 %v5965
        %v6027 = vunpack.c.h.bf16 %v5965
        %v6028 = vunpack.c.l.bf16 %v5966
        %v6029 = vunpack.c.h.bf16 %v5966
        %v6030 = vunpack.c.l.bf16 %v5967
        %v6031 = vunpack.c.h.bf16 %v5967
        %v6032 = vmax.f32 %v5808, %v5968
        %v6033 = vmax.f32 %v5809, %v5969
        %v6034 = vmax.f32 %v5810, %v5970
        %v6035 = vmax.f32 %v5811, %v5971
        %v6036 = vmax.f32 %v5812, %v5972
        %v6037 = vmax.f32 %v5813, %v5973
        %v6038 = vmax.f32 %v5814, %v5974
        %v6039 = vmax.f32 %v5815, %v5975
        %v6040 = vmax.f32 %v5816, %v5976
        %v6041 = vmax.f32 %v5817, %v5977
        %v6042 = vmax.f32 %v5818, %v5978
        %v6043 = vmax.f32 %v5819, %v5979
        %v6044 = vmax.f32 %v5820, %v5980
        %v6045 = vmax.f32 %v5821, %v5981
        %v6046 = vmax.f32 %v5822, %v5982
        %v6047 = vmax.f32 %v5823, %v5983
        %v6048 = vmax.f32 %v5824, %v5984
        %v6049 = vmax.f32 %v5825, %v5985
        %v6050 = vmax.f32 %v5826, %v5986
        %v6051 = vmax.f32 %v5827, %v5987
        %v6052 = vmax.f32 %v5828, %v5988
        %v6053 = vmax.f32 %v5829, %v5989
        %v6054 = vmax.f32 %v5830, %v5990
        %v6055 = vmax.f32 %v5831, %v5991
        %v6056 = vmax.f32 %v5832, %v5992
        %v6057 = vmax.f32 %v5833, %v5993
        %v6058 = vmax.f32 %v5834, %v5994
        %v6059 = vmax.f32 %v5835, %v5995
        %v6060 = vmax.f32 %v5836, %v5996
        %v6061 = vmax.f32 %v5837, %v5997
        %v6062 = vmax.f32 %v5838, %v5998
        %v6063 = vmax.f32 %v5839, %v5999
        %v6064 = vmax.f32 %v5840, %v6000
        %v6065 = vmax.f32 %v5841, %v6001
        %v6066 = vmax.f32 %v5842, %v6002
        %v6067 = vmax.f32 %v5843, %v6003
        %v6068 = vmax.f32 %v5844, %v6004
        %v6069 = vmax.f32 %v5845, %v6005
        %v6070 = vmax.f32 %v5846, %v6006
        %v6071 = vmax.f32 %v5847, %v6007
        %v6072 = vmax.f32 %v5848, %v6008
        %v6073 = vmax.f32 %v5849, %v6009
        %v6074 = vmax.f32 %v5850, %v6010
        %v6075 = vmax.f32 %v5851, %v6011
        %v6076 = vmax.f32 %v5852, %v6012
        %v6077 = vmax.f32 %v5853, %v6013
        %v6078 = vmax.f32 %v5854, %v6014
        %v6079 = vmax.f32 %v5855, %v6015
        %v6080 = vmax.f32 %v5856, %v6016
        %v6081 = vmax.f32 %v5857, %v6017
        %v6082 = vmax.f32 %v5858, %v6018
        %v6083 = vmax.f32 %v5859, %v6019
        %v6084 = vmax.f32 %v5860, %v6020
        %v6085 = vmax.f32 %v5861, %v6021
        %v6086 = vmax.f32 %v5862, %v6022
        %v6087 = vmax.f32 %v5863, %v6023
        %v6088 = vmax.f32 %v5864, %v6024
        %v6089 = vmax.f32 %v5865, %v6025
        %v6090 = vmax.f32 %v5866, %v6026
        %v6091 = vmax.f32 %v5867, %v6027
        %v6092 = vmax.f32 %v5868, %v6028
        %v6093 = vmax.f32 %v5869, %v6029
        %v6094 = vmax.f32 %v5870, %v6030
        %v6095 = vmax.f32 %v5871, %v6031
        %v6096 = vpack.c.bf16 %v6034, %v6032
        %v6097 = vpack.c.bf16 %v6035, %v6033
        %v6098 = vpack.c.bf16 %v6038, %v6036
        %v6099 = vpack.c.bf16 %v6039, %v6037
        %v6100 = vpack.c.bf16 %v6042, %v6040
        %v6101 = vpack.c.bf16 %v6043, %v6041
        %v6102 = vpack.c.bf16 %v6046, %v6044
        %v6103 = vpack.c.bf16 %v6047, %v6045
        %v6104 = vpack.c.bf16 %v6050, %v6048
        %v6105 = vpack.c.bf16 %v6051, %v6049
        %v6106 = vpack.c.bf16 %v6054, %v6052
        %v6107 = vpack.c.bf16 %v6055, %v6053
        %v6108 = vpack.c.bf16 %v6058, %v6056
        %v6109 = vpack.c.bf16 %v6059, %v6057
        %v6110 = vpack.c.bf16 %v6062, %v6060
        %v6111 = vpack.c.bf16 %v6063, %v6061
        %v6112 = vpack.c.bf16 %v6066, %v6064
        %v6113 = vpack.c.bf16 %v6067, %v6065
        %v6114 = vpack.c.bf16 %v6070, %v6068
        %v6115 = vpack.c.bf16 %v6071, %v6069
        %v6116 = vpack.c.bf16 %v6074, %v6072
        %v6117 = vpack.c.bf16 %v6075, %v6073
        %v6118 = vpack.c.bf16 %v6078, %v6076
        %v6119 = vpack.c.bf16 %v6079, %v6077
        %v6120 = vpack.c.bf16 %v6082, %v6080
        %v6121 = vpack.c.bf16 %v6083, %v6081
        %v6122 = vpack.c.bf16 %v6086, %v6084
        %v6123 = vpack.c.bf16 %v6087, %v6085
        %v6124 = vpack.c.bf16 %v6090, %v6088
        %v6125 = vpack.c.bf16 %v6091, %v6089
        %v6126 = vpack.c.bf16 %v6094, %v6092
        %v6127 = vpack.c.bf16 %v6095, %v6093
        %v6128 = vld [vmem:[#allocation13] sm:$0xf]
        %v6129 = vld [vmem:[#allocation13 + $0x4] sm:$0xf]
        %v6130 = vld [vmem:[#allocation13 + $0x8] sm:$0xf]
        %v6131 = vld [vmem:[#allocation13 + $0xc] sm:$0xf]
        %v6132 = vld [vmem:[#allocation13 + $0x10] sm:$0xf]
        %v6133 = vld [vmem:[#allocation13 + $0x14] sm:$0xf]
        %v6134 = vld [vmem:[#allocation13 + $0x18] sm:$0xf]
        %v6135 = vld [vmem:[#allocation13 + $0x1c] sm:$0xf]
        %v6136 = vld [vmem:[#allocation13 + $0x20] sm:$0xf]
        %v6137 = vld [vmem:[#allocation13 + $0x24] sm:$0xf]
        %v6138 = vld [vmem:[#allocation13 + $0x28] sm:$0xf]
        %v6139 = vld [vmem:[#allocation13 + $0x2c] sm:$0xf]
        %v6140 = vld [vmem:[#allocation13 + $0x30] sm:$0xf]
        %v6141 = vld [vmem:[#allocation13 + $0x34] sm:$0xf]
        %v6142 = vld [vmem:[#allocation13 + $0x38] sm:$0xf]
        %v6143 = vld [vmem:[#allocation13 + $0x3c] sm:$0xf]
        %v6144 = vld [vmem:[#allocation13 + $0x40] sm:$0xf]
        %v6145 = vld [vmem:[#allocation13 + $0x44] sm:$0xf]
        %v6146 = vld [vmem:[#allocation13 + $0x48] sm:$0xf]
        %v6147 = vld [vmem:[#allocation13 + $0x4c] sm:$0xf]
        %v6148 = vld [vmem:[#allocation13 + $0x50] sm:$0xf]
        %v6149 = vld [vmem:[#allocation13 + $0x54] sm:$0xf]
        %v6150 = vld [vmem:[#allocation13 + $0x58] sm:$0xf]
        %v6151 = vld [vmem:[#allocation13 + $0x5c] sm:$0xf]
        %v6152 = vld [vmem:[#allocation13 + $0x60] sm:$0xf]
        %v6153 = vld [vmem:[#allocation13 + $0x64] sm:$0xf]
        %v6154 = vld [vmem:[#allocation13 + $0x68] sm:$0xf]
        %v6155 = vld [vmem:[#allocation13 + $0x6c] sm:$0xf]
        %v6156 = vld [vmem:[#allocation13 + $0x70] sm:$0xf]
        %v6157 = vld [vmem:[#allocation13 + $0x74] sm:$0xf]
        %v6158 = vld [vmem:[#allocation13 + $0x78] sm:$0xf]
        %v6159 = vld [vmem:[#allocation13 + $0x7c] sm:$0xf]
        %v6160 = vld [vmem:[%s18] sm:$0x1]
        %v6162 = vperm.slane %v6160, 0
        %v6196 = vunpack.c.l.b16 %v6128
        %v6197 = vunpack.c.l.b16 %v6129
        %v6198 = vunpack.c.l.b16 %v6130
        %v6199 = vunpack.c.l.b16 %v6131
        %v6200 = vunpack.c.l.b16 %v6132
        %v6201 = vunpack.c.l.b16 %v6133
        %v6202 = vunpack.c.l.b16 %v6134
        %v6203 = vunpack.c.l.b16 %v6135
        %v6204 = vunpack.c.l.b16 %v6136
        %v6205 = vunpack.c.l.b16 %v6137
        %v6206 = vunpack.c.l.b16 %v6138
        %v6207 = vunpack.c.l.b16 %v6139
        %v6208 = vunpack.c.l.b16 %v6140
        %v6209 = vunpack.c.l.b16 %v6141
        %v6210 = vunpack.c.l.b16 %v6142
        %v6211 = vunpack.c.l.b16 %v6143
        %v6212 = vunpack.c.l.b16 %v6144
        %v6213 = vunpack.c.l.b16 %v6145
        %v6214 = vunpack.c.l.b16 %v6146
        %v6215 = vunpack.c.l.b16 %v6147
        %v6216 = vunpack.c.l.b16 %v6148
        %v6217 = vunpack.c.l.b16 %v6149
        %v6218 = vunpack.c.l.b16 %v6150
        %v6219 = vunpack.c.l.b16 %v6151
        %v6220 = vunpack.c.l.b16 %v6152
        %v6221 = vunpack.c.l.b16 %v6153
        %v6222 = vunpack.c.l.b16 %v6154
        %v6223 = vunpack.c.l.b16 %v6155
        %v6224 = vunpack.c.l.b16 %v6156
        %v6225 = vunpack.c.l.b16 %v6157
        %v6226 = vunpack.c.l.b16 %v6158
        %v6227 = vunpack.c.l.b16 %v6159
        %v6228 = vpack.c.b16 %v6197, %v6196
        %v6229 = vpack.c.b16 %v6199, %v6198
        %v6230 = vpack.c.b16 %v6201, %v6200
        %v6231 = vpack.c.b16 %v6203, %v6202
        %v6232 = vpack.c.b16 %v6205, %v6204
        %v6233 = vpack.c.b16 %v6207, %v6206
        %v6234 = vpack.c.b16 %v6209, %v6208
        %v6235 = vpack.c.b16 %v6211, %v6210
        %v6236 = vpack.c.b16 %v6213, %v6212
        %v6237 = vpack.c.b16 %v6215, %v6214
        %v6238 = vpack.c.b16 %v6217, %v6216
        %v6239 = vpack.c.b16 %v6219, %v6218
        %v6240 = vpack.c.b16 %v6221, %v6220
        %v6241 = vpack.c.b16 %v6223, %v6222
        %v6242 = vpack.c.b16 %v6225, %v6224
        %v6243 = vpack.c.b16 %v6227, %v6226
        %6260 = vmatpush.bf16.msra.mxu0 %v6235
        %6261 = vmatpush.bf16.msra.mxu0 %v6234
        %6262 = vmatpush.bf16.msra.mxu0 %v6233
        %6263 = vmatpush.bf16.msra.mxu0 %v6232
        %6264 = vmatpush.bf16.msra.mxu0 %v6231
        %6265 = vmatpush.bf16.msra.mxu0 %v6230
        %6266 = vmatpush.bf16.msra.mxu0 %v6229
        %6267 = vmatpush.bf16.msra.mxu0 %v6228
        %6268 = vmatmul.bf16.gmra.mxu0 %v6096
        %v6269 = vpop.f32.mrf.mxu0
        %v6270 = vadd.f32 %v6162, %v6269
        %v6271 = vpop.f32.mrf.mxu0
        %v6272 = vadd.f32 %v6162, %v6271
        %6273 = vmatmul.bf16.gmra.mxu0 %v6098
        %v6274 = vpop.f32.mrf.mxu0
        %v6275 = vadd.f32 %v6162, %v6274
        %v6276 = vpop.f32.mrf.mxu0
        %v6277 = vadd.f32 %v6162, %v6276
        %6278 = vmatmul.bf16.gmra.mxu0 %v6100
        %v6279 = vpop.f32.mrf.mxu0
        %v6280 = vadd.f32 %v6162, %v6279
        %v6281 = vpop.f32.mrf.mxu0
        %v6282 = vadd.f32 %v6162, %v6281
        %6283 = vmatmul.bf16.gmra.mxu0 %v6102
        %v6284 = vpop.f32.mrf.mxu0
        %v6285 = vadd.f32 %v6162, %v6284
        %v6286 = vpop.f32.mrf.mxu0
        %v6287 = vadd.f32 %v6162, %v6286
        %6288 = vmatmul.bf16.gmra.mxu0 %v6104
        %v6289 = vpop.f32.mrf.mxu0
        %v6290 = vadd.f32 %v6162, %v6289
        %v6291 = vpop.f32.mrf.mxu0
        %v6292 = vadd.f32 %v6162, %v6291
        %6293 = vmatmul.bf16.gmra.mxu0 %v6106
        %v6294 = vpop.f32.mrf.mxu0
        %v6295 = vadd.f32 %v6162, %v6294
        %v6296 = vpop.f32.mrf.mxu0
        %v6297 = vadd.f32 %v6162, %v6296
        %6298 = vmatmul.bf16.gmra.mxu0 %v6108
        %v6299 = vpop.f32.mrf.mxu0
        %v6300 = vadd.f32 %v6162, %v6299
        %v6301 = vpop.f32.mrf.mxu0
        %v6302 = vadd.f32 %v6162, %v6301
        %6303 = vmatmul.bf16.gmra.mxu0 %v6110
        %v6304 = vpop.f32.mrf.mxu0
        %v6305 = vadd.f32 %v6162, %v6304
        %v6306 = vpop.f32.mrf.mxu0
        %v6307 = vadd.f32 %v6162, %v6306
        %6308 = vmatmul.bf16.gmra.mxu0 %v6112
        %v6309 = vpop.f32.mrf.mxu0
        %v6310 = vadd.f32 %v6162, %v6309
        %v6311 = vpop.f32.mrf.mxu0
        %v6312 = vadd.f32 %v6162, %v6311
        %6313 = vmatmul.bf16.gmra.mxu0 %v6114
        %v6314 = vpop.f32.mrf.mxu0
        %v6315 = vadd.f32 %v6162, %v6314
        %v6316 = vpop.f32.mrf.mxu0
        %v6317 = vadd.f32 %v6162, %v6316
        %6318 = vmatmul.bf16.gmra.mxu0 %v6116
        %v6319 = vpop.f32.mrf.mxu0
        %v6320 = vadd.f32 %v6162, %v6319
        %v6321 = vpop.f32.mrf.mxu0
        %v6322 = vadd.f32 %v6162, %v6321
        %6323 = vmatmul.bf16.gmra.mxu0 %v6118
        %v6324 = vpop.f32.mrf.mxu0
        %v6325 = vadd.f32 %v6162, %v6324
        %v6326 = vpop.f32.mrf.mxu0
        %v6327 = vadd.f32 %v6162, %v6326
        %6328 = vmatmul.bf16.gmra.mxu0 %v6120
        %v6329 = vpop.f32.mrf.mxu0
        %v6330 = vadd.f32 %v6162, %v6329
        %v6331 = vpop.f32.mrf.mxu0
        %v6332 = vadd.f32 %v6162, %v6331
        %6333 = vmatmul.bf16.gmra.mxu0 %v6122
        %v6334 = vpop.f32.mrf.mxu0
        %v6335 = vadd.f32 %v6162, %v6334
        %v6336 = vpop.f32.mrf.mxu0
        %v6337 = vadd.f32 %v6162, %v6336
        %6338 = vmatmul.bf16.gmra.mxu0 %v6124
        %v6339 = vpop.f32.mrf.mxu0
        %v6340 = vadd.f32 %v6162, %v6339
        %v6341 = vpop.f32.mrf.mxu0
        %v6342 = vadd.f32 %v6162, %v6341
        %6343 = vmatmul.bf16.gmra.mxu0 %v6126
        %v6344 = vpop.f32.mrf.mxu0
        %v6345 = vadd.f32 %v6162, %v6344
        %v6346 = vpop.f32.mrf.mxu0
        %v6347 = vadd.f32 %v6162, %v6346
        %6348 = vdwg.mxu0
        %6349 = vmatpush.bf16.msra.mxu0 %v6243
        %6350 = vmatpush.bf16.msra.mxu0 %v6242
        %6351 = vmatpush.bf16.msra.mxu0 %v6241
        %6352 = vmatpush.bf16.msra.mxu0 %v6240
        %6353 = vmatpush.bf16.msra.mxu0 %v6239
        %6354 = vmatpush.bf16.msra.mxu0 %v6238
        %6355 = vmatpush.bf16.msra.mxu0 %v6237
        %6356 = vmatpush.bf16.msra.mxu0 %v6236
        %6357 = vmatmul.bf16.gmra.mxu0 %v6097
        %v6358 = vpop.f32.mrf.mxu0
        %v6359 = vadd.f32 %v6270, %v6358
        %v6360 = vpop.f32.mrf.mxu0
        %v6361 = vadd.f32 %v6272, %v6360
        %6362 = vmatmul.bf16.gmra.mxu0 %v6099
        %v6363 = vpop.f32.mrf.mxu0
        %v6364 = vadd.f32 %v6275, %v6363
        %v6365 = vpop.f32.mrf.mxu0
        %v6366 = vadd.f32 %v6277, %v6365
        %6367 = vmatmul.bf16.gmra.mxu0 %v6101
        %v6368 = vpop.f32.mrf.mxu0
        %v6369 = vadd.f32 %v6280, %v6368
        %v6370 = vpop.f32.mrf.mxu0
        %v6371 = vadd.f32 %v6282, %v6370
        %6372 = vmatmul.bf16.gmra.mxu0 %v6103
        %v6373 = vpop.f32.mrf.mxu0
        %v6374 = vadd.f32 %v6285, %v6373
        %v6375 = vpop.f32.mrf.mxu0
        %v6376 = vadd.f32 %v6287, %v6375
        %6377 = vmatmul.bf16.gmra.mxu0 %v6105
        %v6378 = vpop.f32.mrf.mxu0
        %v6379 = vadd.f32 %v6290, %v6378
        %v6380 = vpop.f32.mrf.mxu0
        %v6381 = vadd.f32 %v6292, %v6380
        %6382 = vmatmul.bf16.gmra.mxu0 %v6107
        %v6383 = vpop.f32.mrf.mxu0
        %v6384 = vadd.f32 %v6295, %v6383
        %v6385 = vpop.f32.mrf.mxu0
        %v6386 = vadd.f32 %v6297, %v6385
        %6387 = vmatmul.bf16.gmra.mxu0 %v6109
        %v6388 = vpop.f32.mrf.mxu0
        %v6389 = vadd.f32 %v6300, %v6388
        %v6390 = vpop.f32.mrf.mxu0
        %v6391 = vadd.f32 %v6302, %v6390
        %6392 = vmatmul.bf16.gmra.mxu0 %v6111
        %v6393 = vpop.f32.mrf.mxu0
        %v6394 = vadd.f32 %v6305, %v6393
        %v6395 = vpop.f32.mrf.mxu0
        %v6396 = vadd.f32 %v6307, %v6395
        %6397 = vmatmul.bf16.gmra.mxu0 %v6113
        %v6398 = vpop.f32.mrf.mxu0
        %v6399 = vadd.f32 %v6310, %v6398
        %v6400 = vpop.f32.mrf.mxu0
        %v6401 = vadd.f32 %v6312, %v6400
        %6402 = vmatmul.bf16.gmra.mxu0 %v6115
        %v6403 = vpop.f32.mrf.mxu0
        %v6404 = vadd.f32 %v6315, %v6403
        %v6405 = vpop.f32.mrf.mxu0
        %v6406 = vadd.f32 %v6317, %v6405
        %6407 = vmatmul.bf16.gmra.mxu0 %v6117
        %v6408 = vpop.f32.mrf.mxu0
        %v6409 = vadd.f32 %v6320, %v6408
        %v6410 = vpop.f32.mrf.mxu0
        %v6411 = vadd.f32 %v6322, %v6410
        %6412 = vmatmul.bf16.gmra.mxu0 %v6119
        %v6413 = vpop.f32.mrf.mxu0
        %v6414 = vadd.f32 %v6325, %v6413
        %v6415 = vpop.f32.mrf.mxu0
        %v6416 = vadd.f32 %v6327, %v6415
        %6417 = vmatmul.bf16.gmra.mxu0 %v6121
        %v6418 = vpop.f32.mrf.mxu0
        %v6419 = vadd.f32 %v6330, %v6418
        %v6420 = vpop.f32.mrf.mxu0
        %v6421 = vadd.f32 %v6332, %v6420
        %6422 = vmatmul.bf16.gmra.mxu0 %v6123
        %v6423 = vpop.f32.mrf.mxu0
        %v6424 = vadd.f32 %v6335, %v6423
        %v6425 = vpop.f32.mrf.mxu0
        %v6426 = vadd.f32 %v6337, %v6425
        %6427 = vmatmul.bf16.gmra.mxu0 %v6125
        %v6428 = vpop.f32.mrf.mxu0
        %v6429 = vadd.f32 %v6340, %v6428
        %v6430 = vpop.f32.mrf.mxu0
        %v6431 = vadd.f32 %v6342, %v6430
        %6432 = vmatmul.bf16.gmra.mxu0 %v6127
        %v6433 = vpop.f32.mrf.mxu0
        %v6434 = vadd.f32 %v6345, %v6433
        %v6435 = vpop.f32.mrf.mxu0
        %v6436 = vadd.f32 %v6347, %v6435
        %6437 = vdwg.mxu0
        %v6438 = vpack.c.bf16 %v6359, %v6359
        %v6439 = vpack.c.bf16 %v6361, %v6361
        %v6440 = vpack.c.bf16 %v6364, %v6364
        %v6441 = vpack.c.bf16 %v6366, %v6366
        %v6442 = vpack.c.bf16 %v6369, %v6369
        %v6443 = vpack.c.bf16 %v6371, %v6371
        %v6444 = vpack.c.bf16 %v6374, %v6374
        %v6445 = vpack.c.bf16 %v6376, %v6376
        %v6446 = vpack.c.bf16 %v6379, %v6379
        %v6447 = vpack.c.bf16 %v6381, %v6381
        %v6448 = vpack.c.bf16 %v6384, %v6384
        %v6449 = vpack.c.bf16 %v6386, %v6386
        %v6450 = vpack.c.bf16 %v6389, %v6389
        %v6451 = vpack.c.bf16 %v6391, %v6391
        %v6452 = vpack.c.bf16 %v6394, %v6394
        %v6453 = vpack.c.bf16 %v6396, %v6396
        %v6454 = vpack.c.bf16 %v6399, %v6399
        %v6455 = vpack.c.bf16 %v6401, %v6401
        %v6456 = vpack.c.bf16 %v6404, %v6404
        %v6457 = vpack.c.bf16 %v6406, %v6406
        %v6458 = vpack.c.bf16 %v6409, %v6409
        %v6459 = vpack.c.bf16 %v6411, %v6411
        %v6460 = vpack.c.bf16 %v6414, %v6414
        %v6461 = vpack.c.bf16 %v6416, %v6416
        %v6462 = vpack.c.bf16 %v6419, %v6419
        %v6463 = vpack.c.bf16 %v6421, %v6421
        %v6464 = vpack.c.bf16 %v6424, %v6424
        %v6465 = vpack.c.bf16 %v6426, %v6426
        %v6466 = vpack.c.bf16 %v6429, %v6429
        %v6467 = vpack.c.bf16 %v6431, %v6431
        %v6468 = vpack.c.bf16 %v6434, %v6434
        %v6469 = vpack.c.bf16 %v6436, %v6436
        %v6470 = vunpack.c.l.bf16 %v4622
        %v6471 = vunpack.c.l.bf16 %v4623
        %v6472 = vunpack.c.l.bf16 %v4624
        %v6473 = vunpack.c.l.bf16 %v4625
        %v6474 = vunpack.c.l.bf16 %v4626
        %v6475 = vunpack.c.l.bf16 %v4627
        %v6476 = vunpack.c.l.bf16 %v4628
        %v6477 = vunpack.c.l.bf16 %v4629
        %v6478 = vunpack.c.l.bf16 %v4630
        %v6479 = vunpack.c.l.bf16 %v4631
        %v6480 = vunpack.c.l.bf16 %v4632
        %v6481 = vunpack.c.l.bf16 %v4633
        %v6482 = vunpack.c.l.bf16 %v4634
        %v6483 = vunpack.c.l.bf16 %v4635
        %v6484 = vunpack.c.l.bf16 %v4636
        %v6485 = vunpack.c.l.bf16 %v4637
        %v6486 = vunpack.c.l.bf16 %v4638
        %v6487 = vunpack.c.l.bf16 %v4639
        %v6488 = vunpack.c.l.bf16 %v4640
        %v6489 = vunpack.c.l.bf16 %v4641
        %v6490 = vunpack.c.l.bf16 %v4642
        %v6491 = vunpack.c.l.bf16 %v4643
        %v6492 = vunpack.c.l.bf16 %v4644
        %v6493 = vunpack.c.l.bf16 %v4645
        %v6494 = vunpack.c.l.bf16 %v4646
        %v6495 = vunpack.c.l.bf16 %v4647
        %v6496 = vunpack.c.l.bf16 %v4648
        %v6497 = vunpack.c.l.bf16 %v4649
        %v6498 = vunpack.c.l.bf16 %v4650
        %v6499 = vunpack.c.l.bf16 %v4651
        %v6500 = vunpack.c.l.bf16 %v4652
        %v6501 = vunpack.c.l.bf16 %v4653
        %v6502 = vunpack.c.l.bf16 %v6438
        %v6503 = vunpack.c.l.bf16 %v6439
        %v6504 = vunpack.c.l.bf16 %v6440
        %v6505 = vunpack.c.l.bf16 %v6441
        %v6506 = vunpack.c.l.bf16 %v6442
        %v6507 = vunpack.c.l.bf16 %v6443
        %v6508 = vunpack.c.l.bf16 %v6444
        %v6509 = vunpack.c.l.bf16 %v6445
        %v6510 = vunpack.c.l.bf16 %v6446
        %v6511 = vunpack.c.l.bf16 %v6447
        %v6512 = vunpack.c.l.bf16 %v6448
        %v6513 = vunpack.c.l.bf16 %v6449
        %v6514 = vunpack.c.l.bf16 %v6450
        %v6515 = vunpack.c.l.bf16 %v6451
        %v6516 = vunpack.c.l.bf16 %v6452
        %v6517 = vunpack.c.l.bf16 %v6453
        %v6518 = vunpack.c.l.bf16 %v6454
        %v6519 = vunpack.c.l.bf16 %v6455
        %v6520 = vunpack.c.l.bf16 %v6456
        %v6521 = vunpack.c.l.bf16 %v6457
        %v6522 = vunpack.c.l.bf16 %v6458
        %v6523 = vunpack.c.l.bf16 %v6459
        %v6524 = vunpack.c.l.bf16 %v6460
        %v6525 = vunpack.c.l.bf16 %v6461
        %v6526 = vunpack.c.l.bf16 %v6462
        %v6527 = vunpack.c.l.bf16 %v6463
        %v6528 = vunpack.c.l.bf16 %v6464
        %v6529 = vunpack.c.l.bf16 %v6465
        %v6530 = vunpack.c.l.bf16 %v6466
        %v6531 = vunpack.c.l.bf16 %v6467
        %v6532 = vunpack.c.l.bf16 %v6468
        %v6533 = vunpack.c.l.bf16 %v6469
        %v6534 = vadd.f32 %v6470, %v6502
        %v6535 = vadd.f32 %v6471, %v6503
        %v6536 = vadd.f32 %v6472, %v6504
        %v6537 = vadd.f32 %v6473, %v6505
        %v6538 = vadd.f32 %v6474, %v6506
        %v6539 = vadd.f32 %v6475, %v6507
        %v6540 = vadd.f32 %v6476, %v6508
        %v6541 = vadd.f32 %v6477, %v6509
        %v6542 = vadd.f32 %v6478, %v6510
        %v6543 = vadd.f32 %v6479, %v6511
        %v6544 = vadd.f32 %v6480, %v6512
        %v6545 = vadd.f32 %v6481, %v6513
        %v6546 = vadd.f32 %v6482, %v6514
        %v6547 = vadd.f32 %v6483, %v6515
        %v6548 = vadd.f32 %v6484, %v6516
        %v6549 = vadd.f32 %v6485, %v6517
        %v6550 = vadd.f32 %v6486, %v6518
        %v6551 = vadd.f32 %v6487, %v6519
        %v6552 = vadd.f32 %v6488, %v6520
        %v6553 = vadd.f32 %v6489, %v6521
        %v6554 = vadd.f32 %v6490, %v6522
        %v6555 = vadd.f32 %v6491, %v6523
        %v6556 = vadd.f32 %v6492, %v6524
        %v6557 = vadd.f32 %v6493, %v6525
        %v6558 = vadd.f32 %v6494, %v6526
        %v6559 = vadd.f32 %v6495, %v6527
        %v6560 = vadd.f32 %v6496, %v6528
        %v6561 = vadd.f32 %v6497, %v6529
        %v6562 = vadd.f32 %v6498, %v6530
        %v6563 = vadd.f32 %v6499, %v6531
        %v6564 = vadd.f32 %v6500, %v6532
        %v6565 = vadd.f32 %v6501, %v6533
        %v6566 = vpack.c.bf16 %v6534, %v6534
        %v6567 = vpack.c.bf16 %v6535, %v6535
        %v6568 = vpack.c.bf16 %v6536, %v6536
        %v6569 = vpack.c.bf16 %v6537, %v6537
        %v6570 = vpack.c.bf16 %v6538, %v6538
        %v6571 = vpack.c.bf16 %v6539, %v6539
        %v6572 = vpack.c.bf16 %v6540, %v6540
        %v6573 = vpack.c.bf16 %v6541, %v6541
        %v6574 = vpack.c.bf16 %v6542, %v6542
        %v6575 = vpack.c.bf16 %v6543, %v6543
        %v6576 = vpack.c.bf16 %v6544, %v6544
        %v6577 = vpack.c.bf16 %v6545, %v6545
        %v6578 = vpack.c.bf16 %v6546, %v6546
        %v6579 = vpack.c.bf16 %v6547, %v6547
        %v6580 = vpack.c.bf16 %v6548, %v6548
        %v6581 = vpack.c.bf16 %v6549, %v6549
        %v6582 = vpack.c.bf16 %v6550, %v6550
        %v6583 = vpack.c.bf16 %v6551, %v6551
        %v6584 = vpack.c.bf16 %v6552, %v6552
        %v6585 = vpack.c.bf16 %v6553, %v6553
        %v6586 = vpack.c.bf16 %v6554, %v6554
        %v6587 = vpack.c.bf16 %v6555, %v6555
        %v6588 = vpack.c.bf16 %v6556, %v6556
        %v6589 = vpack.c.bf16 %v6557, %v6557
        %v6590 = vpack.c.bf16 %v6558, %v6558
        %v6591 = vpack.c.bf16 %v6559, %v6559
        %v6592 = vpack.c.bf16 %v6560, %v6560
        %v6593 = vpack.c.bf16 %v6561, %v6561
        %v6594 = vpack.c.bf16 %v6562, %v6562
        %v6595 = vpack.c.bf16 %v6563, %v6563
        %v6596 = vpack.c.bf16 %v6564, %v6564
        %v6597 = vpack.c.bf16 %v6565, %v6565
        %6598 = vst [vmem:[%s717] sm:$0xf] %v6566
        %6599 = vst [vmem:[%s717 + $0x4] sm:$0xf] %v6567
        %6600 = vst [vmem:[%s717 + $0x8] sm:$0xf] %v6568
        %6601 = vst [vmem:[%s717 + $0xc] sm:$0xf] %v6569
        %6602 = vst [vmem:[%s717 + $0x10] sm:$0xf] %v6570
        %6603 = vst [vmem:[%s717 + $0x14] sm:$0xf] %v6571
        %6604 = vst [vmem:[%s717 + $0x18] sm:$0xf] %v6572
        %6605 = vst [vmem:[%s717 + $0x1c] sm:$0xf] %v6573
        %6606 = vst [vmem:[%s717 + $0x20] sm:$0xf] %v6574
        %6607 = vst [vmem:[%s717 + $0x24] sm:$0xf] %v6575
        %6608 = vst [vmem:[%s717 + $0x28] sm:$0xf] %v6576
        %6609 = vst [vmem:[%s717 + $0x2c] sm:$0xf] %v6577
        %6610 = vst [vmem:[%s717 + $0x30] sm:$0xf] %v6578
        %6611 = vst [vmem:[%s717 + $0x34] sm:$0xf] %v6579
        %6612 = vst [vmem:[%s717 + $0x38] sm:$0xf] %v6580
        %6613 = vst [vmem:[%s717 + $0x3c] sm:$0xf] %v6581
        %6614 = vst [vmem:[%s717 + $0x40] sm:$0xf] %v6582
        %6615 = vst [vmem:[%s717 + $0x44] sm:$0xf] %v6583
        %6616 = vst [vmem:[%s717 + $0x48] sm:$0xf] %v6584
        %6617 = vst [vmem:[%s717 + $0x4c] sm:$0xf] %v6585
        %6618 = vst [vmem:[%s717 + $0x50] sm:$0xf] %v6586
        %6619 = vst [vmem:[%s717 + $0x54] sm:$0xf] %v6587
        %6620 = vst [vmem:[%s717 + $0x58] sm:$0xf] %v6588
        %6621 = vst [vmem:[%s717 + $0x5c] sm:$0xf] %v6589
        %6622 = vst [vmem:[%s717 + $0x60] sm:$0xf] %v6590
        %6623 = vst [vmem:[%s717 + $0x64] sm:$0xf] %v6591
        %6624 = vst [vmem:[%s717 + $0x68] sm:$0xf] %v6592
        %6625 = vst [vmem:[%s717 + $0x6c] sm:$0xf] %v6593
        %6626 = vst [vmem:[%s717 + $0x70] sm:$0xf] %v6594
        %6627 = vst [vmem:[%s717 + $0x74] sm:$0xf] %v6595
        %6628 = vst [vmem:[%s717 + $0x78] sm:$0xf] %v6596
        %6629 = vst [vmem:[%s717 + $0x7c] sm:$0xf] %v6597
        %s6630 = sand.u32 %s451, 1
        %s6631 = scalar_lea.sflag [#allocation4], %s6630
        %s6632 = sand.u32 %s451, 1
        %s6633 = smul.addr %s6632, 128
        %s6634 = scalar_lea.vmem [#allocation14], %s6633
        // Predicated region
        $region125: #{_ae_pallas.1} parent=95 // pred_check
          %p6635 = pneg %p461
        $region126: #{_ae_pallas.1} parent=95 // pred_check_branch
          %6637 = sbr.rel (%p6635) target = $region128
        $region127: #{_ae_pallas.1} parent=95 // pred_region
          %s6638 = smul.u32 32, %s39
          %6640 = vsyncadd %s6631, 0
          %s6641 = smul.addr %s6638, 4
          %s6642 = scalar_lea.hbm %s19, %s6641
          %s6643 = sshll.u32 %s6634, 4
          %s6644 = int_to_ptr.vmem [resolvable:$true] %s6643
          %s6645 = sshll.u32 %s6642, 4
          %s6646 = int_to_ptr.hbm [resolvable:$true] %s6645
          %6651 = dma.vmem_to_hbm [thread:$0]  %s6644, 2048, %s6646, %s6631, 64, 64, 4
        $region128: #{_ae_pallas.1} parent=95 // pred_fallthru
          _
      $region96: #{_ae_pallas.1} parent=5 // pred_fallthru
        _
      %p6652 = scmp.le.s32.totalorder 2, %s34
      // Predicated region
      $region129: #{_ae_pallas.1} parent=5 // pred_check
        %p6653 = pneg %p6652
      $region130: #{_ae_pallas.1} parent=5 // pred_check_branch
        %6655 = sbr.rel (%p6653) target = $region132
      $region131: #{_ae_pallas.1} parent=5 // pred_region
        %s6656 = ssub.s32 %s34, 2
        // Predicated region
        $region133: #{_ae_pallas.1} parent=131 // pred_check
          %p6657 = pneg %p467
        $region134: #{_ae_pallas.1} parent=131 // pred_check_branch
          %6659 = sbr.rel (%p6657) target = $region136
        $region135: #{_ae_pallas.1} parent=131 // pred_region
          %s6660 = sand.u32 %s452, 1
          %s6661 = scalar_lea.sflag [#allocation4], %s6660
          %s6662 = sand.u32 %s452, 1
          %s6663 = smul.addr %s6662, 128
          %s6664 = scalar_lea.vmem [#allocation14], %s6663
          %6666 = dma.done %s6661, 2048
        $region136: #{_ae_pallas.1} parent=131 // pred_fallthru
          _
      $region132: #{_ae_pallas.1} parent=5 // pred_fallthru
        _
    $region6: #{_ae_pallas.1} parent=1 // loop_footer
      %s38 = sadd.s32 1, %s34
    $region7: #{_ae_pallas.1} parent=1 // loop_footer_branch
      %33 = sbr.rel target = $region3
    $region8: #{_ae_pallas.1} parent=1 // loop_exit
      _
    %6667 = vsyncpa [#allocation3], 1
    %s6668 = scalar_lea.sflag [#allocation3], 1
    %6669 = vsyncpa %s6668, 1
    %6670 = vsyncpa [#allocation6], 1
    %6671 = vsyncpa [#allocation9], 1
    %6672 = vsyncpa [#allocation12], 1
    %6673 = vsyncpa [#allocation4], 1
    %s6674 = scalar_lea.sflag [#allocation4], 1
    %6675 = vsyncpa %s6674, 1

</llo_original>
